<compile_context>
chip_gen: v7x
topology: tpu7x:2x2x1
jax: 0.10.0
libtpu: 0.0.40
codegen_flags: <defaults>
</compile_context>

<pallas_src>
import math

import jax
import jax.numpy as jnp
from jax.experimental import pallas as pl

# ----------------------- small, module-consistent config -----------------------
SEQ = 8             # caption length
BATCH = 2           # batch size
EMBED = 32          # embedding_size / d_model
HEADS = 4           # num_heads
HEAD_DIM = EMBED // HEADS
LAYERS = 2          # num_decoder_layers
VOCAB = 64          # trg_vocab_size
VOCAB_PAD = 128     # lane-dense output store; sliced back to VOCAB in the wrapper
FFN = 2048          # PyTorch TransformerDecoderLayer default dim_feedforward
LN_EPS = 1e-5       # PyTorch LayerNorm default eps


# ------------------------------- Pallas kernel ---------------------------------
def decoder_kernel(x_ref, mem_ref, mask_ref,
                   qkv_w_ref, qkv_b_ref, sa_out_w_ref, sa_out_b_ref,
                   ca_v_w_ref, ca_v_b_ref, ca_out_w_ref, ca_out_b_ref,
                   ff1_w_ref, ff1_b_ref, ff2_w_ref, ff2_b_ref,
                   ln_w_ref, ln_b_ref, lin_w_ref, lin_b_ref,
                   out_ref):
    B, S, E, H, D = BATCH, SEQ, EMBED, HEADS, HEAD_DIM
    M = B * S
    scale = 1.0 / math.sqrt(D)

    x = x_ref[...]        # [M, E]  f32 activation slab (batch folded into rows, b-major)
    mem = mem_ref[...]    # [B, E]  f32 image features (length-1 memory sequence)
    mask = mask_ref[...]  # [S, S]  causal mask (0 / -inf)

    def layer_norm(v, w, b):
        mu = jnp.mean(v, axis=-1, keepdims=True)
        var = jnp.mean(jnp.square(v - mu), axis=-1, keepdims=True)
        return (v - mu) * jax.lax.rsqrt(var + LN_EPS) * w + b

    def matmul(a, w):     # bf16 MXU feed, f32 accumulation; w is lane-dense [K, N]
        return jnp.dot(a.astype(jnp.bfloat16), w, preferred_element_type=jnp.float32)

    for l in range(LAYERS):                      # static loop over decoder layers
        # ---------------- self-attention block (post-norm) ----------------
        qkv = matmul(x, qkv_w_ref[l]) + qkv_b_ref[l]            # [M, 3E], one MXU push
        head_outs = []
        for h in range(H):     # tiny per-head score/softmax/AV stage (8x8 matmuls
            #                    regardless of batching; only layout-friendly reshapes)
            q = qkv[:, h * D:(h + 1) * D].reshape(B, S, D)
            k = qkv[:, E + h * D:E + (h + 1) * D].reshape(B, S, D)
            v = qkv[:, 2 * E + h * D:2 * E + (h + 1) * D].reshape(B, S, D)
            s = jnp.einsum('bqd,bkd->bqk', q, k,
                           preferred_element_type=jnp.float32) * scale
            s = s + mask[None, :, :]
            s = s - jnp.max(s, axis=-1, keepdims=True)
            p = jnp.exp(s)
            p = p * pl.reciprocal(jnp.sum(p, axis=-1, keepdims=True), approx=True)
            o = jnp.einsum('bqk,bkd->bqd', p, v,
                           preferred_element_type=jnp.float32)
            head_outs.append(o.reshape(M, D))
        attn = jnp.concatenate(head_outs, axis=-1)              # [M, E] head concat
        sa = matmul(attn, sa_out_w_ref[l]) + sa_out_b_ref[l]    # single out-proj matmul
        x = layer_norm(x + sa, ln_w_ref[l, 0], ln_b_ref[l, 0])

        # ---------- cross-attention block with a single memory token ----------
        # softmax over one key is identically 1, so the block reduces to
        # out_proj(V(mem)) broadcast over the sequence (bit-exact rewrite).
        v_mem = matmul(mem, ca_v_w_ref[l]) + ca_v_b_ref[l]      # [B, E]
        ca = matmul(v_mem, ca_out_w_ref[l]) + ca_out_b_ref[l]   # [B, E]
        xb = x.reshape(B, S, E) + ca[:, None, :]                # broadcast over S
        x = layer_norm(xb.reshape(M, E), ln_w_ref[l, 1], ln_b_ref[l, 1])

        # ------------------------ feed-forward block ------------------------
        h1 = matmul(x, ff1_w_ref[l]) + ff1_b_ref[l]             # [M, FFN]
        h1 = jnp.maximum(h1, 0.0)
        ff = matmul(h1, ff2_w_ref[l]) + ff2_b_ref[l]            # [M, E]
        x = layer_norm(x + ff, ln_w_ref[l, 2], ln_b_ref[l, 2])

    # -------- final vocabulary projection (lane-dense 128-wide store) --------
    out_ref[...] = matmul(x, lin_w_ref[...]) + lin_b_ref[...]   # [M, VOCAB_PAD]


# ------------------------------ plain-JAX glue ----------------------------------
def positional_encoding(seq_len, d_model):
    position = jnp.arange(seq_len, dtype=jnp.float32)[:, None]
    div_term = jnp.exp(jnp.arange(0, d_model, 2, dtype=jnp.float32)
                       * (-math.log(10000.0) / d_model))
    pe = jnp.zeros((seq_len, 1, d_model), jnp.float32)
    pe = pe.at[:, 0, 0::2].set(jnp.sin(position * div_term))
    pe = pe.at[:, 0, 1::2].set(jnp.cos(position * div_term))
    return pe


def make_causal_mask(sz):
    upper = jnp.triu(jnp.ones((sz, sz), dtype=bool), k=1)
    return jnp.where(upper, -jnp.inf, 0.0).astype(jnp.float32)


def init_params(key):
    # PyTorch-shaped parameters (as nn.TransformerDecoder holds them).
    ks = jax.random.split(key, 17)
    scale = 0.05

    def nrm(k, shape, s=scale):
        return (s * jax.random.normal(k, shape)).astype(jnp.float32)

    return dict(
        embedding=nrm(ks[0], (VOCAB, EMBED)),
        sa_in_w=nrm(ks[1], (LAYERS, 3 * EMBED, EMBED)),
        sa_in_b=nrm(ks[2], (LAYERS, 3 * EMBED), 0.02),
        sa_out_w=nrm(ks[3], (LAYERS, EMBED, EMBED)),
        sa_out_b=nrm(ks[4], (LAYERS, EMBED), 0.02),
        ca_in_w=nrm(ks[5], (LAYERS, 3 * EMBED, EMBED)),
        ca_in_b=nrm(ks[6], (LAYERS, 3 * EMBED), 0.02),
        ca_out_w=nrm(ks[7], (LAYERS, EMBED, EMBED)),
        ca_out_b=nrm(ks[8], (LAYERS, EMBED), 0.02),
        ff1_w=nrm(ks[9], (LAYERS, FFN, EMBED)),
        ff1_b=nrm(ks[10], (LAYERS, FFN), 0.02),
        ff2_w=nrm(ks[11], (LAYERS, EMBED, FFN)),
        ff2_b=nrm(ks[12], (LAYERS, EMBED), 0.02),
        ln_w=(1.0 + 0.05 * jax.random.normal(ks[13], (LAYERS, 3, EMBED))
              ).astype(jnp.float32),
        ln_b=nrm(ks[14], (LAYERS, 3, EMBED), 0.02),
        lin_w=nrm(ks[15], (VOCAB, EMBED)),
        lin_b=nrm(ks[16], (1, VOCAB), 0.02),
    )


def _prep_kernel_weights(params):
    """Transpose / pad PyTorch-layout weights into contraction-natural [K, N],
    lane-dense kernel layout.  Cheap XLA work on tiny tensors, fused under jit."""
    bf16 = jnp.bfloat16
    E = EMBED
    qkv_w = jnp.transpose(params['sa_in_w'], (0, 2, 1)).astype(bf16)       # [L, E, 3E]
    qkv_b = params['sa_in_b']                                              # [L, 3E] f32
    sa_out_w = jnp.transpose(params['sa_out_w'], (0, 2, 1)).astype(bf16)   # [L, E, E]
    sa_out_b = params['sa_out_b']                                          # [L, E] f32
    # Cross-attention over a length-1 memory only needs the V-projection rows.
    ca_v_w = jnp.transpose(params['ca_in_w'][:, 2 * E:3 * E, :], (0, 2, 1)).astype(bf16)
    ca_v_b = params['ca_in_b'][:, 2 * E:3 * E]
    ca_out_w = jnp.transpose(params['ca_out_w'], (0, 2, 1)).astype(bf16)   # [L, E, E]
    ca_out_b = params['ca_out_b']
    ff1_w = jnp.transpose(params['ff1_w'], (0, 2, 1)).astype(bf16)         # [L, E, FFN]
    ff2_w = jnp.transpose(params['ff2_w'], (0, 2, 1)).astype(bf16)         # [L, FFN, E]
    # Vocab projection padded to 128 lanes (lane-dense output store).
    lin_w = jnp.zeros((E, VOCAB_PAD), bf16)
    lin_w = lin_w.at[:, :VOCAB].set(params['lin_w'].T.astype(bf16))        # [E, 128]
    lin_b = jnp.zeros((1, VOCAB_PAD), jnp.float32)
    lin_b = lin_b.at[:, :VOCAB].set(params['lin_b'])                       # [1, 128]
    return (qkv_w, qkv_b, sa_out_w, sa_out_b,
            ca_v_w, ca_v_b, ca_out_w, ca_out_b,
            ff1_w, params['ff1_b'], ff2_w, params['ff2_b'],
            params['ln_w'], params['ln_b'], lin_w, lin_b)


@jax.jit
def transformers_decoder_forward(features, caption, params):
    """features: [B, E] f32, caption: [S, B] int32 -> logits [S, B, V] (PyTorch layout)."""
    S, B = caption.shape

    # Embedding lookup + positional encoding (glue, plain JAX).  Dropout == identity.
    embed = params['embedding'][caption] + positional_encoding(S, EMBED)    # [S, B, E]
    x_slab = jnp.transpose(embed, (1, 0, 2)).reshape(B * S, EMBED)          # [B*S, E]
    mask = make_causal_mask(S)
    weights = _prep_kernel_weights(params)

    # Advisory cost hint so XLA schedules the surrounding gather/transposes sensibly.
    cost = pl.CostEstimate(
        flops=2 * B * S * LAYERS * (2 * EMBED * FFN + 4 * EMBED * EMBED)
              + 2 * B * S * EMBED * VOCAB_PAD,
        transcendentals=LAYERS * HEADS * B * S * S,
        bytes_accessed=1_300_000)

    # Single invocation, no grid: everything (< 1 MiB) is resident in VMEM.
    out = pl.pallas_call(
        decoder_kernel,
        out_shape=jax.ShapeDtypeStruct((B * S, VOCAB_PAD), jnp.float32),
        cost_estimate=cost,
    )(x_slab, features, mask, *weights)

    logits = out.reshape(B, S, VOCAB_PAD)[:, :, :VOCAB]
    return jnp.transpose(logits, (1, 0, 2))                                 # [S, B, V]


# -------------------- pure-JAX f32 reference (for self-check) -------------------
def reference_forward(features, caption, params):
    S, B = caption.shape
    E, H, D = EMBED, HEADS, HEAD_DIM
    x = params['embedding'][caption] + positional_encoding(S, E)    # [S, B, E]
    mem = features[None, :, :]                                      # [1, B, E]
    mask = make_causal_mask(S)

    def ln(v, w, b):
        mu = v.mean(-1, keepdims=True)
        var = ((v - mu) ** 2).mean(-1, keepdims=True)
        return (v - mu) / jnp.sqrt(var + LN_EPS) * w + b

    def mha(q_in, kv_in, w_in, b_in, w_out, b_out, attn_mask):
        Tq, Tk = q_in.shape[0], kv_in.shape[0]
        q = q_in @ w_in[:E].T + b_in[:E]
        k = kv_in @ w_in[E:2 * E].T + b_in[E:2 * E]
        v = kv_in @ w_in[2 * E:].T + b_in[2 * E:]

        def split(t, T):
            return t.reshape(T, B, H, D).transpose(1, 2, 0, 3)      # [B, H, T, D]

        qh, kh, vh = split(q, Tq), split(k, Tk), split(v, Tk)
        s = jnp.einsum('bhqd,bhkd->bhqk', qh, kh) / math.sqrt(D)
        if attn_mask is not None:
            s = s + attn_mask
        p = jax.nn.softmax(s, axis=-1)
        o = jnp.einsum('bhqk,bhkd->bhqd', p, vh)
        o = o.transpose(2, 0, 1, 3).reshape(Tq, B, E)
        return o @ w_out.T + b_out

    for l in range(LAYERS):
        sa = mha(x, x, params['sa_in_w'][l], params['sa_in_b'][l],
                 params['sa_out_w'][l], params['sa_out_b'][l], mask)
        x = ln(x + sa, params['ln_w'][l, 0], params['ln_b'][l, 0])
        ca = mha(x, mem, params['ca_in_w'][l], params['ca_in_b'][l],
                 params['ca_out_w'][l], params['ca_out_b'][l], None)
        x = ln(x + ca, params['ln_w'][l, 1], params['ln_b'][l, 1])
        h1 = jax.nn.relu(x @ params['ff1_w'][l].T + params['ff1_b'][l])
        ff = h1 @ params['ff2_w'][l].T + params['ff2_b'][l]
        x = ln(x + ff, params['ln_w'][l, 2], params['ln_b'][l, 2])
    return x @ params['lin_w'].T + params['lin_b']                   # [S, B, V]


# ------------------------------------ main --------------------------------------
if __name__ == "__main__":
    key = jax.random.PRNGKey(0)
    k_param, k_feat, k_cap = jax.random.split(key, 3)

    params = init_params(k_param)
    features = jax.random.normal(k_feat, (BATCH, EMBED), jnp.float32)   # image features
    caption = jax.random.randint(k_cap, (SEQ, BATCH), 0, VOCAB, jnp.int32)

    logits = transformers_decoder_forward(features, caption, params)
    logits = jax.block_until_ready(logits)

    assert logits.shape == (SEQ, BATCH, VOCAB), logits.shape
    assert bool(jnp.all(jnp.isfinite(logits)))

    # Loose-tolerance check vs the pure-JAX f32 reference (kernel feeds the MXU in
    # bf16 and uses an approximate reciprocal in the softmax).
    ref = reference_forward(features, caption, params)
    max_err = float(jnp.max(jnp.abs(logits - ref)))
    assert max_err < 5e-2, f"max abs error vs reference: {max_err}"

    print("KERNEL_OK")
</pallas_src>

<mosaic_0001>
module attributes {stable_mosaic.version = 11 : i64} {
  func.func @decoder_kernel(%arg0: memref<16x32xf32, #tpu.memory_space<vmem>>, %arg1: memref<2x32xf32, #tpu.memory_space<vmem>>, %arg2: memref<8x8xf32, #tpu.memory_space<vmem>>, %arg3: memref<2x32x96xbf16, #tpu.memory_space<vmem>>, %arg4: memref<2x96xf32, #tpu.memory_space<vmem>>, %arg5: memref<2x32x32xbf16, #tpu.memory_space<vmem>>, %arg6: memref<2x32xf32, #tpu.memory_space<vmem>>, %arg7: memref<2x32x32xbf16, #tpu.memory_space<vmem>>, %arg8: memref<2x32xf32, #tpu.memory_space<vmem>>, %arg9: memref<2x32x32xbf16, #tpu.memory_space<vmem>>, %arg10: memref<2x32xf32, #tpu.memory_space<vmem>>, %arg11: memref<2x32x2048xbf16, #tpu.memory_space<vmem>>, %arg12: memref<2x2048xf32, #tpu.memory_space<vmem>>, %arg13: memref<2x2048x32xbf16, #tpu.memory_space<vmem>>, %arg14: memref<2x32xf32, #tpu.memory_space<vmem>>, %arg15: memref<2x3x32xf32, #tpu.memory_space<vmem>>, %arg16: memref<2x3x32xf32, #tpu.memory_space<vmem>>, %arg17: memref<32x128xbf16, #tpu.memory_space<vmem>>, %arg18: memref<1x128xf32, #tpu.memory_space<vmem>>, %arg19: memref<16x128xf32, #tpu.memory_space<vmem>>) attributes {dimension_semantics = [], scalar_prefetch = 0 : i64, scratch_operands = 0 : i64, tpu.core_type = #tpu.core_type<tc>} {
    %c0 = arith.constant 0 : index
    %c0_0 = arith.constant 0 : index
    %0 = vector.load %arg0[%c0, %c0_0] : memref<16x32xf32, #tpu.memory_space<vmem>>, vector<16x32xf32>
    %c0_1 = arith.constant 0 : index
    %c0_2 = arith.constant 0 : index
    %1 = vector.load %arg1[%c0_1, %c0_2] : memref<2x32xf32, #tpu.memory_space<vmem>>, vector<2x32xf32>
    %c0_3 = arith.constant 0 : index
    %c0_4 = arith.constant 0 : index
    %2 = vector.load %arg2[%c0_3, %c0_4] : memref<8x8xf32, #tpu.memory_space<vmem>>, vector<8x8xf32>
    %c0_5 = arith.constant 0 : index
    %c0_6 = arith.constant 0 : index
    %c0_7 = arith.constant 0 : index
    %3 = vector.load %arg3[%c0_5, %c0_6, %c0_7] : memref<2x32x96xbf16, #tpu.memory_space<vmem>>, vector<1x32x96xbf16>
    %4 = vector.shape_cast %3 : vector<1x32x96xbf16> to vector<32x96xbf16>
    %5 = arith.truncf %0 : vector<16x32xf32> to vector<16x32xbf16>
    %cst = arith.constant dense<0.000000e+00> : vector<16x96xf32>
    %6 = tpu.matmul %5, %4, %cst {dimension_numbers = #tpu.dot_dimension_numbers<[1], [0], [0], [1], [0, 0, 1, 1], [], []>} : vector<16x32xbf16>, vector<32x96xbf16>, vector<16x96xf32> -> vector<16x96xf32>
    %c0_8 = arith.constant 0 : index
    %c0_9 = arith.constant 0 : index
    %7 = vector.load %arg4[%c0_8, %c0_9] : memref<2x96xf32, #tpu.memory_space<vmem>>, vector<1x96xf32>
    %8 = vector.shape_cast %7 : vector<1x96xf32> to vector<96xf32>
    %9 = vector.shape_cast %8 : vector<96xf32> to vector<1x96xf32>
    %10 = vector.broadcast %9 : vector<1x96xf32> to vector<16x96xf32>
    %11 = arith.addf %6, %10 : vector<16x96xf32>
    %12 = vector.extract_strided_slice %11 {offsets = [0, 0], sizes = [16, 8], strides = [1, 1]} : vector<16x96xf32> to vector<16x8xf32>
    %13 = vector.shape_cast %12 : vector<16x8xf32> to vector<2x8x8xf32>
    %14 = vector.extract_strided_slice %11 {offsets = [0, 32], sizes = [16, 8], strides = [1, 1]} : vector<16x96xf32> to vector<16x8xf32>
    %15 = vector.shape_cast %14 : vector<16x8xf32> to vector<2x8x8xf32>
    %16 = vector.extract_strided_slice %11 {offsets = [0, 64], sizes = [16, 8], strides = [1, 1]} : vector<16x96xf32> to vector<16x8xf32>
    %17 = vector.shape_cast %16 : vector<16x8xf32> to vector<2x8x8xf32>
    "tpu.trace_start"() <{level = 10 : i32, message = "bqd,bkd->bqk"}> : () -> ()
    %cst_10 = arith.constant dense<0.000000e+00> : vector<2x8x8xf32>
    %18 = tpu.matmul %13, %15, %cst_10 {dimension_numbers = #tpu.dot_dimension_numbers<[2], [2], [1], [1], [0, 0, 0, 1, 1, 1], [0], [0]>} : vector<2x8x8xf32>, vector<2x8x8xf32>, vector<2x8x8xf32> -> vector<2x8x8xf32>
    "tpu.trace_stop"() : () -> ()
    %cst_11 = arith.constant 0.353553385 : f32
    %19 = vector.broadcast %cst_11 : f32 to vector<2x8x8xf32>
    %20 = arith.mulf %18, %19 : vector<2x8x8xf32>
    %21 = vector.shape_cast %2 : vector<8x8xf32> to vector<1x8x8xf32>
    %22 = vector.broadcast %21 : vector<1x8x8xf32> to vector<2x8x8xf32>
    %23 = arith.addf %20, %22 : vector<2x8x8xf32>
    %cst_12 = arith.constant dense<0xFF800000> : vector<2x8xf32>
    %24 = vector.multi_reduction <maximumf>, %23, %cst_12 [2] : vector<2x8x8xf32> to vector<2x8xf32>
    %25 = vector.shape_cast %24 : vector<2x8xf32> to vector<2x8x1xf32>
    %26 = vector.broadcast %25 : vector<2x8x1xf32> to vector<2x8x8xf32>
    %27 = arith.subf %23, %26 : vector<2x8x8xf32>
    %28 = math.exp %27 : vector<2x8x8xf32>
    %cst_13 = arith.constant dense<0.000000e+00> : vector<2x8xf32>
    %29 = vector.multi_reduction <add>, %28, %cst_13 [2] : vector<2x8x8xf32> to vector<2x8xf32>
    %30 = vector.shape_cast %29 : vector<2x8xf32> to vector<2x8x1xf32>
    %31 = tpu.reciprocal %30 {approx = true} : vector<2x8x1xf32> -> vector<2x8x1xf32>
    %32 = vector.broadcast %31 : vector<2x8x1xf32> to vector<2x8x8xf32>
    %33 = arith.mulf %28, %32 : vector<2x8x8xf32>
    "tpu.trace_start"() <{level = 10 : i32, message = "bqk,bkd->bqd"}> : () -> ()
    %cst_14 = arith.constant dense<0.000000e+00> : vector<2x8x8xf32>
    %34 = tpu.matmul %33, %17, %cst_14 {dimension_numbers = #tpu.dot_dimension_numbers<[2], [1], [1], [2], [0, 0, 0, 1, 1, 2], [0], [0]>} : vector<2x8x8xf32>, vector<2x8x8xf32>, vector<2x8x8xf32> -> vector<2x8x8xf32>
    "tpu.trace_stop"() : () -> ()
    %35 = vector.shape_cast %34 : vector<2x8x8xf32> to vector<16x8xf32>
    %36 = vector.extract_strided_slice %11 {offsets = [0, 8], sizes = [16, 8], strides = [1, 1]} : vector<16x96xf32> to vector<16x8xf32>
    %37 = vector.shape_cast %36 : vector<16x8xf32> to vector<2x8x8xf32>
    %38 = vector.extract_strided_slice %11 {offsets = [0, 40], sizes = [16, 8], strides = [1, 1]} : vector<16x96xf32> to vector<16x8xf32>
    %39 = vector.shape_cast %38 : vector<16x8xf32> to vector<2x8x8xf32>
    %40 = vector.extract_strided_slice %11 {offsets = [0, 72], sizes = [16, 8], strides = [1, 1]} : vector<16x96xf32> to vector<16x8xf32>
    %41 = vector.shape_cast %40 : vector<16x8xf32> to vector<2x8x8xf32>
    "tpu.trace_start"() <{level = 10 : i32, message = "bqd,bkd->bqk"}> : () -> ()
    %cst_15 = arith.constant dense<0.000000e+00> : vector<2x8x8xf32>
    %42 = tpu.matmul %37, %39, %cst_15 {dimension_numbers = #tpu.dot_dimension_numbers<[2], [2], [1], [1], [0, 0, 0, 1, 1, 1], [0], [0]>} : vector<2x8x8xf32>, vector<2x8x8xf32>, vector<2x8x8xf32> -> vector<2x8x8xf32>
    "tpu.trace_stop"() : () -> ()
    %cst_16 = arith.constant 0.353553385 : f32
    %43 = vector.broadcast %cst_16 : f32 to vector<2x8x8xf32>
    %44 = arith.mulf %42, %43 : vector<2x8x8xf32>
    %45 = vector.shape_cast %2 : vector<8x8xf32> to vector<1x8x8xf32>
    %46 = vector.broadcast %45 : vector<1x8x8xf32> to vector<2x8x8xf32>
    %47 = arith.addf %44, %46 : vector<2x8x8xf32>
    %cst_17 = arith.constant dense<0xFF800000> : vector<2x8xf32>
    %48 = vector.multi_reduction <maximumf>, %47, %cst_17 [2] : vector<2x8x8xf32> to vector<2x8xf32>
    %49 = vector.shape_cast %48 : vector<2x8xf32> to vector<2x8x1xf32>
    %50 = vector.broadcast %49 : vector<2x8x1xf32> to vector<2x8x8xf32>
    %51 = arith.subf %47, %50 : vector<2x8x8xf32>
    %52 = math.exp %51 : vector<2x8x8xf32>
    %cst_18 = arith.constant dense<0.000000e+00> : vector<2x8xf32>
    %53 = vector.multi_reduction <add>, %52, %cst_18 [2] : vector<2x8x8xf32> to vector<2x8xf32>
    %54 = vector.shape_cast %53 : vector<2x8xf32> to vector<2x8x1xf32>
    %55 = tpu.reciprocal %54 {approx = true} : vector<2x8x1xf32> -> vector<2x8x1xf32>
    %56 = vector.broadcast %55 : vector<2x8x1xf32> to vector<2x8x8xf32>
    %57 = arith.mulf %52, %56 : vector<2x8x8xf32>
    "tpu.trace_start"() <{level = 10 : i32, message = "bqk,bkd->bqd"}> : () -> ()
    %cst_19 = arith.constant dense<0.000000e+00> : vector<2x8x8xf32>
    %58 = tpu.matmul %57, %41, %cst_19 {dimension_numbers = #tpu.dot_dimension_numbers<[2], [1], [1], [2], [0, 0, 0, 1, 1, 2], [0], [0]>} : vector<2x8x8xf32>, vector<2x8x8xf32>, vector<2x8x8xf32> -> vector<2x8x8xf32>
    "tpu.trace_stop"() : () -> ()
    %59 = vector.shape_cast %58 : vector<2x8x8xf32> to vector<16x8xf32>
    %60 = vector.extract_strided_slice %11 {offsets = [0, 16], sizes = [16, 8], strides = [1, 1]} : vector<16x96xf32> to vector<16x8xf32>
    %61 = vector.shape_cast %60 : vector<16x8xf32> to vector<2x8x8xf32>
    %62 = vector.extract_strided_slice %11 {offsets = [0, 48], sizes = [16, 8], strides = [1, 1]} : vector<16x96xf32> to vector<16x8xf32>
    %63 = vector.shape_cast %62 : vector<16x8xf32> to vector<2x8x8xf32>
    %64 = vector.extract_strided_slice %11 {offsets = [0, 80], sizes = [16, 8], strides = [1, 1]} : vector<16x96xf32> to vector<16x8xf32>
    %65 = vector.shape_cast %64 : vector<16x8xf32> to vector<2x8x8xf32>
    "tpu.trace_start"() <{level = 10 : i32, message = "bqd,bkd->bqk"}> : () -> ()
    %cst_20 = arith.constant dense<0.000000e+00> : vector<2x8x8xf32>
    %66 = tpu.matmul %61, %63, %cst_20 {dimension_numbers = #tpu.dot_dimension_numbers<[2], [2], [1], [1], [0, 0, 0, 1, 1, 1], [0], [0]>} : vector<2x8x8xf32>, vector<2x8x8xf32>, vector<2x8x8xf32> -> vector<2x8x8xf32>
    "tpu.trace_stop"() : () -> ()
    %cst_21 = arith.constant 0.353553385 : f32
    %67 = vector.broadcast %cst_21 : f32 to vector<2x8x8xf32>
    %68 = arith.mulf %66, %67 : vector<2x8x8xf32>
    %69 = vector.shape_cast %2 : vector<8x8xf32> to vector<1x8x8xf32>
    %70 = vector.broadcast %69 : vector<1x8x8xf32> to vector<2x8x8xf32>
    %71 = arith.addf %68, %70 : vector<2x8x8xf32>
    %cst_22 = arith.constant dense<0xFF800000> : vector<2x8xf32>
    %72 = vector.multi_reduction <maximumf>, %71, %cst_22 [2] : vector<2x8x8xf32> to vector<2x8xf32>
    %73 = vector.shape_cast %72 : vector<2x8xf32> to vector<2x8x1xf32>
    %74 = vector.broadcast %73 : vector<2x8x1xf32> to vector<2x8x8xf32>
    %75 = arith.subf %71, %74 : vector<2x8x8xf32>
    %76 = math.exp %75 : vector<2x8x8xf32>
    %cst_23 = arith.constant dense<0.000000e+00> : vector<2x8xf32>
    %77 = vector.multi_reduction <add>, %76, %cst_23 [2] : vector<2x8x8xf32> to vector<2x8xf32>
    %78 = vector.shape_cast %77 : vector<2x8xf32> to vector<2x8x1xf32>
    %79 = tpu.reciprocal %78 {approx = true} : vector<2x8x1xf32> -> vector<2x8x1xf32>
    %80 = vector.broadcast %79 : vector<2x8x1xf32> to vector<2x8x8xf32>
    %81 = arith.mulf %76, %80 : vector<2x8x8xf32>
    "tpu.trace_start"() <{level = 10 : i32, message = "bqk,bkd->bqd"}> : () -> ()
    %cst_24 = arith.constant dense<0.000000e+00> : vector<2x8x8xf32>
    %82 = tpu.matmul %81, %65, %cst_24 {dimension_numbers = #tpu.dot_dimension_numbers<[2], [1], [1], [2], [0, 0, 0, 1, 1, 2], [0], [0]>} : vector<2x8x8xf32>, vector<2x8x8xf32>, vector<2x8x8xf32> -> vector<2x8x8xf32>
    "tpu.trace_stop"() : () -> ()
    %83 = vector.shape_cast %82 : vector<2x8x8xf32> to vector<16x8xf32>
    %84 = vector.extract_strided_slice %11 {offsets = [0, 24], sizes = [16, 8], strides = [1, 1]} : vector<16x96xf32> to vector<16x8xf32>
    %85 = vector.shape_cast %84 : vector<16x8xf32> to vector<2x8x8xf32>
    %86 = vector.extract_strided_slice %11 {offsets = [0, 56], sizes = [16, 8], strides = [1, 1]} : vector<16x96xf32> to vector<16x8xf32>
    %87 = vector.shape_cast %86 : vector<16x8xf32> to vector<2x8x8xf32>
    %88 = vector.extract_strided_slice %11 {offsets = [0, 88], sizes = [16, 8], strides = [1, 1]} : vector<16x96xf32> to vector<16x8xf32>
    %89 = vector.shape_cast %88 : vector<16x8xf32> to vector<2x8x8xf32>
    "tpu.trace_start"() <{level = 10 : i32, message = "bqd,bkd->bqk"}> : () -> ()
    %cst_25 = arith.constant dense<0.000000e+00> : vector<2x8x8xf32>
    %90 = tpu.matmul %85, %87, %cst_25 {dimension_numbers = #tpu.dot_dimension_numbers<[2], [2], [1], [1], [0, 0, 0, 1, 1, 1], [0], [0]>} : vector<2x8x8xf32>, vector<2x8x8xf32>, vector<2x8x8xf32> -> vector<2x8x8xf32>
    "tpu.trace_stop"() : () -> ()
    %cst_26 = arith.constant 0.353553385 : f32
    %91 = vector.broadcast %cst_26 : f32 to vector<2x8x8xf32>
    %92 = arith.mulf %90, %91 : vector<2x8x8xf32>
    %93 = vector.shape_cast %2 : vector<8x8xf32> to vector<1x8x8xf32>
    %94 = vector.broadcast %93 : vector<1x8x8xf32> to vector<2x8x8xf32>
    %95 = arith.addf %92, %94 : vector<2x8x8xf32>
    %cst_27 = arith.constant dense<0xFF800000> : vector<2x8xf32>
    %96 = vector.multi_reduction <maximumf>, %95, %cst_27 [2] : vector<2x8x8xf32> to vector<2x8xf32>
    %97 = vector.shape_cast %96 : vector<2x8xf32> to vector<2x8x1xf32>
    %98 = vector.broadcast %97 : vector<2x8x1xf32> to vector<2x8x8xf32>
    %99 = arith.subf %95, %98 : vector<2x8x8xf32>
    %100 = math.exp %99 : vector<2x8x8xf32>
    %cst_28 = arith.constant dense<0.000000e+00> : vector<2x8xf32>
    %101 = vector.multi_reduction <add>, %100, %cst_28 [2] : vector<2x8x8xf32> to vector<2x8xf32>
    %102 = vector.shape_cast %101 : vector<2x8xf32> to vector<2x8x1xf32>
    %103 = tpu.reciprocal %102 {approx = true} : vector<2x8x1xf32> -> vector<2x8x1xf32>
    %104 = vector.broadcast %103 : vector<2x8x1xf32> to vector<2x8x8xf32>
    %105 = arith.mulf %100, %104 : vector<2x8x8xf32>
    "tpu.trace_start"() <{level = 10 : i32, message = "bqk,bkd->bqd"}> : () -> ()
    %cst_29 = arith.constant dense<0.000000e+00> : vector<2x8x8xf32>
    %106 = tpu.matmul %105, %89, %cst_29 {dimension_numbers = #tpu.dot_dimension_numbers<[2], [1], [1], [2], [0, 0, 0, 1, 1, 2], [0], [0]>} : vector<2x8x8xf32>, vector<2x8x8xf32>, vector<2x8x8xf32> -> vector<2x8x8xf32>
    "tpu.trace_stop"() : () -> ()
    %107 = vector.shape_cast %106 : vector<2x8x8xf32> to vector<16x8xf32>
    %108 = tpu.concatenate %35, %59, %83, %107 in 1 : vector<16x8xf32>, vector<16x8xf32>, vector<16x8xf32>, vector<16x8xf32> -> vector<16x32xf32>
    %c0_30 = arith.constant 0 : index
    %c0_31 = arith.constant 0 : index
    %c0_32 = arith.constant 0 : index
    %109 = vector.load %arg5[%c0_30, %c0_31, %c0_32] : memref<2x32x32xbf16, #tpu.memory_space<vmem>>, vector<1x32x32xbf16>
    %110 = vector.shape_cast %109 : vector<1x32x32xbf16> to vector<32x32xbf16>
    %111 = arith.truncf %108 : vector<16x32xf32> to vector<16x32xbf16>
    %cst_33 = arith.constant dense<0.000000e+00> : vector<16x32xf32>
    %112 = tpu.matmul %111, %110, %cst_33 {dimension_numbers = #tpu.dot_dimension_numbers<[1], [0], [0], [1], [0, 0, 1, 1], [], []>} : vector<16x32xbf16>, vector<32x32xbf16>, vector<16x32xf32> -> vector<16x32xf32>
    %c0_34 = arith.constant 0 : index
    %c0_35 = arith.constant 0 : index
    %113 = vector.load %arg6[%c0_34, %c0_35] : memref<2x32xf32, #tpu.memory_space<vmem>>, vector<1x32xf32>
    %114 = vector.shape_cast %113 : vector<1x32xf32> to vector<32xf32>
    %115 = vector.shape_cast %114 : vector<32xf32> to vector<1x32xf32>
    %116 = vector.broadcast %115 : vector<1x32xf32> to vector<16x32xf32>
    %117 = arith.addf %112, %116 : vector<16x32xf32>
    %118 = arith.addf %0, %117 : vector<16x32xf32>
    %c0_36 = arith.constant 0 : index
    %c0_37 = arith.constant 0 : index
    %c0_38 = arith.constant 0 : index
    %119 = vector.load %arg15[%c0_36, %c0_37, %c0_38] : memref<2x3x32xf32, #tpu.memory_space<vmem>>, vector<1x1x32xf32>
    %120 = vector.shape_cast %119 : vector<1x1x32xf32> to vector<32xf32>
    %c0_39 = arith.constant 0 : index
    %c0_40 = arith.constant 0 : index
    %c0_41 = arith.constant 0 : index
    %121 = vector.load %arg16[%c0_39, %c0_40, %c0_41] : memref<2x3x32xf32, #tpu.memory_space<vmem>>, vector<1x1x32xf32>
    %122 = vector.shape_cast %121 : vector<1x1x32xf32> to vector<32xf32>
    %cst_42 = arith.constant dense<0.000000e+00> : vector<16xf32>
    %123 = vector.multi_reduction <add>, %118, %cst_42 [1] : vector<16x32xf32> to vector<16xf32>
    %124 = vector.shape_cast %123 : vector<16xf32> to vector<16x1xf32>
    %cst_43 = arith.constant 3.200000e+01 : f32
    %125 = vector.broadcast %cst_43 : f32 to vector<16x1xf32>
    %126 = arith.divf %124, %125 : vector<16x1xf32>
    %127 = vector.broadcast %126 : vector<16x1xf32> to vector<16x32xf32>
    %128 = arith.subf %118, %127 : vector<16x32xf32>
    %129 = arith.mulf %128, %128 : vector<16x32xf32>
    %cst_44 = arith.constant dense<0.000000e+00> : vector<16xf32>
    %130 = vector.multi_reduction <add>, %129, %cst_44 [1] : vector<16x32xf32> to vector<16xf32>
    %131 = vector.shape_cast %130 : vector<16xf32> to vector<16x1xf32>
    %cst_45 = arith.constant 3.200000e+01 : f32
    %132 = vector.broadcast %cst_45 : f32 to vector<16x1xf32>
    %133 = arith.divf %131, %132 : vector<16x1xf32>
    %134 = vector.broadcast %126 : vector<16x1xf32> to vector<16x32xf32>
    %135 = arith.subf %118, %134 : vector<16x32xf32>
    %cst_46 = arith.constant 9.99999974E-6 : f32
    %136 = vector.broadcast %cst_46 : f32 to vector<16x1xf32>
    %137 = arith.addf %133, %136 : vector<16x1xf32>
    %138 = math.rsqrt %137 : vector<16x1xf32>
    %139 = vector.broadcast %138 : vector<16x1xf32> to vector<16x32xf32>
    %140 = arith.mulf %135, %139 : vector<16x32xf32>
    %141 = vector.shape_cast %120 : vector<32xf32> to vector<1x32xf32>
    %142 = vector.broadcast %141 : vector<1x32xf32> to vector<16x32xf32>
    %143 = arith.mulf %140, %142 : vector<16x32xf32>
    %144 = vector.shape_cast %122 : vector<32xf32> to vector<1x32xf32>
    %145 = vector.broadcast %144 : vector<1x32xf32> to vector<16x32xf32>
    %146 = arith.addf %143, %145 : vector<16x32xf32>
    %c0_47 = arith.constant 0 : index
    %c0_48 = arith.constant 0 : index
    %c0_49 = arith.constant 0 : index
    %147 = vector.load %arg7[%c0_47, %c0_48, %c0_49] : memref<2x32x32xbf16, #tpu.memory_space<vmem>>, vector<1x32x32xbf16>
    %148 = vector.shape_cast %147 : vector<1x32x32xbf16> to vector<32x32xbf16>
    %149 = arith.truncf %1 : vector<2x32xf32> to vector<2x32xbf16>
    %cst_50 = arith.constant dense<0.000000e+00> : vector<2x32xf32>
    %150 = tpu.matmul %149, %148, %cst_50 {dimension_numbers = #tpu.dot_dimension_numbers<[1], [0], [0], [1], [0, 0, 1, 1], [], []>} : vector<2x32xbf16>, vector<32x32xbf16>, vector<2x32xf32> -> vector<2x32xf32>
    %c0_51 = arith.constant 0 : index
    %c0_52 = arith.constant 0 : index
    %151 = vector.load %arg8[%c0_51, %c0_52] : memref<2x32xf32, #tpu.memory_space<vmem>>, vector<1x32xf32>
    %152 = vector.shape_cast %151 : vector<1x32xf32> to vector<32xf32>
    %153 = vector.shape_cast %152 : vector<32xf32> to vector<1x32xf32>
    %154 = vector.broadcast %153 : vector<1x32xf32> to vector<2x32xf32>
    %155 = arith.addf %150, %154 : vector<2x32xf32>
    %c0_53 = arith.constant 0 : index
    %c0_54 = arith.constant 0 : index
    %c0_55 = arith.constant 0 : index
    %156 = vector.load %arg9[%c0_53, %c0_54, %c0_55] : memref<2x32x32xbf16, #tpu.memory_space<vmem>>, vector<1x32x32xbf16>
    %157 = vector.shape_cast %156 : vector<1x32x32xbf16> to vector<32x32xbf16>
    %158 = arith.truncf %155 : vector<2x32xf32> to vector<2x32xbf16>
    %cst_56 = arith.constant dense<0.000000e+00> : vector<2x32xf32>
    %159 = tpu.matmul %158, %157, %cst_56 {dimension_numbers = #tpu.dot_dimension_numbers<[1], [0], [0], [1], [0, 0, 1, 1], [], []>} : vector<2x32xbf16>, vector<32x32xbf16>, vector<2x32xf32> -> vector<2x32xf32>
    %c0_57 = arith.constant 0 : index
    %c0_58 = arith.constant 0 : index
    %160 = vector.load %arg10[%c0_57, %c0_58] : memref<2x32xf32, #tpu.memory_space<vmem>>, vector<1x32xf32>
    %161 = vector.shape_cast %160 : vector<1x32xf32> to vector<32xf32>
    %162 = vector.shape_cast %161 : vector<32xf32> to vector<1x32xf32>
    %163 = vector.broadcast %162 : vector<1x32xf32> to vector<2x32xf32>
    %164 = arith.addf %159, %163 : vector<2x32xf32>
    %165 = vector.shape_cast %146 : vector<16x32xf32> to vector<2x8x32xf32>
    %166 = vector.shape_cast %164 : vector<2x32xf32> to vector<2x1x32xf32>
    %167 = vector.broadcast %166 : vector<2x1x32xf32> to vector<2x8x32xf32>
    %168 = arith.addf %165, %167 : vector<2x8x32xf32>
    %169 = vector.shape_cast %168 : vector<2x8x32xf32> to vector<16x32xf32>
    %c0_59 = arith.constant 0 : index
    %c1 = arith.constant 1 : index
    %c0_60 = arith.constant 0 : index
    %170 = vector.load %arg15[%c0_59, %c1, %c0_60] : memref<2x3x32xf32, #tpu.memory_space<vmem>>, vector<1x1x32xf32>
    %171 = vector.shape_cast %170 : vector<1x1x32xf32> to vector<32xf32>
    %c0_61 = arith.constant 0 : index
    %c1_62 = arith.constant 1 : index
    %c0_63 = arith.constant 0 : index
    %172 = vector.load %arg16[%c0_61, %c1_62, %c0_63] : memref<2x3x32xf32, #tpu.memory_space<vmem>>, vector<1x1x32xf32>
    %173 = vector.shape_cast %172 : vector<1x1x32xf32> to vector<32xf32>
    %cst_64 = arith.constant dense<0.000000e+00> : vector<16xf32>
    %174 = vector.multi_reduction <add>, %169, %cst_64 [1] : vector<16x32xf32> to vector<16xf32>
    %175 = vector.shape_cast %174 : vector<16xf32> to vector<16x1xf32>
    %cst_65 = arith.constant 3.200000e+01 : f32
    %176 = vector.broadcast %cst_65 : f32 to vector<16x1xf32>
    %177 = arith.divf %175, %176 : vector<16x1xf32>
    %178 = vector.broadcast %177 : vector<16x1xf32> to vector<16x32xf32>
    %179 = arith.subf %169, %178 : vector<16x32xf32>
    %180 = arith.mulf %179, %179 : vector<16x32xf32>
    %cst_66 = arith.constant dense<0.000000e+00> : vector<16xf32>
    %181 = vector.multi_reduction <add>, %180, %cst_66 [1] : vector<16x32xf32> to vector<16xf32>
    %182 = vector.shape_cast %181 : vector<16xf32> to vector<16x1xf32>
    %cst_67 = arith.constant 3.200000e+01 : f32
    %183 = vector.broadcast %cst_67 : f32 to vector<16x1xf32>
    %184 = arith.divf %182, %183 : vector<16x1xf32>
    %185 = vector.broadcast %177 : vector<16x1xf32> to vector<16x32xf32>
    %186 = arith.subf %169, %185 : vector<16x32xf32>
    %cst_68 = arith.constant 9.99999974E-6 : f32
    %187 = vector.broadcast %cst_68 : f32 to vector<16x1xf32>
    %188 = arith.addf %184, %187 : vector<16x1xf32>
    %189 = math.rsqrt %188 : vector<16x1xf32>
    %190 = vector.broadcast %189 : vector<16x1xf32> to vector<16x32xf32>
    %191 = arith.mulf %186, %190 : vector<16x32xf32>
    %192 = vector.shape_cast %171 : vector<32xf32> to vector<1x32xf32>
    %193 = vector.broadcast %192 : vector<1x32xf32> to vector<16x32xf32>
    %194 = arith.mulf %191, %193 : vector<16x32xf32>
    %195 = vector.shape_cast %173 : vector<32xf32> to vector<1x32xf32>
    %196 = vector.broadcast %195 : vector<1x32xf32> to vector<16x32xf32>
    %197 = arith.addf %194, %196 : vector<16x32xf32>
    %c0_69 = arith.constant 0 : index
    %c0_70 = arith.constant 0 : index
    %c0_71 = arith.constant 0 : index
    %198 = vector.load %arg11[%c0_69, %c0_70, %c0_71] : memref<2x32x2048xbf16, #tpu.memory_space<vmem>>, vector<1x32x2048xbf16>
    %199 = vector.shape_cast %198 : vector<1x32x2048xbf16> to vector<32x2048xbf16>
    %200 = arith.truncf %197 : vector<16x32xf32> to vector<16x32xbf16>
    %cst_72 = arith.constant dense<0.000000e+00> : vector<16x2048xf32>
    %201 = tpu.matmul %200, %199, %cst_72 {dimension_numbers = #tpu.dot_dimension_numbers<[1], [0], [0], [1], [0, 0, 1, 1], [], []>} : vector<16x32xbf16>, vector<32x2048xbf16>, vector<16x2048xf32> -> vector<16x2048xf32>
    %c0_73 = arith.constant 0 : index
    %c0_74 = arith.constant 0 : index
    %202 = vector.load %arg12[%c0_73, %c0_74] : memref<2x2048xf32, #tpu.memory_space<vmem>>, vector<1x2048xf32>
    %203 = vector.shape_cast %202 : vector<1x2048xf32> to vector<2048xf32>
    %204 = vector.shape_cast %203 : vector<2048xf32> to vector<1x2048xf32>
    %205 = vector.broadcast %204 : vector<1x2048xf32> to vector<16x2048xf32>
    %206 = arith.addf %201, %205 : vector<16x2048xf32>
    %cst_75 = arith.constant 0.000000e+00 : f32
    %207 = vector.broadcast %cst_75 : f32 to vector<16x2048xf32>
    %208 = arith.maximumf %206, %207 : vector<16x2048xf32>
    %c0_76 = arith.constant 0 : index
    %c0_77 = arith.constant 0 : index
    %c0_78 = arith.constant 0 : index
    %209 = vector.load %arg13[%c0_76, %c0_77, %c0_78] : memref<2x2048x32xbf16, #tpu.memory_space<vmem>>, vector<1x2048x32xbf16>
    %210 = vector.shape_cast %209 : vector<1x2048x32xbf16> to vector<2048x32xbf16>
    %211 = arith.truncf %208 : vector<16x2048xf32> to vector<16x2048xbf16>
    %cst_79 = arith.constant dense<0.000000e+00> : vector<16x32xf32>
    %212 = tpu.matmul %211, %210, %cst_79 {dimension_numbers = #tpu.dot_dimension_numbers<[1], [0], [0], [1], [0, 0, 1, 1], [], []>} : vector<16x2048xbf16>, vector<2048x32xbf16>, vector<16x32xf32> -> vector<16x32xf32>
    %c0_80 = arith.constant 0 : index
    %c0_81 = arith.constant 0 : index
    %213 = vector.load %arg14[%c0_80, %c0_81] : memref<2x32xf32, #tpu.memory_space<vmem>>, vector<1x32xf32>
    %214 = vector.shape_cast %213 : vector<1x32xf32> to vector<32xf32>
    %215 = vector.shape_cast %214 : vector<32xf32> to vector<1x32xf32>
    %216 = vector.broadcast %215 : vector<1x32xf32> to vector<16x32xf32>
    %217 = arith.addf %212, %216 : vector<16x32xf32>
    %218 = arith.addf %197, %217 : vector<16x32xf32>
    %c0_82 = arith.constant 0 : index
    %c2 = arith.constant 2 : index
    %c0_83 = arith.constant 0 : index
    %219 = vector.load %arg15[%c0_82, %c2, %c0_83] : memref<2x3x32xf32, #tpu.memory_space<vmem>>, vector<1x1x32xf32>
    %220 = vector.shape_cast %219 : vector<1x1x32xf32> to vector<32xf32>
    %c0_84 = arith.constant 0 : index
    %c2_85 = arith.constant 2 : index
    %c0_86 = arith.constant 0 : index
    %221 = vector.load %arg16[%c0_84, %c2_85, %c0_86] : memref<2x3x32xf32, #tpu.memory_space<vmem>>, vector<1x1x32xf32>
    %222 = vector.shape_cast %221 : vector<1x1x32xf32> to vector<32xf32>
    %cst_87 = arith.constant dense<0.000000e+00> : vector<16xf32>
    %223 = vector.multi_reduction <add>, %218, %cst_87 [1] : vector<16x32xf32> to vector<16xf32>
    %224 = vector.shape_cast %223 : vector<16xf32> to vector<16x1xf32>
    %cst_88 = arith.constant 3.200000e+01 : f32
    %225 = vector.broadcast %cst_88 : f32 to vector<16x1xf32>
    %226 = arith.divf %224, %225 : vector<16x1xf32>
    %227 = vector.broadcast %226 : vector<16x1xf32> to vector<16x32xf32>
    %228 = arith.subf %218, %227 : vector<16x32xf32>
    %229 = arith.mulf %228, %228 : vector<16x32xf32>
    %cst_89 = arith.constant dense<0.000000e+00> : vector<16xf32>
    %230 = vector.multi_reduction <add>, %229, %cst_89 [1] : vector<16x32xf32> to vector<16xf32>
    %231 = vector.shape_cast %230 : vector<16xf32> to vector<16x1xf32>
    %cst_90 = arith.constant 3.200000e+01 : f32
    %232 = vector.broadcast %cst_90 : f32 to vector<16x1xf32>
    %233 = arith.divf %231, %232 : vector<16x1xf32>
    %234 = vector.broadcast %226 : vector<16x1xf32> to vector<16x32xf32>
    %235 = arith.subf %218, %234 : vector<16x32xf32>
    %cst_91 = arith.constant 9.99999974E-6 : f32
    %236 = vector.broadcast %cst_91 : f32 to vector<16x1xf32>
    %237 = arith.addf %233, %236 : vector<16x1xf32>
    %238 = math.rsqrt %237 : vector<16x1xf32>
    %239 = vector.broadcast %238 : vector<16x1xf32> to vector<16x32xf32>
    %240 = arith.mulf %235, %239 : vector<16x32xf32>
    %241 = vector.shape_cast %220 : vector<32xf32> to vector<1x32xf32>
    %242 = vector.broadcast %241 : vector<1x32xf32> to vector<16x32xf32>
    %243 = arith.mulf %240, %242 : vector<16x32xf32>
    %244 = vector.shape_cast %222 : vector<32xf32> to vector<1x32xf32>
    %245 = vector.broadcast %244 : vector<1x32xf32> to vector<16x32xf32>
    %246 = arith.addf %243, %245 : vector<16x32xf32>
    %c1_92 = arith.constant 1 : index
    %c0_93 = arith.constant 0 : index
    %c0_94 = arith.constant 0 : index
    %247 = vector.load %arg3[%c1_92, %c0_93, %c0_94] : memref<2x32x96xbf16, #tpu.memory_space<vmem>>, vector<1x32x96xbf16>
    %248 = vector.shape_cast %247 : vector<1x32x96xbf16> to vector<32x96xbf16>
    %249 = arith.truncf %246 : vector<16x32xf32> to vector<16x32xbf16>
    %cst_95 = arith.constant dense<0.000000e+00> : vector<16x96xf32>
    %250 = tpu.matmul %249, %248, %cst_95 {dimension_numbers = #tpu.dot_dimension_numbers<[1], [0], [0], [1], [0, 0, 1, 1], [], []>} : vector<16x32xbf16>, vector<32x96xbf16>, vector<16x96xf32> -> vector<16x96xf32>
    %c1_96 = arith.constant 1 : index
    %c0_97 = arith.constant 0 : index
    %251 = vector.load %arg4[%c1_96, %c0_97] : memref<2x96xf32, #tpu.memory_space<vmem>>, vector<1x96xf32>
    %252 = vector.shape_cast %251 : vector<1x96xf32> to vector<96xf32>
    %253 = vector.shape_cast %252 : vector<96xf32> to vector<1x96xf32>
    %254 = vector.broadcast %253 : vector<1x96xf32> to vector<16x96xf32>
    %255 = arith.addf %250, %254 : vector<16x96xf32>
    %256 = vector.extract_strided_slice %255 {offsets = [0, 0], sizes = [16, 8], strides = [1, 1]} : vector<16x96xf32> to vector<16x8xf32>
    %257 = vector.shape_cast %256 : vector<16x8xf32> to vector<2x8x8xf32>
    %258 = vector.extract_strided_slice %255 {offsets = [0, 32], sizes = [16, 8], strides = [1, 1]} : vector<16x96xf32> to vector<16x8xf32>
    %259 = vector.shape_cast %258 : vector<16x8xf32> to vector<2x8x8xf32>
    %260 = vector.extract_strided_slice %255 {offsets = [0, 64], sizes = [16, 8], strides = [1, 1]} : vector<16x96xf32> to vector<16x8xf32>
    %261 = vector.shape_cast %260 : vector<16x8xf32> to vector<2x8x8xf32>
    "tpu.trace_start"() <{level = 10 : i32, message = "bqd,bkd->bqk"}> : () -> ()
    %cst_98 = arith.constant dense<0.000000e+00> : vector<2x8x8xf32>
    %262 = tpu.matmul %257, %259, %cst_98 {dimension_numbers = #tpu.dot_dimension_numbers<[2], [2], [1], [1], [0, 0, 0, 1, 1, 1], [0], [0]>} : vector<2x8x8xf32>, vector<2x8x8xf32>, vector<2x8x8xf32> -> vector<2x8x8xf32>
    "tpu.trace_stop"() : () -> ()
    %cst_99 = arith.constant 0.353553385 : f32
    %263 = vector.broadcast %cst_99 : f32 to vector<2x8x8xf32>
    %264 = arith.mulf %262, %263 : vector<2x8x8xf32>
    %265 = vector.shape_cast %2 : vector<8x8xf32> to vector<1x8x8xf32>
    %266 = vector.broadcast %265 : vector<1x8x8xf32> to vector<2x8x8xf32>
    %267 = arith.addf %264, %266 : vector<2x8x8xf32>
    %cst_100 = arith.constant dense<0xFF800000> : vector<2x8xf32>
    %268 = vector.multi_reduction <maximumf>, %267, %cst_100 [2] : vector<2x8x8xf32> to vector<2x8xf32>
    %269 = vector.shape_cast %268 : vector<2x8xf32> to vector<2x8x1xf32>
    %270 = vector.broadcast %269 : vector<2x8x1xf32> to vector<2x8x8xf32>
    %271 = arith.subf %267, %270 : vector<2x8x8xf32>
    %272 = math.exp %271 : vector<2x8x8xf32>
    %cst_101 = arith.constant dense<0.000000e+00> : vector<2x8xf32>
    %273 = vector.multi_reduction <add>, %272, %cst_101 [2] : vector<2x8x8xf32> to vector<2x8xf32>
    %274 = vector.shape_cast %273 : vector<2x8xf32> to vector<2x8x1xf32>
    %275 = tpu.reciprocal %274 {approx = true} : vector<2x8x1xf32> -> vector<2x8x1xf32>
    %276 = vector.broadcast %275 : vector<2x8x1xf32> to vector<2x8x8xf32>
    %277 = arith.mulf %272, %276 : vector<2x8x8xf32>
    "tpu.trace_start"() <{level = 10 : i32, message = "bqk,bkd->bqd"}> : () -> ()
    %cst_102 = arith.constant dense<0.000000e+00> : vector<2x8x8xf32>
    %278 = tpu.matmul %277, %261, %cst_102 {dimension_numbers = #tpu.dot_dimension_numbers<[2], [1], [1], [2], [0, 0, 0, 1, 1, 2], [0], [0]>} : vector<2x8x8xf32>, vector<2x8x8xf32>, vector<2x8x8xf32> -> vector<2x8x8xf32>
    "tpu.trace_stop"() : () -> ()
    %279 = vector.shape_cast %278 : vector<2x8x8xf32> to vector<16x8xf32>
    %280 = vector.extract_strided_slice %255 {offsets = [0, 8], sizes = [16, 8], strides = [1, 1]} : vector<16x96xf32> to vector<16x8xf32>
    %281 = vector.shape_cast %280 : vector<16x8xf32> to vector<2x8x8xf32>
    %282 = vector.extract_strided_slice %255 {offsets = [0, 40], sizes = [16, 8], strides = [1, 1]} : vector<16x96xf32> to vector<16x8xf32>
    %283 = vector.shape_cast %282 : vector<16x8xf32> to vector<2x8x8xf32>
    %284 = vector.extract_strided_slice %255 {offsets = [0, 72], sizes = [16, 8], strides = [1, 1]} : vector<16x96xf32> to vector<16x8xf32>
    %285 = vector.shape_cast %284 : vector<16x8xf32> to vector<2x8x8xf32>
    "tpu.trace_start"() <{level = 10 : i32, message = "bqd,bkd->bqk"}> : () -> ()
    %cst_103 = arith.constant dense<0.000000e+00> : vector<2x8x8xf32>
    %286 = tpu.matmul %281, %283, %cst_103 {dimension_numbers = #tpu.dot_dimension_numbers<[2], [2], [1], [1], [0, 0, 0, 1, 1, 1], [0], [0]>} : vector<2x8x8xf32>, vector<2x8x8xf32>, vector<2x8x8xf32> -> vector<2x8x8xf32>
    "tpu.trace_stop"() : () -> ()
    %cst_104 = arith.constant 0.353553385 : f32
    %287 = vector.broadcast %cst_104 : f32 to vector<2x8x8xf32>
    %288 = arith.mulf %286, %287 : vector<2x8x8xf32>
    %289 = vector.shape_cast %2 : vector<8x8xf32> to vector<1x8x8xf32>
    %290 = vector.broadcast %289 : vector<1x8x8xf32> to vector<2x8x8xf32>
    %291 = arith.addf %288, %290 : vector<2x8x8xf32>
    %cst_105 = arith.constant dense<0xFF800000> : vector<2x8xf32>
    %292 = vector.multi_reduction <maximumf>, %291, %cst_105 [2] : vector<2x8x8xf32> to vector<2x8xf32>
    %293 = vector.shape_cast %292 : vector<2x8xf32> to vector<2x8x1xf32>
    %294 = vector.broadcast %293 : vector<2x8x1xf32> to vector<2x8x8xf32>
    %295 = arith.subf %291, %294 : vector<2x8x8xf32>
    %296 = math.exp %295 : vector<2x8x8xf32>
    %cst_106 = arith.constant dense<0.000000e+00> : vector<2x8xf32>
    %297 = vector.multi_reduction <add>, %296, %cst_106 [2] : vector<2x8x8xf32> to vector<2x8xf32>
    %298 = vector.shape_cast %297 : vector<2x8xf32> to vector<2x8x1xf32>
    %299 = tpu.reciprocal %298 {approx = true} : vector<2x8x1xf32> -> vector<2x8x1xf32>
    %300 = vector.broadcast %299 : vector<2x8x1xf32> to vector<2x8x8xf32>
    %301 = arith.mulf %296, %300 : vector<2x8x8xf32>
    "tpu.trace_start"() <{level = 10 : i32, message = "bqk,bkd->bqd"}> : () -> ()
    %cst_107 = arith.constant dense<0.000000e+00> : vector<2x8x8xf32>
    %302 = tpu.matmul %301, %285, %cst_107 {dimension_numbers = #tpu.dot_dimension_numbers<[2], [1], [1], [2], [0, 0, 0, 1, 1, 2], [0], [0]>} : vector<2x8x8xf32>, vector<2x8x8xf32>, vector<2x8x8xf32> -> vector<2x8x8xf32>
    "tpu.trace_stop"() : () -> ()
    %303 = vector.shape_cast %302 : vector<2x8x8xf32> to vector<16x8xf32>
    %304 = vector.extract_strided_slice %255 {offsets = [0, 16], sizes = [16, 8], strides = [1, 1]} : vector<16x96xf32> to vector<16x8xf32>
    %305 = vector.shape_cast %304 : vector<16x8xf32> to vector<2x8x8xf32>
    %306 = vector.extract_strided_slice %255 {offsets = [0, 48], sizes = [16, 8], strides = [1, 1]} : vector<16x96xf32> to vector<16x8xf32>
    %307 = vector.shape_cast %306 : vector<16x8xf32> to vector<2x8x8xf32>
    %308 = vector.extract_strided_slice %255 {offsets = [0, 80], sizes = [16, 8], strides = [1, 1]} : vector<16x96xf32> to vector<16x8xf32>
    %309 = vector.shape_cast %308 : vector<16x8xf32> to vector<2x8x8xf32>
    "tpu.trace_start"() <{level = 10 : i32, message = "bqd,bkd->bqk"}> : () -> ()
    %cst_108 = arith.constant dense<0.000000e+00> : vector<2x8x8xf32>
    %310 = tpu.matmul %305, %307, %cst_108 {dimension_numbers = #tpu.dot_dimension_numbers<[2], [2], [1], [1], [0, 0, 0, 1, 1, 1], [0], [0]>} : vector<2x8x8xf32>, vector<2x8x8xf32>, vector<2x8x8xf32> -> vector<2x8x8xf32>
    "tpu.trace_stop"() : () -> ()
    %cst_109 = arith.constant 0.353553385 : f32
    %311 = vector.broadcast %cst_109 : f32 to vector<2x8x8xf32>
    %312 = arith.mulf %310, %311 : vector<2x8x8xf32>
    %313 = vector.shape_cast %2 : vector<8x8xf32> to vector<1x8x8xf32>
    %314 = vector.broadcast %313 : vector<1x8x8xf32> to vector<2x8x8xf32>
    %315 = arith.addf %312, %314 : vector<2x8x8xf32>
    %cst_110 = arith.constant dense<0xFF800000> : vector<2x8xf32>
    %316 = vector.multi_reduction <maximumf>, %315, %cst_110 [2] : vector<2x8x8xf32> to vector<2x8xf32>
    %317 = vector.shape_cast %316 : vector<2x8xf32> to vector<2x8x1xf32>
    %318 = vector.broadcast %317 : vector<2x8x1xf32> to vector<2x8x8xf32>
    %319 = arith.subf %315, %318 : vector<2x8x8xf32>
    %320 = math.exp %319 : vector<2x8x8xf32>
    %cst_111 = arith.constant dense<0.000000e+00> : vector<2x8xf32>
    %321 = vector.multi_reduction <add>, %320, %cst_111 [2] : vector<2x8x8xf32> to vector<2x8xf32>
    %322 = vector.shape_cast %321 : vector<2x8xf32> to vector<2x8x1xf32>
    %323 = tpu.reciprocal %322 {approx = true} : vector<2x8x1xf32> -> vector<2x8x1xf32>
    %324 = vector.broadcast %323 : vector<2x8x1xf32> to vector<2x8x8xf32>
    %325 = arith.mulf %320, %324 : vector<2x8x8xf32>
    "tpu.trace_start"() <{level = 10 : i32, message = "bqk,bkd->bqd"}> : () -> ()
    %cst_112 = arith.constant dense<0.000000e+00> : vector<2x8x8xf32>
    %326 = tpu.matmul %325, %309, %cst_112 {dimension_numbers = #tpu.dot_dimension_numbers<[2], [1], [1], [2], [0, 0, 0, 1, 1, 2], [0], [0]>} : vector<2x8x8xf32>, vector<2x8x8xf32>, vector<2x8x8xf32> -> vector<2x8x8xf32>
    "tpu.trace_stop"() : () -> ()
    %327 = vector.shape_cast %326 : vector<2x8x8xf32> to vector<16x8xf32>
    %328 = vector.extract_strided_slice %255 {offsets = [0, 24], sizes = [16, 8], strides = [1, 1]} : vector<16x96xf32> to vector<16x8xf32>
    %329 = vector.shape_cast %328 : vector<16x8xf32> to vector<2x8x8xf32>
    %330 = vector.extract_strided_slice %255 {offsets = [0, 56], sizes = [16, 8], strides = [1, 1]} : vector<16x96xf32> to vector<16x8xf32>
    %331 = vector.shape_cast %330 : vector<16x8xf32> to vector<2x8x8xf32>
    %332 = vector.extract_strided_slice %255 {offsets = [0, 88], sizes = [16, 8], strides = [1, 1]} : vector<16x96xf32> to vector<16x8xf32>
    %333 = vector.shape_cast %332 : vector<16x8xf32> to vector<2x8x8xf32>
    "tpu.trace_start"() <{level = 10 : i32, message = "bqd,bkd->bqk"}> : () -> ()
    %cst_113 = arith.constant dense<0.000000e+00> : vector<2x8x8xf32>
    %334 = tpu.matmul %329, %331, %cst_113 {dimension_numbers = #tpu.dot_dimension_numbers<[2], [2], [1], [1], [0, 0, 0, 1, 1, 1], [0], [0]>} : vector<2x8x8xf32>, vector<2x8x8xf32>, vector<2x8x8xf32> -> vector<2x8x8xf32>
    "tpu.trace_stop"() : () -> ()
    %cst_114 = arith.constant 0.353553385 : f32
    %335 = vector.broadcast %cst_114 : f32 to vector<2x8x8xf32>
    %336 = arith.mulf %334, %335 : vector<2x8x8xf32>
    %337 = vector.shape_cast %2 : vector<8x8xf32> to vector<1x8x8xf32>
    %338 = vector.broadcast %337 : vector<1x8x8xf32> to vector<2x8x8xf32>
    %339 = arith.addf %336, %338 : vector<2x8x8xf32>
    %cst_115 = arith.constant dense<0xFF800000> : vector<2x8xf32>
    %340 = vector.multi_reduction <maximumf>, %339, %cst_115 [2] : vector<2x8x8xf32> to vector<2x8xf32>
    %341 = vector.shape_cast %340 : vector<2x8xf32> to vector<2x8x1xf32>
    %342 = vector.broadcast %341 : vector<2x8x1xf32> to vector<2x8x8xf32>
    %343 = arith.subf %339, %342 : vector<2x8x8xf32>
    %344 = math.exp %343 : vector<2x8x8xf32>
    %cst_116 = arith.constant dense<0.000000e+00> : vector<2x8xf32>
    %345 = vector.multi_reduction <add>, %344, %cst_116 [2] : vector<2x8x8xf32> to vector<2x8xf32>
    %346 = vector.shape_cast %345 : vector<2x8xf32> to vector<2x8x1xf32>
    %347 = tpu.reciprocal %346 {approx = true} : vector<2x8x1xf32> -> vector<2x8x1xf32>
    %348 = vector.broadcast %347 : vector<2x8x1xf32> to vector<2x8x8xf32>
    %349 = arith.mulf %344, %348 : vector<2x8x8xf32>
    "tpu.trace_start"() <{level = 10 : i32, message = "bqk,bkd->bqd"}> : () -> ()
    %cst_117 = arith.constant dense<0.000000e+00> : vector<2x8x8xf32>
    %350 = tpu.matmul %349, %333, %cst_117 {dimension_numbers = #tpu.dot_dimension_numbers<[2], [1], [1], [2], [0, 0, 0, 1, 1, 2], [0], [0]>} : vector<2x8x8xf32>, vector<2x8x8xf32>, vector<2x8x8xf32> -> vector<2x8x8xf32>
    "tpu.trace_stop"() : () -> ()
    %351 = vector.shape_cast %350 : vector<2x8x8xf32> to vector<16x8xf32>
    %352 = tpu.concatenate %279, %303, %327, %351 in 1 : vector<16x8xf32>, vector<16x8xf32>, vector<16x8xf32>, vector<16x8xf32> -> vector<16x32xf32>
    %c1_118 = arith.constant 1 : index
    %c0_119 = arith.constant 0 : index
    %c0_120 = arith.constant 0 : index
    %353 = vector.load %arg5[%c1_118, %c0_119, %c0_120] : memref<2x32x32xbf16, #tpu.memory_space<vmem>>, vector<1x32x32xbf16>
    %354 = vector.shape_cast %353 : vector<1x32x32xbf16> to vector<32x32xbf16>
    %355 = arith.truncf %352 : vector<16x32xf32> to vector<16x32xbf16>
    %cst_121 = arith.constant dense<0.000000e+00> : vector<16x32xf32>
    %356 = tpu.matmul %355, %354, %cst_121 {dimension_numbers = #tpu.dot_dimension_numbers<[1], [0], [0], [1], [0, 0, 1, 1], [], []>} : vector<16x32xbf16>, vector<32x32xbf16>, vector<16x32xf32> -> vector<16x32xf32>
    %c1_122 = arith.constant 1 : index
    %c0_123 = arith.constant 0 : index
    %357 = vector.load %arg6[%c1_122, %c0_123] : memref<2x32xf32, #tpu.memory_space<vmem>>, vector<1x32xf32>
    %358 = vector.shape_cast %357 : vector<1x32xf32> to vector<32xf32>
    %359 = vector.shape_cast %358 : vector<32xf32> to vector<1x32xf32>
    %360 = vector.broadcast %359 : vector<1x32xf32> to vector<16x32xf32>
    %361 = arith.addf %356, %360 : vector<16x32xf32>
    %362 = arith.addf %246, %361 : vector<16x32xf32>
    %c1_124 = arith.constant 1 : index
    %c0_125 = arith.constant 0 : index
    %c0_126 = arith.constant 0 : index
    %363 = vector.load %arg15[%c1_124, %c0_125, %c0_126] : memref<2x3x32xf32, #tpu.memory_space<vmem>>, vector<1x1x32xf32>
    %364 = vector.shape_cast %363 : vector<1x1x32xf32> to vector<32xf32>
    %c1_127 = arith.constant 1 : index
    %c0_128 = arith.constant 0 : index
    %c0_129 = arith.constant 0 : index
    %365 = vector.load %arg16[%c1_127, %c0_128, %c0_129] : memref<2x3x32xf32, #tpu.memory_space<vmem>>, vector<1x1x32xf32>
    %366 = vector.shape_cast %365 : vector<1x1x32xf32> to vector<32xf32>
    %cst_130 = arith.constant dense<0.000000e+00> : vector<16xf32>
    %367 = vector.multi_reduction <add>, %362, %cst_130 [1] : vector<16x32xf32> to vector<16xf32>
    %368 = vector.shape_cast %367 : vector<16xf32> to vector<16x1xf32>
    %cst_131 = arith.constant 3.200000e+01 : f32
    %369 = vector.broadcast %cst_131 : f32 to vector<16x1xf32>
    %370 = arith.divf %368, %369 : vector<16x1xf32>
    %371 = vector.broadcast %370 : vector<16x1xf32> to vector<16x32xf32>
    %372 = arith.subf %362, %371 : vector<16x32xf32>
    %373 = arith.mulf %372, %372 : vector<16x32xf32>
    %cst_132 = arith.constant dense<0.000000e+00> : vector<16xf32>
    %374 = vector.multi_reduction <add>, %373, %cst_132 [1] : vector<16x32xf32> to vector<16xf32>
    %375 = vector.shape_cast %374 : vector<16xf32> to vector<16x1xf32>
    %cst_133 = arith.constant 3.200000e+01 : f32
    %376 = vector.broadcast %cst_133 : f32 to vector<16x1xf32>
    %377 = arith.divf %375, %376 : vector<16x1xf32>
    %378 = vector.broadcast %370 : vector<16x1xf32> to vector<16x32xf32>
    %379 = arith.subf %362, %378 : vector<16x32xf32>
    %cst_134 = arith.constant 9.99999974E-6 : f32
    %380 = vector.broadcast %cst_134 : f32 to vector<16x1xf32>
    %381 = arith.addf %377, %380 : vector<16x1xf32>
    %382 = math.rsqrt %381 : vector<16x1xf32>
    %383 = vector.broadcast %382 : vector<16x1xf32> to vector<16x32xf32>
    %384 = arith.mulf %379, %383 : vector<16x32xf32>
    %385 = vector.shape_cast %364 : vector<32xf32> to vector<1x32xf32>
    %386 = vector.broadcast %385 : vector<1x32xf32> to vector<16x32xf32>
    %387 = arith.mulf %384, %386 : vector<16x32xf32>
    %388 = vector.shape_cast %366 : vector<32xf32> to vector<1x32xf32>
    %389 = vector.broadcast %388 : vector<1x32xf32> to vector<16x32xf32>
    %390 = arith.addf %387, %389 : vector<16x32xf32>
    %c1_135 = arith.constant 1 : index
    %c0_136 = arith.constant 0 : index
    %c0_137 = arith.constant 0 : index
    %391 = vector.load %arg7[%c1_135, %c0_136, %c0_137] : memref<2x32x32xbf16, #tpu.memory_space<vmem>>, vector<1x32x32xbf16>
    %392 = vector.shape_cast %391 : vector<1x32x32xbf16> to vector<32x32xbf16>
    %393 = arith.truncf %1 : vector<2x32xf32> to vector<2x32xbf16>
    %cst_138 = arith.constant dense<0.000000e+00> : vector<2x32xf32>
    %394 = tpu.matmul %393, %392, %cst_138 {dimension_numbers = #tpu.dot_dimension_numbers<[1], [0], [0], [1], [0, 0, 1, 1], [], []>} : vector<2x32xbf16>, vector<32x32xbf16>, vector<2x32xf32> -> vector<2x32xf32>
    %c1_139 = arith.constant 1 : index
    %c0_140 = arith.constant 0 : index
    %395 = vector.load %arg8[%c1_139, %c0_140] : memref<2x32xf32, #tpu.memory_space<vmem>>, vector<1x32xf32>
    %396 = vector.shape_cast %395 : vector<1x32xf32> to vector<32xf32>
    %397 = vector.shape_cast %396 : vector<32xf32> to vector<1x32xf32>
    %398 = vector.broadcast %397 : vector<1x32xf32> to vector<2x32xf32>
    %399 = arith.addf %394, %398 : vector<2x32xf32>
    %c1_141 = arith.constant 1 : index
    %c0_142 = arith.constant 0 : index
    %c0_143 = arith.constant 0 : index
    %400 = vector.load %arg9[%c1_141, %c0_142, %c0_143] : memref<2x32x32xbf16, #tpu.memory_space<vmem>>, vector<1x32x32xbf16>
    %401 = vector.shape_cast %400 : vector<1x32x32xbf16> to vector<32x32xbf16>
    %402 = arith.truncf %399 : vector<2x32xf32> to vector<2x32xbf16>
    %cst_144 = arith.constant dense<0.000000e+00> : vector<2x32xf32>
    %403 = tpu.matmul %402, %401, %cst_144 {dimension_numbers = #tpu.dot_dimension_numbers<[1], [0], [0], [1], [0, 0, 1, 1], [], []>} : vector<2x32xbf16>, vector<32x32xbf16>, vector<2x32xf32> -> vector<2x32xf32>
    %c1_145 = arith.constant 1 : index
    %c0_146 = arith.constant 0 : index
    %404 = vector.load %arg10[%c1_145, %c0_146] : memref<2x32xf32, #tpu.memory_space<vmem>>, vector<1x32xf32>
    %405 = vector.shape_cast %404 : vector<1x32xf32> to vector<32xf32>
    %406 = vector.shape_cast %405 : vector<32xf32> to vector<1x32xf32>
    %407 = vector.broadcast %406 : vector<1x32xf32> to vector<2x32xf32>
    %408 = arith.addf %403, %407 : vector<2x32xf32>
    %409 = vector.shape_cast %390 : vector<16x32xf32> to vector<2x8x32xf32>
    %410 = vector.shape_cast %408 : vector<2x32xf32> to vector<2x1x32xf32>
    %411 = vector.broadcast %410 : vector<2x1x32xf32> to vector<2x8x32xf32>
    %412 = arith.addf %409, %411 : vector<2x8x32xf32>
    %413 = vector.shape_cast %412 : vector<2x8x32xf32> to vector<16x32xf32>
    %c1_147 = arith.constant 1 : index
    %c1_148 = arith.constant 1 : index
    %c0_149 = arith.constant 0 : index
    %414 = vector.load %arg15[%c1_147, %c1_148, %c0_149] : memref<2x3x32xf32, #tpu.memory_space<vmem>>, vector<1x1x32xf32>
    %415 = vector.shape_cast %414 : vector<1x1x32xf32> to vector<32xf32>
    %c1_150 = arith.constant 1 : index
    %c1_151 = arith.constant 1 : index
    %c0_152 = arith.constant 0 : index
    %416 = vector.load %arg16[%c1_150, %c1_151, %c0_152] : memref<2x3x32xf32, #tpu.memory_space<vmem>>, vector<1x1x32xf32>
    %417 = vector.shape_cast %416 : vector<1x1x32xf32> to vector<32xf32>
    %cst_153 = arith.constant dense<0.000000e+00> : vector<16xf32>
    %418 = vector.multi_reduction <add>, %413, %cst_153 [1] : vector<16x32xf32> to vector<16xf32>
    %419 = vector.shape_cast %418 : vector<16xf32> to vector<16x1xf32>
    %cst_154 = arith.constant 3.200000e+01 : f32
    %420 = vector.broadcast %cst_154 : f32 to vector<16x1xf32>
    %421 = arith.divf %419, %420 : vector<16x1xf32>
    %422 = vector.broadcast %421 : vector<16x1xf32> to vector<16x32xf32>
    %423 = arith.subf %413, %422 : vector<16x32xf32>
    %424 = arith.mulf %423, %423 : vector<16x32xf32>
    %cst_155 = arith.constant dense<0.000000e+00> : vector<16xf32>
    %425 = vector.multi_reduction <add>, %424, %cst_155 [1] : vector<16x32xf32> to vector<16xf32>
    %426 = vector.shape_cast %425 : vector<16xf32> to vector<16x1xf32>
    %cst_156 = arith.constant 3.200000e+01 : f32
    %427 = vector.broadcast %cst_156 : f32 to vector<16x1xf32>
    %428 = arith.divf %426, %427 : vector<16x1xf32>
    %429 = vector.broadcast %421 : vector<16x1xf32> to vector<16x32xf32>
    %430 = arith.subf %413, %429 : vector<16x32xf32>
    %cst_157 = arith.constant 9.99999974E-6 : f32
    %431 = vector.broadcast %cst_157 : f32 to vector<16x1xf32>
    %432 = arith.addf %428, %431 : vector<16x1xf32>
    %433 = math.rsqrt %432 : vector<16x1xf32>
    %434 = vector.broadcast %433 : vector<16x1xf32> to vector<16x32xf32>
    %435 = arith.mulf %430, %434 : vector<16x32xf32>
    %436 = vector.shape_cast %415 : vector<32xf32> to vector<1x32xf32>
    %437 = vector.broadcast %436 : vector<1x32xf32> to vector<16x32xf32>
    %438 = arith.mulf %435, %437 : vector<16x32xf32>
    %439 = vector.shape_cast %417 : vector<32xf32> to vector<1x32xf32>
    %440 = vector.broadcast %439 : vector<1x32xf32> to vector<16x32xf32>
    %441 = arith.addf %438, %440 : vector<16x32xf32>
    %c1_158 = arith.constant 1 : index
    %c0_159 = arith.constant 0 : index
    %c0_160 = arith.constant 0 : index
    %442 = vector.load %arg11[%c1_158, %c0_159, %c0_160] : memref<2x32x2048xbf16, #tpu.memory_space<vmem>>, vector<1x32x2048xbf16>
    %443 = vector.shape_cast %442 : vector<1x32x2048xbf16> to vector<32x2048xbf16>
    %444 = arith.truncf %441 : vector<16x32xf32> to vector<16x32xbf16>
    %cst_161 = arith.constant dense<0.000000e+00> : vector<16x2048xf32>
    %445 = tpu.matmul %444, %443, %cst_161 {dimension_numbers = #tpu.dot_dimension_numbers<[1], [0], [0], [1], [0, 0, 1, 1], [], []>} : vector<16x32xbf16>, vector<32x2048xbf16>, vector<16x2048xf32> -> vector<16x2048xf32>
    %c1_162 = arith.constant 1 : index
    %c0_163 = arith.constant 0 : index
    %446 = vector.load %arg12[%c1_162, %c0_163] : memref<2x2048xf32, #tpu.memory_space<vmem>>, vector<1x2048xf32>
    %447 = vector.shape_cast %446 : vector<1x2048xf32> to vector<2048xf32>
    %448 = vector.shape_cast %447 : vector<2048xf32> to vector<1x2048xf32>
    %449 = vector.broadcast %448 : vector<1x2048xf32> to vector<16x2048xf32>
    %450 = arith.addf %445, %449 : vector<16x2048xf32>
    %cst_164 = arith.constant 0.000000e+00 : f32
    %451 = vector.broadcast %cst_164 : f32 to vector<16x2048xf32>
    %452 = arith.maximumf %450, %451 : vector<16x2048xf32>
    %c1_165 = arith.constant 1 : index
    %c0_166 = arith.constant 0 : index
    %c0_167 = arith.constant 0 : index
    %453 = vector.load %arg13[%c1_165, %c0_166, %c0_167] : memref<2x2048x32xbf16, #tpu.memory_space<vmem>>, vector<1x2048x32xbf16>
    %454 = vector.shape_cast %453 : vector<1x2048x32xbf16> to vector<2048x32xbf16>
    %455 = arith.truncf %452 : vector<16x2048xf32> to vector<16x2048xbf16>
    %cst_168 = arith.constant dense<0.000000e+00> : vector<16x32xf32>
    %456 = tpu.matmul %455, %454, %cst_168 {dimension_numbers = #tpu.dot_dimension_numbers<[1], [0], [0], [1], [0, 0, 1, 1], [], []>} : vector<16x2048xbf16>, vector<2048x32xbf16>, vector<16x32xf32> -> vector<16x32xf32>
    %c1_169 = arith.constant 1 : index
    %c0_170 = arith.constant 0 : index
    %457 = vector.load %arg14[%c1_169, %c0_170] : memref<2x32xf32, #tpu.memory_space<vmem>>, vector<1x32xf32>
    %458 = vector.shape_cast %457 : vector<1x32xf32> to vector<32xf32>
    %459 = vector.shape_cast %458 : vector<32xf32> to vector<1x32xf32>
    %460 = vector.broadcast %459 : vector<1x32xf32> to vector<16x32xf32>
    %461 = arith.addf %456, %460 : vector<16x32xf32>
    %462 = arith.addf %441, %461 : vector<16x32xf32>
    %c1_171 = arith.constant 1 : index
    %c2_172 = arith.constant 2 : index
    %c0_173 = arith.constant 0 : index
    %463 = vector.load %arg15[%c1_171, %c2_172, %c0_173] : memref<2x3x32xf32, #tpu.memory_space<vmem>>, vector<1x1x32xf32>
    %464 = vector.shape_cast %463 : vector<1x1x32xf32> to vector<32xf32>
    %c1_174 = arith.constant 1 : index
    %c2_175 = arith.constant 2 : index
    %c0_176 = arith.constant 0 : index
    %465 = vector.load %arg16[%c1_174, %c2_175, %c0_176] : memref<2x3x32xf32, #tpu.memory_space<vmem>>, vector<1x1x32xf32>
    %466 = vector.shape_cast %465 : vector<1x1x32xf32> to vector<32xf32>
    %cst_177 = arith.constant dense<0.000000e+00> : vector<16xf32>
    %467 = vector.multi_reduction <add>, %462, %cst_177 [1] : vector<16x32xf32> to vector<16xf32>
    %468 = vector.shape_cast %467 : vector<16xf32> to vector<16x1xf32>
    %cst_178 = arith.constant 3.200000e+01 : f32
    %469 = vector.broadcast %cst_178 : f32 to vector<16x1xf32>
    %470 = arith.divf %468, %469 : vector<16x1xf32>
    %471 = vector.broadcast %470 : vector<16x1xf32> to vector<16x32xf32>
    %472 = arith.subf %462, %471 : vector<16x32xf32>
    %473 = arith.mulf %472, %472 : vector<16x32xf32>
    %cst_179 = arith.constant dense<0.000000e+00> : vector<16xf32>
    %474 = vector.multi_reduction <add>, %473, %cst_179 [1] : vector<16x32xf32> to vector<16xf32>
    %475 = vector.shape_cast %474 : vector<16xf32> to vector<16x1xf32>
    %cst_180 = arith.constant 3.200000e+01 : f32
    %476 = vector.broadcast %cst_180 : f32 to vector<16x1xf32>
    %477 = arith.divf %475, %476 : vector<16x1xf32>
    %478 = vector.broadcast %470 : vector<16x1xf32> to vector<16x32xf32>
    %479 = arith.subf %462, %478 : vector<16x32xf32>
    %cst_181 = arith.constant 9.99999974E-6 : f32
    %480 = vector.broadcast %cst_181 : f32 to vector<16x1xf32>
    %481 = arith.addf %477, %480 : vector<16x1xf32>
    %482 = math.rsqrt %481 : vector<16x1xf32>
    %483 = vector.broadcast %482 : vector<16x1xf32> to vector<16x32xf32>
    %484 = arith.mulf %479, %483 : vector<16x32xf32>
    %485 = vector.shape_cast %464 : vector<32xf32> to vector<1x32xf32>
    %486 = vector.broadcast %485 : vector<1x32xf32> to vector<16x32xf32>
    %487 = arith.mulf %484, %486 : vector<16x32xf32>
    %488 = vector.shape_cast %466 : vector<32xf32> to vector<1x32xf32>
    %489 = vector.broadcast %488 : vector<1x32xf32> to vector<16x32xf32>
    %490 = arith.addf %487, %489 : vector<16x32xf32>
    %c0_182 = arith.constant 0 : index
    %c0_183 = arith.constant 0 : index
    %491 = vector.load %arg17[%c0_182, %c0_183] : memref<32x128xbf16, #tpu.memory_space<vmem>>, vector<32x128xbf16>
    %492 = arith.truncf %490 : vector<16x32xf32> to vector<16x32xbf16>
    %cst_184 = arith.constant dense<0.000000e+00> : vector<16x128xf32>
    %493 = tpu.matmul %492, %491, %cst_184 {dimension_numbers = #tpu.dot_dimension_numbers<[1], [0], [0], [1], [0, 0, 1, 1], [], []>} : vector<16x32xbf16>, vector<32x128xbf16>, vector<16x128xf32> -> vector<16x128xf32>
    %c0_185 = arith.constant 0 : index
    %c0_186 = arith.constant 0 : index
    %494 = vector.load %arg18[%c0_185, %c0_186] : memref<1x128xf32, #tpu.memory_space<vmem>>, vector<1x128xf32>
    %495 = vector.broadcast %494 : vector<1x128xf32> to vector<16x128xf32>
    %496 = arith.addf %493, %495 : vector<16x128xf32>
    %c0_187 = arith.constant 0 : index
    %c0_188 = arith.constant 0 : index
    %497 = vector.load %arg19[%c0_187, %c0_188] : memref<16x128xf32, #tpu.memory_space<vmem>>, vector<16x128xf32>
    tpu.vector_store %arg19[%c0_187, %c0_188], %496 {strides = array<i32>} : memref<16x128xf32, #tpu.memory_space<vmem>>, vector<16x128xf32>,
    return
  }
}

</mosaic_0001>

<llo_original>
// kernel: transformers_decoder_forward.1
$region0: #{transformers_decoder_forward.1}
  #allocation0 [shape = 'u32[]', space=smem, size = 0x4, offset = 0x4, fixed_abs, tag = 'smem constant byte address 0x4 - core index']
  #allocation1 [shape = 'u32[144,128]{1,0:T(1,128)}', space=vmem, size = 0x12000, scoped, tag = 'internal scratch']
  %s0 = inlined_call_operand.vmem [shape: f32[16,32], index: 0, kind: input, shape index: {}]
  %s1 = inlined_call_operand.vmem [shape: f32[2,32], index: 1, kind: input, shape index: {}]
  %s2 = inlined_call_operand.vmem [shape: f32[8,8], index: 2, kind: input, shape index: {}]
  %s3 = inlined_call_operand.vmem [shape: bf16[2,32,96], index: 3, kind: input, shape index: {}]
  %s4 = inlined_call_operand.vmem [shape: f32[2,96], index: 4, kind: input, shape index: {}]
  %s5 = inlined_call_operand.vmem [shape: bf16[2,32,32], index: 5, kind: input, shape index: {}]
  %s6 = inlined_call_operand.vmem [shape: f32[2,32], index: 6, kind: input, shape index: {}]
  %s7 = inlined_call_operand.vmem [shape: bf16[2,32,32], index: 7, kind: input, shape index: {}]
  %s8 = inlined_call_operand.vmem [shape: f32[2,32], index: 8, kind: input, shape index: {}]
  %s9 = inlined_call_operand.vmem [shape: bf16[2,32,32], index: 9, kind: input, shape index: {}]
  %s10 = inlined_call_operand.vmem [shape: f32[2,32], index: 10, kind: input, shape index: {}]
  %s11 = inlined_call_operand.vmem [shape: bf16[2,32,2048], index: 11, kind: input, shape index: {}]
  %s12 = inlined_call_operand.vmem [shape: f32[2,2048], index: 12, kind: input, shape index: {}]
  %s13 = inlined_call_operand.vmem [shape: bf16[2,2048,32], index: 13, kind: input, shape index: {}]
  %s14 = inlined_call_operand.vmem [shape: f32[2,32], index: 14, kind: input, shape index: {}]
  %s15 = inlined_call_operand.vmem [shape: f32[2,3,32], index: 15, kind: input, shape index: {}]
  %s16 = inlined_call_operand.vmem [shape: f32[2,3,32], index: 16, kind: input, shape index: {}]
  %s17 = inlined_call_operand.vmem [shape: bf16[32,128], index: 17, kind: input, shape index: {}]
  %s18 = inlined_call_operand.vmem [shape: f32[1,128], index: 18, kind: input, shape index: {}]
  %s19 = inlined_call_operand.vmem [shape: f32[16,128], index: 19, kind: output, shape index: {}]
  %s20 = sld [smem:[#allocation0]]
  $region86: #{transformers_decoder_forward.1} parent=0
    _
  %s22 = ssub.s32 1, %s20
  %s23 = scalar_select 0, %s22, %s20
  // Predicated region
  $region2: #{transformers_decoder_forward.1} parent=0 // pred_check
    _
  $region3: #{transformers_decoder_forward.1} parent=0 // pred_check_branch
    %25 = sbr.rel (0) target = $region5
  $region4: #{transformers_decoder_forward.1} parent=0 // pred_region
    _
  $region5: #{transformers_decoder_forward.1} parent=0 // pred_fallthru
    _
  // Predicated region
  $region6: #{transformers_decoder_forward.1} parent=0 // pred_check
    _
  $region7: #{transformers_decoder_forward.1} parent=0 // pred_check_branch
    %27 = sbr.rel (0) target = $region9
  $region8: #{transformers_decoder_forward.1} parent=0 // pred_region
    _
  $region9: #{transformers_decoder_forward.1} parent=0 // pred_fallthru
    _
  // Predicated region
  $region10: #{transformers_decoder_forward.1} parent=0 // pred_check
    _
  $region11: #{transformers_decoder_forward.1} parent=0 // pred_check_branch
    %29 = sbr.rel (0) target = $region13
  $region12: #{transformers_decoder_forward.1} parent=0 // pred_region
    _
  $region13: #{transformers_decoder_forward.1} parent=0 // pred_fallthru
    _
  // Predicated region
  $region14: #{transformers_decoder_forward.1} parent=0 // pred_check
    _
  $region15: #{transformers_decoder_forward.1} parent=0 // pred_check_branch
    %31 = sbr.rel (0) target = $region17
  $region16: #{transformers_decoder_forward.1} parent=0 // pred_region
    _
  $region17: #{transformers_decoder_forward.1} parent=0 // pred_fallthru
    _
  // Predicated region
  $region18: #{transformers_decoder_forward.1} parent=0 // pred_check
    _
  $region19: #{transformers_decoder_forward.1} parent=0 // pred_check_branch
    %33 = sbr.rel (0) target = $region21
  $region20: #{transformers_decoder_forward.1} parent=0 // pred_region
    _
  $region21: #{transformers_decoder_forward.1} parent=0 // pred_fallthru
    _
  // Predicated region
  $region22: #{transformers_decoder_forward.1} parent=0 // pred_check
    _
  $region23: #{transformers_decoder_forward.1} parent=0 // pred_check_branch
    %35 = sbr.rel (0) target = $region25
  $region24: #{transformers_decoder_forward.1} parent=0 // pred_region
    _
  $region25: #{transformers_decoder_forward.1} parent=0 // pred_fallthru
    _
  // Predicated region
  $region26: #{transformers_decoder_forward.1} parent=0 // pred_check
    _
  $region27: #{transformers_decoder_forward.1} parent=0 // pred_check_branch
    %37 = sbr.rel (0) target = $region29
  $region28: #{transformers_decoder_forward.1} parent=0 // pred_region
    _
  $region29: #{transformers_decoder_forward.1} parent=0 // pred_fallthru
    _
  // Predicated region
  $region30: #{transformers_decoder_forward.1} parent=0 // pred_check
    _
  $region31: #{transformers_decoder_forward.1} parent=0 // pred_check_branch
    %39 = sbr.rel (0) target = $region33
  $region32: #{transformers_decoder_forward.1} parent=0 // pred_region
    _
  $region33: #{transformers_decoder_forward.1} parent=0 // pred_fallthru
    _
  // Predicated region
  $region34: #{transformers_decoder_forward.1} parent=0 // pred_check
    _
  $region35: #{transformers_decoder_forward.1} parent=0 // pred_check_branch
    %41 = sbr.rel (0) target = $region37
  $region36: #{transformers_decoder_forward.1} parent=0 // pred_region
    _
  $region37: #{transformers_decoder_forward.1} parent=0 // pred_fallthru
    _
  // Predicated region
  $region38: #{transformers_decoder_forward.1} parent=0 // pred_check
    _
  $region39: #{transformers_decoder_forward.1} parent=0 // pred_check_branch
    %43 = sbr.rel (0) target = $region41
  $region40: #{transformers_decoder_forward.1} parent=0 // pred_region
    _
  $region41: #{transformers_decoder_forward.1} parent=0 // pred_fallthru
    _
  // Predicated region
  $region42: #{transformers_decoder_forward.1} parent=0 // pred_check
    _
  $region43: #{transformers_decoder_forward.1} parent=0 // pred_check_branch
    %45 = sbr.rel (0) target = $region45
  $region44: #{transformers_decoder_forward.1} parent=0 // pred_region
    _
  $region45: #{transformers_decoder_forward.1} parent=0 // pred_fallthru
    _
  // Predicated region
  $region46: #{transformers_decoder_forward.1} parent=0 // pred_check
    _
  $region47: #{transformers_decoder_forward.1} parent=0 // pred_check_branch
    %47 = sbr.rel (0) target = $region49
  $region48: #{transformers_decoder_forward.1} parent=0 // pred_region
    _
  $region49: #{transformers_decoder_forward.1} parent=0 // pred_fallthru
    _
  // Predicated region
  $region50: #{transformers_decoder_forward.1} parent=0 // pred_check
    _
  $region51: #{transformers_decoder_forward.1} parent=0 // pred_check_branch
    %49 = sbr.rel (0) target = $region53
  $region52: #{transformers_decoder_forward.1} parent=0 // pred_region
    _
  $region53: #{transformers_decoder_forward.1} parent=0 // pred_fallthru
    _
  // Predicated region
  $region54: #{transformers_decoder_forward.1} parent=0 // pred_check
    _
  $region55: #{transformers_decoder_forward.1} parent=0 // pred_check_branch
    %51 = sbr.rel (0) target = $region57
  $region56: #{transformers_decoder_forward.1} parent=0 // pred_region
    _
  $region57: #{transformers_decoder_forward.1} parent=0 // pred_fallthru
    _
  // Predicated region
  $region58: #{transformers_decoder_forward.1} parent=0 // pred_check
    _
  $region59: #{transformers_decoder_forward.1} parent=0 // pred_check_branch
    %53 = sbr.rel (0) target = $region61
  $region60: #{transformers_decoder_forward.1} parent=0 // pred_region
    _
  $region61: #{transformers_decoder_forward.1} parent=0 // pred_fallthru
    _
  // Predicated region
  $region62: #{transformers_decoder_forward.1} parent=0 // pred_check
    _
  $region63: #{transformers_decoder_forward.1} parent=0 // pred_check_branch
    %55 = sbr.rel (0) target = $region65
  $region64: #{transformers_decoder_forward.1} parent=0 // pred_region
    _
  $region65: #{transformers_decoder_forward.1} parent=0 // pred_fallthru
    _
  // Predicated region
  $region66: #{transformers_decoder_forward.1} parent=0 // pred_check
    _
  $region67: #{transformers_decoder_forward.1} parent=0 // pred_check_branch
    %57 = sbr.rel (0) target = $region69
  $region68: #{transformers_decoder_forward.1} parent=0 // pred_region
    _
  $region69: #{transformers_decoder_forward.1} parent=0 // pred_fallthru
    _
  // Predicated region
  $region70: #{transformers_decoder_forward.1} parent=0 // pred_check
    _
  $region71: #{transformers_decoder_forward.1} parent=0 // pred_check_branch
    %59 = sbr.rel (0) target = $region73
  $region72: #{transformers_decoder_forward.1} parent=0 // pred_region
    _
  $region73: #{transformers_decoder_forward.1} parent=0 // pred_fallthru
    _
  // Predicated region
  $region74: #{transformers_decoder_forward.1} parent=0 // pred_check
    _
  $region75: #{transformers_decoder_forward.1} parent=0 // pred_check_branch
    %61 = sbr.rel (0) target = $region77
  $region76: #{transformers_decoder_forward.1} parent=0 // pred_region
    _
  $region77: #{transformers_decoder_forward.1} parent=0 // pred_fallthru
    _
  %v63 = vld [vmem:[%s0] sm:$0xff]
  %v64 = vld [vmem:[%s0 + $0x8] sm:$0xff]
  %v65 = vld [vmem:[%s1] sm:$0x3]
  %v66 = vld [vmem:[%s2] sm:$0xff]
  %v67 = vld [vmem:[%s3] sm:$0xf]
  %v68 = vld [vmem:[%s3 + $0x4] sm:$0xf]
  %v69 = vld [vmem:[%s3 + $0x8] sm:$0xf]
  %v70 = vld [vmem:[%s3 + $0xc] sm:$0xf]
  %v71 = vpack.c.bf16 %v64, %v63
  %v72 = vld [vmem:[%s4] sm:$0x1]
  %v73 = vlaneseq
  %v74 = vshrl.u32 %v73, 7
  %v75 = vsub.s32 0, %v74
  %v76 = vrot.slane %v72, %v75
  %v81 = vunpack.c.l.b16 %v67
  %v82 = vunpack.c.l.b16 %v68
  %v83 = vunpack.c.l.b16 %v69
  %v84 = vunpack.c.l.b16 %v70
  %v85 = vpack.c.b16 %v82, %v81
  %v86 = vpack.c.b16 %v84, %v83
  %vm89 = vcmask 261120
  %v91 = vsel %vm89, %v71, 0
  %93 = vmatprep.subr.bf16.mxu0 0
  %94 = vmatpush1.bf16.msra.mxu0 %v85
  %95 = vmatprep.subr.bf16.mxu0 0
  %96 = vmatpush1.bf16.msra.mxu0 %v86
  %97 = vmatprep.subr.bf16.mxu0 0
  %98 = vmatpush1.bf16.msra.mxu0 0
  %99 = vmatprep.subr.bf16.mxu0 0
  %100 = vmatpush1.bf16.msra.mxu0 0
  %101 = vmatprep.subr.bf16.mxu0 0
  %102 = vmatpush1.bf16.msra.mxu0 0
  %103 = vmatprep.subr.bf16.mxu0 0
  %104 = vmatpush1.bf16.msra.mxu0 0
  %105 = vmatprep.subr.bf16.mxu0 0
  %106 = vmatpush1.bf16.msra.mxu0 0
  %107 = vmatprep.subr.bf16.mxu0 0
  %108 = vmatpush1.bf16.msra.mxu0 0
  %109 = vmatprep.subr.bf16.mxu0 0
  %110 = vmatpush1.bf16.msra.mxu0 0
  %111 = vmatprep.subr.bf16.mxu0 0
  %112 = vmatpush1.bf16.msra.mxu0 0
  %113 = vmatprep.subr.bf16.mxu0 0
  %114 = vmatpush1.bf16.msra.mxu0 0
  %115 = vmatprep.subr.bf16.mxu0 0
  %116 = vmatpush1.bf16.msra.mxu0 0
  %117 = vmatprep.subr.bf16.mxu0 0
  %118 = vmatpush1.bf16.msra.mxu0 0
  %119 = vmatprep.subr.bf16.mxu0 0
  %120 = vmatpush1.bf16.msra.mxu0 0
  %121 = vmatprep.subr.bf16.mxu0 0
  %122 = vmatpush1.bf16.msra.mxu0 0
  %123 = vmatprep.subr.bf16.mxu0 0
  %124 = vmatpush1.bf16.msra.mxu0 0
  %125 = vmatprep.mubr.bf16.mxu0 0
  %126 = vmatmul.mubr.bf16.gmra.mrb[0].mxu0 %v91
  %v127 = vpop.f32.mrb[0].mxu0
  %v128 = vadd.f32 %v76, %v127
  %v129 = vpop.f32.mrb[0].mxu0
  %v130 = vpop.f32.mrb[0].mxu0
  %v131 = vadd.f32 %v76, %v130
  %v132 = vpop.f32.mrb[0].mxu0
  %133 = vdwg.mxu0
  %135 = vrot.lane.b32.xlu0 %v128, 96
  %v136 = vpop.permute.xlu0 %135
  %vm137 = vcmask 64512
  %v138 = vsel %vm137, %v128, 0
  %v140 = vsel %vm137, %v136, 0
  %142 = vmatprep.subr.mxu0 0.0
  %143 = vmatpush1.xpose.msra.mxu0 %v140
  %144 = vmatprep.subr.mxu0 0.0
  %145 = vmatpush1.xpose.msra.mxu0 0.0
  %146 = vmatprep.subr.mxu0 0.0
  %147 = vmatpush1.xpose.msra.mxu0 0.0
  %148 = vmatprep.subr.mxu0 0.0
  %149 = vmatpush1.xpose.msra.mxu0 0.0
  %150 = vmatprep.subr.mxu0 0.0
  %151 = vmatpush1.xpose.msra.mxu0 0.0
  %152 = vmatprep.subr.mxu0 0.0
  %153 = vmatpush1.xpose.msra.mxu0 0.0
  %154 = vmatprep.subr.mxu0 0.0
  %155 = vmatpush1.xpose.msra.mxu0 0.0
  %156 = vmatprep.subr.mxu0 0.0
  %157 = vmatpush1.xpose.msra.mxu0 0.0
  %158 = vmatprep.subr.mxu0 0.0
  %159 = vmatpush1.xpose.msra.mxu0 0.0
  %160 = vmatprep.subr.mxu0 0.0
  %161 = vmatpush1.xpose.msra.mxu0 0.0
  %162 = vmatprep.subr.mxu0 0.0
  %163 = vmatpush1.xpose.msra.mxu0 0.0
  %164 = vmatprep.subr.mxu0 0.0
  %165 = vmatpush1.xpose.msra.mxu0 0.0
  %166 = vmatprep.subr.mxu0 0.0
  %167 = vmatpush1.xpose.msra.mxu0 0.0
  %168 = vmatprep.subr.mxu0 0.0
  %169 = vmatpush1.xpose.msra.mxu0 0.0
  %170 = vmatprep.subr.mxu0 0.0
  %171 = vmatpush1.xpose.msra.mxu0 0.0
  %172 = vmatprep.subr.mxu0 0.0
  %173 = vmatpush1.xpose.msra.mxu0 0.0
  %174 = vmatprep.subr.mxu0 0.0
  %175 = vmatpush1.xpose.msra.mxu0 0.0
  %176 = vmatprep.subr.mxu0 0.0
  %177 = vmatpush1.xpose.msra.mxu0 0.0
  %178 = vmatprep.subr.mxu0 0.0
  %179 = vmatpush1.xpose.msra.mxu0 0.0
  %180 = vmatprep.subr.mxu0 0.0
  %181 = vmatpush1.xpose.msra.mxu0 0.0
  %182 = vmatprep.subr.mxu0 0.0
  %183 = vmatpush1.xpose.msra.mxu0 0.0
  %184 = vmatprep.subr.mxu0 0.0
  %185 = vmatpush1.xpose.msra.mxu0 0.0
  %186 = vmatprep.subr.mxu0 0.0
  %187 = vmatpush1.xpose.msra.mxu0 0.0
  %188 = vmatprep.subr.mxu0 0.0
  %189 = vmatpush1.xpose.msra.mxu0 0.0
  %190 = vmatprep.subr.mxu0 0.0
  %191 = vmatpush1.xpose.msra.mxu0 0.0
  %192 = vmatprep.subr.mxu0 0.0
  %193 = vmatpush1.xpose.msra.mxu0 0.0
  %194 = vmatprep.subr.mxu0 0.0
  %195 = vmatpush1.xpose.msra.mxu0 0.0
  %196 = vmatprep.subr.mxu0 0.0
  %197 = vmatpush1.xpose.msra.mxu0 0.0
  %198 = vmatprep.subr.mxu0 0.0
  %199 = vmatpush1.xpose.msra.mxu0 0.0
  %200 = vmatprep.subr.mxu0 0.0
  %201 = vmatpush1.xpose.msra.mxu0 0.0
  %202 = vmatprep.subr.mxu0 0.0
  %203 = vmatpush1.xpose.msra.mxu0 0.0
  %204 = vmatprep.subr.mxu0 0.0
  %205 = vmatpush1.xpose.msra.mxu0 0.0
  %206 = vmatprep.mubr.f32.mxu0 0.0
  %207 = vmatmul.mubr.f32.gmra.mrb[0].mxu0 %v138
  %v208 = vpop.f32.mrb[0].mxu0
  %v209 = vadd.f32 0.0, %v208
  %v210 = vpop.f32.mrb[0].mxu0
  %211 = vdwg.mxu0
  %213 = vrot.lane.b32.xlu0 %v131, 96
  %v214 = vpop.permute.xlu0 %213
  %v215 = vsel %vm137, %v131, 0
  %v217 = vsel %vm137, %v214, 0
  %219 = vmatprep.subr.mxu0 0.0
  %220 = vmatpush1.xpose.msra.mxu0 %v217
  %221 = vmatprep.subr.mxu0 0.0
  %222 = vmatpush1.xpose.msra.mxu0 0.0
  %223 = vmatprep.subr.mxu0 0.0
  %224 = vmatpush1.xpose.msra.mxu0 0.0
  %225 = vmatprep.subr.mxu0 0.0
  %226 = vmatpush1.xpose.msra.mxu0 0.0
  %227 = vmatprep.subr.mxu0 0.0
  %228 = vmatpush1.xpose.msra.mxu0 0.0
  %229 = vmatprep.subr.mxu0 0.0
  %230 = vmatpush1.xpose.msra.mxu0 0.0
  %231 = vmatprep.subr.mxu0 0.0
  %232 = vmatpush1.xpose.msra.mxu0 0.0
  %233 = vmatprep.subr.mxu0 0.0
  %234 = vmatpush1.xpose.msra.mxu0 0.0
  %235 = vmatprep.subr.mxu0 0.0
  %236 = vmatpush1.xpose.msra.mxu0 0.0
  %237 = vmatprep.subr.mxu0 0.0
  %238 = vmatpush1.xpose.msra.mxu0 0.0
  %239 = vmatprep.subr.mxu0 0.0
  %240 = vmatpush1.xpose.msra.mxu0 0.0
  %241 = vmatprep.subr.mxu0 0.0
  %242 = vmatpush1.xpose.msra.mxu0 0.0
  %243 = vmatprep.subr.mxu0 0.0
  %244 = vmatpush1.xpose.msra.mxu0 0.0
  %245 = vmatprep.subr.mxu0 0.0
  %246 = vmatpush1.xpose.msra.mxu0 0.0
  %247 = vmatprep.subr.mxu0 0.0
  %248 = vmatpush1.xpose.msra.mxu0 0.0
  %249 = vmatprep.subr.mxu0 0.0
  %250 = vmatpush1.xpose.msra.mxu0 0.0
  %251 = vmatprep.subr.mxu0 0.0
  %252 = vmatpush1.xpose.msra.mxu0 0.0
  %253 = vmatprep.subr.mxu0 0.0
  %254 = vmatpush1.xpose.msra.mxu0 0.0
  %255 = vmatprep.subr.mxu0 0.0
  %256 = vmatpush1.xpose.msra.mxu0 0.0
  %257 = vmatprep.subr.mxu0 0.0
  %258 = vmatpush1.xpose.msra.mxu0 0.0
  %259 = vmatprep.subr.mxu0 0.0
  %260 = vmatpush1.xpose.msra.mxu0 0.0
  %261 = vmatprep.subr.mxu0 0.0
  %262 = vmatpush1.xpose.msra.mxu0 0.0
  %263 = vmatprep.subr.mxu0 0.0
  %264 = vmatpush1.xpose.msra.mxu0 0.0
  %265 = vmatprep.subr.mxu0 0.0
  %266 = vmatpush1.xpose.msra.mxu0 0.0
  %267 = vmatprep.subr.mxu0 0.0
  %268 = vmatpush1.xpose.msra.mxu0 0.0
  %269 = vmatprep.subr.mxu0 0.0
  %270 = vmatpush1.xpose.msra.mxu0 0.0
  %271 = vmatprep.subr.mxu0 0.0
  %272 = vmatpush1.xpose.msra.mxu0 0.0
  %273 = vmatprep.subr.mxu0 0.0
  %274 = vmatpush1.xpose.msra.mxu0 0.0
  %275 = vmatprep.subr.mxu0 0.0
  %276 = vmatpush1.xpose.msra.mxu0 0.0
  %277 = vmatprep.subr.mxu0 0.0
  %278 = vmatpush1.xpose.msra.mxu0 0.0
  %279 = vmatprep.subr.mxu0 0.0
  %280 = vmatpush1.xpose.msra.mxu0 0.0
  %281 = vmatprep.subr.mxu0 0.0
  %282 = vmatpush1.xpose.msra.mxu0 0.0
  %283 = vmatprep.mubr.f32.mxu0 0.0
  %284 = vmatmul.mubr.f32.gmra.mrb[0].mxu0 %v215
  %v285 = vpop.f32.mrb[0].mxu0
  %v286 = vadd.f32 0.0, %v285
  %v287 = vpop.f32.mrb[0].mxu0
  %288 = vdwg.mxu0
  %v289 = vmul.f32 %v209, 0.35355338
  %v290 = vmul.f32 %v286, 0.35355338
  %v291 = vadd.f32 %v289, %v66
  %v292 = vadd.f32 %v290, %v66
  %v293 = vsel %vm137, %v291, -inf
  %294 = vmax.xlane.f32.xlu0 %v293
  %v295 = vpop.xlane.xlu0 %294
  %v296 = vsel %vm137, %v292, -inf
  %297 = vmax.xlane.f32.xlu0 %v296
  %v298 = vpop.xlane.xlu0 %297
  %v299 = vsub.f32 %v291, %v295
  %v300 = vsub.f32 %v292, %v298
  %v301 = vmul.f32 %v299, 1.442695
  %v302 = vpow.pop %v301
  %v303 = vmul.f32 %v300, 1.442695
  %v304 = vpow.pop %v303
  %v305 = vsel %vm137, %v302, 0.0
  %306 = vadd.xlane.f32.xlu0 %v305
  %v307 = vpop.xlane.xlu0 %306
  %v308 = vsel %vm137, %v304, 0.0
  %309 = vadd.xlane.f32.xlu0 %v308
  %v310 = vpop.xlane.xlu0 %309
  %v311 = vrcp.pop %v307
  %v312 = vrcp.pop %v310
  %v313 = vmul.f32 %v302, %v311
  %v314 = vmul.f32 %v304, %v312
  %315 = vrot.lane.b32.xlu0 %v128, 64
  %v316 = vpop.permute.xlu0 %315
  %v319 = vsel %vm137, %v313, 0
  %321 = vmatprep.subr.mxu0 0.0
  %322 = vmatpush1.msra.mxu0 %v316
  %323 = vmatprep.subr.mxu0 0.0
  %324 = vmatpush1.msra.mxu0 0.0
  %325 = vmatprep.subr.mxu0 0.0
  %326 = vmatpush1.msra.mxu0 0.0
  %327 = vmatprep.subr.mxu0 0.0
  %328 = vmatpush1.msra.mxu0 0.0
  %329 = vmatprep.subr.mxu0 0.0
  %330 = vmatpush1.msra.mxu0 0.0
  %331 = vmatprep.subr.mxu0 0.0
  %332 = vmatpush1.msra.mxu0 0.0
  %333 = vmatprep.subr.mxu0 0.0
  %334 = vmatpush1.msra.mxu0 0.0
  %335 = vmatprep.subr.mxu0 0.0
  %336 = vmatpush1.msra.mxu0 0.0
  %337 = vmatprep.subr.mxu0 0.0
  %338 = vmatpush1.msra.mxu0 0.0
  %339 = vmatprep.subr.mxu0 0.0
  %340 = vmatpush1.msra.mxu0 0.0
  %341 = vmatprep.subr.mxu0 0.0
  %342 = vmatpush1.msra.mxu0 0.0
  %343 = vmatprep.subr.mxu0 0.0
  %344 = vmatpush1.msra.mxu0 0.0
  %345 = vmatprep.subr.mxu0 0.0
  %346 = vmatpush1.msra.mxu0 0.0
  %347 = vmatprep.subr.mxu0 0.0
  %348 = vmatpush1.msra.mxu0 0.0
  %349 = vmatprep.subr.mxu0 0.0
  %350 = vmatpush1.msra.mxu0 0.0
  %351 = vmatprep.subr.mxu0 0.0
  %352 = vmatpush1.msra.mxu0 0.0
  %353 = vmatprep.subr.mxu0 0.0
  %354 = vmatpush1.msra.mxu0 0.0
  %355 = vmatprep.subr.mxu0 0.0
  %356 = vmatpush1.msra.mxu0 0.0
  %357 = vmatprep.subr.mxu0 0.0
  %358 = vmatpush1.msra.mxu0 0.0
  %359 = vmatprep.subr.mxu0 0.0
  %360 = vmatpush1.msra.mxu0 0.0
  %361 = vmatprep.subr.mxu0 0.0
  %362 = vmatpush1.msra.mxu0 0.0
  %363 = vmatprep.subr.mxu0 0.0
  %364 = vmatpush1.msra.mxu0 0.0
  %365 = vmatprep.subr.mxu0 0.0
  %366 = vmatpush1.msra.mxu0 0.0
  %367 = vmatprep.subr.mxu0 0.0
  %368 = vmatpush1.msra.mxu0 0.0
  %369 = vmatprep.subr.mxu0 0.0
  %370 = vmatpush1.msra.mxu0 0.0
  %371 = vmatprep.subr.mxu0 0.0
  %372 = vmatpush1.msra.mxu0 0.0
  %373 = vmatprep.subr.mxu0 0.0
  %374 = vmatpush1.msra.mxu0 0.0
  %375 = vmatprep.subr.mxu0 0.0
  %376 = vmatpush1.msra.mxu0 0.0
  %377 = vmatprep.subr.mxu0 0.0
  %378 = vmatpush1.msra.mxu0 0.0
  %379 = vmatprep.subr.mxu0 0.0
  %380 = vmatpush1.msra.mxu0 0.0
  %381 = vmatprep.subr.mxu0 0.0
  %382 = vmatpush1.msra.mxu0 0.0
  %383 = vmatprep.subr.mxu0 0.0
  %384 = vmatpush1.msra.mxu0 0.0
  %385 = vmatprep.mubr.f32.mxu0 0.0
  %386 = vmatmul.mubr.f32.gmra.mrb[0].mxu0 %v319
  %v387 = vpop.f32.mrb[0].mxu0
  %v388 = vadd.f32 0.0, %v387
  %v389 = vpop.f32.mrb[0].mxu0
  %390 = vdwg.mxu0
  %391 = vrot.lane.b32.xlu0 %v131, 64
  %v392 = vpop.permute.xlu0 %391
  %v395 = vsel %vm137, %v314, 0
  %397 = vmatprep.subr.mxu0 0.0
  %398 = vmatpush1.msra.mxu0 %v392
  %399 = vmatprep.subr.mxu0 0.0
  %400 = vmatpush1.msra.mxu0 0.0
  %401 = vmatprep.subr.mxu0 0.0
  %402 = vmatpush1.msra.mxu0 0.0
  %403 = vmatprep.subr.mxu0 0.0
  %404 = vmatpush1.msra.mxu0 0.0
  %405 = vmatprep.subr.mxu0 0.0
  %406 = vmatpush1.msra.mxu0 0.0
  %407 = vmatprep.subr.mxu0 0.0
  %408 = vmatpush1.msra.mxu0 0.0
  %409 = vmatprep.subr.mxu0 0.0
  %410 = vmatpush1.msra.mxu0 0.0
  %411 = vmatprep.subr.mxu0 0.0
  %412 = vmatpush1.msra.mxu0 0.0
  %413 = vmatprep.subr.mxu0 0.0
  %414 = vmatpush1.msra.mxu0 0.0
  %415 = vmatprep.subr.mxu0 0.0
  %416 = vmatpush1.msra.mxu0 0.0
  %417 = vmatprep.subr.mxu0 0.0
  %418 = vmatpush1.msra.mxu0 0.0
  %419 = vmatprep.subr.mxu0 0.0
  %420 = vmatpush1.msra.mxu0 0.0
  %421 = vmatprep.subr.mxu0 0.0
  %422 = vmatpush1.msra.mxu0 0.0
  %423 = vmatprep.subr.mxu0 0.0
  %424 = vmatpush1.msra.mxu0 0.0
  %425 = vmatprep.subr.mxu0 0.0
  %426 = vmatpush1.msra.mxu0 0.0
  %427 = vmatprep.subr.mxu0 0.0
  %428 = vmatpush1.msra.mxu0 0.0
  %429 = vmatprep.subr.mxu0 0.0
  %430 = vmatpush1.msra.mxu0 0.0
  %431 = vmatprep.subr.mxu0 0.0
  %432 = vmatpush1.msra.mxu0 0.0
  %433 = vmatprep.subr.mxu0 0.0
  %434 = vmatpush1.msra.mxu0 0.0
  %435 = vmatprep.subr.mxu0 0.0
  %436 = vmatpush1.msra.mxu0 0.0
  %437 = vmatprep.subr.mxu0 0.0
  %438 = vmatpush1.msra.mxu0 0.0
  %439 = vmatprep.subr.mxu0 0.0
  %440 = vmatpush1.msra.mxu0 0.0
  %441 = vmatprep.subr.mxu0 0.0
  %442 = vmatpush1.msra.mxu0 0.0
  %443 = vmatprep.subr.mxu0 0.0
  %444 = vmatpush1.msra.mxu0 0.0
  %445 = vmatprep.subr.mxu0 0.0
  %446 = vmatpush1.msra.mxu0 0.0
  %447 = vmatprep.subr.mxu0 0.0
  %448 = vmatpush1.msra.mxu0 0.0
  %449 = vmatprep.subr.mxu0 0.0
  %450 = vmatpush1.msra.mxu0 0.0
  %451 = vmatprep.subr.mxu0 0.0
  %452 = vmatpush1.msra.mxu0 0.0
  %453 = vmatprep.subr.mxu0 0.0
  %454 = vmatpush1.msra.mxu0 0.0
  %455 = vmatprep.subr.mxu0 0.0
  %456 = vmatpush1.msra.mxu0 0.0
  %457 = vmatprep.subr.mxu0 0.0
  %458 = vmatpush1.msra.mxu0 0.0
  %459 = vmatprep.subr.mxu0 0.0
  %460 = vmatpush1.msra.mxu0 0.0
  %461 = vmatprep.mubr.f32.mxu0 0.0
  %462 = vmatmul.mubr.f32.gmra.mrb[0].mxu0 %v395
  %v463 = vpop.f32.mrb[0].mxu0
  %v464 = vadd.f32 0.0, %v463
  %v465 = vpop.f32.mrb[0].mxu0
  %466 = vdwg.mxu0
  %467 = vrot.lane.b32.xlu0 %v128, 120
  %v468 = vpop.permute.xlu0 %467
  %469 = vrot.lane.b32.xlu0 %v128, 88
  %v470 = vpop.permute.xlu0 %469
  %v471 = vsel %vm137, %v468, 0
  %v473 = vsel %vm137, %v470, 0
  %475 = vmatprep.subr.mxu0 0.0
  %476 = vmatpush1.xpose.msra.mxu0 %v473
  %477 = vmatprep.subr.mxu0 0.0
  %478 = vmatpush1.xpose.msra.mxu0 0.0
  %479 = vmatprep.subr.mxu0 0.0
  %480 = vmatpush1.xpose.msra.mxu0 0.0
  %481 = vmatprep.subr.mxu0 0.0
  %482 = vmatpush1.xpose.msra.mxu0 0.0
  %483 = vmatprep.subr.mxu0 0.0
  %484 = vmatpush1.xpose.msra.mxu0 0.0
  %485 = vmatprep.subr.mxu0 0.0
  %486 = vmatpush1.xpose.msra.mxu0 0.0
  %487 = vmatprep.subr.mxu0 0.0
  %488 = vmatpush1.xpose.msra.mxu0 0.0
  %489 = vmatprep.subr.mxu0 0.0
  %490 = vmatpush1.xpose.msra.mxu0 0.0
  %491 = vmatprep.subr.mxu0 0.0
  %492 = vmatpush1.xpose.msra.mxu0 0.0
  %493 = vmatprep.subr.mxu0 0.0
  %494 = vmatpush1.xpose.msra.mxu0 0.0
  %495 = vmatprep.subr.mxu0 0.0
  %496 = vmatpush1.xpose.msra.mxu0 0.0
  %497 = vmatprep.subr.mxu0 0.0
  %498 = vmatpush1.xpose.msra.mxu0 0.0
  %499 = vmatprep.subr.mxu0 0.0
  %500 = vmatpush1.xpose.msra.mxu0 0.0
  %501 = vmatprep.subr.mxu0 0.0
  %502 = vmatpush1.xpose.msra.mxu0 0.0
  %503 = vmatprep.subr.mxu0 0.0
  %504 = vmatpush1.xpose.msra.mxu0 0.0
  %505 = vmatprep.subr.mxu0 0.0
  %506 = vmatpush1.xpose.msra.mxu0 0.0
  %507 = vmatprep.subr.mxu0 0.0
  %508 = vmatpush1.xpose.msra.mxu0 0.0
  %509 = vmatprep.subr.mxu0 0.0
  %510 = vmatpush1.xpose.msra.mxu0 0.0
  %511 = vmatprep.subr.mxu0 0.0
  %512 = vmatpush1.xpose.msra.mxu0 0.0
  %513 = vmatprep.subr.mxu0 0.0
  %514 = vmatpush1.xpose.msra.mxu0 0.0
  %515 = vmatprep.subr.mxu0 0.0
  %516 = vmatpush1.xpose.msra.mxu0 0.0
  %517 = vmatprep.subr.mxu0 0.0
  %518 = vmatpush1.xpose.msra.mxu0 0.0
  %519 = vmatprep.subr.mxu0 0.0
  %520 = vmatpush1.xpose.msra.mxu0 0.0
  %521 = vmatprep.subr.mxu0 0.0
  %522 = vmatpush1.xpose.msra.mxu0 0.0
  %523 = vmatprep.subr.mxu0 0.0
  %524 = vmatpush1.xpose.msra.mxu0 0.0
  %525 = vmatprep.subr.mxu0 0.0
  %526 = vmatpush1.xpose.msra.mxu0 0.0
  %527 = vmatprep.subr.mxu0 0.0
  %528 = vmatpush1.xpose.msra.mxu0 0.0
  %529 = vmatprep.subr.mxu0 0.0
  %530 = vmatpush1.xpose.msra.mxu0 0.0
  %531 = vmatprep.subr.mxu0 0.0
  %532 = vmatpush1.xpose.msra.mxu0 0.0
  %533 = vmatprep.subr.mxu0 0.0
  %534 = vmatpush1.xpose.msra.mxu0 0.0
  %535 = vmatprep.subr.mxu0 0.0
  %536 = vmatpush1.xpose.msra.mxu0 0.0
  %537 = vmatprep.subr.mxu0 0.0
  %538 = vmatpush1.xpose.msra.mxu0 0.0
  %539 = vmatprep.mubr.f32.mxu0 0.0
  %540 = vmatmul.mubr.f32.gmra.mrb[0].mxu0 %v471
  %v541 = vpop.f32.mrb[0].mxu0
  %v542 = vadd.f32 0.0, %v541
  %v543 = vpop.f32.mrb[0].mxu0
  %544 = vdwg.mxu0
  %545 = vrot.lane.b32.xlu0 %v131, 120
  %v546 = vpop.permute.xlu0 %545
  %547 = vrot.lane.b32.xlu0 %v131, 88
  %v548 = vpop.permute.xlu0 %547
  %v549 = vsel %vm137, %v546, 0
  %v551 = vsel %vm137, %v548, 0
  %553 = vmatprep.subr.mxu0 0.0
  %554 = vmatpush1.xpose.msra.mxu0 %v551
  %555 = vmatprep.subr.mxu0 0.0
  %556 = vmatpush1.xpose.msra.mxu0 0.0
  %557 = vmatprep.subr.mxu0 0.0
  %558 = vmatpush1.xpose.msra.mxu0 0.0
  %559 = vmatprep.subr.mxu0 0.0
  %560 = vmatpush1.xpose.msra.mxu0 0.0
  %561 = vmatprep.subr.mxu0 0.0
  %562 = vmatpush1.xpose.msra.mxu0 0.0
  %563 = vmatprep.subr.mxu0 0.0
  %564 = vmatpush1.xpose.msra.mxu0 0.0
  %565 = vmatprep.subr.mxu0 0.0
  %566 = vmatpush1.xpose.msra.mxu0 0.0
  %567 = vmatprep.subr.mxu0 0.0
  %568 = vmatpush1.xpose.msra.mxu0 0.0
  %569 = vmatprep.subr.mxu0 0.0
  %570 = vmatpush1.xpose.msra.mxu0 0.0
  %571 = vmatprep.subr.mxu0 0.0
  %572 = vmatpush1.xpose.msra.mxu0 0.0
  %573 = vmatprep.subr.mxu0 0.0
  %574 = vmatpush1.xpose.msra.mxu0 0.0
  %575 = vmatprep.subr.mxu0 0.0
  %576 = vmatpush1.xpose.msra.mxu0 0.0
  %577 = vmatprep.subr.mxu0 0.0
  %578 = vmatpush1.xpose.msra.mxu0 0.0
  %579 = vmatprep.subr.mxu0 0.0
  %580 = vmatpush1.xpose.msra.mxu0 0.0
  %581 = vmatprep.subr.mxu0 0.0
  %582 = vmatpush1.xpose.msra.mxu0 0.0
  %583 = vmatprep.subr.mxu0 0.0
  %584 = vmatpush1.xpose.msra.mxu0 0.0
  %585 = vmatprep.subr.mxu0 0.0
  %586 = vmatpush1.xpose.msra.mxu0 0.0
  %587 = vmatprep.subr.mxu0 0.0
  %588 = vmatpush1.xpose.msra.mxu0 0.0
  %589 = vmatprep.subr.mxu0 0.0
  %590 = vmatpush1.xpose.msra.mxu0 0.0
  %591 = vmatprep.subr.mxu0 0.0
  %592 = vmatpush1.xpose.msra.mxu0 0.0
  %593 = vmatprep.subr.mxu0 0.0
  %594 = vmatpush1.xpose.msra.mxu0 0.0
  %595 = vmatprep.subr.mxu0 0.0
  %596 = vmatpush1.xpose.msra.mxu0 0.0
  %597 = vmatprep.subr.mxu0 0.0
  %598 = vmatpush1.xpose.msra.mxu0 0.0
  %599 = vmatprep.subr.mxu0 0.0
  %600 = vmatpush1.xpose.msra.mxu0 0.0
  %601 = vmatprep.subr.mxu0 0.0
  %602 = vmatpush1.xpose.msra.mxu0 0.0
  %603 = vmatprep.subr.mxu0 0.0
  %604 = vmatpush1.xpose.msra.mxu0 0.0
  %605 = vmatprep.subr.mxu0 0.0
  %606 = vmatpush1.xpose.msra.mxu0 0.0
  %607 = vmatprep.subr.mxu0 0.0
  %608 = vmatpush1.xpose.msra.mxu0 0.0
  %609 = vmatprep.subr.mxu0 0.0
  %610 = vmatpush1.xpose.msra.mxu0 0.0
  %611 = vmatprep.subr.mxu0 0.0
  %612 = vmatpush1.xpose.msra.mxu0 0.0
  %613 = vmatprep.subr.mxu0 0.0
  %614 = vmatpush1.xpose.msra.mxu0 0.0
  %615 = vmatprep.subr.mxu0 0.0
  %616 = vmatpush1.xpose.msra.mxu0 0.0
  %617 = vmatprep.mubr.f32.mxu0 0.0
  %618 = vmatmul.mubr.f32.gmra.mrb[0].mxu0 %v549
  %v619 = vpop.f32.mrb[0].mxu0
  %v620 = vadd.f32 0.0, %v619
  %v621 = vpop.f32.mrb[0].mxu0
  %622 = vdwg.mxu0
  %v623 = vmul.f32 %v542, 0.35355338
  %v624 = vmul.f32 %v620, 0.35355338
  %v625 = vadd.f32 %v623, %v66
  %v626 = vadd.f32 %v624, %v66
  %v627 = vsel %vm137, %v625, -inf
  %628 = vmax.xlane.f32.xlu0 %v627
  %v629 = vpop.xlane.xlu0 %628
  %v630 = vsel %vm137, %v626, -inf
  %631 = vmax.xlane.f32.xlu0 %v630
  %v632 = vpop.xlane.xlu0 %631
  %v633 = vsub.f32 %v625, %v629
  %v634 = vsub.f32 %v626, %v632
  %v635 = vmul.f32 %v633, 1.442695
  %v636 = vpow.pop %v635
  %v637 = vmul.f32 %v634, 1.442695
  %v638 = vpow.pop %v637
  %v639 = vsel %vm137, %v636, 0.0
  %640 = vadd.xlane.f32.xlu0 %v639
  %v641 = vpop.xlane.xlu0 %640
  %v642 = vsel %vm137, %v638, 0.0
  %643 = vadd.xlane.f32.xlu0 %v642
  %v644 = vpop.xlane.xlu0 %643
  %v645 = vrcp.pop %v641
  %v646 = vrcp.pop %v644
  %v647 = vmul.f32 %v636, %v645
  %v648 = vmul.f32 %v638, %v646
  %649 = vrot.lane.b32.xlu0 %v128, 56
  %v650 = vpop.permute.xlu0 %649
  %v653 = vsel %vm137, %v647, 0
  %655 = vmatprep.subr.mxu0 0.0
  %656 = vmatpush1.msra.mxu0 %v650
  %657 = vmatprep.subr.mxu0 0.0
  %658 = vmatpush1.msra.mxu0 0.0
  %659 = vmatprep.subr.mxu0 0.0
  %660 = vmatpush1.msra.mxu0 0.0
  %661 = vmatprep.subr.mxu0 0.0
  %662 = vmatpush1.msra.mxu0 0.0
  %663 = vmatprep.subr.mxu0 0.0
  %664 = vmatpush1.msra.mxu0 0.0
  %665 = vmatprep.subr.mxu0 0.0
  %666 = vmatpush1.msra.mxu0 0.0
  %667 = vmatprep.subr.mxu0 0.0
  %668 = vmatpush1.msra.mxu0 0.0
  %669 = vmatprep.subr.mxu0 0.0
  %670 = vmatpush1.msra.mxu0 0.0
  %671 = vmatprep.subr.mxu0 0.0
  %672 = vmatpush1.msra.mxu0 0.0
  %673 = vmatprep.subr.mxu0 0.0
  %674 = vmatpush1.msra.mxu0 0.0
  %675 = vmatprep.subr.mxu0 0.0
  %676 = vmatpush1.msra.mxu0 0.0
  %677 = vmatprep.subr.mxu0 0.0
  %678 = vmatpush1.msra.mxu0 0.0
  %679 = vmatprep.subr.mxu0 0.0
  %680 = vmatpush1.msra.mxu0 0.0
  %681 = vmatprep.subr.mxu0 0.0
  %682 = vmatpush1.msra.mxu0 0.0
  %683 = vmatprep.subr.mxu0 0.0
  %684 = vmatpush1.msra.mxu0 0.0
  %685 = vmatprep.subr.mxu0 0.0
  %686 = vmatpush1.msra.mxu0 0.0
  %687 = vmatprep.subr.mxu0 0.0
  %688 = vmatpush1.msra.mxu0 0.0
  %689 = vmatprep.subr.mxu0 0.0
  %690 = vmatpush1.msra.mxu0 0.0
  %691 = vmatprep.subr.mxu0 0.0
  %692 = vmatpush1.msra.mxu0 0.0
  %693 = vmatprep.subr.mxu0 0.0
  %694 = vmatpush1.msra.mxu0 0.0
  %695 = vmatprep.subr.mxu0 0.0
  %696 = vmatpush1.msra.mxu0 0.0
  %697 = vmatprep.subr.mxu0 0.0
  %698 = vmatpush1.msra.mxu0 0.0
  %699 = vmatprep.subr.mxu0 0.0
  %700 = vmatpush1.msra.mxu0 0.0
  %701 = vmatprep.subr.mxu0 0.0
  %702 = vmatpush1.msra.mxu0 0.0
  %703 = vmatprep.subr.mxu0 0.0
  %704 = vmatpush1.msra.mxu0 0.0
  %705 = vmatprep.subr.mxu0 0.0
  %706 = vmatpush1.msra.mxu0 0.0
  %707 = vmatprep.subr.mxu0 0.0
  %708 = vmatpush1.msra.mxu0 0.0
  %709 = vmatprep.subr.mxu0 0.0
  %710 = vmatpush1.msra.mxu0 0.0
  %711 = vmatprep.subr.mxu0 0.0
  %712 = vmatpush1.msra.mxu0 0.0
  %713 = vmatprep.subr.mxu0 0.0
  %714 = vmatpush1.msra.mxu0 0.0
  %715 = vmatprep.subr.mxu0 0.0
  %716 = vmatpush1.msra.mxu0 0.0
  %717 = vmatprep.subr.mxu0 0.0
  %718 = vmatpush1.msra.mxu0 0.0
  %719 = vmatprep.mubr.f32.mxu0 0.0
  %720 = vmatmul.mubr.f32.gmra.mrb[0].mxu0 %v653
  %v721 = vpop.f32.mrb[0].mxu0
  %v722 = vadd.f32 0.0, %v721
  %v723 = vpop.f32.mrb[0].mxu0
  %724 = vdwg.mxu0
  %725 = vrot.lane.b32.xlu0 %v131, 56
  %v726 = vpop.permute.xlu0 %725
  %v729 = vsel %vm137, %v648, 0
  %731 = vmatprep.subr.mxu0 0.0
  %732 = vmatpush1.msra.mxu0 %v726
  %733 = vmatprep.subr.mxu0 0.0
  %734 = vmatpush1.msra.mxu0 0.0
  %735 = vmatprep.subr.mxu0 0.0
  %736 = vmatpush1.msra.mxu0 0.0
  %737 = vmatprep.subr.mxu0 0.0
  %738 = vmatpush1.msra.mxu0 0.0
  %739 = vmatprep.subr.mxu0 0.0
  %740 = vmatpush1.msra.mxu0 0.0
  %741 = vmatprep.subr.mxu0 0.0
  %742 = vmatpush1.msra.mxu0 0.0
  %743 = vmatprep.subr.mxu0 0.0
  %744 = vmatpush1.msra.mxu0 0.0
  %745 = vmatprep.subr.mxu0 0.0
  %746 = vmatpush1.msra.mxu0 0.0
  %747 = vmatprep.subr.mxu0 0.0
  %748 = vmatpush1.msra.mxu0 0.0
  %749 = vmatprep.subr.mxu0 0.0
  %750 = vmatpush1.msra.mxu0 0.0
  %751 = vmatprep.subr.mxu0 0.0
  %752 = vmatpush1.msra.mxu0 0.0
  %753 = vmatprep.subr.mxu0 0.0
  %754 = vmatpush1.msra.mxu0 0.0
  %755 = vmatprep.subr.mxu0 0.0
  %756 = vmatpush1.msra.mxu0 0.0
  %757 = vmatprep.subr.mxu0 0.0
  %758 = vmatpush1.msra.mxu0 0.0
  %759 = vmatprep.subr.mxu0 0.0
  %760 = vmatpush1.msra.mxu0 0.0
  %761 = vmatprep.subr.mxu0 0.0
  %762 = vmatpush1.msra.mxu0 0.0
  %763 = vmatprep.subr.mxu0 0.0
  %764 = vmatpush1.msra.mxu0 0.0
  %765 = vmatprep.subr.mxu0 0.0
  %766 = vmatpush1.msra.mxu0 0.0
  %767 = vmatprep.subr.mxu0 0.0
  %768 = vmatpush1.msra.mxu0 0.0
  %769 = vmatprep.subr.mxu0 0.0
  %770 = vmatpush1.msra.mxu0 0.0
  %771 = vmatprep.subr.mxu0 0.0
  %772 = vmatpush1.msra.mxu0 0.0
  %773 = vmatprep.subr.mxu0 0.0
  %774 = vmatpush1.msra.mxu0 0.0
  %775 = vmatprep.subr.mxu0 0.0
  %776 = vmatpush1.msra.mxu0 0.0
  %777 = vmatprep.subr.mxu0 0.0
  %778 = vmatpush1.msra.mxu0 0.0
  %779 = vmatprep.subr.mxu0 0.0
  %780 = vmatpush1.msra.mxu0 0.0
  %781 = vmatprep.subr.mxu0 0.0
  %782 = vmatpush1.msra.mxu0 0.0
  %783 = vmatprep.subr.mxu0 0.0
  %784 = vmatpush1.msra.mxu0 0.0
  %785 = vmatprep.subr.mxu0 0.0
  %786 = vmatpush1.msra.mxu0 0.0
  %787 = vmatprep.subr.mxu0 0.0
  %788 = vmatpush1.msra.mxu0 0.0
  %789 = vmatprep.subr.mxu0 0.0
  %790 = vmatpush1.msra.mxu0 0.0
  %791 = vmatprep.subr.mxu0 0.0
  %792 = vmatpush1.msra.mxu0 0.0
  %793 = vmatprep.subr.mxu0 0.0
  %794 = vmatpush1.msra.mxu0 0.0
  %795 = vmatprep.mubr.f32.mxu0 0.0
  %796 = vmatmul.mubr.f32.gmra.mrb[0].mxu0 %v729
  %v797 = vpop.f32.mrb[0].mxu0
  %v798 = vadd.f32 0.0, %v797
  %v799 = vpop.f32.mrb[0].mxu0
  %800 = vdwg.mxu0
  %801 = vrot.lane.b32.xlu0 %v128, 112
  %v802 = vpop.permute.xlu0 %801
  %803 = vrot.lane.b32.xlu0 %v128, 80
  %v804 = vpop.permute.xlu0 %803
  %v805 = vsel %vm137, %v802, 0
  %v807 = vsel %vm137, %v804, 0
  %809 = vmatprep.subr.mxu0 0.0
  %810 = vmatpush1.xpose.msra.mxu0 %v807
  %811 = vmatprep.subr.mxu0 0.0
  %812 = vmatpush1.xpose.msra.mxu0 0.0
  %813 = vmatprep.subr.mxu0 0.0
  %814 = vmatpush1.xpose.msra.mxu0 0.0
  %815 = vmatprep.subr.mxu0 0.0
  %816 = vmatpush1.xpose.msra.mxu0 0.0
  %817 = vmatprep.subr.mxu0 0.0
  %818 = vmatpush1.xpose.msra.mxu0 0.0
  %819 = vmatprep.subr.mxu0 0.0
  %820 = vmatpush1.xpose.msra.mxu0 0.0
  %821 = vmatprep.subr.mxu0 0.0
  %822 = vmatpush1.xpose.msra.mxu0 0.0
  %823 = vmatprep.subr.mxu0 0.0
  %824 = vmatpush1.xpose.msra.mxu0 0.0
  %825 = vmatprep.subr.mxu0 0.0
  %826 = vmatpush1.xpose.msra.mxu0 0.0
  %827 = vmatprep.subr.mxu0 0.0
  %828 = vmatpush1.xpose.msra.mxu0 0.0
  %829 = vmatprep.subr.mxu0 0.0
  %830 = vmatpush1.xpose.msra.mxu0 0.0
  %831 = vmatprep.subr.mxu0 0.0
  %832 = vmatpush1.xpose.msra.mxu0 0.0
  %833 = vmatprep.subr.mxu0 0.0
  %834 = vmatpush1.xpose.msra.mxu0 0.0
  %835 = vmatprep.subr.mxu0 0.0
  %836 = vmatpush1.xpose.msra.mxu0 0.0
  %837 = vmatprep.subr.mxu0 0.0
  %838 = vmatpush1.xpose.msra.mxu0 0.0
  %839 = vmatprep.subr.mxu0 0.0
  %840 = vmatpush1.xpose.msra.mxu0 0.0
  %841 = vmatprep.subr.mxu0 0.0
  %842 = vmatpush1.xpose.msra.mxu0 0.0
  %843 = vmatprep.subr.mxu0 0.0
  %844 = vmatpush1.xpose.msra.mxu0 0.0
  %845 = vmatprep.subr.mxu0 0.0
  %846 = vmatpush1.xpose.msra.mxu0 0.0
  %847 = vmatprep.subr.mxu0 0.0
  %848 = vmatpush1.xpose.msra.mxu0 0.0
  %849 = vmatprep.subr.mxu0 0.0
  %850 = vmatpush1.xpose.msra.mxu0 0.0
  %851 = vmatprep.subr.mxu0 0.0
  %852 = vmatpush1.xpose.msra.mxu0 0.0
  %853 = vmatprep.subr.mxu0 0.0
  %854 = vmatpush1.xpose.msra.mxu0 0.0
  %855 = vmatprep.subr.mxu0 0.0
  %856 = vmatpush1.xpose.msra.mxu0 0.0
  %857 = vmatprep.subr.mxu0 0.0
  %858 = vmatpush1.xpose.msra.mxu0 0.0
  %859 = vmatprep.subr.mxu0 0.0
  %860 = vmatpush1.xpose.msra.mxu0 0.0
  %861 = vmatprep.subr.mxu0 0.0
  %862 = vmatpush1.xpose.msra.mxu0 0.0
  %863 = vmatprep.subr.mxu0 0.0
  %864 = vmatpush1.xpose.msra.mxu0 0.0
  %865 = vmatprep.subr.mxu0 0.0
  %866 = vmatpush1.xpose.msra.mxu0 0.0
  %867 = vmatprep.subr.mxu0 0.0
  %868 = vmatpush1.xpose.msra.mxu0 0.0
  %869 = vmatprep.subr.mxu0 0.0
  %870 = vmatpush1.xpose.msra.mxu0 0.0
  %871 = vmatprep.subr.mxu0 0.0
  %872 = vmatpush1.xpose.msra.mxu0 0.0
  %873 = vmatprep.mubr.f32.mxu0 0.0
  %874 = vmatmul.mubr.f32.gmra.mrb[0].mxu0 %v805
  %v875 = vpop.f32.mrb[0].mxu0
  %v876 = vadd.f32 0.0, %v875
  %v877 = vpop.f32.mrb[0].mxu0
  %878 = vdwg.mxu0
  %879 = vrot.lane.b32.xlu0 %v131, 112
  %v880 = vpop.permute.xlu0 %879
  %881 = vrot.lane.b32.xlu0 %v131, 80
  %v882 = vpop.permute.xlu0 %881
  %v883 = vsel %vm137, %v880, 0
  %v885 = vsel %vm137, %v882, 0
  %887 = vmatprep.subr.mxu0 0.0
  %888 = vmatpush1.xpose.msra.mxu0 %v885
  %889 = vmatprep.subr.mxu0 0.0
  %890 = vmatpush1.xpose.msra.mxu0 0.0
  %891 = vmatprep.subr.mxu0 0.0
  %892 = vmatpush1.xpose.msra.mxu0 0.0
  %893 = vmatprep.subr.mxu0 0.0
  %894 = vmatpush1.xpose.msra.mxu0 0.0
  %895 = vmatprep.subr.mxu0 0.0
  %896 = vmatpush1.xpose.msra.mxu0 0.0
  %897 = vmatprep.subr.mxu0 0.0
  %898 = vmatpush1.xpose.msra.mxu0 0.0
  %899 = vmatprep.subr.mxu0 0.0
  %900 = vmatpush1.xpose.msra.mxu0 0.0
  %901 = vmatprep.subr.mxu0 0.0
  %902 = vmatpush1.xpose.msra.mxu0 0.0
  %903 = vmatprep.subr.mxu0 0.0
  %904 = vmatpush1.xpose.msra.mxu0 0.0
  %905 = vmatprep.subr.mxu0 0.0
  %906 = vmatpush1.xpose.msra.mxu0 0.0
  %907 = vmatprep.subr.mxu0 0.0
  %908 = vmatpush1.xpose.msra.mxu0 0.0
  %909 = vmatprep.subr.mxu0 0.0
  %910 = vmatpush1.xpose.msra.mxu0 0.0
  %911 = vmatprep.subr.mxu0 0.0
  %912 = vmatpush1.xpose.msra.mxu0 0.0
  %913 = vmatprep.subr.mxu0 0.0
  %914 = vmatpush1.xpose.msra.mxu0 0.0
  %915 = vmatprep.subr.mxu0 0.0
  %916 = vmatpush1.xpose.msra.mxu0 0.0
  %917 = vmatprep.subr.mxu0 0.0
  %918 = vmatpush1.xpose.msra.mxu0 0.0
  %919 = vmatprep.subr.mxu0 0.0
  %920 = vmatpush1.xpose.msra.mxu0 0.0
  %921 = vmatprep.subr.mxu0 0.0
  %922 = vmatpush1.xpose.msra.mxu0 0.0
  %923 = vmatprep.subr.mxu0 0.0
  %924 = vmatpush1.xpose.msra.mxu0 0.0
  %925 = vmatprep.subr.mxu0 0.0
  %926 = vmatpush1.xpose.msra.mxu0 0.0
  %927 = vmatprep.subr.mxu0 0.0
  %928 = vmatpush1.xpose.msra.mxu0 0.0
  %929 = vmatprep.subr.mxu0 0.0
  %930 = vmatpush1.xpose.msra.mxu0 0.0
  %931 = vmatprep.subr.mxu0 0.0
  %932 = vmatpush1.xpose.msra.mxu0 0.0
  %933 = vmatprep.subr.mxu0 0.0
  %934 = vmatpush1.xpose.msra.mxu0 0.0
  %935 = vmatprep.subr.mxu0 0.0
  %936 = vmatpush1.xpose.msra.mxu0 0.0
  %937 = vmatprep.subr.mxu0 0.0
  %938 = vmatpush1.xpose.msra.mxu0 0.0
  %939 = vmatprep.subr.mxu0 0.0
  %940 = vmatpush1.xpose.msra.mxu0 0.0
  %941 = vmatprep.subr.mxu0 0.0
  %942 = vmatpush1.xpose.msra.mxu0 0.0
  %943 = vmatprep.subr.mxu0 0.0
  %944 = vmatpush1.xpose.msra.mxu0 0.0
  %945 = vmatprep.subr.mxu0 0.0
  %946 = vmatpush1.xpose.msra.mxu0 0.0
  %947 = vmatprep.subr.mxu0 0.0
  %948 = vmatpush1.xpose.msra.mxu0 0.0
  %949 = vmatprep.subr.mxu0 0.0
  %950 = vmatpush1.xpose.msra.mxu0 0.0
  %951 = vmatprep.mubr.f32.mxu0 0.0
  %952 = vmatmul.mubr.f32.gmra.mrb[0].mxu0 %v883
  %v953 = vpop.f32.mrb[0].mxu0
  %v954 = vadd.f32 0.0, %v953
  %v955 = vpop.f32.mrb[0].mxu0
  %956 = vdwg.mxu0
  %v957 = vmul.f32 %v876, 0.35355338
  %v958 = vmul.f32 %v954, 0.35355338
  %v959 = vadd.f32 %v957, %v66
  %v960 = vadd.f32 %v958, %v66
  %v961 = vsel %vm137, %v959, -inf
  %962 = vmax.xlane.f32.xlu0 %v961
  %v963 = vpop.xlane.xlu0 %962
  %v964 = vsel %vm137, %v960, -inf
  %965 = vmax.xlane.f32.xlu0 %v964
  %v966 = vpop.xlane.xlu0 %965
  %v967 = vsub.f32 %v959, %v963
  %v968 = vsub.f32 %v960, %v966
  %v969 = vmul.f32 %v967, 1.442695
  %v970 = vpow.pop %v969
  %v971 = vmul.f32 %v968, 1.442695
  %v972 = vpow.pop %v971
  %v973 = vsel %vm137, %v970, 0.0
  %974 = vadd.xlane.f32.xlu0 %v973
  %v975 = vpop.xlane.xlu0 %974
  %v976 = vsel %vm137, %v972, 0.0
  %977 = vadd.xlane.f32.xlu0 %v976
  %v978 = vpop.xlane.xlu0 %977
  %v979 = vrcp.pop %v975
  %v980 = vrcp.pop %v978
  %v981 = vmul.f32 %v970, %v979
  %v982 = vmul.f32 %v972, %v980
  %983 = vrot.lane.b32.xlu0 %v128, 48
  %v984 = vpop.permute.xlu0 %983
  %v987 = vsel %vm137, %v981, 0
  %989 = vmatprep.subr.mxu0 0.0
  %990 = vmatpush1.msra.mxu0 %v984
  %991 = vmatprep.subr.mxu0 0.0
  %992 = vmatpush1.msra.mxu0 0.0
  %993 = vmatprep.subr.mxu0 0.0
  %994 = vmatpush1.msra.mxu0 0.0
  %995 = vmatprep.subr.mxu0 0.0
  %996 = vmatpush1.msra.mxu0 0.0
  %997 = vmatprep.subr.mxu0 0.0
  %998 = vmatpush1.msra.mxu0 0.0
  %999 = vmatprep.subr.mxu0 0.0
  %1000 = vmatpush1.msra.mxu0 0.0
  %1001 = vmatprep.subr.mxu0 0.0
  %1002 = vmatpush1.msra.mxu0 0.0
  %1003 = vmatprep.subr.mxu0 0.0
  %1004 = vmatpush1.msra.mxu0 0.0
  %1005 = vmatprep.subr.mxu0 0.0
  %1006 = vmatpush1.msra.mxu0 0.0
  %1007 = vmatprep.subr.mxu0 0.0
  %1008 = vmatpush1.msra.mxu0 0.0
  %1009 = vmatprep.subr.mxu0 0.0
  %1010 = vmatpush1.msra.mxu0 0.0
  %1011 = vmatprep.subr.mxu0 0.0
  %1012 = vmatpush1.msra.mxu0 0.0
  %1013 = vmatprep.subr.mxu0 0.0
  %1014 = vmatpush1.msra.mxu0 0.0
  %1015 = vmatprep.subr.mxu0 0.0
  %1016 = vmatpush1.msra.mxu0 0.0
  %1017 = vmatprep.subr.mxu0 0.0
  %1018 = vmatpush1.msra.mxu0 0.0
  %1019 = vmatprep.subr.mxu0 0.0
  %1020 = vmatpush1.msra.mxu0 0.0
  %1021 = vmatprep.subr.mxu0 0.0
  %1022 = vmatpush1.msra.mxu0 0.0
  %1023 = vmatprep.subr.mxu0 0.0
  %1024 = vmatpush1.msra.mxu0 0.0
  %1025 = vmatprep.subr.mxu0 0.0
  %1026 = vmatpush1.msra.mxu0 0.0
  %1027 = vmatprep.subr.mxu0 0.0
  %1028 = vmatpush1.msra.mxu0 0.0
  %1029 = vmatprep.subr.mxu0 0.0
  %1030 = vmatpush1.msra.mxu0 0.0
  %1031 = vmatprep.subr.mxu0 0.0
  %1032 = vmatpush1.msra.mxu0 0.0
  %1033 = vmatprep.subr.mxu0 0.0
  %1034 = vmatpush1.msra.mxu0 0.0
  %1035 = vmatprep.subr.mxu0 0.0
  %1036 = vmatpush1.msra.mxu0 0.0
  %1037 = vmatprep.subr.mxu0 0.0
  %1038 = vmatpush1.msra.mxu0 0.0
  %1039 = vmatprep.subr.mxu0 0.0
  %1040 = vmatpush1.msra.mxu0 0.0
  %1041 = vmatprep.subr.mxu0 0.0
  %1042 = vmatpush1.msra.mxu0 0.0
  %1043 = vmatprep.subr.mxu0 0.0
  %1044 = vmatpush1.msra.mxu0 0.0
  %1045 = vmatprep.subr.mxu0 0.0
  %1046 = vmatpush1.msra.mxu0 0.0
  %1047 = vmatprep.subr.mxu0 0.0
  %1048 = vmatpush1.msra.mxu0 0.0
  %1049 = vmatprep.subr.mxu0 0.0
  %1050 = vmatpush1.msra.mxu0 0.0
  %1051 = vmatprep.subr.mxu0 0.0
  %1052 = vmatpush1.msra.mxu0 0.0
  %1053 = vmatprep.mubr.f32.mxu0 0.0
  %1054 = vmatmul.mubr.f32.gmra.mrb[0].mxu0 %v987
  %v1055 = vpop.f32.mrb[0].mxu0
  %v1056 = vadd.f32 0.0, %v1055
  %v1057 = vpop.f32.mrb[0].mxu0
  %1058 = vdwg.mxu0
  %1059 = vrot.lane.b32.xlu0 %v131, 48
  %v1060 = vpop.permute.xlu0 %1059
  %v1063 = vsel %vm137, %v982, 0
  %1065 = vmatprep.subr.mxu0 0.0
  %1066 = vmatpush1.msra.mxu0 %v1060
  %1067 = vmatprep.subr.mxu0 0.0
  %1068 = vmatpush1.msra.mxu0 0.0
  %1069 = vmatprep.subr.mxu0 0.0
  %1070 = vmatpush1.msra.mxu0 0.0
  %1071 = vmatprep.subr.mxu0 0.0
  %1072 = vmatpush1.msra.mxu0 0.0
  %1073 = vmatprep.subr.mxu0 0.0
  %1074 = vmatpush1.msra.mxu0 0.0
  %1075 = vmatprep.subr.mxu0 0.0
  %1076 = vmatpush1.msra.mxu0 0.0
  %1077 = vmatprep.subr.mxu0 0.0
  %1078 = vmatpush1.msra.mxu0 0.0
  %1079 = vmatprep.subr.mxu0 0.0
  %1080 = vmatpush1.msra.mxu0 0.0
  %1081 = vmatprep.subr.mxu0 0.0
  %1082 = vmatpush1.msra.mxu0 0.0
  %1083 = vmatprep.subr.mxu0 0.0
  %1084 = vmatpush1.msra.mxu0 0.0
  %1085 = vmatprep.subr.mxu0 0.0
  %1086 = vmatpush1.msra.mxu0 0.0
  %1087 = vmatprep.subr.mxu0 0.0
  %1088 = vmatpush1.msra.mxu0 0.0
  %1089 = vmatprep.subr.mxu0 0.0
  %1090 = vmatpush1.msra.mxu0 0.0
  %1091 = vmatprep.subr.mxu0 0.0
  %1092 = vmatpush1.msra.mxu0 0.0
  %1093 = vmatprep.subr.mxu0 0.0
  %1094 = vmatpush1.msra.mxu0 0.0
  %1095 = vmatprep.subr.mxu0 0.0
  %1096 = vmatpush1.msra.mxu0 0.0
  %1097 = vmatprep.subr.mxu0 0.0
  %1098 = vmatpush1.msra.mxu0 0.0
  %1099 = vmatprep.subr.mxu0 0.0
  %1100 = vmatpush1.msra.mxu0 0.0
  %1101 = vmatprep.subr.mxu0 0.0
  %1102 = vmatpush1.msra.mxu0 0.0
  %1103 = vmatprep.subr.mxu0 0.0
  %1104 = vmatpush1.msra.mxu0 0.0
  %1105 = vmatprep.subr.mxu0 0.0
  %1106 = vmatpush1.msra.mxu0 0.0
  %1107 = vmatprep.subr.mxu0 0.0
  %1108 = vmatpush1.msra.mxu0 0.0
  %1109 = vmatprep.subr.mxu0 0.0
  %1110 = vmatpush1.msra.mxu0 0.0
  %1111 = vmatprep.subr.mxu0 0.0
  %1112 = vmatpush1.msra.mxu0 0.0
  %1113 = vmatprep.subr.mxu0 0.0
  %1114 = vmatpush1.msra.mxu0 0.0
  %1115 = vmatprep.subr.mxu0 0.0
  %1116 = vmatpush1.msra.mxu0 0.0
  %1117 = vmatprep.subr.mxu0 0.0
  %1118 = vmatpush1.msra.mxu0 0.0
  %1119 = vmatprep.subr.mxu0 0.0
  %1120 = vmatpush1.msra.mxu0 0.0
  %1121 = vmatprep.subr.mxu0 0.0
  %1122 = vmatpush1.msra.mxu0 0.0
  %1123 = vmatprep.subr.mxu0 0.0
  %1124 = vmatpush1.msra.mxu0 0.0
  %1125 = vmatprep.subr.mxu0 0.0
  %1126 = vmatpush1.msra.mxu0 0.0
  %1127 = vmatprep.subr.mxu0 0.0
  %1128 = vmatpush1.msra.mxu0 0.0
  %1129 = vmatprep.mubr.f32.mxu0 0.0
  %1130 = vmatmul.mubr.f32.gmra.mrb[0].mxu0 %v1063
  %v1131 = vpop.f32.mrb[0].mxu0
  %v1132 = vadd.f32 0.0, %v1131
  %v1133 = vpop.f32.mrb[0].mxu0
  %1134 = vdwg.mxu0
  %1135 = vrot.lane.b32.xlu0 %v128, 104
  %v1136 = vpop.permute.xlu0 %1135
  %1137 = vrot.lane.b32.xlu0 %v128, 72
  %v1138 = vpop.permute.xlu0 %1137
  %v1139 = vsel %vm137, %v1136, 0
  %v1141 = vsel %vm137, %v1138, 0
  %1143 = vmatprep.subr.mxu0 0.0
  %1144 = vmatpush1.xpose.msra.mxu0 %v1141
  %1145 = vmatprep.subr.mxu0 0.0
  %1146 = vmatpush1.xpose.msra.mxu0 0.0
  %1147 = vmatprep.subr.mxu0 0.0
  %1148 = vmatpush1.xpose.msra.mxu0 0.0
  %1149 = vmatprep.subr.mxu0 0.0
  %1150 = vmatpush1.xpose.msra.mxu0 0.0
  %1151 = vmatprep.subr.mxu0 0.0
  %1152 = vmatpush1.xpose.msra.mxu0 0.0
  %1153 = vmatprep.subr.mxu0 0.0
  %1154 = vmatpush1.xpose.msra.mxu0 0.0
  %1155 = vmatprep.subr.mxu0 0.0
  %1156 = vmatpush1.xpose.msra.mxu0 0.0
  %1157 = vmatprep.subr.mxu0 0.0
  %1158 = vmatpush1.xpose.msra.mxu0 0.0
  %1159 = vmatprep.subr.mxu0 0.0
  %1160 = vmatpush1.xpose.msra.mxu0 0.0
  %1161 = vmatprep.subr.mxu0 0.0
  %1162 = vmatpush1.xpose.msra.mxu0 0.0
  %1163 = vmatprep.subr.mxu0 0.0
  %1164 = vmatpush1.xpose.msra.mxu0 0.0
  %1165 = vmatprep.subr.mxu0 0.0
  %1166 = vmatpush1.xpose.msra.mxu0 0.0
  %1167 = vmatprep.subr.mxu0 0.0
  %1168 = vmatpush1.xpose.msra.mxu0 0.0
  %1169 = vmatprep.subr.mxu0 0.0
  %1170 = vmatpush1.xpose.msra.mxu0 0.0
  %1171 = vmatprep.subr.mxu0 0.0
  %1172 = vmatpush1.xpose.msra.mxu0 0.0
  %1173 = vmatprep.subr.mxu0 0.0
  %1174 = vmatpush1.xpose.msra.mxu0 0.0
  %1175 = vmatprep.subr.mxu0 0.0
  %1176 = vmatpush1.xpose.msra.mxu0 0.0
  %1177 = vmatprep.subr.mxu0 0.0
  %1178 = vmatpush1.xpose.msra.mxu0 0.0
  %1179 = vmatprep.subr.mxu0 0.0
  %1180 = vmatpush1.xpose.msra.mxu0 0.0
  %1181 = vmatprep.subr.mxu0 0.0
  %1182 = vmatpush1.xpose.msra.mxu0 0.0
  %1183 = vmatprep.subr.mxu0 0.0
  %1184 = vmatpush1.xpose.msra.mxu0 0.0
  %1185 = vmatprep.subr.mxu0 0.0
  %1186 = vmatpush1.xpose.msra.mxu0 0.0
  %1187 = vmatprep.subr.mxu0 0.0
  %1188 = vmatpush1.xpose.msra.mxu0 0.0
  %1189 = vmatprep.subr.mxu0 0.0
  %1190 = vmatpush1.xpose.msra.mxu0 0.0
  %1191 = vmatprep.subr.mxu0 0.0
  %1192 = vmatpush1.xpose.msra.mxu0 0.0
  %1193 = vmatprep.subr.mxu0 0.0
  %1194 = vmatpush1.xpose.msra.mxu0 0.0
  %1195 = vmatprep.subr.mxu0 0.0
  %1196 = vmatpush1.xpose.msra.mxu0 0.0
  %1197 = vmatprep.subr.mxu0 0.0
  %1198 = vmatpush1.xpose.msra.mxu0 0.0
  %1199 = vmatprep.subr.mxu0 0.0
  %1200 = vmatpush1.xpose.msra.mxu0 0.0
  %1201 = vmatprep.subr.mxu0 0.0
  %1202 = vmatpush1.xpose.msra.mxu0 0.0
  %1203 = vmatprep.subr.mxu0 0.0
  %1204 = vmatpush1.xpose.msra.mxu0 0.0
  %1205 = vmatprep.subr.mxu0 0.0
  %1206 = vmatpush1.xpose.msra.mxu0 0.0
  %1207 = vmatprep.mubr.f32.mxu0 0.0
  %1208 = vmatmul.mubr.f32.gmra.mrb[0].mxu0 %v1139
  %v1209 = vpop.f32.mrb[0].mxu0
  %v1210 = vadd.f32 0.0, %v1209
  %v1211 = vpop.f32.mrb[0].mxu0
  %1212 = vdwg.mxu0
  %1213 = vrot.lane.b32.xlu0 %v131, 104
  %v1214 = vpop.permute.xlu0 %1213
  %1215 = vrot.lane.b32.xlu0 %v131, 72
  %v1216 = vpop.permute.xlu0 %1215
  %v1217 = vsel %vm137, %v1214, 0
  %v1219 = vsel %vm137, %v1216, 0
  %1221 = vmatprep.subr.mxu0 0.0
  %1222 = vmatpush1.xpose.msra.mxu0 %v1219
  %1223 = vmatprep.subr.mxu0 0.0
  %1224 = vmatpush1.xpose.msra.mxu0 0.0
  %1225 = vmatprep.subr.mxu0 0.0
  %1226 = vmatpush1.xpose.msra.mxu0 0.0
  %1227 = vmatprep.subr.mxu0 0.0
  %1228 = vmatpush1.xpose.msra.mxu0 0.0
  %1229 = vmatprep.subr.mxu0 0.0
  %1230 = vmatpush1.xpose.msra.mxu0 0.0
  %1231 = vmatprep.subr.mxu0 0.0
  %1232 = vmatpush1.xpose.msra.mxu0 0.0
  %1233 = vmatprep.subr.mxu0 0.0
  %1234 = vmatpush1.xpose.msra.mxu0 0.0
  %1235 = vmatprep.subr.mxu0 0.0
  %1236 = vmatpush1.xpose.msra.mxu0 0.0
  %1237 = vmatprep.subr.mxu0 0.0
  %1238 = vmatpush1.xpose.msra.mxu0 0.0
  %1239 = vmatprep.subr.mxu0 0.0
  %1240 = vmatpush1.xpose.msra.mxu0 0.0
  %1241 = vmatprep.subr.mxu0 0.0
  %1242 = vmatpush1.xpose.msra.mxu0 0.0
  %1243 = vmatprep.subr.mxu0 0.0
  %1244 = vmatpush1.xpose.msra.mxu0 0.0
  %1245 = vmatprep.subr.mxu0 0.0
  %1246 = vmatpush1.xpose.msra.mxu0 0.0
  %1247 = vmatprep.subr.mxu0 0.0
  %1248 = vmatpush1.xpose.msra.mxu0 0.0
  %1249 = vmatprep.subr.mxu0 0.0
  %1250 = vmatpush1.xpose.msra.mxu0 0.0
  %1251 = vmatprep.subr.mxu0 0.0
  %1252 = vmatpush1.xpose.msra.mxu0 0.0
  %1253 = vmatprep.subr.mxu0 0.0
  %1254 = vmatpush1.xpose.msra.mxu0 0.0
  %1255 = vmatprep.subr.mxu0 0.0
  %1256 = vmatpush1.xpose.msra.mxu0 0.0
  %1257 = vmatprep.subr.mxu0 0.0
  %1258 = vmatpush1.xpose.msra.mxu0 0.0
  %1259 = vmatprep.subr.mxu0 0.0
  %1260 = vmatpush1.xpose.msra.mxu0 0.0
  %1261 = vmatprep.subr.mxu0 0.0
  %1262 = vmatpush1.xpose.msra.mxu0 0.0
  %1263 = vmatprep.subr.mxu0 0.0
  %1264 = vmatpush1.xpose.msra.mxu0 0.0
  %1265 = vmatprep.subr.mxu0 0.0
  %1266 = vmatpush1.xpose.msra.mxu0 0.0
  %1267 = vmatprep.subr.mxu0 0.0
  %1268 = vmatpush1.xpose.msra.mxu0 0.0
  %1269 = vmatprep.subr.mxu0 0.0
  %1270 = vmatpush1.xpose.msra.mxu0 0.0
  %1271 = vmatprep.subr.mxu0 0.0
  %1272 = vmatpush1.xpose.msra.mxu0 0.0
  %1273 = vmatprep.subr.mxu0 0.0
  %1274 = vmatpush1.xpose.msra.mxu0 0.0
  %1275 = vmatprep.subr.mxu0 0.0
  %1276 = vmatpush1.xpose.msra.mxu0 0.0
  %1277 = vmatprep.subr.mxu0 0.0
  %1278 = vmatpush1.xpose.msra.mxu0 0.0
  %1279 = vmatprep.subr.mxu0 0.0
  %1280 = vmatpush1.xpose.msra.mxu0 0.0
  %1281 = vmatprep.subr.mxu0 0.0
  %1282 = vmatpush1.xpose.msra.mxu0 0.0
  %1283 = vmatprep.subr.mxu0 0.0
  %1284 = vmatpush1.xpose.msra.mxu0 0.0
  %1285 = vmatprep.mubr.f32.mxu0 0.0
  %1286 = vmatmul.mubr.f32.gmra.mrb[0].mxu0 %v1217
  %v1287 = vpop.f32.mrb[0].mxu0
  %v1288 = vadd.f32 0.0, %v1287
  %v1289 = vpop.f32.mrb[0].mxu0
  %1290 = vdwg.mxu0
  %v1291 = vmul.f32 %v1210, 0.35355338
  %v1292 = vmul.f32 %v1288, 0.35355338
  %v1293 = vadd.f32 %v1291, %v66
  %v1294 = vadd.f32 %v1292, %v66
  %v1295 = vsel %vm137, %v1293, -inf
  %1296 = vmax.xlane.f32.xlu0 %v1295
  %v1297 = vpop.xlane.xlu0 %1296
  %v1298 = vsel %vm137, %v1294, -inf
  %1299 = vmax.xlane.f32.xlu0 %v1298
  %v1300 = vpop.xlane.xlu0 %1299
  %v1301 = vsub.f32 %v1293, %v1297
  %v1302 = vsub.f32 %v1294, %v1300
  %v1303 = vmul.f32 %v1301, 1.442695
  %v1304 = vpow.pop %v1303
  %v1305 = vmul.f32 %v1302, 1.442695
  %v1306 = vpow.pop %v1305
  %v1307 = vsel %vm137, %v1304, 0.0
  %1308 = vadd.xlane.f32.xlu0 %v1307
  %v1309 = vpop.xlane.xlu0 %1308
  %v1310 = vsel %vm137, %v1306, 0.0
  %1311 = vadd.xlane.f32.xlu0 %v1310
  %v1312 = vpop.xlane.xlu0 %1311
  %v1313 = vrcp.pop %v1309
  %v1314 = vrcp.pop %v1312
  %v1315 = vmul.f32 %v1304, %v1313
  %v1316 = vmul.f32 %v1306, %v1314
  %1317 = vrot.lane.b32.xlu0 %v128, 40
  %v1318 = vpop.permute.xlu0 %1317
  %v1321 = vsel %vm137, %v1315, 0
  %1323 = vmatprep.subr.mxu0 0.0
  %1324 = vmatpush1.msra.mxu0 %v1318
  %1325 = vmatprep.subr.mxu0 0.0
  %1326 = vmatpush1.msra.mxu0 0.0
  %1327 = vmatprep.subr.mxu0 0.0
  %1328 = vmatpush1.msra.mxu0 0.0
  %1329 = vmatprep.subr.mxu0 0.0
  %1330 = vmatpush1.msra.mxu0 0.0
  %1331 = vmatprep.subr.mxu0 0.0
  %1332 = vmatpush1.msra.mxu0 0.0
  %1333 = vmatprep.subr.mxu0 0.0
  %1334 = vmatpush1.msra.mxu0 0.0
  %1335 = vmatprep.subr.mxu0 0.0
  %1336 = vmatpush1.msra.mxu0 0.0
  %1337 = vmatprep.subr.mxu0 0.0
  %1338 = vmatpush1.msra.mxu0 0.0
  %1339 = vmatprep.subr.mxu0 0.0
  %1340 = vmatpush1.msra.mxu0 0.0
  %1341 = vmatprep.subr.mxu0 0.0
  %1342 = vmatpush1.msra.mxu0 0.0
  %1343 = vmatprep.subr.mxu0 0.0
  %1344 = vmatpush1.msra.mxu0 0.0
  %1345 = vmatprep.subr.mxu0 0.0
  %1346 = vmatpush1.msra.mxu0 0.0
  %1347 = vmatprep.subr.mxu0 0.0
  %1348 = vmatpush1.msra.mxu0 0.0
  %1349 = vmatprep.subr.mxu0 0.0
  %1350 = vmatpush1.msra.mxu0 0.0
  %1351 = vmatprep.subr.mxu0 0.0
  %1352 = vmatpush1.msra.mxu0 0.0
  %1353 = vmatprep.subr.mxu0 0.0
  %1354 = vmatpush1.msra.mxu0 0.0
  %1355 = vmatprep.subr.mxu0 0.0
  %1356 = vmatpush1.msra.mxu0 0.0
  %1357 = vmatprep.subr.mxu0 0.0
  %1358 = vmatpush1.msra.mxu0 0.0
  %1359 = vmatprep.subr.mxu0 0.0
  %1360 = vmatpush1.msra.mxu0 0.0
  %1361 = vmatprep.subr.mxu0 0.0
  %1362 = vmatpush1.msra.mxu0 0.0
  %1363 = vmatprep.subr.mxu0 0.0
  %1364 = vmatpush1.msra.mxu0 0.0
  %1365 = vmatprep.subr.mxu0 0.0
  %1366 = vmatpush1.msra.mxu0 0.0
  %1367 = vmatprep.subr.mxu0 0.0
  %1368 = vmatpush1.msra.mxu0 0.0
  %1369 = vmatprep.subr.mxu0 0.0
  %1370 = vmatpush1.msra.mxu0 0.0
  %1371 = vmatprep.subr.mxu0 0.0
  %1372 = vmatpush1.msra.mxu0 0.0
  %1373 = vmatprep.subr.mxu0 0.0
  %1374 = vmatpush1.msra.mxu0 0.0
  %1375 = vmatprep.subr.mxu0 0.0
  %1376 = vmatpush1.msra.mxu0 0.0
  %1377 = vmatprep.subr.mxu0 0.0
  %1378 = vmatpush1.msra.mxu0 0.0
  %1379 = vmatprep.subr.mxu0 0.0
  %1380 = vmatpush1.msra.mxu0 0.0
  %1381 = vmatprep.subr.mxu0 0.0
  %1382 = vmatpush1.msra.mxu0 0.0
  %1383 = vmatprep.subr.mxu0 0.0
  %1384 = vmatpush1.msra.mxu0 0.0
  %1385 = vmatprep.subr.mxu0 0.0
  %1386 = vmatpush1.msra.mxu0 0.0
  %1387 = vmatprep.mubr.f32.mxu0 0.0
  %1388 = vmatmul.mubr.f32.gmra.mrb[0].mxu0 %v1321
  %v1389 = vpop.f32.mrb[0].mxu0
  %v1390 = vadd.f32 0.0, %v1389
  %v1391 = vpop.f32.mrb[0].mxu0
  %1392 = vdwg.mxu0
  %1393 = vrot.lane.b32.xlu0 %v131, 40
  %v1394 = vpop.permute.xlu0 %1393
  %v1397 = vsel %vm137, %v1316, 0
  %1399 = vmatprep.subr.mxu0 0.0
  %1400 = vmatpush1.msra.mxu0 %v1394
  %1401 = vmatprep.subr.mxu0 0.0
  %1402 = vmatpush1.msra.mxu0 0.0
  %1403 = vmatprep.subr.mxu0 0.0
  %1404 = vmatpush1.msra.mxu0 0.0
  %1405 = vmatprep.subr.mxu0 0.0
  %1406 = vmatpush1.msra.mxu0 0.0
  %1407 = vmatprep.subr.mxu0 0.0
  %1408 = vmatpush1.msra.mxu0 0.0
  %1409 = vmatprep.subr.mxu0 0.0
  %1410 = vmatpush1.msra.mxu0 0.0
  %1411 = vmatprep.subr.mxu0 0.0
  %1412 = vmatpush1.msra.mxu0 0.0
  %1413 = vmatprep.subr.mxu0 0.0
  %1414 = vmatpush1.msra.mxu0 0.0
  %1415 = vmatprep.subr.mxu0 0.0
  %1416 = vmatpush1.msra.mxu0 0.0
  %1417 = vmatprep.subr.mxu0 0.0
  %1418 = vmatpush1.msra.mxu0 0.0
  %1419 = vmatprep.subr.mxu0 0.0
  %1420 = vmatpush1.msra.mxu0 0.0
  %1421 = vmatprep.subr.mxu0 0.0
  %1422 = vmatpush1.msra.mxu0 0.0
  %1423 = vmatprep.subr.mxu0 0.0
  %1424 = vmatpush1.msra.mxu0 0.0
  %1425 = vmatprep.subr.mxu0 0.0
  %1426 = vmatpush1.msra.mxu0 0.0
  %1427 = vmatprep.subr.mxu0 0.0
  %1428 = vmatpush1.msra.mxu0 0.0
  %1429 = vmatprep.subr.mxu0 0.0
  %1430 = vmatpush1.msra.mxu0 0.0
  %1431 = vmatprep.subr.mxu0 0.0
  %1432 = vmatpush1.msra.mxu0 0.0
  %1433 = vmatprep.subr.mxu0 0.0
  %1434 = vmatpush1.msra.mxu0 0.0
  %1435 = vmatprep.subr.mxu0 0.0
  %1436 = vmatpush1.msra.mxu0 0.0
  %1437 = vmatprep.subr.mxu0 0.0
  %1438 = vmatpush1.msra.mxu0 0.0
  %1439 = vmatprep.subr.mxu0 0.0
  %1440 = vmatpush1.msra.mxu0 0.0
  %1441 = vmatprep.subr.mxu0 0.0
  %1442 = vmatpush1.msra.mxu0 0.0
  %1443 = vmatprep.subr.mxu0 0.0
  %1444 = vmatpush1.msra.mxu0 0.0
  %1445 = vmatprep.subr.mxu0 0.0
  %1446 = vmatpush1.msra.mxu0 0.0
  %1447 = vmatprep.subr.mxu0 0.0
  %1448 = vmatpush1.msra.mxu0 0.0
  %1449 = vmatprep.subr.mxu0 0.0
  %1450 = vmatpush1.msra.mxu0 0.0
  %1451 = vmatprep.subr.mxu0 0.0
  %1452 = vmatpush1.msra.mxu0 0.0
  %1453 = vmatprep.subr.mxu0 0.0
  %1454 = vmatpush1.msra.mxu0 0.0
  %1455 = vmatprep.subr.mxu0 0.0
  %1456 = vmatpush1.msra.mxu0 0.0
  %1457 = vmatprep.subr.mxu0 0.0
  %1458 = vmatpush1.msra.mxu0 0.0
  %1459 = vmatprep.subr.mxu0 0.0
  %1460 = vmatpush1.msra.mxu0 0.0
  %1461 = vmatprep.subr.mxu0 0.0
  %1462 = vmatpush1.msra.mxu0 0.0
  %1463 = vmatprep.mubr.f32.mxu0 0.0
  %1464 = vmatmul.mubr.f32.gmra.mrb[0].mxu0 %v1397
  %v1465 = vpop.f32.mrb[0].mxu0
  %v1466 = vadd.f32 0.0, %v1465
  %v1467 = vpop.f32.mrb[0].mxu0
  %1468 = vdwg.mxu0
  %1471 = vrot.lane.b32.xlu0 %v722, 8
  %v1472 = vpop.permute.xlu0 %1471
  %1473 = vrot.lane.b32.xlu0 %v798, 8
  %v1474 = vpop.permute.xlu0 %1473
  %1479 = vrot.lane.b32.xlu0 %v1056, 16
  %v1480 = vpop.permute.xlu0 %1479
  %1481 = vrot.lane.b32.xlu0 %v1132, 16
  %v1482 = vpop.permute.xlu0 %1481
  %1487 = vrot.lane.b32.xlu0 %v1390, 24
  %v1488 = vpop.permute.xlu0 %1487
  %1489 = vrot.lane.b32.xlu0 %v1466, 24
  %v1490 = vpop.permute.xlu0 %1489
  %v1493 = vsel %vm137, %v388, %v1472
  %v1494 = vsel %vm137, %v464, %v1474
  %vm1495 = vcmask 130048
  %v1496 = vsel %vm1495, %v1493, %v1480
  %v1497 = vsel %vm1495, %v1494, %v1482
  %vm1498 = vcmask 195584
  %v1499 = vsel %vm1498, %v1496, %v1488
  %v1500 = vsel %vm1498, %v1497, %v1490
  %v1501 = vld [vmem:[%s5] sm:$0xf]
  %v1502 = vld [vmem:[%s5 + $0x4] sm:$0xf]
  %v1503 = vld [vmem:[%s5 + $0x8] sm:$0xf]
  %v1504 = vld [vmem:[%s5 + $0xc] sm:$0xf]
  %v1505 = vpack.c.bf16 %v1500, %v1499
  %v1506 = vld [vmem:[%s6] sm:$0x1]
  %v1507 = vlaneseq
  %v1508 = vshrl.u32 %v1507, 7
  %v1509 = vsub.s32 0, %v1508
  %v1510 = vrot.slane %v1506, %v1509
  %v1515 = vunpack.c.l.b16 %v1501
  %v1516 = vunpack.c.l.b16 %v1502
  %v1517 = vunpack.c.l.b16 %v1503
  %v1518 = vunpack.c.l.b16 %v1504
  %v1519 = vpack.c.b16 %v1516, %v1515
  %v1520 = vpack.c.b16 %v1518, %v1517
  %v1524 = vsel %vm89, %v1505, 0
  %1526 = vmatprep.subr.bf16.mxu0 0
  %1527 = vmatpush1.bf16.msra.mxu0 %v1519
  %1528 = vmatprep.subr.bf16.mxu0 0
  %1529 = vmatpush1.bf16.msra.mxu0 %v1520
  %1530 = vmatprep.subr.bf16.mxu0 0
  %1531 = vmatpush1.bf16.msra.mxu0 0
  %1532 = vmatprep.subr.bf16.mxu0 0
  %1533 = vmatpush1.bf16.msra.mxu0 0
  %1534 = vmatprep.subr.bf16.mxu0 0
  %1535 = vmatpush1.bf16.msra.mxu0 0
  %1536 = vmatprep.subr.bf16.mxu0 0
  %1537 = vmatpush1.bf16.msra.mxu0 0
  %1538 = vmatprep.subr.bf16.mxu0 0
  %1539 = vmatpush1.bf16.msra.mxu0 0
  %1540 = vmatprep.subr.bf16.mxu0 0
  %1541 = vmatpush1.bf16.msra.mxu0 0
  %1542 = vmatprep.subr.bf16.mxu0 0
  %1543 = vmatpush1.bf16.msra.mxu0 0
  %1544 = vmatprep.subr.bf16.mxu0 0
  %1545 = vmatpush1.bf16.msra.mxu0 0
  %1546 = vmatprep.subr.bf16.mxu0 0
  %1547 = vmatpush1.bf16.msra.mxu0 0
  %1548 = vmatprep.subr.bf16.mxu0 0
  %1549 = vmatpush1.bf16.msra.mxu0 0
  %1550 = vmatprep.subr.bf16.mxu0 0
  %1551 = vmatpush1.bf16.msra.mxu0 0
  %1552 = vmatprep.subr.bf16.mxu0 0
  %1553 = vmatpush1.bf16.msra.mxu0 0
  %1554 = vmatprep.subr.bf16.mxu0 0
  %1555 = vmatpush1.bf16.msra.mxu0 0
  %1556 = vmatprep.subr.bf16.mxu0 0
  %1557 = vmatpush1.bf16.msra.mxu0 0
  %1558 = vmatprep.mubr.bf16.mxu0 0
  %1559 = vmatmul.mubr.bf16.gmra.mrb[0].mxu0 %v1524
  %v1560 = vpop.f32.mrb[0].mxu0
  %v1561 = vadd.f32 %v1510, %v1560
  %v1562 = vpop.f32.mrb[0].mxu0
  %v1563 = vpop.f32.mrb[0].mxu0
  %v1564 = vadd.f32 %v1510, %v1563
  %v1565 = vpop.f32.mrb[0].mxu0
  %1566 = vdwg.mxu0
  %v1567 = vadd.f32 %v63, %v1561
  %v1568 = vadd.f32 %v64, %v1564
  %v1569 = vld [vmem:[%s15] sm:$0x1]
  %v1570 = vld [vmem:[%s16] sm:$0x1]
  %v1571 = vsel %vm89, %v1567, 0.0
  %1572 = vadd.xlane.f32.xlu0 %v1571
  %v1573 = vpop.xlane.xlu0 %1572
  %v1574 = vsel %vm89, %v1568, 0.0
  %1575 = vadd.xlane.f32.xlu0 %v1574
  %v1576 = vpop.xlane.xlu0 %1575
  %v1577 = vrcp.pop 32.0
  %v1578 = vmul.f32 %v1573, %v1577
  %v1579 = vmul.f32 %v1576, %v1577
  %v1580 = vsub.f32 %v1567, %v1578
  %v1581 = vsub.f32 %v1568, %v1579
  %v1582 = vmul.f32 %v1580, %v1580
  %v1583 = vmul.f32 %v1581, %v1581
  %v1584 = vsel %vm89, %v1582, 0.0
  %1585 = vadd.xlane.f32.xlu0 %v1584
  %v1586 = vpop.xlane.xlu0 %1585
  %v1587 = vsel %vm89, %v1583, 0.0
  %1588 = vadd.xlane.f32.xlu0 %v1587
  %v1589 = vpop.xlane.xlu0 %1588
  %v1590 = vmul.f32 %v1586, %v1577
  %v1591 = vmul.f32 %v1589, %v1577
  %v1592 = vadd.f32 %v1590, 1e-05
  %v1593 = vadd.f32 %v1591, 1e-05
  %v1594 = vrsqrt.pop %v1592
  %v1595 = vrsqrt.pop %v1593
  %v1596 = vmul.f32 %v1580, %v1594
  %v1597 = vmul.f32 %v1581, %v1595
  %v1598 = vlaneseq
  %v1599 = vshrl.u32 %v1598, 7
  %v1600 = vsub.s32 0, %v1599
  %v1601 = vrot.slane %v1569, %v1600
  %v1602 = vmul.f32 %v1596, %v1601
  %v1603 = vmul.f32 %v1597, %v1601
  %v1604 = vlaneseq
  %v1605 = vshrl.u32 %v1604, 7
  %v1606 = vsub.s32 0, %v1605
  %v1607 = vrot.slane %v1570, %v1606
  %v1608 = vadd.f32 %v1602, %v1607
  %v1609 = vadd.f32 %v1603, %v1607
  %v1610 = vld [vmem:[%s7] sm:$0xf]
  %v1611 = vld [vmem:[%s7 + $0x4] sm:$0xf]
  %v1612 = vld [vmem:[%s7 + $0x8] sm:$0xf]
  %v1613 = vld [vmem:[%s7 + $0xc] sm:$0xf]
  %v1614 = vpack.c.bf16 %v65, %v65
  %v1615 = vld [vmem:[%s8] sm:$0x1]
  %v1616 = vlaneseq
  %v1617 = vshrl.u32 %v1616, 7
  %v1618 = vsub.s32 0, %v1617
  %v1619 = vrot.slane %v1615, %v1618
  %v1624 = vunpack.c.l.b16 %v1610
  %v1625 = vunpack.c.l.b16 %v1611
  %v1626 = vunpack.c.l.b16 %v1612
  %v1627 = vunpack.c.l.b16 %v1613
  %v1628 = vpack.c.b16 %v1625, %v1624
  %v1629 = vpack.c.b16 %v1627, %v1626
  %v1633 = vsel %vm89, %v1614, 0
  %1635 = vmatprep.subr.bf16.mxu0 0
  %1636 = vmatpush1.bf16.msra.mxu0 %v1628
  %1637 = vmatprep.subr.bf16.mxu0 0
  %1638 = vmatpush1.bf16.msra.mxu0 %v1629
  %1639 = vmatprep.subr.bf16.mxu0 0
  %1640 = vmatpush1.bf16.msra.mxu0 0
  %1641 = vmatprep.subr.bf16.mxu0 0
  %1642 = vmatpush1.bf16.msra.mxu0 0
  %1643 = vmatprep.subr.bf16.mxu0 0
  %1644 = vmatpush1.bf16.msra.mxu0 0
  %1645 = vmatprep.subr.bf16.mxu0 0
  %1646 = vmatpush1.bf16.msra.mxu0 0
  %1647 = vmatprep.subr.bf16.mxu0 0
  %1648 = vmatpush1.bf16.msra.mxu0 0
  %1649 = vmatprep.subr.bf16.mxu0 0
  %1650 = vmatpush1.bf16.msra.mxu0 0
  %1651 = vmatprep.subr.bf16.mxu0 0
  %1652 = vmatpush1.bf16.msra.mxu0 0
  %1653 = vmatprep.subr.bf16.mxu0 0
  %1654 = vmatpush1.bf16.msra.mxu0 0
  %1655 = vmatprep.subr.bf16.mxu0 0
  %1656 = vmatpush1.bf16.msra.mxu0 0
  %1657 = vmatprep.subr.bf16.mxu0 0
  %1658 = vmatpush1.bf16.msra.mxu0 0
  %1659 = vmatprep.subr.bf16.mxu0 0
  %1660 = vmatpush1.bf16.msra.mxu0 0
  %1661 = vmatprep.subr.bf16.mxu0 0
  %1662 = vmatpush1.bf16.msra.mxu0 0
  %1663 = vmatprep.subr.bf16.mxu0 0
  %1664 = vmatpush1.bf16.msra.mxu0 0
  %1665 = vmatprep.subr.bf16.mxu0 0
  %1666 = vmatpush1.bf16.msra.mxu0 0
  %1667 = vmatprep.mubr.bf16.mxu0 0
  %1668 = vmatmul.mubr.bf16.gmra.mrb[0].mxu0 %v1633
  %v1669 = vpop.f32.mrb[0].mxu0
  %v1670 = vadd.f32 %v1619, %v1669
  %v1671 = vpop.f32.mrb[0].mxu0
  %v1672 = vpop.f32.mrb[0].mxu0
  %v1673 = vpop.f32.mrb[0].mxu0
  %1674 = vdwg.mxu0
  %v1675 = vld [vmem:[%s9] sm:$0xf]
  %v1676 = vld [vmem:[%s9 + $0x4] sm:$0xf]
  %v1677 = vld [vmem:[%s9 + $0x8] sm:$0xf]
  %v1678 = vld [vmem:[%s9 + $0xc] sm:$0xf]
  %v1679 = vpack.c.bf16 %v1670, %v1670
  %v1680 = vld [vmem:[%s10] sm:$0x1]
  %v1681 = vlaneseq
  %v1682 = vshrl.u32 %v1681, 7
  %v1683 = vsub.s32 0, %v1682
  %v1684 = vrot.slane %v1680, %v1683
  %v1689 = vunpack.c.l.b16 %v1675
  %v1690 = vunpack.c.l.b16 %v1676
  %v1691 = vunpack.c.l.b16 %v1677
  %v1692 = vunpack.c.l.b16 %v1678
  %v1693 = vpack.c.b16 %v1690, %v1689
  %v1694 = vpack.c.b16 %v1692, %v1691
  %v1698 = vsel %vm89, %v1679, 0
  %1700 = vmatprep.subr.bf16.mxu0 0
  %1701 = vmatpush1.bf16.msra.mxu0 %v1693
  %1702 = vmatprep.subr.bf16.mxu0 0
  %1703 = vmatpush1.bf16.msra.mxu0 %v1694
  %1704 = vmatprep.subr.bf16.mxu0 0
  %1705 = vmatpush1.bf16.msra.mxu0 0
  %1706 = vmatprep.subr.bf16.mxu0 0
  %1707 = vmatpush1.bf16.msra.mxu0 0
  %1708 = vmatprep.subr.bf16.mxu0 0
  %1709 = vmatpush1.bf16.msra.mxu0 0
  %1710 = vmatprep.subr.bf16.mxu0 0
  %1711 = vmatpush1.bf16.msra.mxu0 0
  %1712 = vmatprep.subr.bf16.mxu0 0
  %1713 = vmatpush1.bf16.msra.mxu0 0
  %1714 = vmatprep.subr.bf16.mxu0 0
  %1715 = vmatpush1.bf16.msra.mxu0 0
  %1716 = vmatprep.subr.bf16.mxu0 0
  %1717 = vmatpush1.bf16.msra.mxu0 0
  %1718 = vmatprep.subr.bf16.mxu0 0
  %1719 = vmatpush1.bf16.msra.mxu0 0
  %1720 = vmatprep.subr.bf16.mxu0 0
  %1721 = vmatpush1.bf16.msra.mxu0 0
  %1722 = vmatprep.subr.bf16.mxu0 0
  %1723 = vmatpush1.bf16.msra.mxu0 0
  %1724 = vmatprep.subr.bf16.mxu0 0
  %1725 = vmatpush1.bf16.msra.mxu0 0
  %1726 = vmatprep.subr.bf16.mxu0 0
  %1727 = vmatpush1.bf16.msra.mxu0 0
  %1728 = vmatprep.subr.bf16.mxu0 0
  %1729 = vmatpush1.bf16.msra.mxu0 0
  %1730 = vmatprep.subr.bf16.mxu0 0
  %1731 = vmatpush1.bf16.msra.mxu0 0
  %1732 = vmatprep.mubr.bf16.mxu0 0
  %1733 = vmatmul.mubr.bf16.gmra.mrb[0].mxu0 %v1698
  %v1734 = vpop.f32.mrb[0].mxu0
  %v1735 = vadd.f32 %v1684, %v1734
  %v1736 = vpop.f32.mrb[0].mxu0
  %v1737 = vpop.f32.mrb[0].mxu0
  %v1738 = vpop.f32.mrb[0].mxu0
  %1739 = vdwg.mxu0
  %v1742 = vunpack.c.l.s4 1966171168
  %v1743 = vunpack.c.0.s8 %v1742
  %v1744 = vlaneseq
  %v1745 = vshrl.u32 %v1744, 7
  %v1746 = vsub.s32 %v1743, %v1745
  %v1747 = vrot.slane %v1735, %v1746
  %v1748 = vcombine.high %v1747, %v1747
  %v1750 = vunpack.c.l.s4 1966171168
  %v1751 = vunpack.c.0.s8 %v1750
  %v1752 = vlaneseq
  %v1753 = vshrl.u32 %v1752, 7
  %v1754 = vsub.s32 %v1751, %v1753
  %v1755 = vrot.slane %v1747, %v1754
  %v1757 = vunpack.c.l.s4 1966171168
  %v1758 = vunpack.c.0.s8 %v1757
  %v1759 = vlaneseq
  %v1760 = vshrl.u32 %v1759, 7
  %v1761 = vsub.s32 %v1758, %v1760
  %v1762 = vrot.slane %v1748, %v1761
  %v1763 = vlaneseq
  %v1764 = vshrl.u32 %v1763, 7
  %v1765 = vsub.s32 0, %v1764
  %v1766 = vrot.slane %v1755, %v1765
  %v1767 = vlaneseq
  %v1768 = vshrl.u32 %v1767, 7
  %v1769 = vsub.s32 0, %v1768
  %v1770 = vrot.slane %v1762, %v1769
  %v1773 = vadd.f32 %v1608, %v1766
  %v1774 = vadd.f32 %v1609, %v1770
  %v1775 = vld [vmem:[%s15 + $0x1] sm:$0x1]
  %v1776 = vld [vmem:[%s16 + $0x1] sm:$0x1]
  %v1777 = vsel %vm89, %v1773, 0.0
  %1778 = vadd.xlane.f32.xlu0 %v1777
  %v1779 = vpop.xlane.xlu0 %1778
  %v1780 = vsel %vm89, %v1774, 0.0
  %1781 = vadd.xlane.f32.xlu0 %v1780
  %v1782 = vpop.xlane.xlu0 %1781
  %v1783 = vmul.f32 %v1779, %v1577
  %v1784 = vmul.f32 %v1782, %v1577
  %v1785 = vsub.f32 %v1773, %v1783
  %v1786 = vsub.f32 %v1774, %v1784
  %v1787 = vmul.f32 %v1785, %v1785
  %v1788 = vmul.f32 %v1786, %v1786
  %v1789 = vsel %vm89, %v1787, 0.0
  %1790 = vadd.xlane.f32.xlu0 %v1789
  %v1791 = vpop.xlane.xlu0 %1790
  %v1792 = vsel %vm89, %v1788, 0.0
  %1793 = vadd.xlane.f32.xlu0 %v1792
  %v1794 = vpop.xlane.xlu0 %1793
  %v1795 = vmul.f32 %v1791, %v1577
  %v1796 = vmul.f32 %v1794, %v1577
  %v1797 = vadd.f32 %v1795, 1e-05
  %v1798 = vadd.f32 %v1796, 1e-05
  %v1799 = vrsqrt.pop %v1797
  %v1800 = vrsqrt.pop %v1798
  %v1801 = vmul.f32 %v1785, %v1799
  %v1802 = vmul.f32 %v1786, %v1800
  %v1803 = vlaneseq
  %v1804 = vshrl.u32 %v1803, 7
  %v1805 = vsub.s32 0, %v1804
  %v1806 = vrot.slane %v1775, %v1805
  %v1807 = vmul.f32 %v1801, %v1806
  %v1808 = vmul.f32 %v1802, %v1806
  %v1809 = vlaneseq
  %v1810 = vshrl.u32 %v1809, 7
  %v1811 = vsub.s32 0, %v1810
  %v1812 = vrot.slane %v1776, %v1811
  %v1813 = vadd.f32 %v1807, %v1812
  %v1814 = vadd.f32 %v1808, %v1812
  %v1815 = vld [vmem:[%s11] sm:$0xff]
  %v1816 = vld [vmem:[%s11 + $0x8] sm:$0xff]
  %v1817 = vld [vmem:[%s11 + $0x10] sm:$0xff]
  %v1818 = vld [vmem:[%s11 + $0x18] sm:$0xff]
  %v1819 = vld [vmem:[%s11 + $0x20] sm:$0xff]
  %v1820 = vld [vmem:[%s11 + $0x28] sm:$0xff]
  %v1821 = vld [vmem:[%s11 + $0x30] sm:$0xff]
  %v1822 = vld [vmem:[%s11 + $0x38] sm:$0xff]
  %v1823 = vld [vmem:[%s11 + $0x40] sm:$0xff]
  %v1824 = vld [vmem:[%s11 + $0x48] sm:$0xff]
  %v1825 = vld [vmem:[%s11 + $0x50] sm:$0xff]
  %v1826 = vld [vmem:[%s11 + $0x58] sm:$0xff]
  %v1827 = vld [vmem:[%s11 + $0x60] sm:$0xff]
  %v1828 = vld [vmem:[%s11 + $0x68] sm:$0xff]
  %v1829 = vld [vmem:[%s11 + $0x70] sm:$0xff]
  %v1830 = vld [vmem:[%s11 + $0x78] sm:$0xff]
  %v1831 = vld [vmem:[%s11 + $0x80] sm:$0xff]
  %v1832 = vld [vmem:[%s11 + $0x88] sm:$0xff]
  %v1833 = vld [vmem:[%s11 + $0x90] sm:$0xff]
  %v1834 = vld [vmem:[%s11 + $0x98] sm:$0xff]
  %v1835 = vld [vmem:[%s11 + $0xa0] sm:$0xff]
  %v1836 = vld [vmem:[%s11 + $0xa8] sm:$0xff]
  %v1837 = vld [vmem:[%s11 + $0xb0] sm:$0xff]
  %v1838 = vld [vmem:[%s11 + $0xb8] sm:$0xff]
  %v1839 = vld [vmem:[%s11 + $0xc0] sm:$0xff]
  %v1840 = vld [vmem:[%s11 + $0xc8] sm:$0xff]
  %v1841 = vld [vmem:[%s11 + $0xd0] sm:$0xff]
  %v1842 = vld [vmem:[%s11 + $0xd8] sm:$0xff]
  %v1843 = vld [vmem:[%s11 + $0xe0] sm:$0xff]
  %v1844 = vld [vmem:[%s11 + $0xe8] sm:$0xff]
  %v1845 = vld [vmem:[%s11 + $0xf0] sm:$0xff]
  %v1846 = vld [vmem:[%s11 + $0xf8] sm:$0xff]
  %v1847 = vpack.c.bf16 %v1814, %v1813
  %v1848 = vld [vmem:[%s12] ss:$2 sm:$0xff]
  %s1849 = scalar_lea.vmem %s12, 16
  %v1850 = vld [vmem:[%s1849] ss:$2 sm:$0xff]
  %v1853 = vlaneseq
  %v1854 = vshrl.u32 %v1853, 7
  %v1855 = vsub.s32 0, %v1854
  %v1856 = vrot.slane %v1848, %v1855
  %v1857 = vlaneseq
  %v1858 = vshrl.u32 %v1857, 7
  %v1859 = vsub.s32 1, %v1858
  %v1860 = vrot.slane %v1848, %v1859
  %v1861 = vlaneseq
  %v1862 = vshrl.u32 %v1861, 7
  %v1863 = vsub.s32 2, %v1862
  %v1864 = vrot.slane %v1848, %v1863
  %v1865 = vlaneseq
  %v1866 = vshrl.u32 %v1865, 7
  %v1867 = vsub.s32 3, %v1866
  %v1868 = vrot.slane %v1848, %v1867
  %v1869 = vlaneseq
  %v1870 = vshrl.u32 %v1869, 7
  %v1871 = vsub.s32 4, %v1870
  %v1872 = vrot.slane %v1848, %v1871
  %v1873 = vlaneseq
  %v1874 = vshrl.u32 %v1873, 7
  %v1875 = vsub.s32 5, %v1874
  %v1876 = vrot.slane %v1848, %v1875
  %v1877 = vlaneseq
  %v1878 = vshrl.u32 %v1877, 7
  %v1879 = vsub.s32 6, %v1878
  %v1880 = vrot.slane %v1848, %v1879
  %v1881 = vlaneseq
  %v1882 = vshrl.u32 %v1881, 7
  %v1883 = vsub.s32 7, %v1882
  %v1884 = vrot.slane %v1848, %v1883
  %v1885 = vlaneseq
  %v1886 = vshrl.u32 %v1885, 7
  %v1887 = vsub.s32 0, %v1886
  %v1888 = vrot.slane %v1850, %v1887
  %v1889 = vlaneseq
  %v1890 = vshrl.u32 %v1889, 7
  %v1891 = vsub.s32 1, %v1890
  %v1892 = vrot.slane %v1850, %v1891
  %v1893 = vlaneseq
  %v1894 = vshrl.u32 %v1893, 7
  %v1895 = vsub.s32 2, %v1894
  %v1896 = vrot.slane %v1850, %v1895
  %v1897 = vlaneseq
  %v1898 = vshrl.u32 %v1897, 7
  %v1899 = vsub.s32 3, %v1898
  %v1900 = vrot.slane %v1850, %v1899
  %v1901 = vlaneseq
  %v1902 = vshrl.u32 %v1901, 7
  %v1903 = vsub.s32 4, %v1902
  %v1904 = vrot.slane %v1850, %v1903
  %v1905 = vlaneseq
  %v1906 = vshrl.u32 %v1905, 7
  %v1907 = vsub.s32 5, %v1906
  %v1908 = vrot.slane %v1850, %v1907
  %v1909 = vlaneseq
  %v1910 = vshrl.u32 %v1909, 7
  %v1911 = vsub.s32 6, %v1910
  %v1912 = vrot.slane %v1850, %v1911
  %v1913 = vlaneseq
  %v1914 = vshrl.u32 %v1913, 7
  %v1915 = vsub.s32 7, %v1914
  %v1916 = vrot.slane %v1850, %v1915
  %v1965 = vunpack.c.l.b16 %v1815
  %v1966 = vunpack.c.h.b16 %v1815
  %v1967 = vunpack.c.l.b16 %v1816
  %v1968 = vunpack.c.h.b16 %v1816
  %v1969 = vunpack.c.l.b16 %v1817
  %v1970 = vunpack.c.h.b16 %v1817
  %v1971 = vunpack.c.l.b16 %v1818
  %v1972 = vunpack.c.h.b16 %v1818
  %v1973 = vunpack.c.l.b16 %v1819
  %v1974 = vunpack.c.h.b16 %v1819
  %v1975 = vunpack.c.l.b16 %v1820
  %v1976 = vunpack.c.h.b16 %v1820
  %v1977 = vunpack.c.l.b16 %v1821
  %v1978 = vunpack.c.h.b16 %v1821
  %v1979 = vunpack.c.l.b16 %v1822
  %v1980 = vunpack.c.h.b16 %v1822
  %v1981 = vunpack.c.l.b16 %v1823
  %v1982 = vunpack.c.h.b16 %v1823
  %v1983 = vunpack.c.l.b16 %v1824
  %v1984 = vunpack.c.h.b16 %v1824
  %v1985 = vunpack.c.l.b16 %v1825
  %v1986 = vunpack.c.h.b16 %v1825
  %v1987 = vunpack.c.l.b16 %v1826
  %v1988 = vunpack.c.h.b16 %v1826
  %v1989 = vunpack.c.l.b16 %v1827
  %v1990 = vunpack.c.h.b16 %v1827
  %v1991 = vunpack.c.l.b16 %v1828
  %v1992 = vunpack.c.h.b16 %v1828
  %v1993 = vunpack.c.l.b16 %v1829
  %v1994 = vunpack.c.h.b16 %v1829
  %v1995 = vunpack.c.l.b16 %v1830
  %v1996 = vunpack.c.h.b16 %v1830
  %v1997 = vunpack.c.l.b16 %v1831
  %v1998 = vunpack.c.h.b16 %v1831
  %v1999 = vunpack.c.l.b16 %v1832
  %v2000 = vunpack.c.h.b16 %v1832
  %v2001 = vunpack.c.l.b16 %v1833
  %v2002 = vunpack.c.h.b16 %v1833
  %v2003 = vunpack.c.l.b16 %v1834
  %v2004 = vunpack.c.h.b16 %v1834
  %v2005 = vunpack.c.l.b16 %v1835
  %v2006 = vunpack.c.h.b16 %v1835
  %v2007 = vunpack.c.l.b16 %v1836
  %v2008 = vunpack.c.h.b16 %v1836
  %v2009 = vunpack.c.l.b16 %v1837
  %v2010 = vunpack.c.h.b16 %v1837
  %v2011 = vunpack.c.l.b16 %v1838
  %v2012 = vunpack.c.h.b16 %v1838
  %v2013 = vunpack.c.l.b16 %v1839
  %v2014 = vunpack.c.h.b16 %v1839
  %v2015 = vunpack.c.l.b16 %v1840
  %v2016 = vunpack.c.h.b16 %v1840
  %v2017 = vunpack.c.l.b16 %v1841
  %v2018 = vunpack.c.h.b16 %v1841
  %v2019 = vunpack.c.l.b16 %v1842
  %v2020 = vunpack.c.h.b16 %v1842
  %v2021 = vunpack.c.l.b16 %v1843
  %v2022 = vunpack.c.h.b16 %v1843
  %v2023 = vunpack.c.l.b16 %v1844
  %v2024 = vunpack.c.h.b16 %v1844
  %v2025 = vunpack.c.l.b16 %v1845
  %v2026 = vunpack.c.h.b16 %v1845
  %v2027 = vunpack.c.l.b16 %v1846
  %v2028 = vunpack.c.h.b16 %v1846
  %v2029 = vpack.c.b16 %v1981, %v1965
  %v2030 = vpack.c.b16 %v1982, %v1966
  %v2031 = vpack.c.b16 %v1983, %v1967
  %v2032 = vpack.c.b16 %v1984, %v1968
  %v2033 = vpack.c.b16 %v1985, %v1969
  %v2034 = vpack.c.b16 %v1986, %v1970
  %v2035 = vpack.c.b16 %v1987, %v1971
  %v2036 = vpack.c.b16 %v1988, %v1972
  %v2037 = vpack.c.b16 %v1989, %v1973
  %v2038 = vpack.c.b16 %v1990, %v1974
  %v2039 = vpack.c.b16 %v1991, %v1975
  %v2040 = vpack.c.b16 %v1992, %v1976
  %v2041 = vpack.c.b16 %v1993, %v1977
  %v2042 = vpack.c.b16 %v1994, %v1978
  %v2043 = vpack.c.b16 %v1995, %v1979
  %v2044 = vpack.c.b16 %v1996, %v1980
  %v2045 = vpack.c.b16 %v2013, %v1997
  %v2046 = vpack.c.b16 %v2014, %v1998
  %v2047 = vpack.c.b16 %v2015, %v1999
  %v2048 = vpack.c.b16 %v2016, %v2000
  %v2049 = vpack.c.b16 %v2017, %v2001
  %v2050 = vpack.c.b16 %v2018, %v2002
  %v2051 = vpack.c.b16 %v2019, %v2003
  %v2052 = vpack.c.b16 %v2020, %v2004
  %v2053 = vpack.c.b16 %v2021, %v2005
  %v2054 = vpack.c.b16 %v2022, %v2006
  %v2055 = vpack.c.b16 %v2023, %v2007
  %v2056 = vpack.c.b16 %v2024, %v2008
  %v2057 = vpack.c.b16 %v2025, %v2009
  %v2058 = vpack.c.b16 %v2026, %v2010
  %v2059 = vpack.c.b16 %v2027, %v2011
  %v2060 = vpack.c.b16 %v2028, %v2012
  %v2094 = vsel %vm89, %v1847, 0
  %2096 = vmatprep.subr.bf16.mxu0 %v2030
  %2097 = vmatpush1.bf16.msra.mxu0 %v2029
  %2098 = vmatprep.subr.bf16.mxu0 %v2046
  %2099 = vmatpush1.bf16.msra.mxu0 %v2045
  %2100 = vmatprep.subr.bf16.mxu0 0
  %2101 = vmatpush1.bf16.msra.mxu0 0
  %2102 = vmatprep.subr.bf16.mxu0 0
  %2103 = vmatpush1.bf16.msra.mxu0 0
  %2104 = vmatprep.subr.bf16.mxu0 0
  %2105 = vmatpush1.bf16.msra.mxu0 0
  %2106 = vmatprep.subr.bf16.mxu0 0
  %2107 = vmatpush1.bf16.msra.mxu0 0
  %2108 = vmatprep.subr.bf16.mxu0 0
  %2109 = vmatpush1.bf16.msra.mxu0 0
  %2110 = vmatprep.subr.bf16.mxu0 0
  %2111 = vmatpush1.bf16.msra.mxu0 0
  %2112 = vmatprep.subr.bf16.mxu0 0
  %2113 = vmatpush1.bf16.msra.mxu0 0
  %2114 = vmatprep.subr.bf16.mxu0 0
  %2115 = vmatpush1.bf16.msra.mxu0 0
  %2116 = vmatprep.subr.bf16.mxu0 0
  %2117 = vmatpush1.bf16.msra.mxu0 0
  %2118 = vmatprep.subr.bf16.mxu0 0
  %2119 = vmatpush1.bf16.msra.mxu0 0
  %2120 = vmatprep.subr.bf16.mxu0 0
  %2121 = vmatpush1.bf16.msra.mxu0 0
  %2122 = vmatprep.subr.bf16.mxu0 0
  %2123 = vmatpush1.bf16.msra.mxu0 0
  %2124 = vmatprep.subr.bf16.mxu0 0
  %2125 = vmatpush1.bf16.msra.mxu0 0
  %2126 = vmatprep.subr.bf16.mxu0 0
  %2127 = vmatpush1.bf16.msra.mxu0 0
  %2128 = vmatprep.mubr.bf16.mxu0 0
  %2129 = vmatmul.mubr.bf16.gmra.mrb[0].mxu0 %v2094
  %v2130 = vpop.f32.mrb[0].mxu0
  %v2131 = vadd.f32 %v1856, %v2130
  %v2132 = vpop.f32.mrb[0].mxu0
  %v2133 = vadd.f32 %v1860, %v2132
  %v2134 = vpop.f32.mrb[0].mxu0
  %v2135 = vadd.f32 %v1856, %v2134
  %v2136 = vpop.f32.mrb[0].mxu0
  %v2137 = vadd.f32 %v1860, %v2136
  %2138 = vdwg.mxu0
  %2139 = vmatprep.subr.bf16.mxu0 %v2032
  %2140 = vmatpush1.bf16.msra.mxu0 %v2031
  %2141 = vmatprep.subr.bf16.mxu0 %v2048
  %2142 = vmatpush1.bf16.msra.mxu0 %v2047
  %2143 = vmatprep.subr.bf16.mxu0 0
  %2144 = vmatpush1.bf16.msra.mxu0 0
  %2145 = vmatprep.subr.bf16.mxu0 0
  %2146 = vmatpush1.bf16.msra.mxu0 0
  %2147 = vmatprep.subr.bf16.mxu0 0
  %2148 = vmatpush1.bf16.msra.mxu0 0
  %2149 = vmatprep.subr.bf16.mxu0 0
  %2150 = vmatpush1.bf16.msra.mxu0 0
  %2151 = vmatprep.subr.bf16.mxu0 0
  %2152 = vmatpush1.bf16.msra.mxu0 0
  %2153 = vmatprep.subr.bf16.mxu0 0
  %2154 = vmatpush1.bf16.msra.mxu0 0
  %2155 = vmatprep.subr.bf16.mxu0 0
  %2156 = vmatpush1.bf16.msra.mxu0 0
  %2157 = vmatprep.subr.bf16.mxu0 0
  %2158 = vmatpush1.bf16.msra.mxu0 0
  %2159 = vmatprep.subr.bf16.mxu0 0
  %2160 = vmatpush1.bf16.msra.mxu0 0
  %2161 = vmatprep.subr.bf16.mxu0 0
  %2162 = vmatpush1.bf16.msra.mxu0 0
  %2163 = vmatprep.subr.bf16.mxu0 0
  %2164 = vmatpush1.bf16.msra.mxu0 0
  %2165 = vmatprep.subr.bf16.mxu0 0
  %2166 = vmatpush1.bf16.msra.mxu0 0
  %2167 = vmatprep.subr.bf16.mxu0 0
  %2168 = vmatpush1.bf16.msra.mxu0 0
  %2169 = vmatprep.subr.bf16.mxu0 0
  %2170 = vmatpush1.bf16.msra.mxu0 0
  %2171 = vmatprep.mubr.bf16.mxu0 0
  %2172 = vmatmul.mubr.bf16.gmra.mrb[0].mxu0 %v2094
  %v2173 = vpop.f32.mrb[0].mxu0
  %v2174 = vadd.f32 %v1864, %v2173
  %v2175 = vpop.f32.mrb[0].mxu0
  %v2176 = vadd.f32 %v1868, %v2175
  %v2177 = vpop.f32.mrb[0].mxu0
  %v2178 = vadd.f32 %v1864, %v2177
  %v2179 = vpop.f32.mrb[0].mxu0
  %v2180 = vadd.f32 %v1868, %v2179
  %2181 = vdwg.mxu0
  %2182 = vmatprep.subr.bf16.mxu0 %v2034
  %2183 = vmatpush1.bf16.msra.mxu0 %v2033
  %2184 = vmatprep.subr.bf16.mxu0 %v2050
  %2185 = vmatpush1.bf16.msra.mxu0 %v2049
  %2186 = vmatprep.subr.bf16.mxu0 0
  %2187 = vmatpush1.bf16.msra.mxu0 0
  %2188 = vmatprep.subr.bf16.mxu0 0
  %2189 = vmatpush1.bf16.msra.mxu0 0
  %2190 = vmatprep.subr.bf16.mxu0 0
  %2191 = vmatpush1.bf16.msra.mxu0 0
  %2192 = vmatprep.subr.bf16.mxu0 0
  %2193 = vmatpush1.bf16.msra.mxu0 0
  %2194 = vmatprep.subr.bf16.mxu0 0
  %2195 = vmatpush1.bf16.msra.mxu0 0
  %2196 = vmatprep.subr.bf16.mxu0 0
  %2197 = vmatpush1.bf16.msra.mxu0 0
  %2198 = vmatprep.subr.bf16.mxu0 0
  %2199 = vmatpush1.bf16.msra.mxu0 0
  %2200 = vmatprep.subr.bf16.mxu0 0
  %2201 = vmatpush1.bf16.msra.mxu0 0
  %2202 = vmatprep.subr.bf16.mxu0 0
  %2203 = vmatpush1.bf16.msra.mxu0 0
  %2204 = vmatprep.subr.bf16.mxu0 0
  %2205 = vmatpush1.bf16.msra.mxu0 0
  %2206 = vmatprep.subr.bf16.mxu0 0
  %2207 = vmatpush1.bf16.msra.mxu0 0
  %2208 = vmatprep.subr.bf16.mxu0 0
  %2209 = vmatpush1.bf16.msra.mxu0 0
  %2210 = vmatprep.subr.bf16.mxu0 0
  %2211 = vmatpush1.bf16.msra.mxu0 0
  %2212 = vmatprep.subr.bf16.mxu0 0
  %2213 = vmatpush1.bf16.msra.mxu0 0
  %2214 = vmatprep.mubr.bf16.mxu0 0
  %2215 = vmatmul.mubr.bf16.gmra.mrb[0].mxu0 %v2094
  %v2216 = vpop.f32.mrb[0].mxu0
  %v2217 = vadd.f32 %v1872, %v2216
  %v2218 = vpop.f32.mrb[0].mxu0
  %v2219 = vadd.f32 %v1876, %v2218
  %v2220 = vpop.f32.mrb[0].mxu0
  %v2221 = vadd.f32 %v1872, %v2220
  %v2222 = vpop.f32.mrb[0].mxu0
  %v2223 = vadd.f32 %v1876, %v2222
  %2224 = vdwg.mxu0
  %2225 = vmatprep.subr.bf16.mxu0 %v2036
  %2226 = vmatpush1.bf16.msra.mxu0 %v2035
  %2227 = vmatprep.subr.bf16.mxu0 %v2052
  %2228 = vmatpush1.bf16.msra.mxu0 %v2051
  %2229 = vmatprep.subr.bf16.mxu0 0
  %2230 = vmatpush1.bf16.msra.mxu0 0
  %2231 = vmatprep.subr.bf16.mxu0 0
  %2232 = vmatpush1.bf16.msra.mxu0 0
  %2233 = vmatprep.subr.bf16.mxu0 0
  %2234 = vmatpush1.bf16.msra.mxu0 0
  %2235 = vmatprep.subr.bf16.mxu0 0
  %2236 = vmatpush1.bf16.msra.mxu0 0
  %2237 = vmatprep.subr.bf16.mxu0 0
  %2238 = vmatpush1.bf16.msra.mxu0 0
  %2239 = vmatprep.subr.bf16.mxu0 0
  %2240 = vmatpush1.bf16.msra.mxu0 0
  %2241 = vmatprep.subr.bf16.mxu0 0
  %2242 = vmatpush1.bf16.msra.mxu0 0
  %2243 = vmatprep.subr.bf16.mxu0 0
  %2244 = vmatpush1.bf16.msra.mxu0 0
  %2245 = vmatprep.subr.bf16.mxu0 0
  %2246 = vmatpush1.bf16.msra.mxu0 0
  %2247 = vmatprep.subr.bf16.mxu0 0
  %2248 = vmatpush1.bf16.msra.mxu0 0
  %2249 = vmatprep.subr.bf16.mxu0 0
  %2250 = vmatpush1.bf16.msra.mxu0 0
  %2251 = vmatprep.subr.bf16.mxu0 0
  %2252 = vmatpush1.bf16.msra.mxu0 0
  %2253 = vmatprep.subr.bf16.mxu0 0
  %2254 = vmatpush1.bf16.msra.mxu0 0
  %2255 = vmatprep.subr.bf16.mxu0 0
  %2256 = vmatpush1.bf16.msra.mxu0 0
  %2257 = vmatprep.mubr.bf16.mxu0 0
  %2258 = vmatmul.mubr.bf16.gmra.mrb[0].mxu0 %v2094
  %v2259 = vpop.f32.mrb[0].mxu0
  %v2260 = vadd.f32 %v1880, %v2259
  %v2261 = vpop.f32.mrb[0].mxu0
  %v2262 = vadd.f32 %v1884, %v2261
  %v2263 = vpop.f32.mrb[0].mxu0
  %v2264 = vadd.f32 %v1880, %v2263
  %v2265 = vpop.f32.mrb[0].mxu0
  %v2266 = vadd.f32 %v1884, %v2265
  %2267 = vdwg.mxu0
  %2268 = vmatprep.subr.bf16.mxu0 %v2038
  %2269 = vmatpush1.bf16.msra.mxu0 %v2037
  %2270 = vmatprep.subr.bf16.mxu0 %v2054
  %2271 = vmatpush1.bf16.msra.mxu0 %v2053
  %2272 = vmatprep.subr.bf16.mxu0 0
  %2273 = vmatpush1.bf16.msra.mxu0 0
  %2274 = vmatprep.subr.bf16.mxu0 0
  %2275 = vmatpush1.bf16.msra.mxu0 0
  %2276 = vmatprep.subr.bf16.mxu0 0
  %2277 = vmatpush1.bf16.msra.mxu0 0
  %2278 = vmatprep.subr.bf16.mxu0 0
  %2279 = vmatpush1.bf16.msra.mxu0 0
  %2280 = vmatprep.subr.bf16.mxu0 0
  %2281 = vmatpush1.bf16.msra.mxu0 0
  %2282 = vmatprep.subr.bf16.mxu0 0
  %2283 = vmatpush1.bf16.msra.mxu0 0
  %2284 = vmatprep.subr.bf16.mxu0 0
  %2285 = vmatpush1.bf16.msra.mxu0 0
  %2286 = vmatprep.subr.bf16.mxu0 0
  %2287 = vmatpush1.bf16.msra.mxu0 0
  %2288 = vmatprep.subr.bf16.mxu0 0
  %2289 = vmatpush1.bf16.msra.mxu0 0
  %2290 = vmatprep.subr.bf16.mxu0 0
  %2291 = vmatpush1.bf16.msra.mxu0 0
  %2292 = vmatprep.subr.bf16.mxu0 0
  %2293 = vmatpush1.bf16.msra.mxu0 0
  %2294 = vmatprep.subr.bf16.mxu0 0
  %2295 = vmatpush1.bf16.msra.mxu0 0
  %2296 = vmatprep.subr.bf16.mxu0 0
  %2297 = vmatpush1.bf16.msra.mxu0 0
  %2298 = vmatprep.subr.bf16.mxu0 0
  %2299 = vmatpush1.bf16.msra.mxu0 0
  %2300 = vmatprep.mubr.bf16.mxu0 0
  %2301 = vmatmul.mubr.bf16.gmra.mrb[0].mxu0 %v2094
  %v2302 = vpop.f32.mrb[0].mxu0
  %v2303 = vadd.f32 %v1888, %v2302
  %v2304 = vpop.f32.mrb[0].mxu0
  %v2305 = vadd.f32 %v1892, %v2304
  %v2306 = vpop.f32.mrb[0].mxu0
  %v2307 = vadd.f32 %v1888, %v2306
  %v2308 = vpop.f32.mrb[0].mxu0
  %v2309 = vadd.f32 %v1892, %v2308
  %2310 = vdwg.mxu0
  %2311 = vmatprep.subr.bf16.mxu0 %v2040
  %2312 = vmatpush1.bf16.msra.mxu0 %v2039
  %2313 = vmatprep.subr.bf16.mxu0 %v2056
  %2314 = vmatpush1.bf16.msra.mxu0 %v2055
  %2315 = vmatprep.subr.bf16.mxu0 0
  %2316 = vmatpush1.bf16.msra.mxu0 0
  %2317 = vmatprep.subr.bf16.mxu0 0
  %2318 = vmatpush1.bf16.msra.mxu0 0
  %2319 = vmatprep.subr.bf16.mxu0 0
  %2320 = vmatpush1.bf16.msra.mxu0 0
  %2321 = vmatprep.subr.bf16.mxu0 0
  %2322 = vmatpush1.bf16.msra.mxu0 0
  %2323 = vmatprep.subr.bf16.mxu0 0
  %2324 = vmatpush1.bf16.msra.mxu0 0
  %2325 = vmatprep.subr.bf16.mxu0 0
  %2326 = vmatpush1.bf16.msra.mxu0 0
  %2327 = vmatprep.subr.bf16.mxu0 0
  %2328 = vmatpush1.bf16.msra.mxu0 0
  %2329 = vmatprep.subr.bf16.mxu0 0
  %2330 = vmatpush1.bf16.msra.mxu0 0
  %2331 = vmatprep.subr.bf16.mxu0 0
  %2332 = vmatpush1.bf16.msra.mxu0 0
  %2333 = vmatprep.subr.bf16.mxu0 0
  %2334 = vmatpush1.bf16.msra.mxu0 0
  %2335 = vmatprep.subr.bf16.mxu0 0
  %2336 = vmatpush1.bf16.msra.mxu0 0
  %2337 = vmatprep.subr.bf16.mxu0 0
  %2338 = vmatpush1.bf16.msra.mxu0 0
  %2339 = vmatprep.subr.bf16.mxu0 0
  %2340 = vmatpush1.bf16.msra.mxu0 0
  %2341 = vmatprep.subr.bf16.mxu0 0
  %2342 = vmatpush1.bf16.msra.mxu0 0
  %2343 = vmatprep.mubr.bf16.mxu0 0
  %2344 = vmatmul.mubr.bf16.gmra.mrb[0].mxu0 %v2094
  %v2345 = vpop.f32.mrb[0].mxu0
  %v2346 = vadd.f32 %v1896, %v2345
  %v2347 = vpop.f32.mrb[0].mxu0
  %v2348 = vadd.f32 %v1900, %v2347
  %v2349 = vpop.f32.mrb[0].mxu0
  %v2350 = vadd.f32 %v1896, %v2349
  %v2351 = vpop.f32.mrb[0].mxu0
  %v2352 = vadd.f32 %v1900, %v2351
  %2353 = vdwg.mxu0
  %2354 = vmatprep.subr.bf16.mxu0 %v2042
  %2355 = vmatpush1.bf16.msra.mxu0 %v2041
  %2356 = vmatprep.subr.bf16.mxu0 %v2058
  %2357 = vmatpush1.bf16.msra.mxu0 %v2057
  %2358 = vmatprep.subr.bf16.mxu0 0
  %2359 = vmatpush1.bf16.msra.mxu0 0
  %2360 = vmatprep.subr.bf16.mxu0 0
  %2361 = vmatpush1.bf16.msra.mxu0 0
  %2362 = vmatprep.subr.bf16.mxu0 0
  %2363 = vmatpush1.bf16.msra.mxu0 0
  %2364 = vmatprep.subr.bf16.mxu0 0
  %2365 = vmatpush1.bf16.msra.mxu0 0
  %2366 = vmatprep.subr.bf16.mxu0 0
  %2367 = vmatpush1.bf16.msra.mxu0 0
  %2368 = vmatprep.subr.bf16.mxu0 0
  %2369 = vmatpush1.bf16.msra.mxu0 0
  %2370 = vmatprep.subr.bf16.mxu0 0
  %2371 = vmatpush1.bf16.msra.mxu0 0
  %2372 = vmatprep.subr.bf16.mxu0 0
  %2373 = vmatpush1.bf16.msra.mxu0 0
  %2374 = vmatprep.subr.bf16.mxu0 0
  %2375 = vmatpush1.bf16.msra.mxu0 0
  %2376 = vmatprep.subr.bf16.mxu0 0
  %2377 = vmatpush1.bf16.msra.mxu0 0
  %2378 = vmatprep.subr.bf16.mxu0 0
  %2379 = vmatpush1.bf16.msra.mxu0 0
  %2380 = vmatprep.subr.bf16.mxu0 0
  %2381 = vmatpush1.bf16.msra.mxu0 0
  %2382 = vmatprep.subr.bf16.mxu0 0
  %2383 = vmatpush1.bf16.msra.mxu0 0
  %2384 = vmatprep.subr.bf16.mxu0 0
  %2385 = vmatpush1.bf16.msra.mxu0 0
  %2386 = vmatprep.mubr.bf16.mxu0 0
  %2387 = vmatmul.mubr.bf16.gmra.mrb[0].mxu0 %v2094
  %v2388 = vpop.f32.mrb[0].mxu0
  %v2389 = vadd.f32 %v1904, %v2388
  %v2390 = vpop.f32.mrb[0].mxu0
  %v2391 = vadd.f32 %v1908, %v2390
  %v2392 = vpop.f32.mrb[0].mxu0
  %v2393 = vadd.f32 %v1904, %v2392
  %v2394 = vpop.f32.mrb[0].mxu0
  %v2395 = vadd.f32 %v1908, %v2394
  %2396 = vdwg.mxu0
  %2397 = vmatprep.subr.bf16.mxu0 %v2044
  %2398 = vmatpush1.bf16.msra.mxu0 %v2043
  %2399 = vmatprep.subr.bf16.mxu0 %v2060
  %2400 = vmatpush1.bf16.msra.mxu0 %v2059
  %2401 = vmatprep.subr.bf16.mxu0 0
  %2402 = vmatpush1.bf16.msra.mxu0 0
  %2403 = vmatprep.subr.bf16.mxu0 0
  %2404 = vmatpush1.bf16.msra.mxu0 0
  %2405 = vmatprep.subr.bf16.mxu0 0
  %2406 = vmatpush1.bf16.msra.mxu0 0
  %2407 = vmatprep.subr.bf16.mxu0 0
  %2408 = vmatpush1.bf16.msra.mxu0 0
  %2409 = vmatprep.subr.bf16.mxu0 0
  %2410 = vmatpush1.bf16.msra.mxu0 0
  %2411 = vmatprep.subr.bf16.mxu0 0
  %2412 = vmatpush1.bf16.msra.mxu0 0
  %2413 = vmatprep.subr.bf16.mxu0 0
  %2414 = vmatpush1.bf16.msra.mxu0 0
  %2415 = vmatprep.subr.bf16.mxu0 0
  %2416 = vmatpush1.bf16.msra.mxu0 0
  %2417 = vmatprep.subr.bf16.mxu0 0
  %2418 = vmatpush1.bf16.msra.mxu0 0
  %2419 = vmatprep.subr.bf16.mxu0 0
  %2420 = vmatpush1.bf16.msra.mxu0 0
  %2421 = vmatprep.subr.bf16.mxu0 0
  %2422 = vmatpush1.bf16.msra.mxu0 0
  %2423 = vmatprep.subr.bf16.mxu0 0
  %2424 = vmatpush1.bf16.msra.mxu0 0
  %2425 = vmatprep.subr.bf16.mxu0 0
  %2426 = vmatpush1.bf16.msra.mxu0 0
  %2427 = vmatprep.subr.bf16.mxu0 0
  %2428 = vmatpush1.bf16.msra.mxu0 0
  %2429 = vmatprep.mubr.bf16.mxu0 0
  %2430 = vmatmul.mubr.bf16.gmra.mrb[0].mxu0 %v2094
  %v2431 = vpop.f32.mrb[0].mxu0
  %v2432 = vadd.f32 %v1912, %v2431
  %v2433 = vpop.f32.mrb[0].mxu0
  %v2434 = vadd.f32 %v1916, %v2433
  %v2435 = vpop.f32.mrb[0].mxu0
  %v2436 = vadd.f32 %v1912, %v2435
  %v2437 = vpop.f32.mrb[0].mxu0
  %v2438 = vadd.f32 %v1916, %v2437
  %2439 = vdwg.mxu0
  %v2440 = vmax.f32 %v2131, 0.0
  %v2441 = vmax.f32 %v2133, 0.0
  %v2442 = vmax.f32 %v2174, 0.0
  %v2443 = vmax.f32 %v2176, 0.0
  %v2444 = vmax.f32 %v2217, 0.0
  %v2445 = vmax.f32 %v2219, 0.0
  %v2446 = vmax.f32 %v2260, 0.0
  %v2447 = vmax.f32 %v2262, 0.0
  %v2448 = vmax.f32 %v2303, 0.0
  %v2449 = vmax.f32 %v2305, 0.0
  %v2450 = vmax.f32 %v2346, 0.0
  %v2451 = vmax.f32 %v2348, 0.0
  %v2452 = vmax.f32 %v2389, 0.0
  %v2453 = vmax.f32 %v2391, 0.0
  %v2454 = vmax.f32 %v2432, 0.0
  %v2455 = vmax.f32 %v2434, 0.0
  %v2456 = vmax.f32 %v2135, 0.0
  %v2457 = vmax.f32 %v2137, 0.0
  %v2458 = vmax.f32 %v2178, 0.0
  %v2459 = vmax.f32 %v2180, 0.0
  %v2460 = vmax.f32 %v2221, 0.0
  %v2461 = vmax.f32 %v2223, 0.0
  %v2462 = vmax.f32 %v2264, 0.0
  %v2463 = vmax.f32 %v2266, 0.0
  %v2464 = vmax.f32 %v2307, 0.0
  %v2465 = vmax.f32 %v2309, 0.0
  %v2466 = vmax.f32 %v2350, 0.0
  %v2467 = vmax.f32 %v2352, 0.0
  %v2468 = vmax.f32 %v2393, 0.0
  %v2469 = vmax.f32 %v2395, 0.0
  %v2470 = vmax.f32 %v2436, 0.0
  %v2471 = vmax.f32 %v2438, 0.0
  %v2472 = vld [vmem:[%s13] sm:$0xf]
  %v2473 = vld [vmem:[%s13 + $0x4] sm:$0xf]
  %v2474 = vld [vmem:[%s13 + $0x8] sm:$0xf]
  %v2475 = vld [vmem:[%s13 + $0xc] sm:$0xf]
  %v2476 = vld [vmem:[%s13 + $0x10] sm:$0xf]
  %v2477 = vld [vmem:[%s13 + $0x14] sm:$0xf]
  %v2478 = vld [vmem:[%s13 + $0x18] sm:$0xf]
  %v2479 = vld [vmem:[%s13 + $0x1c] sm:$0xf]
  %v2480 = vld [vmem:[%s13 + $0x20] sm:$0xf]
  %v2481 = vld [vmem:[%s13 + $0x24] sm:$0xf]
  %v2482 = vld [vmem:[%s13 + $0x28] sm:$0xf]
  %v2483 = vld [vmem:[%s13 + $0x2c] sm:$0xf]
  %v2484 = vld [vmem:[%s13 + $0x30] sm:$0xf]
  %v2485 = vld [vmem:[%s13 + $0x34] sm:$0xf]
  %v2486 = vld [vmem:[%s13 + $0x38] sm:$0xf]
  %v2487 = vld [vmem:[%s13 + $0x3c] sm:$0xf]
  %v2488 = vld [vmem:[%s13 + $0x40] sm:$0xf]
  %v2489 = vld [vmem:[%s13 + $0x44] sm:$0xf]
  %v2490 = vld [vmem:[%s13 + $0x48] sm:$0xf]
  %v2491 = vld [vmem:[%s13 + $0x4c] sm:$0xf]
  %v2492 = vld [vmem:[%s13 + $0x50] sm:$0xf]
  %v2493 = vld [vmem:[%s13 + $0x54] sm:$0xf]
  %v2494 = vld [vmem:[%s13 + $0x58] sm:$0xf]
  %v2495 = vld [vmem:[%s13 + $0x5c] sm:$0xf]
  %v2496 = vld [vmem:[%s13 + $0x60] sm:$0xf]
  %v2497 = vld [vmem:[%s13 + $0x64] sm:$0xf]
  %v2498 = vld [vmem:[%s13 + $0x68] sm:$0xf]
  %v2499 = vld [vmem:[%s13 + $0x6c] sm:$0xf]
  %v2500 = vld [vmem:[%s13 + $0x70] sm:$0xf]
  %v2501 = vld [vmem:[%s13 + $0x74] sm:$0xf]
  %v2502 = vld [vmem:[%s13 + $0x78] sm:$0xf]
  %v2503 = vld [vmem:[%s13 + $0x7c] sm:$0xf]
  %v2504 = vld [vmem:[%s13 + $0x80] sm:$0xf]
  %v2505 = vld [vmem:[%s13 + $0x84] sm:$0xf]
  %v2506 = vld [vmem:[%s13 + $0x88] sm:$0xf]
  %v2507 = vld [vmem:[%s13 + $0x8c] sm:$0xf]
  %v2508 = vld [vmem:[%s13 + $0x90] sm:$0xf]
  %v2509 = vld [vmem:[%s13 + $0x94] sm:$0xf]
  %v2510 = vld [vmem:[%s13 + $0x98] sm:$0xf]
  %v2511 = vld [vmem:[%s13 + $0x9c] sm:$0xf]
  %v2512 = vld [vmem:[%s13 + $0xa0] sm:$0xf]
  %v2513 = vld [vmem:[%s13 + $0xa4] sm:$0xf]
  %v2514 = vld [vmem:[%s13 + $0xa8] sm:$0xf]
  %v2515 = vld [vmem:[%s13 + $0xac] sm:$0xf]
  %v2516 = vld [vmem:[%s13 + $0xb0] sm:$0xf]
  %v2517 = vld [vmem:[%s13 + $0xb4] sm:$0xf]
  %v2518 = vld [vmem:[%s13 + $0xb8] sm:$0xf]
  %v2519 = vld [vmem:[%s13 + $0xbc] sm:$0xf]
  %v2520 = vld [vmem:[%s13 + $0xc0] sm:$0xf]
  %v2521 = vld [vmem:[%s13 + $0xc4] sm:$0xf]
  %v2522 = vld [vmem:[%s13 + $0xc8] sm:$0xf]
  %v2523 = vld [vmem:[%s13 + $0xcc] sm:$0xf]
  %v2524 = vld [vmem:[%s13 + $0xd0] sm:$0xf]
  %v2525 = vld [vmem:[%s13 + $0xd4] sm:$0xf]
  %v2526 = vld [vmem:[%s13 + $0xd8] sm:$0xf]
  %v2527 = vld [vmem:[%s13 + $0xdc] sm:$0xf]
  %v2528 = vld [vmem:[%s13 + $0xe0] sm:$0xf]
  %v2529 = vld [vmem:[%s13 + $0xe4] sm:$0xf]
  %v2530 = vld [vmem:[%s13 + $0xe8] sm:$0xf]
  %v2531 = vld [vmem:[%s13 + $0xec] sm:$0xf]
  %v2532 = vld [vmem:[%s13 + $0xf0] sm:$0xf]
  %v2533 = vld [vmem:[%s13 + $0xf4] sm:$0xf]
  %v2534 = vld [vmem:[%s13 + $0xf8] sm:$0xf]
  %v2535 = vld [vmem:[%s13 + $0xfc] sm:$0xf]
  %v2536 = vld [vmem:[%s13 + $0x100] sm:$0xf]
  %v2537 = vld [vmem:[%s13 + $0x104] sm:$0xf]
  %v2538 = vld [vmem:[%s13 + $0x108] sm:$0xf]
  %v2539 = vld [vmem:[%s13 + $0x10c] sm:$0xf]
  %v2540 = vld [vmem:[%s13 + $0x110] sm:$0xf]
  %v2541 = vld [vmem:[%s13 + $0x114] sm:$0xf]
  %v2542 = vld [vmem:[%s13 + $0x118] sm:$0xf]
  %v2543 = vld [vmem:[%s13 + $0x11c] sm:$0xf]
  %v2544 = vld [vmem:[%s13 + $0x120] sm:$0xf]
  %v2545 = vld [vmem:[%s13 + $0x124] sm:$0xf]
  %v2546 = vld [vmem:[%s13 + $0x128] sm:$0xf]
  %v2547 = vld [vmem:[%s13 + $0x12c] sm:$0xf]
  %v2548 = vld [vmem:[%s13 + $0x130] sm:$0xf]
  %v2549 = vld [vmem:[%s13 + $0x134] sm:$0xf]
  %v2550 = vld [vmem:[%s13 + $0x138] sm:$0xf]
  %v2551 = vld [vmem:[%s13 + $0x13c] sm:$0xf]
  %v2552 = vld [vmem:[%s13 + $0x140] sm:$0xf]
  %v2553 = vld [vmem:[%s13 + $0x144] sm:$0xf]
  %v2554 = vld [vmem:[%s13 + $0x148] sm:$0xf]
  %v2555 = vld [vmem:[%s13 + $0x14c] sm:$0xf]
  %v2556 = vld [vmem:[%s13 + $0x150] sm:$0xf]
  %v2557 = vld [vmem:[%s13 + $0x154] sm:$0xf]
  %v2558 = vld [vmem:[%s13 + $0x158] sm:$0xf]
  %v2559 = vld [vmem:[%s13 + $0x15c] sm:$0xf]
  %v2560 = vld [vmem:[%s13 + $0x160] sm:$0xf]
  %v2561 = vld [vmem:[%s13 + $0x164] sm:$0xf]
  %v2562 = vld [vmem:[%s13 + $0x168] sm:$0xf]
  %v2563 = vld [vmem:[%s13 + $0x16c] sm:$0xf]
  %v2564 = vld [vmem:[%s13 + $0x170] sm:$0xf]
  %v2565 = vld [vmem:[%s13 + $0x174] sm:$0xf]
  %v2566 = vld [vmem:[%s13 + $0x178] sm:$0xf]
  %v2567 = vld [vmem:[%s13 + $0x17c] sm:$0xf]
  %v2568 = vld [vmem:[%s13 + $0x180] sm:$0xf]
  %v2569 = vld [vmem:[%s13 + $0x184] sm:$0xf]
  %v2570 = vld [vmem:[%s13 + $0x188] sm:$0xf]
  %v2571 = vld [vmem:[%s13 + $0x18c] sm:$0xf]
  %v2572 = vld [vmem:[%s13 + $0x190] sm:$0xf]
  %v2573 = vld [vmem:[%s13 + $0x194] sm:$0xf]
  %v2574 = vld [vmem:[%s13 + $0x198] sm:$0xf]
  %v2575 = vld [vmem:[%s13 + $0x19c] sm:$0xf]
  %v2576 = vld [vmem:[%s13 + $0x1a0] sm:$0xf]
  %v2577 = vld [vmem:[%s13 + $0x1a4] sm:$0xf]
  %v2578 = vld [vmem:[%s13 + $0x1a8] sm:$0xf]
  %v2579 = vld [vmem:[%s13 + $0x1ac] sm:$0xf]
  %v2580 = vld [vmem:[%s13 + $0x1b0] sm:$0xf]
  %v2581 = vld [vmem:[%s13 + $0x1b4] sm:$0xf]
  %v2582 = vld [vmem:[%s13 + $0x1b8] sm:$0xf]
  %v2583 = vld [vmem:[%s13 + $0x1bc] sm:$0xf]
  %v2584 = vld [vmem:[%s13 + $0x1c0] sm:$0xf]
  %v2585 = vld [vmem:[%s13 + $0x1c4] sm:$0xf]
  %v2586 = vld [vmem:[%s13 + $0x1c8] sm:$0xf]
  %v2587 = vld [vmem:[%s13 + $0x1cc] sm:$0xf]
  %v2588 = vld [vmem:[%s13 + $0x1d0] sm:$0xf]
  %v2589 = vld [vmem:[%s13 + $0x1d4] sm:$0xf]
  %v2590 = vld [vmem:[%s13 + $0x1d8] sm:$0xf]
  %v2591 = vld [vmem:[%s13 + $0x1dc] sm:$0xf]
  %v2592 = vld [vmem:[%s13 + $0x1e0] sm:$0xf]
  %v2593 = vld [vmem:[%s13 + $0x1e4] sm:$0xf]
  %v2594 = vld [vmem:[%s13 + $0x1e8] sm:$0xf]
  %v2595 = vld [vmem:[%s13 + $0x1ec] sm:$0xf]
  %v2596 = vld [vmem:[%s13 + $0x1f0] sm:$0xf]
  %v2597 = vld [vmem:[%s13 + $0x1f4] sm:$0xf]
  %v2598 = vld [vmem:[%s13 + $0x1f8] sm:$0xf]
  %v2599 = vld [vmem:[%s13 + $0x1fc] sm:$0xf]
  %v2600 = vld [vmem:[%s13 + $0x200] sm:$0xf]
  %v2601 = vld [vmem:[%s13 + $0x204] sm:$0xf]
  %v2602 = vld [vmem:[%s13 + $0x208] sm:$0xf]
  %v2603 = vld [vmem:[%s13 + $0x20c] sm:$0xf]
  %v2604 = vld [vmem:[%s13 + $0x210] sm:$0xf]
  %v2605 = vld [vmem:[%s13 + $0x214] sm:$0xf]
  %v2606 = vld [vmem:[%s13 + $0x218] sm:$0xf]
  %v2607 = vld [vmem:[%s13 + $0x21c] sm:$0xf]
  %v2608 = vld [vmem:[%s13 + $0x220] sm:$0xf]
  %v2609 = vld [vmem:[%s13 + $0x224] sm:$0xf]
  %v2610 = vld [vmem:[%s13 + $0x228] sm:$0xf]
  %v2611 = vld [vmem:[%s13 + $0x22c] sm:$0xf]
  %v2612 = vld [vmem:[%s13 + $0x230] sm:$0xf]
  %v2613 = vld [vmem:[%s13 + $0x234] sm:$0xf]
  %v2614 = vld [vmem:[%s13 + $0x238] sm:$0xf]
  %v2615 = vld [vmem:[%s13 + $0x23c] sm:$0xf]
  %v2616 = vld [vmem:[%s13 + $0x240] sm:$0xf]
  %v2617 = vld [vmem:[%s13 + $0x244] sm:$0xf]
  %v2618 = vld [vmem:[%s13 + $0x248] sm:$0xf]
  %v2619 = vld [vmem:[%s13 + $0x24c] sm:$0xf]
  %v2620 = vld [vmem:[%s13 + $0x250] sm:$0xf]
  %v2621 = vld [vmem:[%s13 + $0x254] sm:$0xf]
  %v2622 = vld [vmem:[%s13 + $0x258] sm:$0xf]
  %v2623 = vld [vmem:[%s13 + $0x25c] sm:$0xf]
  %v2624 = vld [vmem:[%s13 + $0x260] sm:$0xf]
  %v2625 = vld [vmem:[%s13 + $0x264] sm:$0xf]
  %v2626 = vld [vmem:[%s13 + $0x268] sm:$0xf]
  %v2627 = vld [vmem:[%s13 + $0x26c] sm:$0xf]
  %v2628 = vld [vmem:[%s13 + $0x270] sm:$0xf]
  %v2629 = vld [vmem:[%s13 + $0x274] sm:$0xf]
  %v2630 = vld [vmem:[%s13 + $0x278] sm:$0xf]
  %v2631 = vld [vmem:[%s13 + $0x27c] sm:$0xf]
  %v2632 = vld [vmem:[%s13 + $0x280] sm:$0xf]
  %v2633 = vld [vmem:[%s13 + $0x284] sm:$0xf]
  %v2634 = vld [vmem:[%s13 + $0x288] sm:$0xf]
  %v2635 = vld [vmem:[%s13 + $0x28c] sm:$0xf]
  %v2636 = vld [vmem:[%s13 + $0x290] sm:$0xf]
  %v2637 = vld [vmem:[%s13 + $0x294] sm:$0xf]
  %v2638 = vld [vmem:[%s13 + $0x298] sm:$0xf]
  %v2639 = vld [vmem:[%s13 + $0x29c] sm:$0xf]
  %v2640 = vld [vmem:[%s13 + $0x2a0] sm:$0xf]
  %v2641 = vld [vmem:[%s13 + $0x2a4] sm:$0xf]
  %v2642 = vld [vmem:[%s13 + $0x2a8] sm:$0xf]
  %v2643 = vld [vmem:[%s13 + $0x2ac] sm:$0xf]
  %v2644 = vld [vmem:[%s13 + $0x2b0] sm:$0xf]
  %v2645 = vld [vmem:[%s13 + $0x2b4] sm:$0xf]
  %v2646 = vld [vmem:[%s13 + $0x2b8] sm:$0xf]
  %v2647 = vld [vmem:[%s13 + $0x2bc] sm:$0xf]
  %v2648 = vld [vmem:[%s13 + $0x2c0] sm:$0xf]
  %v2649 = vld [vmem:[%s13 + $0x2c4] sm:$0xf]
  %v2650 = vld [vmem:[%s13 + $0x2c8] sm:$0xf]
  %v2651 = vld [vmem:[%s13 + $0x2cc] sm:$0xf]
  %v2652 = vld [vmem:[%s13 + $0x2d0] sm:$0xf]
  %v2653 = vld [vmem:[%s13 + $0x2d4] sm:$0xf]
  %v2654 = vld [vmem:[%s13 + $0x2d8] sm:$0xf]
  %v2655 = vld [vmem:[%s13 + $0x2dc] sm:$0xf]
  %v2656 = vld [vmem:[%s13 + $0x2e0] sm:$0xf]
  %v2657 = vld [vmem:[%s13 + $0x2e4] sm:$0xf]
  %v2658 = vld [vmem:[%s13 + $0x2e8] sm:$0xf]
  %v2659 = vld [vmem:[%s13 + $0x2ec] sm:$0xf]
  %v2660 = vld [vmem:[%s13 + $0x2f0] sm:$0xf]
  %v2661 = vld [vmem:[%s13 + $0x2f4] sm:$0xf]
  %v2662 = vld [vmem:[%s13 + $0x2f8] sm:$0xf]
  %v2663 = vld [vmem:[%s13 + $0x2fc] sm:$0xf]
  %v2664 = vld [vmem:[%s13 + $0x300] sm:$0xf]
  %v2665 = vld [vmem:[%s13 + $0x304] sm:$0xf]
  %v2666 = vld [vmem:[%s13 + $0x308] sm:$0xf]
  %v2667 = vld [vmem:[%s13 + $0x30c] sm:$0xf]
  %v2668 = vld [vmem:[%s13 + $0x310] sm:$0xf]
  %v2669 = vld [vmem:[%s13 + $0x314] sm:$0xf]
  %v2670 = vld [vmem:[%s13 + $0x318] sm:$0xf]
  %v2671 = vld [vmem:[%s13 + $0x31c] sm:$0xf]
  %v2672 = vld [vmem:[%s13 + $0x320] sm:$0xf]
  %v2673 = vld [vmem:[%s13 + $0x324] sm:$0xf]
  %v2674 = vld [vmem:[%s13 + $0x328] sm:$0xf]
  %v2675 = vld [vmem:[%s13 + $0x32c] sm:$0xf]
  %v2676 = vld [vmem:[%s13 + $0x330] sm:$0xf]
  %v2677 = vld [vmem:[%s13 + $0x334] sm:$0xf]
  %v2678 = vld [vmem:[%s13 + $0x338] sm:$0xf]
  %v2679 = vld [vmem:[%s13 + $0x33c] sm:$0xf]
  %v2680 = vld [vmem:[%s13 + $0x340] sm:$0xf]
  %v2681 = vld [vmem:[%s13 + $0x344] sm:$0xf]
  %v2682 = vld [vmem:[%s13 + $0x348] sm:$0xf]
  %v2683 = vld [vmem:[%s13 + $0x34c] sm:$0xf]
  %v2684 = vld [vmem:[%s13 + $0x350] sm:$0xf]
  %v2685 = vld [vmem:[%s13 + $0x354] sm:$0xf]
  %v2686 = vld [vmem:[%s13 + $0x358] sm:$0xf]
  %v2687 = vld [vmem:[%s13 + $0x35c] sm:$0xf]
  %v2688 = vld [vmem:[%s13 + $0x360] sm:$0xf]
  %v2689 = vld [vmem:[%s13 + $0x364] sm:$0xf]
  %v2690 = vld [vmem:[%s13 + $0x368] sm:$0xf]
  %v2691 = vld [vmem:[%s13 + $0x36c] sm:$0xf]
  %v2692 = vld [vmem:[%s13 + $0x370] sm:$0xf]
  %v2693 = vld [vmem:[%s13 + $0x374] sm:$0xf]
  %v2694 = vld [vmem:[%s13 + $0x378] sm:$0xf]
  %v2695 = vld [vmem:[%s13 + $0x37c] sm:$0xf]
  %v2696 = vld [vmem:[%s13 + $0x380] sm:$0xf]
  %v2697 = vld [vmem:[%s13 + $0x384] sm:$0xf]
  %v2698 = vld [vmem:[%s13 + $0x388] sm:$0xf]
  %v2699 = vld [vmem:[%s13 + $0x38c] sm:$0xf]
  %v2700 = vld [vmem:[%s13 + $0x390] sm:$0xf]
  %v2701 = vld [vmem:[%s13 + $0x394] sm:$0xf]
  %v2702 = vld [vmem:[%s13 + $0x398] sm:$0xf]
  %v2703 = vld [vmem:[%s13 + $0x39c] sm:$0xf]
  %v2704 = vld [vmem:[%s13 + $0x3a0] sm:$0xf]
  %v2705 = vld [vmem:[%s13 + $0x3a4] sm:$0xf]
  %v2706 = vld [vmem:[%s13 + $0x3a8] sm:$0xf]
  %v2707 = vld [vmem:[%s13 + $0x3ac] sm:$0xf]
  %v2708 = vld [vmem:[%s13 + $0x3b0] sm:$0xf]
  %v2709 = vld [vmem:[%s13 + $0x3b4] sm:$0xf]
  %v2710 = vld [vmem:[%s13 + $0x3b8] sm:$0xf]
  %v2711 = vld [vmem:[%s13 + $0x3bc] sm:$0xf]
  %v2712 = vld [vmem:[%s13 + $0x3c0] sm:$0xf]
  %v2713 = vld [vmem:[%s13 + $0x3c4] sm:$0xf]
  %v2714 = vld [vmem:[%s13 + $0x3c8] sm:$0xf]
  %v2715 = vld [vmem:[%s13 + $0x3cc] sm:$0xf]
  %v2716 = vld [vmem:[%s13 + $0x3d0] sm:$0xf]
  %v2717 = vld [vmem:[%s13 + $0x3d4] sm:$0xf]
  %v2718 = vld [vmem:[%s13 + $0x3d8] sm:$0xf]
  %v2719 = vld [vmem:[%s13 + $0x3dc] sm:$0xf]
  %v2720 = vld [vmem:[%s13 + $0x3e0] sm:$0xf]
  %v2721 = vld [vmem:[%s13 + $0x3e4] sm:$0xf]
  %v2722 = vld [vmem:[%s13 + $0x3e8] sm:$0xf]
  %v2723 = vld [vmem:[%s13 + $0x3ec] sm:$0xf]
  %v2724 = vld [vmem:[%s13 + $0x3f0] sm:$0xf]
  %v2725 = vld [vmem:[%s13 + $0x3f4] sm:$0xf]
  %v2726 = vld [vmem:[%s13 + $0x3f8] sm:$0xf]
  %v2727 = vld [vmem:[%s13 + $0x3fc] sm:$0xf]
  %v2728 = vpack.c.bf16 %v2456, %v2440
  %v2729 = vpack.c.bf16 %v2457, %v2441
  %v2730 = vpack.c.bf16 %v2458, %v2442
  %v2731 = vpack.c.bf16 %v2459, %v2443
  %v2732 = vpack.c.bf16 %v2460, %v2444
  %v2733 = vpack.c.bf16 %v2461, %v2445
  %v2734 = vpack.c.bf16 %v2462, %v2446
  %v2735 = vpack.c.bf16 %v2463, %v2447
  %v2736 = vpack.c.bf16 %v2464, %v2448
  %v2737 = vpack.c.bf16 %v2465, %v2449
  %v2738 = vpack.c.bf16 %v2466, %v2450
  %v2739 = vpack.c.bf16 %v2467, %v2451
  %v2740 = vpack.c.bf16 %v2468, %v2452
  %v2741 = vpack.c.bf16 %v2469, %v2453
  %v2742 = vpack.c.bf16 %v2470, %v2454
  %v2743 = vpack.c.bf16 %v2471, %v2455
  %v2744 = vld [vmem:[%s14] sm:$0x1]
  %v2745 = vlaneseq
  %v2746 = vshrl.u32 %v2745, 7
  %v2747 = vsub.s32 0, %v2746
  %v2748 = vrot.slane %v2744, %v2747
  %v3005 = vunpack.c.l.b16 %v2472
  %v3006 = vunpack.c.l.b16 %v2473
  %v3007 = vunpack.c.l.b16 %v2474
  %v3008 = vunpack.c.l.b16 %v2475
  %v3009 = vunpack.c.l.b16 %v2476
  %v3010 = vunpack.c.l.b16 %v2477
  %v3011 = vunpack.c.l.b16 %v2478
  %v3012 = vunpack.c.l.b16 %v2479
  %v3013 = vunpack.c.l.b16 %v2480
  %v3014 = vunpack.c.l.b16 %v2481
  %v3015 = vunpack.c.l.b16 %v2482
  %v3016 = vunpack.c.l.b16 %v2483
  %v3017 = vunpack.c.l.b16 %v2484
  %v3018 = vunpack.c.l.b16 %v2485
  %v3019 = vunpack.c.l.b16 %v2486
  %v3020 = vunpack.c.l.b16 %v2487
  %v3021 = vunpack.c.l.b16 %v2488
  %v3022 = vunpack.c.l.b16 %v2489
  %v3023 = vunpack.c.l.b16 %v2490
  %v3024 = vunpack.c.l.b16 %v2491
  %v3025 = vunpack.c.l.b16 %v2492
  %v3026 = vunpack.c.l.b16 %v2493
  %v3027 = vunpack.c.l.b16 %v2494
  %v3028 = vunpack.c.l.b16 %v2495
  %v3029 = vunpack.c.l.b16 %v2496
  %v3030 = vunpack.c.l.b16 %v2497
  %v3031 = vunpack.c.l.b16 %v2498
  %v3032 = vunpack.c.l.b16 %v2499
  %v3033 = vunpack.c.l.b16 %v2500
  %v3034 = vunpack.c.l.b16 %v2501
  %v3035 = vunpack.c.l.b16 %v2502
  %v3036 = vunpack.c.l.b16 %v2503
  %v3037 = vunpack.c.l.b16 %v2504
  %v3038 = vunpack.c.l.b16 %v2505
  %v3039 = vunpack.c.l.b16 %v2506
  %v3040 = vunpack.c.l.b16 %v2507
  %v3041 = vunpack.c.l.b16 %v2508
  %v3042 = vunpack.c.l.b16 %v2509
  %v3043 = vunpack.c.l.b16 %v2510
  %v3044 = vunpack.c.l.b16 %v2511
  %v3045 = vunpack.c.l.b16 %v2512
  %v3046 = vunpack.c.l.b16 %v2513
  %v3047 = vunpack.c.l.b16 %v2514
  %v3048 = vunpack.c.l.b16 %v2515
  %v3049 = vunpack.c.l.b16 %v2516
  %v3050 = vunpack.c.l.b16 %v2517
  %v3051 = vunpack.c.l.b16 %v2518
  %v3052 = vunpack.c.l.b16 %v2519
  %v3053 = vunpack.c.l.b16 %v2520
  %v3054 = vunpack.c.l.b16 %v2521
  %v3055 = vunpack.c.l.b16 %v2522
  %v3056 = vunpack.c.l.b16 %v2523
  %v3057 = vunpack.c.l.b16 %v2524
  %v3058 = vunpack.c.l.b16 %v2525
  %v3059 = vunpack.c.l.b16 %v2526
  %v3060 = vunpack.c.l.b16 %v2527
  %v3061 = vunpack.c.l.b16 %v2528
  %v3062 = vunpack.c.l.b16 %v2529
  %v3063 = vunpack.c.l.b16 %v2530
  %v3064 = vunpack.c.l.b16 %v2531
  %v3065 = vunpack.c.l.b16 %v2532
  %v3066 = vunpack.c.l.b16 %v2533
  %v3067 = vunpack.c.l.b16 %v2534
  %v3068 = vunpack.c.l.b16 %v2535
  %v3069 = vunpack.c.l.b16 %v2536
  %v3070 = vunpack.c.l.b16 %v2537
  %v3071 = vunpack.c.l.b16 %v2538
  %v3072 = vunpack.c.l.b16 %v2539
  %v3073 = vunpack.c.l.b16 %v2540
  %v3074 = vunpack.c.l.b16 %v2541
  %v3075 = vunpack.c.l.b16 %v2542
  %v3076 = vunpack.c.l.b16 %v2543
  %v3077 = vunpack.c.l.b16 %v2544
  %v3078 = vunpack.c.l.b16 %v2545
  %v3079 = vunpack.c.l.b16 %v2546
  %v3080 = vunpack.c.l.b16 %v2547
  %v3081 = vunpack.c.l.b16 %v2548
  %v3082 = vunpack.c.l.b16 %v2549
  %v3083 = vunpack.c.l.b16 %v2550
  %v3084 = vunpack.c.l.b16 %v2551
  %v3085 = vunpack.c.l.b16 %v2552
  %v3086 = vunpack.c.l.b16 %v2553
  %v3087 = vunpack.c.l.b16 %v2554
  %v3088 = vunpack.c.l.b16 %v2555
  %v3089 = vunpack.c.l.b16 %v2556
  %v3090 = vunpack.c.l.b16 %v2557
  %v3091 = vunpack.c.l.b16 %v2558
  %v3092 = vunpack.c.l.b16 %v2559
  %v3093 = vunpack.c.l.b16 %v2560
  %v3094 = vunpack.c.l.b16 %v2561
  %v3095 = vunpack.c.l.b16 %v2562
  %v3096 = vunpack.c.l.b16 %v2563
  %v3097 = vunpack.c.l.b16 %v2564
  %v3098 = vunpack.c.l.b16 %v2565
  %v3099 = vunpack.c.l.b16 %v2566
  %v3100 = vunpack.c.l.b16 %v2567
  %v3101 = vunpack.c.l.b16 %v2568
  %v3102 = vunpack.c.l.b16 %v2569
  %v3103 = vunpack.c.l.b16 %v2570
  %v3104 = vunpack.c.l.b16 %v2571
  %v3105 = vunpack.c.l.b16 %v2572
  %v3106 = vunpack.c.l.b16 %v2573
  %v3107 = vunpack.c.l.b16 %v2574
  %v3108 = vunpack.c.l.b16 %v2575
  %v3109 = vunpack.c.l.b16 %v2576
  %v3110 = vunpack.c.l.b16 %v2577
  %v3111 = vunpack.c.l.b16 %v2578
  %v3112 = vunpack.c.l.b16 %v2579
  %v3113 = vunpack.c.l.b16 %v2580
  %v3114 = vunpack.c.l.b16 %v2581
  %v3115 = vunpack.c.l.b16 %v2582
  %v3116 = vunpack.c.l.b16 %v2583
  %v3117 = vunpack.c.l.b16 %v2584
  %v3118 = vunpack.c.l.b16 %v2585
  %v3119 = vunpack.c.l.b16 %v2586
  %v3120 = vunpack.c.l.b16 %v2587
  %v3121 = vunpack.c.l.b16 %v2588
  %v3122 = vunpack.c.l.b16 %v2589
  %v3123 = vunpack.c.l.b16 %v2590
  %v3124 = vunpack.c.l.b16 %v2591
  %v3125 = vunpack.c.l.b16 %v2592
  %v3126 = vunpack.c.l.b16 %v2593
  %v3127 = vunpack.c.l.b16 %v2594
  %v3128 = vunpack.c.l.b16 %v2595
  %v3129 = vunpack.c.l.b16 %v2596
  %v3130 = vunpack.c.l.b16 %v2597
  %v3131 = vunpack.c.l.b16 %v2598
  %v3132 = vunpack.c.l.b16 %v2599
  %v3133 = vunpack.c.l.b16 %v2600
  %v3134 = vunpack.c.l.b16 %v2601
  %v3135 = vunpack.c.l.b16 %v2602
  %v3136 = vunpack.c.l.b16 %v2603
  %v3137 = vunpack.c.l.b16 %v2604
  %v3138 = vunpack.c.l.b16 %v2605
  %v3139 = vunpack.c.l.b16 %v2606
  %v3140 = vunpack.c.l.b16 %v2607
  %v3141 = vunpack.c.l.b16 %v2608
  %v3142 = vunpack.c.l.b16 %v2609
  %v3143 = vunpack.c.l.b16 %v2610
  %v3144 = vunpack.c.l.b16 %v2611
  %v3145 = vunpack.c.l.b16 %v2612
  %v3146 = vunpack.c.l.b16 %v2613
  %v3147 = vunpack.c.l.b16 %v2614
  %v3148 = vunpack.c.l.b16 %v2615
  %v3149 = vunpack.c.l.b16 %v2616
  %v3150 = vunpack.c.l.b16 %v2617
  %v3151 = vunpack.c.l.b16 %v2618
  %v3152 = vunpack.c.l.b16 %v2619
  %v3153 = vunpack.c.l.b16 %v2620
  %v3154 = vunpack.c.l.b16 %v2621
  %v3155 = vunpack.c.l.b16 %v2622
  %v3156 = vunpack.c.l.b16 %v2623
  %v3157 = vunpack.c.l.b16 %v2624
  %v3158 = vunpack.c.l.b16 %v2625
  %v3159 = vunpack.c.l.b16 %v2626
  %v3160 = vunpack.c.l.b16 %v2627
  %v3161 = vunpack.c.l.b16 %v2628
  %v3162 = vunpack.c.l.b16 %v2629
  %v3163 = vunpack.c.l.b16 %v2630
  %v3164 = vunpack.c.l.b16 %v2631
  %v3165 = vunpack.c.l.b16 %v2632
  %v3166 = vunpack.c.l.b16 %v2633
  %v3167 = vunpack.c.l.b16 %v2634
  %v3168 = vunpack.c.l.b16 %v2635
  %v3169 = vunpack.c.l.b16 %v2636
  %v3170 = vunpack.c.l.b16 %v2637
  %v3171 = vunpack.c.l.b16 %v2638
  %v3172 = vunpack.c.l.b16 %v2639
  %v3173 = vunpack.c.l.b16 %v2640
  %v3174 = vunpack.c.l.b16 %v2641
  %v3175 = vunpack.c.l.b16 %v2642
  %v3176 = vunpack.c.l.b16 %v2643
  %v3177 = vunpack.c.l.b16 %v2644
  %v3178 = vunpack.c.l.b16 %v2645
  %v3179 = vunpack.c.l.b16 %v2646
  %v3180 = vunpack.c.l.b16 %v2647
  %v3181 = vunpack.c.l.b16 %v2648
  %v3182 = vunpack.c.l.b16 %v2649
  %v3183 = vunpack.c.l.b16 %v2650
  %v3184 = vunpack.c.l.b16 %v2651
  %v3185 = vunpack.c.l.b16 %v2652
  %v3186 = vunpack.c.l.b16 %v2653
  %v3187 = vunpack.c.l.b16 %v2654
  %v3188 = vunpack.c.l.b16 %v2655
  %v3189 = vunpack.c.l.b16 %v2656
  %v3190 = vunpack.c.l.b16 %v2657
  %v3191 = vunpack.c.l.b16 %v2658
  %v3192 = vunpack.c.l.b16 %v2659
  %v3193 = vunpack.c.l.b16 %v2660
  %v3194 = vunpack.c.l.b16 %v2661
  %v3195 = vunpack.c.l.b16 %v2662
  %v3196 = vunpack.c.l.b16 %v2663
  %v3197 = vunpack.c.l.b16 %v2664
  %v3198 = vunpack.c.l.b16 %v2665
  %v3199 = vunpack.c.l.b16 %v2666
  %v3200 = vunpack.c.l.b16 %v2667
  %v3201 = vunpack.c.l.b16 %v2668
  %v3202 = vunpack.c.l.b16 %v2669
  %v3203 = vunpack.c.l.b16 %v2670
  %v3204 = vunpack.c.l.b16 %v2671
  %v3205 = vunpack.c.l.b16 %v2672
  %v3206 = vunpack.c.l.b16 %v2673
  %v3207 = vunpack.c.l.b16 %v2674
  %v3208 = vunpack.c.l.b16 %v2675
  %v3209 = vunpack.c.l.b16 %v2676
  %v3210 = vunpack.c.l.b16 %v2677
  %v3211 = vunpack.c.l.b16 %v2678
  %v3212 = vunpack.c.l.b16 %v2679
  %v3213 = vunpack.c.l.b16 %v2680
  %v3214 = vunpack.c.l.b16 %v2681
  %v3215 = vunpack.c.l.b16 %v2682
  %v3216 = vunpack.c.l.b16 %v2683
  %v3217 = vunpack.c.l.b16 %v2684
  %v3218 = vunpack.c.l.b16 %v2685
  %v3219 = vunpack.c.l.b16 %v2686
  %v3220 = vunpack.c.l.b16 %v2687
  %v3221 = vunpack.c.l.b16 %v2688
  %v3222 = vunpack.c.l.b16 %v2689
  %v3223 = vunpack.c.l.b16 %v2690
  %v3224 = vunpack.c.l.b16 %v2691
  %v3225 = vunpack.c.l.b16 %v2692
  %v3226 = vunpack.c.l.b16 %v2693
  %v3227 = vunpack.c.l.b16 %v2694
  %v3228 = vunpack.c.l.b16 %v2695
  %v3229 = vunpack.c.l.b16 %v2696
  %v3230 = vunpack.c.l.b16 %v2697
  %v3231 = vunpack.c.l.b16 %v2698
  %v3232 = vunpack.c.l.b16 %v2699
  %v3233 = vunpack.c.l.b16 %v2700
  %v3234 = vunpack.c.l.b16 %v2701
  %v3235 = vunpack.c.l.b16 %v2702
  %v3236 = vunpack.c.l.b16 %v2703
  %v3237 = vunpack.c.l.b16 %v2704
  %v3238 = vunpack.c.l.b16 %v2705
  %v3239 = vunpack.c.l.b16 %v2706
  %v3240 = vunpack.c.l.b16 %v2707
  %v3241 = vunpack.c.l.b16 %v2708
  %v3242 = vunpack.c.l.b16 %v2709
  %v3243 = vunpack.c.l.b16 %v2710
  %v3244 = vunpack.c.l.b16 %v2711
  %v3245 = vunpack.c.l.b16 %v2712
  %v3246 = vunpack.c.l.b16 %v2713
  %v3247 = vunpack.c.l.b16 %v2714
  %v3248 = vunpack.c.l.b16 %v2715
  %v3249 = vunpack.c.l.b16 %v2716
  %v3250 = vunpack.c.l.b16 %v2717
  %v3251 = vunpack.c.l.b16 %v2718
  %v3252 = vunpack.c.l.b16 %v2719
  %v3253 = vunpack.c.l.b16 %v2720
  %v3254 = vunpack.c.l.b16 %v2721
  %v3255 = vunpack.c.l.b16 %v2722
  %v3256 = vunpack.c.l.b16 %v2723
  %v3257 = vunpack.c.l.b16 %v2724
  %v3258 = vunpack.c.l.b16 %v2725
  %v3259 = vunpack.c.l.b16 %v2726
  %v3260 = vunpack.c.l.b16 %v2727
  %v3261 = vpack.c.b16 %v3006, %v3005
  %v3262 = vpack.c.b16 %v3008, %v3007
  %v3263 = vpack.c.b16 %v3010, %v3009
  %v3264 = vpack.c.b16 %v3012, %v3011
  %v3265 = vpack.c.b16 %v3014, %v3013
  %v3266 = vpack.c.b16 %v3016, %v3015
  %v3267 = vpack.c.b16 %v3018, %v3017
  %v3268 = vpack.c.b16 %v3020, %v3019
  %v3269 = vpack.c.b16 %v3022, %v3021
  %v3270 = vpack.c.b16 %v3024, %v3023
  %v3271 = vpack.c.b16 %v3026, %v3025
  %v3272 = vpack.c.b16 %v3028, %v3027
  %v3273 = vpack.c.b16 %v3030, %v3029
  %v3274 = vpack.c.b16 %v3032, %v3031
  %v3275 = vpack.c.b16 %v3034, %v3033
  %v3276 = vpack.c.b16 %v3036, %v3035
  %v3277 = vpack.c.b16 %v3038, %v3037
  %v3278 = vpack.c.b16 %v3040, %v3039
  %v3279 = vpack.c.b16 %v3042, %v3041
  %v3280 = vpack.c.b16 %v3044, %v3043
  %v3281 = vpack.c.b16 %v3046, %v3045
  %v3282 = vpack.c.b16 %v3048, %v3047
  %v3283 = vpack.c.b16 %v3050, %v3049
  %v3284 = vpack.c.b16 %v3052, %v3051
  %v3285 = vpack.c.b16 %v3054, %v3053
  %v3286 = vpack.c.b16 %v3056, %v3055
  %v3287 = vpack.c.b16 %v3058, %v3057
  %v3288 = vpack.c.b16 %v3060, %v3059
  %v3289 = vpack.c.b16 %v3062, %v3061
  %v3290 = vpack.c.b16 %v3064, %v3063
  %v3291 = vpack.c.b16 %v3066, %v3065
  %v3292 = vpack.c.b16 %v3068, %v3067
  %v3293 = vpack.c.b16 %v3070, %v3069
  %v3294 = vpack.c.b16 %v3072, %v3071
  %v3295 = vpack.c.b16 %v3074, %v3073
  %v3296 = vpack.c.b16 %v3076, %v3075
  %v3297 = vpack.c.b16 %v3078, %v3077
  %v3298 = vpack.c.b16 %v3080, %v3079
  %v3299 = vpack.c.b16 %v3082, %v3081
  %v3300 = vpack.c.b16 %v3084, %v3083
  %v3301 = vpack.c.b16 %v3086, %v3085
  %v3302 = vpack.c.b16 %v3088, %v3087
  %v3303 = vpack.c.b16 %v3090, %v3089
  %v3304 = vpack.c.b16 %v3092, %v3091
  %v3305 = vpack.c.b16 %v3094, %v3093
  %v3306 = vpack.c.b16 %v3096, %v3095
  %v3307 = vpack.c.b16 %v3098, %v3097
  %v3308 = vpack.c.b16 %v3100, %v3099
  %v3309 = vpack.c.b16 %v3102, %v3101
  %v3310 = vpack.c.b16 %v3104, %v3103
  %v3311 = vpack.c.b16 %v3106, %v3105
  %v3312 = vpack.c.b16 %v3108, %v3107
  %v3313 = vpack.c.b16 %v3110, %v3109
  %v3314 = vpack.c.b16 %v3112, %v3111
  %v3315 = vpack.c.b16 %v3114, %v3113
  %v3316 = vpack.c.b16 %v3116, %v3115
  %v3317 = vpack.c.b16 %v3118, %v3117
  %v3318 = vpack.c.b16 %v3120, %v3119
  %v3319 = vpack.c.b16 %v3122, %v3121
  %v3320 = vpack.c.b16 %v3124, %v3123
  %v3321 = vpack.c.b16 %v3126, %v3125
  %v3322 = vpack.c.b16 %v3128, %v3127
  %v3323 = vpack.c.b16 %v3130, %v3129
  %v3324 = vpack.c.b16 %v3132, %v3131
  %v3325 = vpack.c.b16 %v3134, %v3133
  %v3326 = vpack.c.b16 %v3136, %v3135
  %v3327 = vpack.c.b16 %v3138, %v3137
  %v3328 = vpack.c.b16 %v3140, %v3139
  %v3329 = vpack.c.b16 %v3142, %v3141
  %v3330 = vpack.c.b16 %v3144, %v3143
  %v3331 = vpack.c.b16 %v3146, %v3145
  %v3332 = vpack.c.b16 %v3148, %v3147
  %v3333 = vpack.c.b16 %v3150, %v3149
  %v3334 = vpack.c.b16 %v3152, %v3151
  %v3335 = vpack.c.b16 %v3154, %v3153
  %v3336 = vpack.c.b16 %v3156, %v3155
  %v3337 = vpack.c.b16 %v3158, %v3157
  %v3338 = vpack.c.b16 %v3160, %v3159
  %v3339 = vpack.c.b16 %v3162, %v3161
  %v3340 = vpack.c.b16 %v3164, %v3163
  %v3341 = vpack.c.b16 %v3166, %v3165
  %v3342 = vpack.c.b16 %v3168, %v3167
  %v3343 = vpack.c.b16 %v3170, %v3169
  %v3344 = vpack.c.b16 %v3172, %v3171
  %v3345 = vpack.c.b16 %v3174, %v3173
  %v3346 = vpack.c.b16 %v3176, %v3175
  %v3347 = vpack.c.b16 %v3178, %v3177
  %v3348 = vpack.c.b16 %v3180, %v3179
  %v3349 = vpack.c.b16 %v3182, %v3181
  %v3350 = vpack.c.b16 %v3184, %v3183
  %v3351 = vpack.c.b16 %v3186, %v3185
  %v3352 = vpack.c.b16 %v3188, %v3187
  %v3353 = vpack.c.b16 %v3190, %v3189
  %v3354 = vpack.c.b16 %v3192, %v3191
  %v3355 = vpack.c.b16 %v3194, %v3193
  %v3356 = vpack.c.b16 %v3196, %v3195
  %v3357 = vpack.c.b16 %v3198, %v3197
  %v3358 = vpack.c.b16 %v3200, %v3199
  %v3359 = vpack.c.b16 %v3202, %v3201
  %v3360 = vpack.c.b16 %v3204, %v3203
  %v3361 = vpack.c.b16 %v3206, %v3205
  %v3362 = vpack.c.b16 %v3208, %v3207
  %v3363 = vpack.c.b16 %v3210, %v3209
  %v3364 = vpack.c.b16 %v3212, %v3211
  %v3365 = vpack.c.b16 %v3214, %v3213
  %v3366 = vpack.c.b16 %v3216, %v3215
  %v3367 = vpack.c.b16 %v3218, %v3217
  %v3368 = vpack.c.b16 %v3220, %v3219
  %v3369 = vpack.c.b16 %v3222, %v3221
  %v3370 = vpack.c.b16 %v3224, %v3223
  %v3371 = vpack.c.b16 %v3226, %v3225
  %v3372 = vpack.c.b16 %v3228, %v3227
  %v3373 = vpack.c.b16 %v3230, %v3229
  %v3374 = vpack.c.b16 %v3232, %v3231
  %v3375 = vpack.c.b16 %v3234, %v3233
  %v3376 = vpack.c.b16 %v3236, %v3235
  %v3377 = vpack.c.b16 %v3238, %v3237
  %v3378 = vpack.c.b16 %v3240, %v3239
  %v3379 = vpack.c.b16 %v3242, %v3241
  %v3380 = vpack.c.b16 %v3244, %v3243
  %v3381 = vpack.c.b16 %v3246, %v3245
  %v3382 = vpack.c.b16 %v3248, %v3247
  %v3383 = vpack.c.b16 %v3250, %v3249
  %v3384 = vpack.c.b16 %v3252, %v3251
  %v3385 = vpack.c.b16 %v3254, %v3253
  %v3386 = vpack.c.b16 %v3256, %v3255
  %v3387 = vpack.c.b16 %v3258, %v3257
  %v3388 = vpack.c.b16 %v3260, %v3259
  %3517 = vmatprep.subr.bf16.mxu0 0
  %3518 = vmatpush1.bf16.msra.mxu0 %v3261
  %3519 = vmatprep.subr.bf16.mxu0 0
  %3520 = vmatpush1.bf16.msra.mxu0 %v3262
  %3521 = vmatprep.subr.bf16.mxu0 0
  %3522 = vmatpush1.bf16.msra.mxu0 %v3263
  %3523 = vmatprep.subr.bf16.mxu0 0
  %3524 = vmatpush1.bf16.msra.mxu0 %v3264
  %3525 = vmatprep.subr.bf16.mxu0 0
  %3526 = vmatpush1.bf16.msra.mxu0 %v3265
  %3527 = vmatprep.subr.bf16.mxu0 0
  %3528 = vmatpush1.bf16.msra.mxu0 %v3266
  %3529 = vmatprep.subr.bf16.mxu0 0
  %3530 = vmatpush1.bf16.msra.mxu0 %v3267
  %3531 = vmatprep.subr.bf16.mxu0 0
  %3532 = vmatpush1.bf16.msra.mxu0 %v3268
  %3533 = vmatprep.subr.bf16.mxu0 0
  %3534 = vmatpush1.bf16.msra.mxu0 %v3269
  %3535 = vmatprep.subr.bf16.mxu0 0
  %3536 = vmatpush1.bf16.msra.mxu0 %v3270
  %3537 = vmatprep.subr.bf16.mxu0 0
  %3538 = vmatpush1.bf16.msra.mxu0 %v3271
  %3539 = vmatprep.subr.bf16.mxu0 0
  %3540 = vmatpush1.bf16.msra.mxu0 %v3272
  %3541 = vmatprep.subr.bf16.mxu0 0
  %3542 = vmatpush1.bf16.msra.mxu0 %v3273
  %3543 = vmatprep.subr.bf16.mxu0 0
  %3544 = vmatpush1.bf16.msra.mxu0 %v3274
  %3545 = vmatprep.subr.bf16.mxu0 0
  %3546 = vmatpush1.bf16.msra.mxu0 %v3275
  %3547 = vmatprep.subr.bf16.mxu0 0
  %3548 = vmatpush1.bf16.msra.mxu0 %v3276
  %3549 = vmatprep.mubr.bf16.mxu0 %v2729
  %3550 = vmatmul.mubr.bf16.gmra.mrb[0].mxu0 %v2728
  %v3551 = vpop.f32.mrb[0].mxu0
  %v3552 = vadd.f32 %v2748, %v3551
  %v3553 = vpop.f32.mrb[0].mxu0
  %v3554 = vpop.f32.mrb[0].mxu0
  %v3555 = vadd.f32 %v2748, %v3554
  %v3556 = vpop.f32.mrb[0].mxu0
  %3557 = vdwg.mxu0
  %3558 = vmatprep.subr.bf16.mxu0 0
  %3559 = vmatpush1.bf16.msra.mxu0 %v3277
  %3560 = vmatprep.subr.bf16.mxu0 0
  %3561 = vmatpush1.bf16.msra.mxu0 %v3278
  %3562 = vmatprep.subr.bf16.mxu0 0
  %3563 = vmatpush1.bf16.msra.mxu0 %v3279
  %3564 = vmatprep.subr.bf16.mxu0 0
  %3565 = vmatpush1.bf16.msra.mxu0 %v3280
  %3566 = vmatprep.subr.bf16.mxu0 0
  %3567 = vmatpush1.bf16.msra.mxu0 %v3281
  %3568 = vmatprep.subr.bf16.mxu0 0
  %3569 = vmatpush1.bf16.msra.mxu0 %v3282
  %3570 = vmatprep.subr.bf16.mxu0 0
  %3571 = vmatpush1.bf16.msra.mxu0 %v3283
  %3572 = vmatprep.subr.bf16.mxu0 0
  %3573 = vmatpush1.bf16.msra.mxu0 %v3284
  %3574 = vmatprep.subr.bf16.mxu0 0
  %3575 = vmatpush1.bf16.msra.mxu0 %v3285
  %3576 = vmatprep.subr.bf16.mxu0 0
  %3577 = vmatpush1.bf16.msra.mxu0 %v3286
  %3578 = vmatprep.subr.bf16.mxu0 0
  %3579 = vmatpush1.bf16.msra.mxu0 %v3287
  %3580 = vmatprep.subr.bf16.mxu0 0
  %3581 = vmatpush1.bf16.msra.mxu0 %v3288
  %3582 = vmatprep.subr.bf16.mxu0 0
  %3583 = vmatpush1.bf16.msra.mxu0 %v3289
  %3584 = vmatprep.subr.bf16.mxu0 0
  %3585 = vmatpush1.bf16.msra.mxu0 %v3290
  %3586 = vmatprep.subr.bf16.mxu0 0
  %3587 = vmatpush1.bf16.msra.mxu0 %v3291
  %3588 = vmatprep.subr.bf16.mxu0 0
  %3589 = vmatpush1.bf16.msra.mxu0 %v3292
  %3590 = vmatprep.mubr.bf16.mxu0 %v2731
  %3591 = vmatmul.mubr.bf16.gmra.mrb[0].mxu0 %v2730
  %v3592 = vpop.f32.mrb[0].mxu0
  %v3593 = vadd.f32 %v3552, %v3592
  %v3594 = vpop.f32.mrb[0].mxu0
  %v3595 = vpop.f32.mrb[0].mxu0
  %v3596 = vadd.f32 %v3555, %v3595
  %v3597 = vpop.f32.mrb[0].mxu0
  %3598 = vdwg.mxu0
  %3599 = vmatprep.subr.bf16.mxu0 0
  %3600 = vmatpush1.bf16.msra.mxu0 %v3293
  %3601 = vmatprep.subr.bf16.mxu0 0
  %3602 = vmatpush1.bf16.msra.mxu0 %v3294
  %3603 = vmatprep.subr.bf16.mxu0 0
  %3604 = vmatpush1.bf16.msra.mxu0 %v3295
  %3605 = vmatprep.subr.bf16.mxu0 0
  %3606 = vmatpush1.bf16.msra.mxu0 %v3296
  %3607 = vmatprep.subr.bf16.mxu0 0
  %3608 = vmatpush1.bf16.msra.mxu0 %v3297
  %3609 = vmatprep.subr.bf16.mxu0 0
  %3610 = vmatpush1.bf16.msra.mxu0 %v3298
  %3611 = vmatprep.subr.bf16.mxu0 0
  %3612 = vmatpush1.bf16.msra.mxu0 %v3299
  %3613 = vmatprep.subr.bf16.mxu0 0
  %3614 = vmatpush1.bf16.msra.mxu0 %v3300
  %3615 = vmatprep.subr.bf16.mxu0 0
  %3616 = vmatpush1.bf16.msra.mxu0 %v3301
  %3617 = vmatprep.subr.bf16.mxu0 0
  %3618 = vmatpush1.bf16.msra.mxu0 %v3302
  %3619 = vmatprep.subr.bf16.mxu0 0
  %3620 = vmatpush1.bf16.msra.mxu0 %v3303
  %3621 = vmatprep.subr.bf16.mxu0 0
  %3622 = vmatpush1.bf16.msra.mxu0 %v3304
  %3623 = vmatprep.subr.bf16.mxu0 0
  %3624 = vmatpush1.bf16.msra.mxu0 %v3305
  %3625 = vmatprep.subr.bf16.mxu0 0
  %3626 = vmatpush1.bf16.msra.mxu0 %v3306
  %3627 = vmatprep.subr.bf16.mxu0 0
  %3628 = vmatpush1.bf16.msra.mxu0 %v3307
  %3629 = vmatprep.subr.bf16.mxu0 0
  %3630 = vmatpush1.bf16.msra.mxu0 %v3308
  %3631 = vmatprep.mubr.bf16.mxu0 %v2733
  %3632 = vmatmul.mubr.bf16.gmra.mrb[0].mxu0 %v2732
  %v3633 = vpop.f32.mrb[0].mxu0
  %v3634 = vadd.f32 %v3593, %v3633
  %v3635 = vpop.f32.mrb[0].mxu0
  %v3636 = vpop.f32.mrb[0].mxu0
  %v3637 = vadd.f32 %v3596, %v3636
  %v3638 = vpop.f32.mrb[0].mxu0
  %3639 = vdwg.mxu0
  %3640 = vmatprep.subr.bf16.mxu0 0
  %3641 = vmatpush1.bf16.msra.mxu0 %v3309
  %3642 = vmatprep.subr.bf16.mxu0 0
  %3643 = vmatpush1.bf16.msra.mxu0 %v3310
  %3644 = vmatprep.subr.bf16.mxu0 0
  %3645 = vmatpush1.bf16.msra.mxu0 %v3311
  %3646 = vmatprep.subr.bf16.mxu0 0
  %3647 = vmatpush1.bf16.msra.mxu0 %v3312
  %3648 = vmatprep.subr.bf16.mxu0 0
  %3649 = vmatpush1.bf16.msra.mxu0 %v3313
  %3650 = vmatprep.subr.bf16.mxu0 0
  %3651 = vmatpush1.bf16.msra.mxu0 %v3314
  %3652 = vmatprep.subr.bf16.mxu0 0
  %3653 = vmatpush1.bf16.msra.mxu0 %v3315
  %3654 = vmatprep.subr.bf16.mxu0 0
  %3655 = vmatpush1.bf16.msra.mxu0 %v3316
  %3656 = vmatprep.subr.bf16.mxu0 0
  %3657 = vmatpush1.bf16.msra.mxu0 %v3317
  %3658 = vmatprep.subr.bf16.mxu0 0
  %3659 = vmatpush1.bf16.msra.mxu0 %v3318
  %3660 = vmatprep.subr.bf16.mxu0 0
  %3661 = vmatpush1.bf16.msra.mxu0 %v3319
  %3662 = vmatprep.subr.bf16.mxu0 0
  %3663 = vmatpush1.bf16.msra.mxu0 %v3320
  %3664 = vmatprep.subr.bf16.mxu0 0
  %3665 = vmatpush1.bf16.msra.mxu0 %v3321
  %3666 = vmatprep.subr.bf16.mxu0 0
  %3667 = vmatpush1.bf16.msra.mxu0 %v3322
  %3668 = vmatprep.subr.bf16.mxu0 0
  %3669 = vmatpush1.bf16.msra.mxu0 %v3323
  %3670 = vmatprep.subr.bf16.mxu0 0
  %3671 = vmatpush1.bf16.msra.mxu0 %v3324
  %3672 = vmatprep.mubr.bf16.mxu0 %v2735
  %3673 = vmatmul.mubr.bf16.gmra.mrb[0].mxu0 %v2734
  %v3674 = vpop.f32.mrb[0].mxu0
  %v3675 = vadd.f32 %v3634, %v3674
  %v3676 = vpop.f32.mrb[0].mxu0
  %v3677 = vpop.f32.mrb[0].mxu0
  %v3678 = vadd.f32 %v3637, %v3677
  %v3679 = vpop.f32.mrb[0].mxu0
  %3680 = vdwg.mxu0
  %3681 = vmatprep.subr.bf16.mxu0 0
  %3682 = vmatpush1.bf16.msra.mxu0 %v3325
  %3683 = vmatprep.subr.bf16.mxu0 0
  %3684 = vmatpush1.bf16.msra.mxu0 %v3326
  %3685 = vmatprep.subr.bf16.mxu0 0
  %3686 = vmatpush1.bf16.msra.mxu0 %v3327
  %3687 = vmatprep.subr.bf16.mxu0 0
  %3688 = vmatpush1.bf16.msra.mxu0 %v3328
  %3689 = vmatprep.subr.bf16.mxu0 0
  %3690 = vmatpush1.bf16.msra.mxu0 %v3329
  %3691 = vmatprep.subr.bf16.mxu0 0
  %3692 = vmatpush1.bf16.msra.mxu0 %v3330
  %3693 = vmatprep.subr.bf16.mxu0 0
  %3694 = vmatpush1.bf16.msra.mxu0 %v3331
  %3695 = vmatprep.subr.bf16.mxu0 0
  %3696 = vmatpush1.bf16.msra.mxu0 %v3332
  %3697 = vmatprep.subr.bf16.mxu0 0
  %3698 = vmatpush1.bf16.msra.mxu0 %v3333
  %3699 = vmatprep.subr.bf16.mxu0 0
  %3700 = vmatpush1.bf16.msra.mxu0 %v3334
  %3701 = vmatprep.subr.bf16.mxu0 0
  %3702 = vmatpush1.bf16.msra.mxu0 %v3335
  %3703 = vmatprep.subr.bf16.mxu0 0
  %3704 = vmatpush1.bf16.msra.mxu0 %v3336
  %3705 = vmatprep.subr.bf16.mxu0 0
  %3706 = vmatpush1.bf16.msra.mxu0 %v3337
  %3707 = vmatprep.subr.bf16.mxu0 0
  %3708 = vmatpush1.bf16.msra.mxu0 %v3338
  %3709 = vmatprep.subr.bf16.mxu0 0
  %3710 = vmatpush1.bf16.msra.mxu0 %v3339
  %3711 = vmatprep.subr.bf16.mxu0 0
  %3712 = vmatpush1.bf16.msra.mxu0 %v3340
  %3713 = vmatprep.mubr.bf16.mxu0 %v2737
  %3714 = vmatmul.mubr.bf16.gmra.mrb[0].mxu0 %v2736
  %v3715 = vpop.f32.mrb[0].mxu0
  %v3716 = vadd.f32 %v3675, %v3715
  %v3717 = vpop.f32.mrb[0].mxu0
  %v3718 = vpop.f32.mrb[0].mxu0
  %v3719 = vadd.f32 %v3678, %v3718
  %v3720 = vpop.f32.mrb[0].mxu0
  %3721 = vdwg.mxu0
  %3722 = vmatprep.subr.bf16.mxu0 0
  %3723 = vmatpush1.bf16.msra.mxu0 %v3341
  %3724 = vmatprep.subr.bf16.mxu0 0
  %3725 = vmatpush1.bf16.msra.mxu0 %v3342
  %3726 = vmatprep.subr.bf16.mxu0 0
  %3727 = vmatpush1.bf16.msra.mxu0 %v3343
  %3728 = vmatprep.subr.bf16.mxu0 0
  %3729 = vmatpush1.bf16.msra.mxu0 %v3344
  %3730 = vmatprep.subr.bf16.mxu0 0
  %3731 = vmatpush1.bf16.msra.mxu0 %v3345
  %3732 = vmatprep.subr.bf16.mxu0 0
  %3733 = vmatpush1.bf16.msra.mxu0 %v3346
  %3734 = vmatprep.subr.bf16.mxu0 0
  %3735 = vmatpush1.bf16.msra.mxu0 %v3347
  %3736 = vmatprep.subr.bf16.mxu0 0
  %3737 = vmatpush1.bf16.msra.mxu0 %v3348
  %3738 = vmatprep.subr.bf16.mxu0 0
  %3739 = vmatpush1.bf16.msra.mxu0 %v3349
  %3740 = vmatprep.subr.bf16.mxu0 0
  %3741 = vmatpush1.bf16.msra.mxu0 %v3350
  %3742 = vmatprep.subr.bf16.mxu0 0
  %3743 = vmatpush1.bf16.msra.mxu0 %v3351
  %3744 = vmatprep.subr.bf16.mxu0 0
  %3745 = vmatpush1.bf16.msra.mxu0 %v3352
  %3746 = vmatprep.subr.bf16.mxu0 0
  %3747 = vmatpush1.bf16.msra.mxu0 %v3353
  %3748 = vmatprep.subr.bf16.mxu0 0
  %3749 = vmatpush1.bf16.msra.mxu0 %v3354
  %3750 = vmatprep.subr.bf16.mxu0 0
  %3751 = vmatpush1.bf16.msra.mxu0 %v3355
  %3752 = vmatprep.subr.bf16.mxu0 0
  %3753 = vmatpush1.bf16.msra.mxu0 %v3356
  %3754 = vmatprep.mubr.bf16.mxu0 %v2739
  %3755 = vmatmul.mubr.bf16.gmra.mrb[0].mxu0 %v2738
  %v3756 = vpop.f32.mrb[0].mxu0
  %v3757 = vadd.f32 %v3716, %v3756
  %v3758 = vpop.f32.mrb[0].mxu0
  %v3759 = vpop.f32.mrb[0].mxu0
  %v3760 = vadd.f32 %v3719, %v3759
  %v3761 = vpop.f32.mrb[0].mxu0
  %3762 = vdwg.mxu0
  %3763 = vmatprep.subr.bf16.mxu0 0
  %3764 = vmatpush1.bf16.msra.mxu0 %v3357
  %3765 = vmatprep.subr.bf16.mxu0 0
  %3766 = vmatpush1.bf16.msra.mxu0 %v3358
  %3767 = vmatprep.subr.bf16.mxu0 0
  %3768 = vmatpush1.bf16.msra.mxu0 %v3359
  %3769 = vmatprep.subr.bf16.mxu0 0
  %3770 = vmatpush1.bf16.msra.mxu0 %v3360
  %3771 = vmatprep.subr.bf16.mxu0 0
  %3772 = vmatpush1.bf16.msra.mxu0 %v3361
  %3773 = vmatprep.subr.bf16.mxu0 0
  %3774 = vmatpush1.bf16.msra.mxu0 %v3362
  %3775 = vmatprep.subr.bf16.mxu0 0
  %3776 = vmatpush1.bf16.msra.mxu0 %v3363
  %3777 = vmatprep.subr.bf16.mxu0 0
  %3778 = vmatpush1.bf16.msra.mxu0 %v3364
  %3779 = vmatprep.subr.bf16.mxu0 0
  %3780 = vmatpush1.bf16.msra.mxu0 %v3365
  %3781 = vmatprep.subr.bf16.mxu0 0
  %3782 = vmatpush1.bf16.msra.mxu0 %v3366
  %3783 = vmatprep.subr.bf16.mxu0 0
  %3784 = vmatpush1.bf16.msra.mxu0 %v3367
  %3785 = vmatprep.subr.bf16.mxu0 0
  %3786 = vmatpush1.bf16.msra.mxu0 %v3368
  %3787 = vmatprep.subr.bf16.mxu0 0
  %3788 = vmatpush1.bf16.msra.mxu0 %v3369
  %3789 = vmatprep.subr.bf16.mxu0 0
  %3790 = vmatpush1.bf16.msra.mxu0 %v3370
  %3791 = vmatprep.subr.bf16.mxu0 0
  %3792 = vmatpush1.bf16.msra.mxu0 %v3371
  %3793 = vmatprep.subr.bf16.mxu0 0
  %3794 = vmatpush1.bf16.msra.mxu0 %v3372
  %3795 = vmatprep.mubr.bf16.mxu0 %v2741
  %3796 = vmatmul.mubr.bf16.gmra.mrb[0].mxu0 %v2740
  %v3797 = vpop.f32.mrb[0].mxu0
  %v3798 = vadd.f32 %v3757, %v3797
  %v3799 = vpop.f32.mrb[0].mxu0
  %v3800 = vpop.f32.mrb[0].mxu0
  %v3801 = vadd.f32 %v3760, %v3800
  %v3802 = vpop.f32.mrb[0].mxu0
  %3803 = vdwg.mxu0
  %3804 = vmatprep.subr.bf16.mxu0 0
  %3805 = vmatpush1.bf16.msra.mxu0 %v3373
  %3806 = vmatprep.subr.bf16.mxu0 0
  %3807 = vmatpush1.bf16.msra.mxu0 %v3374
  %3808 = vmatprep.subr.bf16.mxu0 0
  %3809 = vmatpush1.bf16.msra.mxu0 %v3375
  %3810 = vmatprep.subr.bf16.mxu0 0
  %3811 = vmatpush1.bf16.msra.mxu0 %v3376
  %3812 = vmatprep.subr.bf16.mxu0 0
  %3813 = vmatpush1.bf16.msra.mxu0 %v3377
  %3814 = vmatprep.subr.bf16.mxu0 0
  %3815 = vmatpush1.bf16.msra.mxu0 %v3378
  %3816 = vmatprep.subr.bf16.mxu0 0
  %3817 = vmatpush1.bf16.msra.mxu0 %v3379
  %3818 = vmatprep.subr.bf16.mxu0 0
  %3819 = vmatpush1.bf16.msra.mxu0 %v3380
  %3820 = vmatprep.subr.bf16.mxu0 0
  %3821 = vmatpush1.bf16.msra.mxu0 %v3381
  %3822 = vmatprep.subr.bf16.mxu0 0
  %3823 = vmatpush1.bf16.msra.mxu0 %v3382
  %3824 = vmatprep.subr.bf16.mxu0 0
  %3825 = vmatpush1.bf16.msra.mxu0 %v3383
  %3826 = vmatprep.subr.bf16.mxu0 0
  %3827 = vmatpush1.bf16.msra.mxu0 %v3384
  %3828 = vmatprep.subr.bf16.mxu0 0
  %3829 = vmatpush1.bf16.msra.mxu0 %v3385
  %3830 = vmatprep.subr.bf16.mxu0 0
  %3831 = vmatpush1.bf16.msra.mxu0 %v3386
  %3832 = vmatprep.subr.bf16.mxu0 0
  %3833 = vmatpush1.bf16.msra.mxu0 %v3387
  %3834 = vmatprep.subr.bf16.mxu0 0
  %3835 = vmatpush1.bf16.msra.mxu0 %v3388
  %3836 = vmatprep.mubr.bf16.mxu0 %v2743
  %3837 = vmatmul.mubr.bf16.gmra.mrb[0].mxu0 %v2742
  %v3838 = vpop.f32.mrb[0].mxu0
  %v3839 = vadd.f32 %v3798, %v3838
  %v3840 = vpop.f32.mrb[0].mxu0
  %v3841 = vpop.f32.mrb[0].mxu0
  %v3842 = vadd.f32 %v3801, %v3841
  %v3843 = vpop.f32.mrb[0].mxu0
  %3844 = vdwg.mxu0
  %v3845 = vadd.f32 %v1813, %v3839
  %v3846 = vadd.f32 %v1814, %v3842
  %v3847 = vld [vmem:[%s15 + $0x2] sm:$0x1]
  %v3848 = vld [vmem:[%s16 + $0x2] sm:$0x1]
  %v3849 = vsel %vm89, %v3845, 0.0
  %3850 = vadd.xlane.f32.xlu0 %v3849
  %v3851 = vpop.xlane.xlu0 %3850
  %v3852 = vsel %vm89, %v3846, 0.0
  %3853 = vadd.xlane.f32.xlu0 %v3852
  %v3854 = vpop.xlane.xlu0 %3853
  %v3855 = vmul.f32 %v3851, %v1577
  %v3856 = vmul.f32 %v3854, %v1577
  %v3857 = vsub.f32 %v3845, %v3855
  %v3858 = vsub.f32 %v3846, %v3856
  %v3859 = vmul.f32 %v3857, %v3857
  %v3860 = vmul.f32 %v3858, %v3858
  %v3861 = vsel %vm89, %v3859, 0.0
  %3862 = vadd.xlane.f32.xlu0 %v3861
  %v3863 = vpop.xlane.xlu0 %3862
  %v3864 = vsel %vm89, %v3860, 0.0
  %3865 = vadd.xlane.f32.xlu0 %v3864
  %v3866 = vpop.xlane.xlu0 %3865
  %v3867 = vmul.f32 %v3863, %v1577
  %v3868 = vmul.f32 %v3866, %v1577
  %v3869 = vadd.f32 %v3867, 1e-05
  %v3870 = vadd.f32 %v3868, 1e-05
  %v3871 = vrsqrt.pop %v3869
  %v3872 = vrsqrt.pop %v3870
  %v3873 = vmul.f32 %v3857, %v3871
  %v3874 = vmul.f32 %v3858, %v3872
  %v3875 = vlaneseq
  %v3876 = vshrl.u32 %v3875, 7
  %v3877 = vsub.s32 0, %v3876
  %v3878 = vrot.slane %v3847, %v3877
  %v3879 = vmul.f32 %v3873, %v3878
  %v3880 = vmul.f32 %v3874, %v3878
  %v3881 = vlaneseq
  %v3882 = vshrl.u32 %v3881, 7
  %v3883 = vsub.s32 0, %v3882
  %v3884 = vrot.slane %v3848, %v3883
  %v3885 = vadd.f32 %v3879, %v3884
  %v3886 = vadd.f32 %v3880, %v3884
  %s3887 = scalar_lea.vmem %s3, 16
  %v3888 = vld [vmem:[%s3887] sm:$0xf]
  %v3889 = vld [vmem:[%s3887 + $0x4] sm:$0xf]
  %v3890 = vld [vmem:[%s3887 + $0x8] sm:$0xf]
  %v3891 = vld [vmem:[%s3887 + $0xc] sm:$0xf]
  %v3892 = vpack.c.bf16 %v3886, %v3885
  %v3893 = vld [vmem:[%s4 + $0x1] sm:$0x1]
  %v3894 = vlaneseq
  %v3895 = vshrl.u32 %v3894, 7
  %v3896 = vsub.s32 0, %v3895
  %v3897 = vrot.slane %v3893, %v3896
  %v3902 = vunpack.c.l.b16 %v3888
  %v3903 = vunpack.c.l.b16 %v3889
  %v3904 = vunpack.c.l.b16 %v3890
  %v3905 = vunpack.c.l.b16 %v3891
  %v3906 = vpack.c.b16 %v3903, %v3902
  %v3907 = vpack.c.b16 %v3905, %v3904
  %v3911 = vsel %vm89, %v3892, 0
  %3913 = vmatprep.subr.bf16.mxu0 0
  %3914 = vmatpush1.bf16.msra.mxu0 %v3906
  %3915 = vmatprep.subr.bf16.mxu0 0
  %3916 = vmatpush1.bf16.msra.mxu0 %v3907
  %3917 = vmatprep.subr.bf16.mxu0 0
  %3918 = vmatpush1.bf16.msra.mxu0 0
  %3919 = vmatprep.subr.bf16.mxu0 0
  %3920 = vmatpush1.bf16.msra.mxu0 0
  %3921 = vmatprep.subr.bf16.mxu0 0
  %3922 = vmatpush1.bf16.msra.mxu0 0
  %3923 = vmatprep.subr.bf16.mxu0 0
  %3924 = vmatpush1.bf16.msra.mxu0 0
  %3925 = vmatprep.subr.bf16.mxu0 0
  %3926 = vmatpush1.bf16.msra.mxu0 0
  %3927 = vmatprep.subr.bf16.mxu0 0
  %3928 = vmatpush1.bf16.msra.mxu0 0
  %3929 = vmatprep.subr.bf16.mxu0 0
  %3930 = vmatpush1.bf16.msra.mxu0 0
  %3931 = vmatprep.subr.bf16.mxu0 0
  %3932 = vmatpush1.bf16.msra.mxu0 0
  %3933 = vmatprep.subr.bf16.mxu0 0
  %3934 = vmatpush1.bf16.msra.mxu0 0
  %3935 = vmatprep.subr.bf16.mxu0 0
  %3936 = vmatpush1.bf16.msra.mxu0 0
  %3937 = vmatprep.subr.bf16.mxu0 0
  %3938 = vmatpush1.bf16.msra.mxu0 0
  %3939 = vmatprep.subr.bf16.mxu0 0
  %3940 = vmatpush1.bf16.msra.mxu0 0
  %3941 = vmatprep.subr.bf16.mxu0 0
  %3942 = vmatpush1.bf16.msra.mxu0 0
  %3943 = vmatprep.subr.bf16.mxu0 0
  %3944 = vmatpush1.bf16.msra.mxu0 0
  %3945 = vmatprep.mubr.bf16.mxu0 0
  %3946 = vmatmul.mubr.bf16.gmra.mrb[0].mxu0 %v3911
  %v3947 = vpop.f32.mrb[0].mxu0
  %v3948 = vadd.f32 %v3897, %v3947
  %v3949 = vpop.f32.mrb[0].mxu0
  %v3950 = vpop.f32.mrb[0].mxu0
  %v3951 = vadd.f32 %v3897, %v3950
  %v3952 = vpop.f32.mrb[0].mxu0
  %3953 = vdwg.mxu0
  %3955 = vrot.lane.b32.xlu0 %v3948, 96
  %v3956 = vpop.permute.xlu0 %3955
  %v3957 = vsel %vm137, %v3948, 0
  %v3959 = vsel %vm137, %v3956, 0
  %3961 = vmatprep.subr.mxu0 0.0
  %3962 = vmatpush1.xpose.msra.mxu0 %v3959
  %3963 = vmatprep.subr.mxu0 0.0
  %3964 = vmatpush1.xpose.msra.mxu0 0.0
  %3965 = vmatprep.subr.mxu0 0.0
  %3966 = vmatpush1.xpose.msra.mxu0 0.0
  %3967 = vmatprep.subr.mxu0 0.0
  %3968 = vmatpush1.xpose.msra.mxu0 0.0
  %3969 = vmatprep.subr.mxu0 0.0
  %3970 = vmatpush1.xpose.msra.mxu0 0.0
  %3971 = vmatprep.subr.mxu0 0.0
  %3972 = vmatpush1.xpose.msra.mxu0 0.0
  %3973 = vmatprep.subr.mxu0 0.0
  %3974 = vmatpush1.xpose.msra.mxu0 0.0
  %3975 = vmatprep.subr.mxu0 0.0
  %3976 = vmatpush1.xpose.msra.mxu0 0.0
  %3977 = vmatprep.subr.mxu0 0.0
  %3978 = vmatpush1.xpose.msra.mxu0 0.0
  %3979 = vmatprep.subr.mxu0 0.0
  %3980 = vmatpush1.xpose.msra.mxu0 0.0
  %3981 = vmatprep.subr.mxu0 0.0
  %3982 = vmatpush1.xpose.msra.mxu0 0.0
  %3983 = vmatprep.subr.mxu0 0.0
  %3984 = vmatpush1.xpose.msra.mxu0 0.0
  %3985 = vmatprep.subr.mxu0 0.0
  %3986 = vmatpush1.xpose.msra.mxu0 0.0
  %3987 = vmatprep.subr.mxu0 0.0
  %3988 = vmatpush1.xpose.msra.mxu0 0.0
  %3989 = vmatprep.subr.mxu0 0.0
  %3990 = vmatpush1.xpose.msra.mxu0 0.0
  %3991 = vmatprep.subr.mxu0 0.0
  %3992 = vmatpush1.xpose.msra.mxu0 0.0
  %3993 = vmatprep.subr.mxu0 0.0
  %3994 = vmatpush1.xpose.msra.mxu0 0.0
  %3995 = vmatprep.subr.mxu0 0.0
  %3996 = vmatpush1.xpose.msra.mxu0 0.0
  %3997 = vmatprep.subr.mxu0 0.0
  %3998 = vmatpush1.xpose.msra.mxu0 0.0
  %3999 = vmatprep.subr.mxu0 0.0
  %4000 = vmatpush1.xpose.msra.mxu0 0.0
  %4001 = vmatprep.subr.mxu0 0.0
  %4002 = vmatpush1.xpose.msra.mxu0 0.0
  %4003 = vmatprep.subr.mxu0 0.0
  %4004 = vmatpush1.xpose.msra.mxu0 0.0
  %4005 = vmatprep.subr.mxu0 0.0
  %4006 = vmatpush1.xpose.msra.mxu0 0.0
  %4007 = vmatprep.subr.mxu0 0.0
  %4008 = vmatpush1.xpose.msra.mxu0 0.0
  %4009 = vmatprep.subr.mxu0 0.0
  %4010 = vmatpush1.xpose.msra.mxu0 0.0
  %4011 = vmatprep.subr.mxu0 0.0
  %4012 = vmatpush1.xpose.msra.mxu0 0.0
  %4013 = vmatprep.subr.mxu0 0.0
  %4014 = vmatpush1.xpose.msra.mxu0 0.0
  %4015 = vmatprep.subr.mxu0 0.0
  %4016 = vmatpush1.xpose.msra.mxu0 0.0
  %4017 = vmatprep.subr.mxu0 0.0
  %4018 = vmatpush1.xpose.msra.mxu0 0.0
  %4019 = vmatprep.subr.mxu0 0.0
  %4020 = vmatpush1.xpose.msra.mxu0 0.0
  %4021 = vmatprep.subr.mxu0 0.0
  %4022 = vmatpush1.xpose.msra.mxu0 0.0
  %4023 = vmatprep.subr.mxu0 0.0
  %4024 = vmatpush1.xpose.msra.mxu0 0.0
  %4025 = vmatprep.mubr.f32.mxu0 0.0
  %4026 = vmatmul.mubr.f32.gmra.mrb[0].mxu0 %v3957
  %v4027 = vpop.f32.mrb[0].mxu0
  %v4028 = vadd.f32 0.0, %v4027
  %v4029 = vpop.f32.mrb[0].mxu0
  %4030 = vdwg.mxu0
  %4032 = vrot.lane.b32.xlu0 %v3951, 96
  %v4033 = vpop.permute.xlu0 %4032
  %v4034 = vsel %vm137, %v3951, 0
  %v4036 = vsel %vm137, %v4033, 0
  %4038 = vmatprep.subr.mxu0 0.0
  %4039 = vmatpush1.xpose.msra.mxu0 %v4036
  %4040 = vmatprep.subr.mxu0 0.0
  %4041 = vmatpush1.xpose.msra.mxu0 0.0
  %4042 = vmatprep.subr.mxu0 0.0
  %4043 = vmatpush1.xpose.msra.mxu0 0.0
  %4044 = vmatprep.subr.mxu0 0.0
  %4045 = vmatpush1.xpose.msra.mxu0 0.0
  %4046 = vmatprep.subr.mxu0 0.0
  %4047 = vmatpush1.xpose.msra.mxu0 0.0
  %4048 = vmatprep.subr.mxu0 0.0
  %4049 = vmatpush1.xpose.msra.mxu0 0.0
  %4050 = vmatprep.subr.mxu0 0.0
  %4051 = vmatpush1.xpose.msra.mxu0 0.0
  %4052 = vmatprep.subr.mxu0 0.0
  %4053 = vmatpush1.xpose.msra.mxu0 0.0
  %4054 = vmatprep.subr.mxu0 0.0
  %4055 = vmatpush1.xpose.msra.mxu0 0.0
  %4056 = vmatprep.subr.mxu0 0.0
  %4057 = vmatpush1.xpose.msra.mxu0 0.0
  %4058 = vmatprep.subr.mxu0 0.0
  %4059 = vmatpush1.xpose.msra.mxu0 0.0
  %4060 = vmatprep.subr.mxu0 0.0
  %4061 = vmatpush1.xpose.msra.mxu0 0.0
  %4062 = vmatprep.subr.mxu0 0.0
  %4063 = vmatpush1.xpose.msra.mxu0 0.0
  %4064 = vmatprep.subr.mxu0 0.0
  %4065 = vmatpush1.xpose.msra.mxu0 0.0
  %4066 = vmatprep.subr.mxu0 0.0
  %4067 = vmatpush1.xpose.msra.mxu0 0.0
  %4068 = vmatprep.subr.mxu0 0.0
  %4069 = vmatpush1.xpose.msra.mxu0 0.0
  %4070 = vmatprep.subr.mxu0 0.0
  %4071 = vmatpush1.xpose.msra.mxu0 0.0
  %4072 = vmatprep.subr.mxu0 0.0
  %4073 = vmatpush1.xpose.msra.mxu0 0.0
  %4074 = vmatprep.subr.mxu0 0.0
  %4075 = vmatpush1.xpose.msra.mxu0 0.0
  %4076 = vmatprep.subr.mxu0 0.0
  %4077 = vmatpush1.xpose.msra.mxu0 0.0
  %4078 = vmatprep.subr.mxu0 0.0
  %4079 = vmatpush1.xpose.msra.mxu0 0.0
  %4080 = vmatprep.subr.mxu0 0.0
  %4081 = vmatpush1.xpose.msra.mxu0 0.0
  %4082 = vmatprep.subr.mxu0 0.0
  %4083 = vmatpush1.xpose.msra.mxu0 0.0
  %4084 = vmatprep.subr.mxu0 0.0
  %4085 = vmatpush1.xpose.msra.mxu0 0.0
  %4086 = vmatprep.subr.mxu0 0.0
  %4087 = vmatpush1.xpose.msra.mxu0 0.0
  %4088 = vmatprep.subr.mxu0 0.0
  %4089 = vmatpush1.xpose.msra.mxu0 0.0
  %4090 = vmatprep.subr.mxu0 0.0
  %4091 = vmatpush1.xpose.msra.mxu0 0.0
  %4092 = vmatprep.subr.mxu0 0.0
  %4093 = vmatpush1.xpose.msra.mxu0 0.0
  %4094 = vmatprep.subr.mxu0 0.0
  %4095 = vmatpush1.xpose.msra.mxu0 0.0
  %4096 = vmatprep.subr.mxu0 0.0
  %4097 = vmatpush1.xpose.msra.mxu0 0.0
  %4098 = vmatprep.subr.mxu0 0.0
  %4099 = vmatpush1.xpose.msra.mxu0 0.0
  %4100 = vmatprep.subr.mxu0 0.0
  %4101 = vmatpush1.xpose.msra.mxu0 0.0
  %4102 = vmatprep.mubr.f32.mxu0 0.0
  %4103 = vmatmul.mubr.f32.gmra.mrb[0].mxu0 %v4034
  %v4104 = vpop.f32.mrb[0].mxu0
  %v4105 = vadd.f32 0.0, %v4104
  %v4106 = vpop.f32.mrb[0].mxu0
  %4107 = vdwg.mxu0
  %v4108 = vmul.f32 %v4028, 0.35355338
  %v4109 = vmul.f32 %v4105, 0.35355338
  %v4110 = vadd.f32 %v4108, %v66
  %v4111 = vadd.f32 %v4109, %v66
  %v4112 = vsel %vm137, %v4110, -inf
  %4113 = vmax.xlane.f32.xlu0 %v4112
  %v4114 = vpop.xlane.xlu0 %4113
  %v4115 = vsel %vm137, %v4111, -inf
  %4116 = vmax.xlane.f32.xlu0 %v4115
  %v4117 = vpop.xlane.xlu0 %4116
  %v4118 = vsub.f32 %v4110, %v4114
  %v4119 = vsub.f32 %v4111, %v4117
  %v4120 = vmul.f32 %v4118, 1.442695
  %v4121 = vpow.pop %v4120
  %v4122 = vmul.f32 %v4119, 1.442695
  %v4123 = vpow.pop %v4122
  %v4124 = vsel %vm137, %v4121, 0.0
  %4125 = vadd.xlane.f32.xlu0 %v4124
  %v4126 = vpop.xlane.xlu0 %4125
  %v4127 = vsel %vm137, %v4123, 0.0
  %4128 = vadd.xlane.f32.xlu0 %v4127
  %v4129 = vpop.xlane.xlu0 %4128
  %v4130 = vrcp.pop %v4126
  %v4131 = vrcp.pop %v4129
  %v4132 = vmul.f32 %v4121, %v4130
  %v4133 = vmul.f32 %v4123, %v4131
  %4134 = vrot.lane.b32.xlu0 %v3948, 64
  %v4135 = vpop.permute.xlu0 %4134
  %v4138 = vsel %vm137, %v4132, 0
  %4140 = vmatprep.subr.mxu0 0.0
  %4141 = vmatpush1.msra.mxu0 %v4135
  %4142 = vmatprep.subr.mxu0 0.0
  %4143 = vmatpush1.msra.mxu0 0.0
  %4144 = vmatprep.subr.mxu0 0.0
  %4145 = vmatpush1.msra.mxu0 0.0
  %4146 = vmatprep.subr.mxu0 0.0
  %4147 = vmatpush1.msra.mxu0 0.0
  %4148 = vmatprep.subr.mxu0 0.0
  %4149 = vmatpush1.msra.mxu0 0.0
  %4150 = vmatprep.subr.mxu0 0.0
  %4151 = vmatpush1.msra.mxu0 0.0
  %4152 = vmatprep.subr.mxu0 0.0
  %4153 = vmatpush1.msra.mxu0 0.0
  %4154 = vmatprep.subr.mxu0 0.0
  %4155 = vmatpush1.msra.mxu0 0.0
  %4156 = vmatprep.subr.mxu0 0.0
  %4157 = vmatpush1.msra.mxu0 0.0
  %4158 = vmatprep.subr.mxu0 0.0
  %4159 = vmatpush1.msra.mxu0 0.0
  %4160 = vmatprep.subr.mxu0 0.0
  %4161 = vmatpush1.msra.mxu0 0.0
  %4162 = vmatprep.subr.mxu0 0.0
  %4163 = vmatpush1.msra.mxu0 0.0
  %4164 = vmatprep.subr.mxu0 0.0
  %4165 = vmatpush1.msra.mxu0 0.0
  %4166 = vmatprep.subr.mxu0 0.0
  %4167 = vmatpush1.msra.mxu0 0.0
  %4168 = vmatprep.subr.mxu0 0.0
  %4169 = vmatpush1.msra.mxu0 0.0
  %4170 = vmatprep.subr.mxu0 0.0
  %4171 = vmatpush1.msra.mxu0 0.0
  %4172 = vmatprep.subr.mxu0 0.0
  %4173 = vmatpush1.msra.mxu0 0.0
  %4174 = vmatprep.subr.mxu0 0.0
  %4175 = vmatpush1.msra.mxu0 0.0
  %4176 = vmatprep.subr.mxu0 0.0
  %4177 = vmatpush1.msra.mxu0 0.0
  %4178 = vmatprep.subr.mxu0 0.0
  %4179 = vmatpush1.msra.mxu0 0.0
  %4180 = vmatprep.subr.mxu0 0.0
  %4181 = vmatpush1.msra.mxu0 0.0
  %4182 = vmatprep.subr.mxu0 0.0
  %4183 = vmatpush1.msra.mxu0 0.0
  %4184 = vmatprep.subr.mxu0 0.0
  %4185 = vmatpush1.msra.mxu0 0.0
  %4186 = vmatprep.subr.mxu0 0.0
  %4187 = vmatpush1.msra.mxu0 0.0
  %4188 = vmatprep.subr.mxu0 0.0
  %4189 = vmatpush1.msra.mxu0 0.0
  %4190 = vmatprep.subr.mxu0 0.0
  %4191 = vmatpush1.msra.mxu0 0.0
  %4192 = vmatprep.subr.mxu0 0.0
  %4193 = vmatpush1.msra.mxu0 0.0
  %4194 = vmatprep.subr.mxu0 0.0
  %4195 = vmatpush1.msra.mxu0 0.0
  %4196 = vmatprep.subr.mxu0 0.0
  %4197 = vmatpush1.msra.mxu0 0.0
  %4198 = vmatprep.subr.mxu0 0.0
  %4199 = vmatpush1.msra.mxu0 0.0
  %4200 = vmatprep.subr.mxu0 0.0
  %4201 = vmatpush1.msra.mxu0 0.0
  %4202 = vmatprep.subr.mxu0 0.0
  %4203 = vmatpush1.msra.mxu0 0.0
  %4204 = vmatprep.mubr.f32.mxu0 0.0
  %4205 = vmatmul.mubr.f32.gmra.mrb[0].mxu0 %v4138
  %v4206 = vpop.f32.mrb[0].mxu0
  %v4207 = vadd.f32 0.0, %v4206
  %v4208 = vpop.f32.mrb[0].mxu0
  %4209 = vdwg.mxu0
  %4210 = vrot.lane.b32.xlu0 %v3951, 64
  %v4211 = vpop.permute.xlu0 %4210
  %v4214 = vsel %vm137, %v4133, 0
  %4216 = vmatprep.subr.mxu0 0.0
  %4217 = vmatpush1.msra.mxu0 %v4211
  %4218 = vmatprep.subr.mxu0 0.0
  %4219 = vmatpush1.msra.mxu0 0.0
  %4220 = vmatprep.subr.mxu0 0.0
  %4221 = vmatpush1.msra.mxu0 0.0
  %4222 = vmatprep.subr.mxu0 0.0
  %4223 = vmatpush1.msra.mxu0 0.0
  %4224 = vmatprep.subr.mxu0 0.0
  %4225 = vmatpush1.msra.mxu0 0.0
  %4226 = vmatprep.subr.mxu0 0.0
  %4227 = vmatpush1.msra.mxu0 0.0
  %4228 = vmatprep.subr.mxu0 0.0
  %4229 = vmatpush1.msra.mxu0 0.0
  %4230 = vmatprep.subr.mxu0 0.0
  %4231 = vmatpush1.msra.mxu0 0.0
  %4232 = vmatprep.subr.mxu0 0.0
  %4233 = vmatpush1.msra.mxu0 0.0
  %4234 = vmatprep.subr.mxu0 0.0
  %4235 = vmatpush1.msra.mxu0 0.0
  %4236 = vmatprep.subr.mxu0 0.0
  %4237 = vmatpush1.msra.mxu0 0.0
  %4238 = vmatprep.subr.mxu0 0.0
  %4239 = vmatpush1.msra.mxu0 0.0
  %4240 = vmatprep.subr.mxu0 0.0
  %4241 = vmatpush1.msra.mxu0 0.0
  %4242 = vmatprep.subr.mxu0 0.0
  %4243 = vmatpush1.msra.mxu0 0.0
  %4244 = vmatprep.subr.mxu0 0.0
  %4245 = vmatpush1.msra.mxu0 0.0
  %4246 = vmatprep.subr.mxu0 0.0
  %4247 = vmatpush1.msra.mxu0 0.0
  %4248 = vmatprep.subr.mxu0 0.0
  %4249 = vmatpush1.msra.mxu0 0.0
  %4250 = vmatprep.subr.mxu0 0.0
  %4251 = vmatpush1.msra.mxu0 0.0
  %4252 = vmatprep.subr.mxu0 0.0
  %4253 = vmatpush1.msra.mxu0 0.0
  %4254 = vmatprep.subr.mxu0 0.0
  %4255 = vmatpush1.msra.mxu0 0.0
  %4256 = vmatprep.subr.mxu0 0.0
  %4257 = vmatpush1.msra.mxu0 0.0
  %4258 = vmatprep.subr.mxu0 0.0
  %4259 = vmatpush1.msra.mxu0 0.0
  %4260 = vmatprep.subr.mxu0 0.0
  %4261 = vmatpush1.msra.mxu0 0.0
  %4262 = vmatprep.subr.mxu0 0.0
  %4263 = vmatpush1.msra.mxu0 0.0
  %4264 = vmatprep.subr.mxu0 0.0
  %4265 = vmatpush1.msra.mxu0 0.0
  %4266 = vmatprep.subr.mxu0 0.0
  %4267 = vmatpush1.msra.mxu0 0.0
  %4268 = vmatprep.subr.mxu0 0.0
  %4269 = vmatpush1.msra.mxu0 0.0
  %4270 = vmatprep.subr.mxu0 0.0
  %4271 = vmatpush1.msra.mxu0 0.0
  %4272 = vmatprep.subr.mxu0 0.0
  %4273 = vmatpush1.msra.mxu0 0.0
  %4274 = vmatprep.subr.mxu0 0.0
  %4275 = vmatpush1.msra.mxu0 0.0
  %4276 = vmatprep.subr.mxu0 0.0
  %4277 = vmatpush1.msra.mxu0 0.0
  %4278 = vmatprep.subr.mxu0 0.0
  %4279 = vmatpush1.msra.mxu0 0.0
  %4280 = vmatprep.mubr.f32.mxu0 0.0
  %4281 = vmatmul.mubr.f32.gmra.mrb[0].mxu0 %v4214
  %v4282 = vpop.f32.mrb[0].mxu0
  %v4283 = vadd.f32 0.0, %v4282
  %v4284 = vpop.f32.mrb[0].mxu0
  %4285 = vdwg.mxu0
  %4286 = vrot.lane.b32.xlu0 %v3948, 120
  %v4287 = vpop.permute.xlu0 %4286
  %4288 = vrot.lane.b32.xlu0 %v3948, 88
  %v4289 = vpop.permute.xlu0 %4288
  %v4290 = vsel %vm137, %v4287, 0
  %v4292 = vsel %vm137, %v4289, 0
  %4294 = vmatprep.subr.mxu0 0.0
  %4295 = vmatpush1.xpose.msra.mxu0 %v4292
  %4296 = vmatprep.subr.mxu0 0.0
  %4297 = vmatpush1.xpose.msra.mxu0 0.0
  %4298 = vmatprep.subr.mxu0 0.0
  %4299 = vmatpush1.xpose.msra.mxu0 0.0
  %4300 = vmatprep.subr.mxu0 0.0
  %4301 = vmatpush1.xpose.msra.mxu0 0.0
  %4302 = vmatprep.subr.mxu0 0.0
  %4303 = vmatpush1.xpose.msra.mxu0 0.0
  %4304 = vmatprep.subr.mxu0 0.0
  %4305 = vmatpush1.xpose.msra.mxu0 0.0
  %4306 = vmatprep.subr.mxu0 0.0
  %4307 = vmatpush1.xpose.msra.mxu0 0.0
  %4308 = vmatprep.subr.mxu0 0.0
  %4309 = vmatpush1.xpose.msra.mxu0 0.0
  %4310 = vmatprep.subr.mxu0 0.0
  %4311 = vmatpush1.xpose.msra.mxu0 0.0
  %4312 = vmatprep.subr.mxu0 0.0
  %4313 = vmatpush1.xpose.msra.mxu0 0.0
  %4314 = vmatprep.subr.mxu0 0.0
  %4315 = vmatpush1.xpose.msra.mxu0 0.0
  %4316 = vmatprep.subr.mxu0 0.0
  %4317 = vmatpush1.xpose.msra.mxu0 0.0
  %4318 = vmatprep.subr.mxu0 0.0
  %4319 = vmatpush1.xpose.msra.mxu0 0.0
  %4320 = vmatprep.subr.mxu0 0.0
  %4321 = vmatpush1.xpose.msra.mxu0 0.0
  %4322 = vmatprep.subr.mxu0 0.0
  %4323 = vmatpush1.xpose.msra.mxu0 0.0
  %4324 = vmatprep.subr.mxu0 0.0
  %4325 = vmatpush1.xpose.msra.mxu0 0.0
  %4326 = vmatprep.subr.mxu0 0.0
  %4327 = vmatpush1.xpose.msra.mxu0 0.0
  %4328 = vmatprep.subr.mxu0 0.0
  %4329 = vmatpush1.xpose.msra.mxu0 0.0
  %4330 = vmatprep.subr.mxu0 0.0
  %4331 = vmatpush1.xpose.msra.mxu0 0.0
  %4332 = vmatprep.subr.mxu0 0.0
  %4333 = vmatpush1.xpose.msra.mxu0 0.0
  %4334 = vmatprep.subr.mxu0 0.0
  %4335 = vmatpush1.xpose.msra.mxu0 0.0
  %4336 = vmatprep.subr.mxu0 0.0
  %4337 = vmatpush1.xpose.msra.mxu0 0.0
  %4338 = vmatprep.subr.mxu0 0.0
  %4339 = vmatpush1.xpose.msra.mxu0 0.0
  %4340 = vmatprep.subr.mxu0 0.0
  %4341 = vmatpush1.xpose.msra.mxu0 0.0
  %4342 = vmatprep.subr.mxu0 0.0
  %4343 = vmatpush1.xpose.msra.mxu0 0.0
  %4344 = vmatprep.subr.mxu0 0.0
  %4345 = vmatpush1.xpose.msra.mxu0 0.0
  %4346 = vmatprep.subr.mxu0 0.0
  %4347 = vmatpush1.xpose.msra.mxu0 0.0
  %4348 = vmatprep.subr.mxu0 0.0
  %4349 = vmatpush1.xpose.msra.mxu0 0.0
  %4350 = vmatprep.subr.mxu0 0.0
  %4351 = vmatpush1.xpose.msra.mxu0 0.0
  %4352 = vmatprep.subr.mxu0 0.0
  %4353 = vmatpush1.xpose.msra.mxu0 0.0
  %4354 = vmatprep.subr.mxu0 0.0
  %4355 = vmatpush1.xpose.msra.mxu0 0.0
  %4356 = vmatprep.subr.mxu0 0.0
  %4357 = vmatpush1.xpose.msra.mxu0 0.0
  %4358 = vmatprep.mubr.f32.mxu0 0.0
  %4359 = vmatmul.mubr.f32.gmra.mrb[0].mxu0 %v4290
  %v4360 = vpop.f32.mrb[0].mxu0
  %v4361 = vadd.f32 0.0, %v4360
  %v4362 = vpop.f32.mrb[0].mxu0
  %4363 = vdwg.mxu0
  %4364 = vrot.lane.b32.xlu0 %v3951, 120
  %v4365 = vpop.permute.xlu0 %4364
  %4366 = vrot.lane.b32.xlu0 %v3951, 88
  %v4367 = vpop.permute.xlu0 %4366
  %v4368 = vsel %vm137, %v4365, 0
  %v4370 = vsel %vm137, %v4367, 0
  %4372 = vmatprep.subr.mxu0 0.0
  %4373 = vmatpush1.xpose.msra.mxu0 %v4370
  %4374 = vmatprep.subr.mxu0 0.0
  %4375 = vmatpush1.xpose.msra.mxu0 0.0
  %4376 = vmatprep.subr.mxu0 0.0
  %4377 = vmatpush1.xpose.msra.mxu0 0.0
  %4378 = vmatprep.subr.mxu0 0.0
  %4379 = vmatpush1.xpose.msra.mxu0 0.0
  %4380 = vmatprep.subr.mxu0 0.0
  %4381 = vmatpush1.xpose.msra.mxu0 0.0
  %4382 = vmatprep.subr.mxu0 0.0
  %4383 = vmatpush1.xpose.msra.mxu0 0.0
  %4384 = vmatprep.subr.mxu0 0.0
  %4385 = vmatpush1.xpose.msra.mxu0 0.0
  %4386 = vmatprep.subr.mxu0 0.0
  %4387 = vmatpush1.xpose.msra.mxu0 0.0
  %4388 = vmatprep.subr.mxu0 0.0
  %4389 = vmatpush1.xpose.msra.mxu0 0.0
  %4390 = vmatprep.subr.mxu0 0.0
  %4391 = vmatpush1.xpose.msra.mxu0 0.0
  %4392 = vmatprep.subr.mxu0 0.0
  %4393 = vmatpush1.xpose.msra.mxu0 0.0
  %4394 = vmatprep.subr.mxu0 0.0
  %4395 = vmatpush1.xpose.msra.mxu0 0.0
  %4396 = vmatprep.subr.mxu0 0.0
  %4397 = vmatpush1.xpose.msra.mxu0 0.0
  %4398 = vmatprep.subr.mxu0 0.0
  %4399 = vmatpush1.xpose.msra.mxu0 0.0
  %4400 = vmatprep.subr.mxu0 0.0
  %4401 = vmatpush1.xpose.msra.mxu0 0.0
  %4402 = vmatprep.subr.mxu0 0.0
  %4403 = vmatpush1.xpose.msra.mxu0 0.0
  %4404 = vmatprep.subr.mxu0 0.0
  %4405 = vmatpush1.xpose.msra.mxu0 0.0
  %4406 = vmatprep.subr.mxu0 0.0
  %4407 = vmatpush1.xpose.msra.mxu0 0.0
  %4408 = vmatprep.subr.mxu0 0.0
  %4409 = vmatpush1.xpose.msra.mxu0 0.0
  %4410 = vmatprep.subr.mxu0 0.0
  %4411 = vmatpush1.xpose.msra.mxu0 0.0
  %4412 = vmatprep.subr.mxu0 0.0
  %4413 = vmatpush1.xpose.msra.mxu0 0.0
  %4414 = vmatprep.subr.mxu0 0.0
  %4415 = vmatpush1.xpose.msra.mxu0 0.0
  %4416 = vmatprep.subr.mxu0 0.0
  %4417 = vmatpush1.xpose.msra.mxu0 0.0
  %4418 = vmatprep.subr.mxu0 0.0
  %4419 = vmatpush1.xpose.msra.mxu0 0.0
  %4420 = vmatprep.subr.mxu0 0.0
  %4421 = vmatpush1.xpose.msra.mxu0 0.0
  %4422 = vmatprep.subr.mxu0 0.0
  %4423 = vmatpush1.xpose.msra.mxu0 0.0
  %4424 = vmatprep.subr.mxu0 0.0
  %4425 = vmatpush1.xpose.msra.mxu0 0.0
  %4426 = vmatprep.subr.mxu0 0.0
  %4427 = vmatpush1.xpose.msra.mxu0 0.0
  %4428 = vmatprep.subr.mxu0 0.0
  %4429 = vmatpush1.xpose.msra.mxu0 0.0
  %4430 = vmatprep.subr.mxu0 0.0
  %4431 = vmatpush1.xpose.msra.mxu0 0.0
  %4432 = vmatprep.subr.mxu0 0.0
  %4433 = vmatpush1.xpose.msra.mxu0 0.0
  %4434 = vmatprep.subr.mxu0 0.0
  %4435 = vmatpush1.xpose.msra.mxu0 0.0
  %4436 = vmatprep.mubr.f32.mxu0 0.0
  %4437 = vmatmul.mubr.f32.gmra.mrb[0].mxu0 %v4368
  %v4438 = vpop.f32.mrb[0].mxu0
  %v4439 = vadd.f32 0.0, %v4438
  %v4440 = vpop.f32.mrb[0].mxu0
  %4441 = vdwg.mxu0
  %v4442 = vmul.f32 %v4361, 0.35355338
  %v4443 = vmul.f32 %v4439, 0.35355338
  %v4444 = vadd.f32 %v4442, %v66
  %v4445 = vadd.f32 %v4443, %v66
  %v4446 = vsel %vm137, %v4444, -inf
  %4447 = vmax.xlane.f32.xlu0 %v4446
  %v4448 = vpop.xlane.xlu0 %4447
  %v4449 = vsel %vm137, %v4445, -inf
  %4450 = vmax.xlane.f32.xlu0 %v4449
  %v4451 = vpop.xlane.xlu0 %4450
  %v4452 = vsub.f32 %v4444, %v4448
  %v4453 = vsub.f32 %v4445, %v4451
  %v4454 = vmul.f32 %v4452, 1.442695
  %v4455 = vpow.pop %v4454
  %v4456 = vmul.f32 %v4453, 1.442695
  %v4457 = vpow.pop %v4456
  %v4458 = vsel %vm137, %v4455, 0.0
  %4459 = vadd.xlane.f32.xlu0 %v4458
  %v4460 = vpop.xlane.xlu0 %4459
  %v4461 = vsel %vm137, %v4457, 0.0
  %4462 = vadd.xlane.f32.xlu0 %v4461
  %v4463 = vpop.xlane.xlu0 %4462
  %v4464 = vrcp.pop %v4460
  %v4465 = vrcp.pop %v4463
  %v4466 = vmul.f32 %v4455, %v4464
  %v4467 = vmul.f32 %v4457, %v4465
  %4468 = vrot.lane.b32.xlu0 %v3948, 56
  %v4469 = vpop.permute.xlu0 %4468
  %v4472 = vsel %vm137, %v4466, 0
  %4474 = vmatprep.subr.mxu0 0.0
  %4475 = vmatpush1.msra.mxu0 %v4469
  %4476 = vmatprep.subr.mxu0 0.0
  %4477 = vmatpush1.msra.mxu0 0.0
  %4478 = vmatprep.subr.mxu0 0.0
  %4479 = vmatpush1.msra.mxu0 0.0
  %4480 = vmatprep.subr.mxu0 0.0
  %4481 = vmatpush1.msra.mxu0 0.0
  %4482 = vmatprep.subr.mxu0 0.0
  %4483 = vmatpush1.msra.mxu0 0.0
  %4484 = vmatprep.subr.mxu0 0.0
  %4485 = vmatpush1.msra.mxu0 0.0
  %4486 = vmatprep.subr.mxu0 0.0
  %4487 = vmatpush1.msra.mxu0 0.0
  %4488 = vmatprep.subr.mxu0 0.0
  %4489 = vmatpush1.msra.mxu0 0.0
  %4490 = vmatprep.subr.mxu0 0.0
  %4491 = vmatpush1.msra.mxu0 0.0
  %4492 = vmatprep.subr.mxu0 0.0
  %4493 = vmatpush1.msra.mxu0 0.0
  %4494 = vmatprep.subr.mxu0 0.0
  %4495 = vmatpush1.msra.mxu0 0.0
  %4496 = vmatprep.subr.mxu0 0.0
  %4497 = vmatpush1.msra.mxu0 0.0
  %4498 = vmatprep.subr.mxu0 0.0
  %4499 = vmatpush1.msra.mxu0 0.0
  %4500 = vmatprep.subr.mxu0 0.0
  %4501 = vmatpush1.msra.mxu0 0.0
  %4502 = vmatprep.subr.mxu0 0.0
  %4503 = vmatpush1.msra.mxu0 0.0
  %4504 = vmatprep.subr.mxu0 0.0
  %4505 = vmatpush1.msra.mxu0 0.0
  %4506 = vmatprep.subr.mxu0 0.0
  %4507 = vmatpush1.msra.mxu0 0.0
  %4508 = vmatprep.subr.mxu0 0.0
  %4509 = vmatpush1.msra.mxu0 0.0
  %4510 = vmatprep.subr.mxu0 0.0
  %4511 = vmatpush1.msra.mxu0 0.0
  %4512 = vmatprep.subr.mxu0 0.0
  %4513 = vmatpush1.msra.mxu0 0.0
  %4514 = vmatprep.subr.mxu0 0.0
  %4515 = vmatpush1.msra.mxu0 0.0
  %4516 = vmatprep.subr.mxu0 0.0
  %4517 = vmatpush1.msra.mxu0 0.0
  %4518 = vmatprep.subr.mxu0 0.0
  %4519 = vmatpush1.msra.mxu0 0.0
  %4520 = vmatprep.subr.mxu0 0.0
  %4521 = vmatpush1.msra.mxu0 0.0
  %4522 = vmatprep.subr.mxu0 0.0
  %4523 = vmatpush1.msra.mxu0 0.0
  %4524 = vmatprep.subr.mxu0 0.0
  %4525 = vmatpush1.msra.mxu0 0.0
  %4526 = vmatprep.subr.mxu0 0.0
  %4527 = vmatpush1.msra.mxu0 0.0
  %4528 = vmatprep.subr.mxu0 0.0
  %4529 = vmatpush1.msra.mxu0 0.0
  %4530 = vmatprep.subr.mxu0 0.0
  %4531 = vmatpush1.msra.mxu0 0.0
  %4532 = vmatprep.subr.mxu0 0.0
  %4533 = vmatpush1.msra.mxu0 0.0
  %4534 = vmatprep.subr.mxu0 0.0
  %4535 = vmatpush1.msra.mxu0 0.0
  %4536 = vmatprep.subr.mxu0 0.0
  %4537 = vmatpush1.msra.mxu0 0.0
  %4538 = vmatprep.mubr.f32.mxu0 0.0
  %4539 = vmatmul.mubr.f32.gmra.mrb[0].mxu0 %v4472
  %v4540 = vpop.f32.mrb[0].mxu0
  %v4541 = vadd.f32 0.0, %v4540
  %v4542 = vpop.f32.mrb[0].mxu0
  %4543 = vdwg.mxu0
  %4544 = vrot.lane.b32.xlu0 %v3951, 56
  %v4545 = vpop.permute.xlu0 %4544
  %v4548 = vsel %vm137, %v4467, 0
  %4550 = vmatprep.subr.mxu0 0.0
  %4551 = vmatpush1.msra.mxu0 %v4545
  %4552 = vmatprep.subr.mxu0 0.0
  %4553 = vmatpush1.msra.mxu0 0.0
  %4554 = vmatprep.subr.mxu0 0.0
  %4555 = vmatpush1.msra.mxu0 0.0
  %4556 = vmatprep.subr.mxu0 0.0
  %4557 = vmatpush1.msra.mxu0 0.0
  %4558 = vmatprep.subr.mxu0 0.0
  %4559 = vmatpush1.msra.mxu0 0.0
  %4560 = vmatprep.subr.mxu0 0.0
  %4561 = vmatpush1.msra.mxu0 0.0
  %4562 = vmatprep.subr.mxu0 0.0
  %4563 = vmatpush1.msra.mxu0 0.0
  %4564 = vmatprep.subr.mxu0 0.0
  %4565 = vmatpush1.msra.mxu0 0.0
  %4566 = vmatprep.subr.mxu0 0.0
  %4567 = vmatpush1.msra.mxu0 0.0
  %4568 = vmatprep.subr.mxu0 0.0
  %4569 = vmatpush1.msra.mxu0 0.0
  %4570 = vmatprep.subr.mxu0 0.0
  %4571 = vmatpush1.msra.mxu0 0.0
  %4572 = vmatprep.subr.mxu0 0.0
  %4573 = vmatpush1.msra.mxu0 0.0
  %4574 = vmatprep.subr.mxu0 0.0
  %4575 = vmatpush1.msra.mxu0 0.0
  %4576 = vmatprep.subr.mxu0 0.0
  %4577 = vmatpush1.msra.mxu0 0.0
  %4578 = vmatprep.subr.mxu0 0.0
  %4579 = vmatpush1.msra.mxu0 0.0
  %4580 = vmatprep.subr.mxu0 0.0
  %4581 = vmatpush1.msra.mxu0 0.0
  %4582 = vmatprep.subr.mxu0 0.0
  %4583 = vmatpush1.msra.mxu0 0.0
  %4584 = vmatprep.subr.mxu0 0.0
  %4585 = vmatpush1.msra.mxu0 0.0
  %4586 = vmatprep.subr.mxu0 0.0
  %4587 = vmatpush1.msra.mxu0 0.0
  %4588 = vmatprep.subr.mxu0 0.0
  %4589 = vmatpush1.msra.mxu0 0.0
  %4590 = vmatprep.subr.mxu0 0.0
  %4591 = vmatpush1.msra.mxu0 0.0
  %4592 = vmatprep.subr.mxu0 0.0
  %4593 = vmatpush1.msra.mxu0 0.0
  %4594 = vmatprep.subr.mxu0 0.0
  %4595 = vmatpush1.msra.mxu0 0.0
  %4596 = vmatprep.subr.mxu0 0.0
  %4597 = vmatpush1.msra.mxu0 0.0
  %4598 = vmatprep.subr.mxu0 0.0
  %4599 = vmatpush1.msra.mxu0 0.0
  %4600 = vmatprep.subr.mxu0 0.0
  %4601 = vmatpush1.msra.mxu0 0.0
  %4602 = vmatprep.subr.mxu0 0.0
  %4603 = vmatpush1.msra.mxu0 0.0
  %4604 = vmatprep.subr.mxu0 0.0
  %4605 = vmatpush1.msra.mxu0 0.0
  %4606 = vmatprep.subr.mxu0 0.0
  %4607 = vmatpush1.msra.mxu0 0.0
  %4608 = vmatprep.subr.mxu0 0.0
  %4609 = vmatpush1.msra.mxu0 0.0
  %4610 = vmatprep.subr.mxu0 0.0
  %4611 = vmatpush1.msra.mxu0 0.0
  %4612 = vmatprep.subr.mxu0 0.0
  %4613 = vmatpush1.msra.mxu0 0.0
  %4614 = vmatprep.mubr.f32.mxu0 0.0
  %4615 = vmatmul.mubr.f32.gmra.mrb[0].mxu0 %v4548
  %v4616 = vpop.f32.mrb[0].mxu0
  %v4617 = vadd.f32 0.0, %v4616
  %v4618 = vpop.f32.mrb[0].mxu0
  %4619 = vdwg.mxu0
  %4620 = vrot.lane.b32.xlu0 %v3948, 112
  %v4621 = vpop.permute.xlu0 %4620
  %4622 = vrot.lane.b32.xlu0 %v3948, 80
  %v4623 = vpop.permute.xlu0 %4622
  %v4624 = vsel %vm137, %v4621, 0
  %v4626 = vsel %vm137, %v4623, 0
  %4628 = vmatprep.subr.mxu0 0.0
  %4629 = vmatpush1.xpose.msra.mxu0 %v4626
  %4630 = vmatprep.subr.mxu0 0.0
  %4631 = vmatpush1.xpose.msra.mxu0 0.0
  %4632 = vmatprep.subr.mxu0 0.0
  %4633 = vmatpush1.xpose.msra.mxu0 0.0
  %4634 = vmatprep.subr.mxu0 0.0
  %4635 = vmatpush1.xpose.msra.mxu0 0.0
  %4636 = vmatprep.subr.mxu0 0.0
  %4637 = vmatpush1.xpose.msra.mxu0 0.0
  %4638 = vmatprep.subr.mxu0 0.0
  %4639 = vmatpush1.xpose.msra.mxu0 0.0
  %4640 = vmatprep.subr.mxu0 0.0
  %4641 = vmatpush1.xpose.msra.mxu0 0.0
  %4642 = vmatprep.subr.mxu0 0.0
  %4643 = vmatpush1.xpose.msra.mxu0 0.0
  %4644 = vmatprep.subr.mxu0 0.0
  %4645 = vmatpush1.xpose.msra.mxu0 0.0
  %4646 = vmatprep.subr.mxu0 0.0
  %4647 = vmatpush1.xpose.msra.mxu0 0.0
  %4648 = vmatprep.subr.mxu0 0.0
  %4649 = vmatpush1.xpose.msra.mxu0 0.0
  %4650 = vmatprep.subr.mxu0 0.0
  %4651 = vmatpush1.xpose.msra.mxu0 0.0
  %4652 = vmatprep.subr.mxu0 0.0
  %4653 = vmatpush1.xpose.msra.mxu0 0.0
  %4654 = vmatprep.subr.mxu0 0.0
  %4655 = vmatpush1.xpose.msra.mxu0 0.0
  %4656 = vmatprep.subr.mxu0 0.0
  %4657 = vmatpush1.xpose.msra.mxu0 0.0
  %4658 = vmatprep.subr.mxu0 0.0
  %4659 = vmatpush1.xpose.msra.mxu0 0.0
  %4660 = vmatprep.subr.mxu0 0.0
  %4661 = vmatpush1.xpose.msra.mxu0 0.0
  %4662 = vmatprep.subr.mxu0 0.0
  %4663 = vmatpush1.xpose.msra.mxu0 0.0
  %4664 = vmatprep.subr.mxu0 0.0
  %4665 = vmatpush1.xpose.msra.mxu0 0.0
  %4666 = vmatprep.subr.mxu0 0.0
  %4667 = vmatpush1.xpose.msra.mxu0 0.0
  %4668 = vmatprep.subr.mxu0 0.0
  %4669 = vmatpush1.xpose.msra.mxu0 0.0
  %4670 = vmatprep.subr.mxu0 0.0
  %4671 = vmatpush1.xpose.msra.mxu0 0.0
  %4672 = vmatprep.subr.mxu0 0.0
  %4673 = vmatpush1.xpose.msra.mxu0 0.0
  %4674 = vmatprep.subr.mxu0 0.0
  %4675 = vmatpush1.xpose.msra.mxu0 0.0
  %4676 = vmatprep.subr.mxu0 0.0
  %4677 = vmatpush1.xpose.msra.mxu0 0.0
  %4678 = vmatprep.subr.mxu0 0.0
  %4679 = vmatpush1.xpose.msra.mxu0 0.0
  %4680 = vmatprep.subr.mxu0 0.0
  %4681 = vmatpush1.xpose.msra.mxu0 0.0
  %4682 = vmatprep.subr.mxu0 0.0
  %4683 = vmatpush1.xpose.msra.mxu0 0.0
  %4684 = vmatprep.subr.mxu0 0.0
  %4685 = vmatpush1.xpose.msra.mxu0 0.0
  %4686 = vmatprep.subr.mxu0 0.0
  %4687 = vmatpush1.xpose.msra.mxu0 0.0
  %4688 = vmatprep.subr.mxu0 0.0
  %4689 = vmatpush1.xpose.msra.mxu0 0.0
  %4690 = vmatprep.subr.mxu0 0.0
  %4691 = vmatpush1.xpose.msra.mxu0 0.0
  %4692 = vmatprep.mubr.f32.mxu0 0.0
  %4693 = vmatmul.mubr.f32.gmra.mrb[0].mxu0 %v4624
  %v4694 = vpop.f32.mrb[0].mxu0
  %v4695 = vadd.f32 0.0, %v4694
  %v4696 = vpop.f32.mrb[0].mxu0
  %4697 = vdwg.mxu0
  %4698 = vrot.lane.b32.xlu0 %v3951, 112
  %v4699 = vpop.permute.xlu0 %4698
  %4700 = vrot.lane.b32.xlu0 %v3951, 80
  %v4701 = vpop.permute.xlu0 %4700
  %v4702 = vsel %vm137, %v4699, 0
  %v4704 = vsel %vm137, %v4701, 0
  %4706 = vmatprep.subr.mxu0 0.0
  %4707 = vmatpush1.xpose.msra.mxu0 %v4704
  %4708 = vmatprep.subr.mxu0 0.0
  %4709 = vmatpush1.xpose.msra.mxu0 0.0
  %4710 = vmatprep.subr.mxu0 0.0
  %4711 = vmatpush1.xpose.msra.mxu0 0.0
  %4712 = vmatprep.subr.mxu0 0.0
  %4713 = vmatpush1.xpose.msra.mxu0 0.0
  %4714 = vmatprep.subr.mxu0 0.0
  %4715 = vmatpush1.xpose.msra.mxu0 0.0
  %4716 = vmatprep.subr.mxu0 0.0
  %4717 = vmatpush1.xpose.msra.mxu0 0.0
  %4718 = vmatprep.subr.mxu0 0.0
  %4719 = vmatpush1.xpose.msra.mxu0 0.0
  %4720 = vmatprep.subr.mxu0 0.0
  %4721 = vmatpush1.xpose.msra.mxu0 0.0
  %4722 = vmatprep.subr.mxu0 0.0
  %4723 = vmatpush1.xpose.msra.mxu0 0.0
  %4724 = vmatprep.subr.mxu0 0.0
  %4725 = vmatpush1.xpose.msra.mxu0 0.0
  %4726 = vmatprep.subr.mxu0 0.0
  %4727 = vmatpush1.xpose.msra.mxu0 0.0
  %4728 = vmatprep.subr.mxu0 0.0
  %4729 = vmatpush1.xpose.msra.mxu0 0.0
  %4730 = vmatprep.subr.mxu0 0.0
  %4731 = vmatpush1.xpose.msra.mxu0 0.0
  %4732 = vmatprep.subr.mxu0 0.0
  %4733 = vmatpush1.xpose.msra.mxu0 0.0
  %4734 = vmatprep.subr.mxu0 0.0
  %4735 = vmatpush1.xpose.msra.mxu0 0.0
  %4736 = vmatprep.subr.mxu0 0.0
  %4737 = vmatpush1.xpose.msra.mxu0 0.0
  %4738 = vmatprep.subr.mxu0 0.0
  %4739 = vmatpush1.xpose.msra.mxu0 0.0
  %4740 = vmatprep.subr.mxu0 0.0
  %4741 = vmatpush1.xpose.msra.mxu0 0.0
  %4742 = vmatprep.subr.mxu0 0.0
  %4743 = vmatpush1.xpose.msra.mxu0 0.0
  %4744 = vmatprep.subr.mxu0 0.0
  %4745 = vmatpush1.xpose.msra.mxu0 0.0
  %4746 = vmatprep.subr.mxu0 0.0
  %4747 = vmatpush1.xpose.msra.mxu0 0.0
  %4748 = vmatprep.subr.mxu0 0.0
  %4749 = vmatpush1.xpose.msra.mxu0 0.0
  %4750 = vmatprep.subr.mxu0 0.0
  %4751 = vmatpush1.xpose.msra.mxu0 0.0
  %4752 = vmatprep.subr.mxu0 0.0
  %4753 = vmatpush1.xpose.msra.mxu0 0.0
  %4754 = vmatprep.subr.mxu0 0.0
  %4755 = vmatpush1.xpose.msra.mxu0 0.0
  %4756 = vmatprep.subr.mxu0 0.0
  %4757 = vmatpush1.xpose.msra.mxu0 0.0
  %4758 = vmatprep.subr.mxu0 0.0
  %4759 = vmatpush1.xpose.msra.mxu0 0.0
  %4760 = vmatprep.subr.mxu0 0.0
  %4761 = vmatpush1.xpose.msra.mxu0 0.0
  %4762 = vmatprep.subr.mxu0 0.0
  %4763 = vmatpush1.xpose.msra.mxu0 0.0
  %4764 = vmatprep.subr.mxu0 0.0
  %4765 = vmatpush1.xpose.msra.mxu0 0.0
  %4766 = vmatprep.subr.mxu0 0.0
  %4767 = vmatpush1.xpose.msra.mxu0 0.0
  %4768 = vmatprep.subr.mxu0 0.0
  %4769 = vmatpush1.xpose.msra.mxu0 0.0
  %4770 = vmatprep.mubr.f32.mxu0 0.0
  %4771 = vmatmul.mubr.f32.gmra.mrb[0].mxu0 %v4702
  %v4772 = vpop.f32.mrb[0].mxu0
  %v4773 = vadd.f32 0.0, %v4772
  %v4774 = vpop.f32.mrb[0].mxu0
  %4775 = vdwg.mxu0
  %v4776 = vmul.f32 %v4695, 0.35355338
  %v4777 = vmul.f32 %v4773, 0.35355338
  %v4778 = vadd.f32 %v4776, %v66
  %v4779 = vadd.f32 %v4777, %v66
  %v4780 = vsel %vm137, %v4778, -inf
  %4781 = vmax.xlane.f32.xlu0 %v4780
  %v4782 = vpop.xlane.xlu0 %4781
  %v4783 = vsel %vm137, %v4779, -inf
  %4784 = vmax.xlane.f32.xlu0 %v4783
  %v4785 = vpop.xlane.xlu0 %4784
  %v4786 = vsub.f32 %v4778, %v4782
  %v4787 = vsub.f32 %v4779, %v4785
  %v4788 = vmul.f32 %v4786, 1.442695
  %v4789 = vpow.pop %v4788
  %v4790 = vmul.f32 %v4787, 1.442695
  %v4791 = vpow.pop %v4790
  %v4792 = vsel %vm137, %v4789, 0.0
  %4793 = vadd.xlane.f32.xlu0 %v4792
  %v4794 = vpop.xlane.xlu0 %4793
  %v4795 = vsel %vm137, %v4791, 0.0
  %4796 = vadd.xlane.f32.xlu0 %v4795
  %v4797 = vpop.xlane.xlu0 %4796
  %v4798 = vrcp.pop %v4794
  %v4799 = vrcp.pop %v4797
  %v4800 = vmul.f32 %v4789, %v4798
  %v4801 = vmul.f32 %v4791, %v4799
  %4802 = vrot.lane.b32.xlu0 %v3948, 48
  %v4803 = vpop.permute.xlu0 %4802
  %v4806 = vsel %vm137, %v4800, 0
  %4808 = vmatprep.subr.mxu0 0.0
  %4809 = vmatpush1.msra.mxu0 %v4803
  %4810 = vmatprep.subr.mxu0 0.0
  %4811 = vmatpush1.msra.mxu0 0.0
  %4812 = vmatprep.subr.mxu0 0.0
  %4813 = vmatpush1.msra.mxu0 0.0
  %4814 = vmatprep.subr.mxu0 0.0
  %4815 = vmatpush1.msra.mxu0 0.0
  %4816 = vmatprep.subr.mxu0 0.0
  %4817 = vmatpush1.msra.mxu0 0.0
  %4818 = vmatprep.subr.mxu0 0.0
  %4819 = vmatpush1.msra.mxu0 0.0
  %4820 = vmatprep.subr.mxu0 0.0
  %4821 = vmatpush1.msra.mxu0 0.0
  %4822 = vmatprep.subr.mxu0 0.0
  %4823 = vmatpush1.msra.mxu0 0.0
  %4824 = vmatprep.subr.mxu0 0.0
  %4825 = vmatpush1.msra.mxu0 0.0
  %4826 = vmatprep.subr.mxu0 0.0
  %4827 = vmatpush1.msra.mxu0 0.0
  %4828 = vmatprep.subr.mxu0 0.0
  %4829 = vmatpush1.msra.mxu0 0.0
  %4830 = vmatprep.subr.mxu0 0.0
  %4831 = vmatpush1.msra.mxu0 0.0
  %4832 = vmatprep.subr.mxu0 0.0
  %4833 = vmatpush1.msra.mxu0 0.0
  %4834 = vmatprep.subr.mxu0 0.0
  %4835 = vmatpush1.msra.mxu0 0.0
  %4836 = vmatprep.subr.mxu0 0.0
  %4837 = vmatpush1.msra.mxu0 0.0
  %4838 = vmatprep.subr.mxu0 0.0
  %4839 = vmatpush1.msra.mxu0 0.0
  %4840 = vmatprep.subr.mxu0 0.0
  %4841 = vmatpush1.msra.mxu0 0.0
  %4842 = vmatprep.subr.mxu0 0.0
  %4843 = vmatpush1.msra.mxu0 0.0
  %4844 = vmatprep.subr.mxu0 0.0
  %4845 = vmatpush1.msra.mxu0 0.0
  %4846 = vmatprep.subr.mxu0 0.0
  %4847 = vmatpush1.msra.mxu0 0.0
  %4848 = vmatprep.subr.mxu0 0.0
  %4849 = vmatpush1.msra.mxu0 0.0
  %4850 = vmatprep.subr.mxu0 0.0
  %4851 = vmatpush1.msra.mxu0 0.0
  %4852 = vmatprep.subr.mxu0 0.0
  %4853 = vmatpush1.msra.mxu0 0.0
  %4854 = vmatprep.subr.mxu0 0.0
  %4855 = vmatpush1.msra.mxu0 0.0
  %4856 = vmatprep.subr.mxu0 0.0
  %4857 = vmatpush1.msra.mxu0 0.0
  %4858 = vmatprep.subr.mxu0 0.0
  %4859 = vmatpush1.msra.mxu0 0.0
  %4860 = vmatprep.subr.mxu0 0.0
  %4861 = vmatpush1.msra.mxu0 0.0
  %4862 = vmatprep.subr.mxu0 0.0
  %4863 = vmatpush1.msra.mxu0 0.0
  %4864 = vmatprep.subr.mxu0 0.0
  %4865 = vmatpush1.msra.mxu0 0.0
  %4866 = vmatprep.subr.mxu0 0.0
  %4867 = vmatpush1.msra.mxu0 0.0
  %4868 = vmatprep.subr.mxu0 0.0
  %4869 = vmatpush1.msra.mxu0 0.0
  %4870 = vmatprep.subr.mxu0 0.0
  %4871 = vmatpush1.msra.mxu0 0.0
  %4872 = vmatprep.mubr.f32.mxu0 0.0
  %4873 = vmatmul.mubr.f32.gmra.mrb[0].mxu0 %v4806
  %v4874 = vpop.f32.mrb[0].mxu0
  %v4875 = vadd.f32 0.0, %v4874
  %v4876 = vpop.f32.mrb[0].mxu0
  %4877 = vdwg.mxu0
  %4878 = vrot.lane.b32.xlu0 %v3951, 48
  %v4879 = vpop.permute.xlu0 %4878
  %v4882 = vsel %vm137, %v4801, 0
  %4884 = vmatprep.subr.mxu0 0.0
  %4885 = vmatpush1.msra.mxu0 %v4879
  %4886 = vmatprep.subr.mxu0 0.0
  %4887 = vmatpush1.msra.mxu0 0.0
  %4888 = vmatprep.subr.mxu0 0.0
  %4889 = vmatpush1.msra.mxu0 0.0
  %4890 = vmatprep.subr.mxu0 0.0
  %4891 = vmatpush1.msra.mxu0 0.0
  %4892 = vmatprep.subr.mxu0 0.0
  %4893 = vmatpush1.msra.mxu0 0.0
  %4894 = vmatprep.subr.mxu0 0.0
  %4895 = vmatpush1.msra.mxu0 0.0
  %4896 = vmatprep.subr.mxu0 0.0
  %4897 = vmatpush1.msra.mxu0 0.0
  %4898 = vmatprep.subr.mxu0 0.0
  %4899 = vmatpush1.msra.mxu0 0.0
  %4900 = vmatprep.subr.mxu0 0.0
  %4901 = vmatpush1.msra.mxu0 0.0
  %4902 = vmatprep.subr.mxu0 0.0
  %4903 = vmatpush1.msra.mxu0 0.0
  %4904 = vmatprep.subr.mxu0 0.0
  %4905 = vmatpush1.msra.mxu0 0.0
  %4906 = vmatprep.subr.mxu0 0.0
  %4907 = vmatpush1.msra.mxu0 0.0
  %4908 = vmatprep.subr.mxu0 0.0
  %4909 = vmatpush1.msra.mxu0 0.0
  %4910 = vmatprep.subr.mxu0 0.0
  %4911 = vmatpush1.msra.mxu0 0.0
  %4912 = vmatprep.subr.mxu0 0.0
  %4913 = vmatpush1.msra.mxu0 0.0
  %4914 = vmatprep.subr.mxu0 0.0
  %4915 = vmatpush1.msra.mxu0 0.0
  %4916 = vmatprep.subr.mxu0 0.0
  %4917 = vmatpush1.msra.mxu0 0.0
  %4918 = vmatprep.subr.mxu0 0.0
  %4919 = vmatpush1.msra.mxu0 0.0
  %4920 = vmatprep.subr.mxu0 0.0
  %4921 = vmatpush1.msra.mxu0 0.0
  %4922 = vmatprep.subr.mxu0 0.0
  %4923 = vmatpush1.msra.mxu0 0.0
  %4924 = vmatprep.subr.mxu0 0.0
  %4925 = vmatpush1.msra.mxu0 0.0
  %4926 = vmatprep.subr.mxu0 0.0
  %4927 = vmatpush1.msra.mxu0 0.0
  %4928 = vmatprep.subr.mxu0 0.0
  %4929 = vmatpush1.msra.mxu0 0.0
  %4930 = vmatprep.subr.mxu0 0.0
  %4931 = vmatpush1.msra.mxu0 0.0
  %4932 = vmatprep.subr.mxu0 0.0
  %4933 = vmatpush1.msra.mxu0 0.0
  %4934 = vmatprep.subr.mxu0 0.0
  %4935 = vmatpush1.msra.mxu0 0.0
  %4936 = vmatprep.subr.mxu0 0.0
  %4937 = vmatpush1.msra.mxu0 0.0
  %4938 = vmatprep.subr.mxu0 0.0
  %4939 = vmatpush1.msra.mxu0 0.0
  %4940 = vmatprep.subr.mxu0 0.0
  %4941 = vmatpush1.msra.mxu0 0.0
  %4942 = vmatprep.subr.mxu0 0.0
  %4943 = vmatpush1.msra.mxu0 0.0
  %4944 = vmatprep.subr.mxu0 0.0
  %4945 = vmatpush1.msra.mxu0 0.0
  %4946 = vmatprep.subr.mxu0 0.0
  %4947 = vmatpush1.msra.mxu0 0.0
  %4948 = vmatprep.mubr.f32.mxu0 0.0
  %4949 = vmatmul.mubr.f32.gmra.mrb[0].mxu0 %v4882
  %v4950 = vpop.f32.mrb[0].mxu0
  %v4951 = vadd.f32 0.0, %v4950
  %v4952 = vpop.f32.mrb[0].mxu0
  %4953 = vdwg.mxu0
  %4954 = vrot.lane.b32.xlu0 %v3948, 104
  %v4955 = vpop.permute.xlu0 %4954
  %4956 = vrot.lane.b32.xlu0 %v3948, 72
  %v4957 = vpop.permute.xlu0 %4956
  %v4958 = vsel %vm137, %v4955, 0
  %v4960 = vsel %vm137, %v4957, 0
  %4962 = vmatprep.subr.mxu0 0.0
  %4963 = vmatpush1.xpose.msra.mxu0 %v4960
  %4964 = vmatprep.subr.mxu0 0.0
  %4965 = vmatpush1.xpose.msra.mxu0 0.0
  %4966 = vmatprep.subr.mxu0 0.0
  %4967 = vmatpush1.xpose.msra.mxu0 0.0
  %4968 = vmatprep.subr.mxu0 0.0
  %4969 = vmatpush1.xpose.msra.mxu0 0.0
  %4970 = vmatprep.subr.mxu0 0.0
  %4971 = vmatpush1.xpose.msra.mxu0 0.0
  %4972 = vmatprep.subr.mxu0 0.0
  %4973 = vmatpush1.xpose.msra.mxu0 0.0
  %4974 = vmatprep.subr.mxu0 0.0
  %4975 = vmatpush1.xpose.msra.mxu0 0.0
  %4976 = vmatprep.subr.mxu0 0.0
  %4977 = vmatpush1.xpose.msra.mxu0 0.0
  %4978 = vmatprep.subr.mxu0 0.0
  %4979 = vmatpush1.xpose.msra.mxu0 0.0
  %4980 = vmatprep.subr.mxu0 0.0
  %4981 = vmatpush1.xpose.msra.mxu0 0.0
  %4982 = vmatprep.subr.mxu0 0.0
  %4983 = vmatpush1.xpose.msra.mxu0 0.0
  %4984 = vmatprep.subr.mxu0 0.0
  %4985 = vmatpush1.xpose.msra.mxu0 0.0
  %4986 = vmatprep.subr.mxu0 0.0
  %4987 = vmatpush1.xpose.msra.mxu0 0.0
  %4988 = vmatprep.subr.mxu0 0.0
  %4989 = vmatpush1.xpose.msra.mxu0 0.0
  %4990 = vmatprep.subr.mxu0 0.0
  %4991 = vmatpush1.xpose.msra.mxu0 0.0
  %4992 = vmatprep.subr.mxu0 0.0
  %4993 = vmatpush1.xpose.msra.mxu0 0.0
  %4994 = vmatprep.subr.mxu0 0.0
  %4995 = vmatpush1.xpose.msra.mxu0 0.0
  %4996 = vmatprep.subr.mxu0 0.0
  %4997 = vmatpush1.xpose.msra.mxu0 0.0
  %4998 = vmatprep.subr.mxu0 0.0
  %4999 = vmatpush1.xpose.msra.mxu0 0.0
  %5000 = vmatprep.subr.mxu0 0.0
  %5001 = vmatpush1.xpose.msra.mxu0 0.0
  %5002 = vmatprep.subr.mxu0 0.0
  %5003 = vmatpush1.xpose.msra.mxu0 0.0
  %5004 = vmatprep.subr.mxu0 0.0
  %5005 = vmatpush1.xpose.msra.mxu0 0.0
  %5006 = vmatprep.subr.mxu0 0.0
  %5007 = vmatpush1.xpose.msra.mxu0 0.0
  %5008 = vmatprep.subr.mxu0 0.0
  %5009 = vmatpush1.xpose.msra.mxu0 0.0
  %5010 = vmatprep.subr.mxu0 0.0
  %5011 = vmatpush1.xpose.msra.mxu0 0.0
  %5012 = vmatprep.subr.mxu0 0.0
  %5013 = vmatpush1.xpose.msra.mxu0 0.0
  %5014 = vmatprep.subr.mxu0 0.0
  %5015 = vmatpush1.xpose.msra.mxu0 0.0
  %5016 = vmatprep.subr.mxu0 0.0
  %5017 = vmatpush1.xpose.msra.mxu0 0.0
  %5018 = vmatprep.subr.mxu0 0.0
  %5019 = vmatpush1.xpose.msra.mxu0 0.0
  %5020 = vmatprep.subr.mxu0 0.0
  %5021 = vmatpush1.xpose.msra.mxu0 0.0
  %5022 = vmatprep.subr.mxu0 0.0
  %5023 = vmatpush1.xpose.msra.mxu0 0.0
  %5024 = vmatprep.subr.mxu0 0.0
  %5025 = vmatpush1.xpose.msra.mxu0 0.0
  %5026 = vmatprep.mubr.f32.mxu0 0.0
  %5027 = vmatmul.mubr.f32.gmra.mrb[0].mxu0 %v4958
  %v5028 = vpop.f32.mrb[0].mxu0
  %v5029 = vadd.f32 0.0, %v5028
  %v5030 = vpop.f32.mrb[0].mxu0
  %5031 = vdwg.mxu0
  %5032 = vrot.lane.b32.xlu0 %v3951, 104
  %v5033 = vpop.permute.xlu0 %5032
  %5034 = vrot.lane.b32.xlu0 %v3951, 72
  %v5035 = vpop.permute.xlu0 %5034
  %v5036 = vsel %vm137, %v5033, 0
  %v5038 = vsel %vm137, %v5035, 0
  %5040 = vmatprep.subr.mxu0 0.0
  %5041 = vmatpush1.xpose.msra.mxu0 %v5038
  %5042 = vmatprep.subr.mxu0 0.0
  %5043 = vmatpush1.xpose.msra.mxu0 0.0
  %5044 = vmatprep.subr.mxu0 0.0
  %5045 = vmatpush1.xpose.msra.mxu0 0.0
  %5046 = vmatprep.subr.mxu0 0.0
  %5047 = vmatpush1.xpose.msra.mxu0 0.0
  %5048 = vmatprep.subr.mxu0 0.0
  %5049 = vmatpush1.xpose.msra.mxu0 0.0
  %5050 = vmatprep.subr.mxu0 0.0
  %5051 = vmatpush1.xpose.msra.mxu0 0.0
  %5052 = vmatprep.subr.mxu0 0.0
  %5053 = vmatpush1.xpose.msra.mxu0 0.0
  %5054 = vmatprep.subr.mxu0 0.0
  %5055 = vmatpush1.xpose.msra.mxu0 0.0
  %5056 = vmatprep.subr.mxu0 0.0
  %5057 = vmatpush1.xpose.msra.mxu0 0.0
  %5058 = vmatprep.subr.mxu0 0.0
  %5059 = vmatpush1.xpose.msra.mxu0 0.0
  %5060 = vmatprep.subr.mxu0 0.0
  %5061 = vmatpush1.xpose.msra.mxu0 0.0
  %5062 = vmatprep.subr.mxu0 0.0
  %5063 = vmatpush1.xpose.msra.mxu0 0.0
  %5064 = vmatprep.subr.mxu0 0.0
  %5065 = vmatpush1.xpose.msra.mxu0 0.0
  %5066 = vmatprep.subr.mxu0 0.0
  %5067 = vmatpush1.xpose.msra.mxu0 0.0
  %5068 = vmatprep.subr.mxu0 0.0
  %5069 = vmatpush1.xpose.msra.mxu0 0.0
  %5070 = vmatprep.subr.mxu0 0.0
  %5071 = vmatpush1.xpose.msra.mxu0 0.0
  %5072 = vmatprep.subr.mxu0 0.0
  %5073 = vmatpush1.xpose.msra.mxu0 0.0
  %5074 = vmatprep.subr.mxu0 0.0
  %5075 = vmatpush1.xpose.msra.mxu0 0.0
  %5076 = vmatprep.subr.mxu0 0.0
  %5077 = vmatpush1.xpose.msra.mxu0 0.0
  %5078 = vmatprep.subr.mxu0 0.0
  %5079 = vmatpush1.xpose.msra.mxu0 0.0
  %5080 = vmatprep.subr.mxu0 0.0
  %5081 = vmatpush1.xpose.msra.mxu0 0.0
  %5082 = vmatprep.subr.mxu0 0.0
  %5083 = vmatpush1.xpose.msra.mxu0 0.0
  %5084 = vmatprep.subr.mxu0 0.0
  %5085 = vmatpush1.xpose.msra.mxu0 0.0
  %5086 = vmatprep.subr.mxu0 0.0
  %5087 = vmatpush1.xpose.msra.mxu0 0.0
  %5088 = vmatprep.subr.mxu0 0.0
  %5089 = vmatpush1.xpose.msra.mxu0 0.0
  %5090 = vmatprep.subr.mxu0 0.0
  %5091 = vmatpush1.xpose.msra.mxu0 0.0
  %5092 = vmatprep.subr.mxu0 0.0
  %5093 = vmatpush1.xpose.msra.mxu0 0.0
  %5094 = vmatprep.subr.mxu0 0.0
  %5095 = vmatpush1.xpose.msra.mxu0 0.0
  %5096 = vmatprep.subr.mxu0 0.0
  %5097 = vmatpush1.xpose.msra.mxu0 0.0
  %5098 = vmatprep.subr.mxu0 0.0
  %5099 = vmatpush1.xpose.msra.mxu0 0.0
  %5100 = vmatprep.subr.mxu0 0.0
  %5101 = vmatpush1.xpose.msra.mxu0 0.0
  %5102 = vmatprep.subr.mxu0 0.0
  %5103 = vmatpush1.xpose.msra.mxu0 0.0
  %5104 = vmatprep.mubr.f32.mxu0 0.0
  %5105 = vmatmul.mubr.f32.gmra.mrb[0].mxu0 %v5036
  %v5106 = vpop.f32.mrb[0].mxu0
  %v5107 = vadd.f32 0.0, %v5106
  %v5108 = vpop.f32.mrb[0].mxu0
  %5109 = vdwg.mxu0
  %v5110 = vmul.f32 %v5029, 0.35355338
  %v5111 = vmul.f32 %v5107, 0.35355338
  %v5112 = vadd.f32 %v5110, %v66
  %v5113 = vadd.f32 %v5111, %v66
  %v5114 = vsel %vm137, %v5112, -inf
  %5115 = vmax.xlane.f32.xlu0 %v5114
  %v5116 = vpop.xlane.xlu0 %5115
  %v5117 = vsel %vm137, %v5113, -inf
  %5118 = vmax.xlane.f32.xlu0 %v5117
  %v5119 = vpop.xlane.xlu0 %5118
  %v5120 = vsub.f32 %v5112, %v5116
  %v5121 = vsub.f32 %v5113, %v5119
  %v5122 = vmul.f32 %v5120, 1.442695
  %v5123 = vpow.pop %v5122
  %v5124 = vmul.f32 %v5121, 1.442695
  %v5125 = vpow.pop %v5124
  %v5126 = vsel %vm137, %v5123, 0.0
  %5127 = vadd.xlane.f32.xlu0 %v5126
  %v5128 = vpop.xlane.xlu0 %5127
  %v5129 = vsel %vm137, %v5125, 0.0
  %5130 = vadd.xlane.f32.xlu0 %v5129
  %v5131 = vpop.xlane.xlu0 %5130
  %v5132 = vrcp.pop %v5128
  %v5133 = vrcp.pop %v5131
  %v5134 = vmul.f32 %v5123, %v5132
  %v5135 = vmul.f32 %v5125, %v5133
  %5136 = vrot.lane.b32.xlu0 %v3948, 40
  %v5137 = vpop.permute.xlu0 %5136
  %v5140 = vsel %vm137, %v5134, 0
  %5142 = vmatprep.subr.mxu0 0.0
  %5143 = vmatpush1.msra.mxu0 %v5137
  %5144 = vmatprep.subr.mxu0 0.0
  %5145 = vmatpush1.msra.mxu0 0.0
  %5146 = vmatprep.subr.mxu0 0.0
  %5147 = vmatpush1.msra.mxu0 0.0
  %5148 = vmatprep.subr.mxu0 0.0
  %5149 = vmatpush1.msra.mxu0 0.0
  %5150 = vmatprep.subr.mxu0 0.0
  %5151 = vmatpush1.msra.mxu0 0.0
  %5152 = vmatprep.subr.mxu0 0.0
  %5153 = vmatpush1.msra.mxu0 0.0
  %5154 = vmatprep.subr.mxu0 0.0
  %5155 = vmatpush1.msra.mxu0 0.0
  %5156 = vmatprep.subr.mxu0 0.0
  %5157 = vmatpush1.msra.mxu0 0.0
  %5158 = vmatprep.subr.mxu0 0.0
  %5159 = vmatpush1.msra.mxu0 0.0
  %5160 = vmatprep.subr.mxu0 0.0
  %5161 = vmatpush1.msra.mxu0 0.0
  %5162 = vmatprep.subr.mxu0 0.0
  %5163 = vmatpush1.msra.mxu0 0.0
  %5164 = vmatprep.subr.mxu0 0.0
  %5165 = vmatpush1.msra.mxu0 0.0
  %5166 = vmatprep.subr.mxu0 0.0
  %5167 = vmatpush1.msra.mxu0 0.0
  %5168 = vmatprep.subr.mxu0 0.0
  %5169 = vmatpush1.msra.mxu0 0.0
  %5170 = vmatprep.subr.mxu0 0.0
  %5171 = vmatpush1.msra.mxu0 0.0
  %5172 = vmatprep.subr.mxu0 0.0
  %5173 = vmatpush1.msra.mxu0 0.0
  %5174 = vmatprep.subr.mxu0 0.0
  %5175 = vmatpush1.msra.mxu0 0.0
  %5176 = vmatprep.subr.mxu0 0.0
  %5177 = vmatpush1.msra.mxu0 0.0
  %5178 = vmatprep.subr.mxu0 0.0
  %5179 = vmatpush1.msra.mxu0 0.0
  %5180 = vmatprep.subr.mxu0 0.0
  %5181 = vmatpush1.msra.mxu0 0.0
  %5182 = vmatprep.subr.mxu0 0.0
  %5183 = vmatpush1.msra.mxu0 0.0
  %5184 = vmatprep.subr.mxu0 0.0
  %5185 = vmatpush1.msra.mxu0 0.0
  %5186 = vmatprep.subr.mxu0 0.0
  %5187 = vmatpush1.msra.mxu0 0.0
  %5188 = vmatprep.subr.mxu0 0.0
  %5189 = vmatpush1.msra.mxu0 0.0
  %5190 = vmatprep.subr.mxu0 0.0
  %5191 = vmatpush1.msra.mxu0 0.0
  %5192 = vmatprep.subr.mxu0 0.0
  %5193 = vmatpush1.msra.mxu0 0.0
  %5194 = vmatprep.subr.mxu0 0.0
  %5195 = vmatpush1.msra.mxu0 0.0
  %5196 = vmatprep.subr.mxu0 0.0
  %5197 = vmatpush1.msra.mxu0 0.0
  %5198 = vmatprep.subr.mxu0 0.0
  %5199 = vmatpush1.msra.mxu0 0.0
  %5200 = vmatprep.subr.mxu0 0.0
  %5201 = vmatpush1.msra.mxu0 0.0
  %5202 = vmatprep.subr.mxu0 0.0
  %5203 = vmatpush1.msra.mxu0 0.0
  %5204 = vmatprep.subr.mxu0 0.0
  %5205 = vmatpush1.msra.mxu0 0.0
  %5206 = vmatprep.mubr.f32.mxu0 0.0
  %5207 = vmatmul.mubr.f32.gmra.mrb[0].mxu0 %v5140
  %v5208 = vpop.f32.mrb[0].mxu0
  %v5209 = vadd.f32 0.0, %v5208
  %v5210 = vpop.f32.mrb[0].mxu0
  %5211 = vdwg.mxu0
  %5212 = vrot.lane.b32.xlu0 %v3951, 40
  %v5213 = vpop.permute.xlu0 %5212
  %v5216 = vsel %vm137, %v5135, 0
  %5218 = vmatprep.subr.mxu0 0.0
  %5219 = vmatpush1.msra.mxu0 %v5213
  %5220 = vmatprep.subr.mxu0 0.0
  %5221 = vmatpush1.msra.mxu0 0.0
  %5222 = vmatprep.subr.mxu0 0.0
  %5223 = vmatpush1.msra.mxu0 0.0
  %5224 = vmatprep.subr.mxu0 0.0
  %5225 = vmatpush1.msra.mxu0 0.0
  %5226 = vmatprep.subr.mxu0 0.0
  %5227 = vmatpush1.msra.mxu0 0.0
  %5228 = vmatprep.subr.mxu0 0.0
  %5229 = vmatpush1.msra.mxu0 0.0
  %5230 = vmatprep.subr.mxu0 0.0
  %5231 = vmatpush1.msra.mxu0 0.0
  %5232 = vmatprep.subr.mxu0 0.0
  %5233 = vmatpush1.msra.mxu0 0.0
  %5234 = vmatprep.subr.mxu0 0.0
  %5235 = vmatpush1.msra.mxu0 0.0
  %5236 = vmatprep.subr.mxu0 0.0
  %5237 = vmatpush1.msra.mxu0 0.0
  %5238 = vmatprep.subr.mxu0 0.0
  %5239 = vmatpush1.msra.mxu0 0.0
  %5240 = vmatprep.subr.mxu0 0.0
  %5241 = vmatpush1.msra.mxu0 0.0
  %5242 = vmatprep.subr.mxu0 0.0
  %5243 = vmatpush1.msra.mxu0 0.0
  %5244 = vmatprep.subr.mxu0 0.0
  %5245 = vmatpush1.msra.mxu0 0.0
  %5246 = vmatprep.subr.mxu0 0.0
  %5247 = vmatpush1.msra.mxu0 0.0
  %5248 = vmatprep.subr.mxu0 0.0
  %5249 = vmatpush1.msra.mxu0 0.0
  %5250 = vmatprep.subr.mxu0 0.0
  %5251 = vmatpush1.msra.mxu0 0.0
  %5252 = vmatprep.subr.mxu0 0.0
  %5253 = vmatpush1.msra.mxu0 0.0
  %5254 = vmatprep.subr.mxu0 0.0
  %5255 = vmatpush1.msra.mxu0 0.0
  %5256 = vmatprep.subr.mxu0 0.0
  %5257 = vmatpush1.msra.mxu0 0.0
  %5258 = vmatprep.subr.mxu0 0.0
  %5259 = vmatpush1.msra.mxu0 0.0
  %5260 = vmatprep.subr.mxu0 0.0
  %5261 = vmatpush1.msra.mxu0 0.0
  %5262 = vmatprep.subr.mxu0 0.0
  %5263 = vmatpush1.msra.mxu0 0.0
  %5264 = vmatprep.subr.mxu0 0.0
  %5265 = vmatpush1.msra.mxu0 0.0
  %5266 = vmatprep.subr.mxu0 0.0
  %5267 = vmatpush1.msra.mxu0 0.0
  %5268 = vmatprep.subr.mxu0 0.0
  %5269 = vmatpush1.msra.mxu0 0.0
  %5270 = vmatprep.subr.mxu0 0.0
  %5271 = vmatpush1.msra.mxu0 0.0
  %5272 = vmatprep.subr.mxu0 0.0
  %5273 = vmatpush1.msra.mxu0 0.0
  %5274 = vmatprep.subr.mxu0 0.0
  %5275 = vmatpush1.msra.mxu0 0.0
  %5276 = vmatprep.subr.mxu0 0.0
  %5277 = vmatpush1.msra.mxu0 0.0
  %5278 = vmatprep.subr.mxu0 0.0
  %5279 = vmatpush1.msra.mxu0 0.0
  %5280 = vmatprep.subr.mxu0 0.0
  %5281 = vmatpush1.msra.mxu0 0.0
  %5282 = vmatprep.mubr.f32.mxu0 0.0
  %5283 = vmatmul.mubr.f32.gmra.mrb[0].mxu0 %v5216
  %v5284 = vpop.f32.mrb[0].mxu0
  %v5285 = vadd.f32 0.0, %v5284
  %v5286 = vpop.f32.mrb[0].mxu0
  %5287 = vdwg.mxu0
  %5290 = vrot.lane.b32.xlu0 %v4541, 8
  %v5291 = vpop.permute.xlu0 %5290
  %5292 = vrot.lane.b32.xlu0 %v4617, 8
  %v5293 = vpop.permute.xlu0 %5292
  %5298 = vrot.lane.b32.xlu0 %v4875, 16
  %v5299 = vpop.permute.xlu0 %5298
  %5300 = vrot.lane.b32.xlu0 %v4951, 16
  %v5301 = vpop.permute.xlu0 %5300
  %5306 = vrot.lane.b32.xlu0 %v5209, 24
  %v5307 = vpop.permute.xlu0 %5306
  %5308 = vrot.lane.b32.xlu0 %v5285, 24
  %v5309 = vpop.permute.xlu0 %5308
  %v5312 = vsel %vm137, %v4207, %v5291
  %v5313 = vsel %vm137, %v4283, %v5293
  %v5314 = vsel %vm1495, %v5312, %v5299
  %v5315 = vsel %vm1495, %v5313, %v5301
  %v5316 = vsel %vm1498, %v5314, %v5307
  %v5317 = vsel %vm1498, %v5315, %v5309
  %s5318 = scalar_lea.vmem %s5, 16
  %v5319 = vld [vmem:[%s5318] sm:$0xf]
  %v5320 = vld [vmem:[%s5318 + $0x4] sm:$0xf]
  %v5321 = vld [vmem:[%s5318 + $0x8] sm:$0xf]
  %v5322 = vld [vmem:[%s5318 + $0xc] sm:$0xf]
  %v5323 = vpack.c.bf16 %v5317, %v5316
  %v5324 = vld [vmem:[%s6 + $0x1] sm:$0x1]
  %v5325 = vlaneseq
  %v5326 = vshrl.u32 %v5325, 7
  %v5327 = vsub.s32 0, %v5326
  %v5328 = vrot.slane %v5324, %v5327
  %v5333 = vunpack.c.l.b16 %v5319
  %v5334 = vunpack.c.l.b16 %v5320
  %v5335 = vunpack.c.l.b16 %v5321
  %v5336 = vunpack.c.l.b16 %v5322
  %v5337 = vpack.c.b16 %v5334, %v5333
  %v5338 = vpack.c.b16 %v5336, %v5335
  %v5342 = vsel %vm89, %v5323, 0
  %5344 = vmatprep.subr.bf16.mxu0 0
  %5345 = vmatpush1.bf16.msra.mxu0 %v5337
  %5346 = vmatprep.subr.bf16.mxu0 0
  %5347 = vmatpush1.bf16.msra.mxu0 %v5338
  %5348 = vmatprep.subr.bf16.mxu0 0
  %5349 = vmatpush1.bf16.msra.mxu0 0
  %5350 = vmatprep.subr.bf16.mxu0 0
  %5351 = vmatpush1.bf16.msra.mxu0 0
  %5352 = vmatprep.subr.bf16.mxu0 0
  %5353 = vmatpush1.bf16.msra.mxu0 0
  %5354 = vmatprep.subr.bf16.mxu0 0
  %5355 = vmatpush1.bf16.msra.mxu0 0
  %5356 = vmatprep.subr.bf16.mxu0 0
  %5357 = vmatpush1.bf16.msra.mxu0 0
  %5358 = vmatprep.subr.bf16.mxu0 0
  %5359 = vmatpush1.bf16.msra.mxu0 0
  %5360 = vmatprep.subr.bf16.mxu0 0
  %5361 = vmatpush1.bf16.msra.mxu0 0
  %5362 = vmatprep.subr.bf16.mxu0 0
  %5363 = vmatpush1.bf16.msra.mxu0 0
  %5364 = vmatprep.subr.bf16.mxu0 0
  %5365 = vmatpush1.bf16.msra.mxu0 0
  %5366 = vmatprep.subr.bf16.mxu0 0
  %5367 = vmatpush1.bf16.msra.mxu0 0
  %5368 = vmatprep.subr.bf16.mxu0 0
  %5369 = vmatpush1.bf16.msra.mxu0 0
  %5370 = vmatprep.subr.bf16.mxu0 0
  %5371 = vmatpush1.bf16.msra.mxu0 0
  %5372 = vmatprep.subr.bf16.mxu0 0
  %5373 = vmatpush1.bf16.msra.mxu0 0
  %5374 = vmatprep.subr.bf16.mxu0 0
  %5375 = vmatpush1.bf16.msra.mxu0 0
  %5376 = vmatprep.mubr.bf16.mxu0 0
  %5377 = vmatmul.mubr.bf16.gmra.mrb[0].mxu0 %v5342
  %v5378 = vpop.f32.mrb[0].mxu0
  %v5379 = vadd.f32 %v5328, %v5378
  %v5380 = vpop.f32.mrb[0].mxu0
  %v5381 = vpop.f32.mrb[0].mxu0
  %v5382 = vadd.f32 %v5328, %v5381
  %v5383 = vpop.f32.mrb[0].mxu0
  %5384 = vdwg.mxu0
  %v5385 = vadd.f32 %v3885, %v5379
  %v5386 = vadd.f32 %v3886, %v5382
  %s5387 = scalar_lea.vmem %s15, 4
  %v5388 = vld [vmem:[%s5387] sm:$0x1]
  %s5389 = scalar_lea.vmem %s16, 4
  %v5390 = vld [vmem:[%s5389] sm:$0x1]
  %v5391 = vsel %vm89, %v5385, 0.0
  %5392 = vadd.xlane.f32.xlu0 %v5391
  %v5393 = vpop.xlane.xlu0 %5392
  %v5394 = vsel %vm89, %v5386, 0.0
  %5395 = vadd.xlane.f32.xlu0 %v5394
  %v5396 = vpop.xlane.xlu0 %5395
  %v5397 = vmul.f32 %v5393, %v1577
  %v5398 = vmul.f32 %v5396, %v1577
  %v5399 = vsub.f32 %v5385, %v5397
  %v5400 = vsub.f32 %v5386, %v5398
  %v5401 = vmul.f32 %v5399, %v5399
  %v5402 = vmul.f32 %v5400, %v5400
  %v5403 = vsel %vm89, %v5401, 0.0
  %5404 = vadd.xlane.f32.xlu0 %v5403
  %v5405 = vpop.xlane.xlu0 %5404
  %v5406 = vsel %vm89, %v5402, 0.0
  %5407 = vadd.xlane.f32.xlu0 %v5406
  %v5408 = vpop.xlane.xlu0 %5407
  %v5409 = vmul.f32 %v5405, %v1577
  %v5410 = vmul.f32 %v5408, %v1577
  %v5411 = vadd.f32 %v5409, 1e-05
  %v5412 = vadd.f32 %v5410, 1e-05
  %v5413 = vrsqrt.pop %v5411
  %v5414 = vrsqrt.pop %v5412
  %v5415 = vmul.f32 %v5399, %v5413
  %v5416 = vmul.f32 %v5400, %v5414
  %v5417 = vlaneseq
  %v5418 = vshrl.u32 %v5417, 7
  %v5419 = vsub.s32 0, %v5418
  %v5420 = vrot.slane %v5388, %v5419
  %v5421 = vmul.f32 %v5415, %v5420
  %v5422 = vmul.f32 %v5416, %v5420
  %v5423 = vlaneseq
  %v5424 = vshrl.u32 %v5423, 7
  %v5425 = vsub.s32 0, %v5424
  %v5426 = vrot.slane %v5390, %v5425
  %v5427 = vadd.f32 %v5421, %v5426
  %v5428 = vadd.f32 %v5422, %v5426
  %s5429 = scalar_lea.vmem %s7, 16
  %v5430 = vld [vmem:[%s5429] sm:$0xf]
  %v5431 = vld [vmem:[%s5429 + $0x4] sm:$0xf]
  %v5432 = vld [vmem:[%s5429 + $0x8] sm:$0xf]
  %v5433 = vld [vmem:[%s5429 + $0xc] sm:$0xf]
  %v5434 = vld [vmem:[%s8 + $0x1] sm:$0x1]
  %v5435 = vlaneseq
  %v5436 = vshrl.u32 %v5435, 7
  %v5437 = vsub.s32 0, %v5436
  %v5438 = vrot.slane %v5434, %v5437
  %v5443 = vunpack.c.l.b16 %v5430
  %v5444 = vunpack.c.l.b16 %v5431
  %v5445 = vunpack.c.l.b16 %v5432
  %v5446 = vunpack.c.l.b16 %v5433
  %v5447 = vpack.c.b16 %v5444, %v5443
  %v5448 = vpack.c.b16 %v5446, %v5445
  %5451 = vmatprep.subr.bf16.mxu0 0
  %5452 = vmatpush1.bf16.msra.mxu0 %v5447
  %5453 = vmatprep.subr.bf16.mxu0 0
  %5454 = vmatpush1.bf16.msra.mxu0 %v5448
  %5455 = vmatprep.subr.bf16.mxu0 0
  %5456 = vmatpush1.bf16.msra.mxu0 0
  %5457 = vmatprep.subr.bf16.mxu0 0
  %5458 = vmatpush1.bf16.msra.mxu0 0
  %5459 = vmatprep.subr.bf16.mxu0 0
  %5460 = vmatpush1.bf16.msra.mxu0 0
  %5461 = vmatprep.subr.bf16.mxu0 0
  %5462 = vmatpush1.bf16.msra.mxu0 0
  %5463 = vmatprep.subr.bf16.mxu0 0
  %5464 = vmatpush1.bf16.msra.mxu0 0
  %5465 = vmatprep.subr.bf16.mxu0 0
  %5466 = vmatpush1.bf16.msra.mxu0 0
  %5467 = vmatprep.subr.bf16.mxu0 0
  %5468 = vmatpush1.bf16.msra.mxu0 0
  %5469 = vmatprep.subr.bf16.mxu0 0
  %5470 = vmatpush1.bf16.msra.mxu0 0
  %5471 = vmatprep.subr.bf16.mxu0 0
  %5472 = vmatpush1.bf16.msra.mxu0 0
  %5473 = vmatprep.subr.bf16.mxu0 0
  %5474 = vmatpush1.bf16.msra.mxu0 0
  %5475 = vmatprep.subr.bf16.mxu0 0
  %5476 = vmatpush1.bf16.msra.mxu0 0
  %5477 = vmatprep.subr.bf16.mxu0 0
  %5478 = vmatpush1.bf16.msra.mxu0 0
  %5479 = vmatprep.subr.bf16.mxu0 0
  %5480 = vmatpush1.bf16.msra.mxu0 0
  %5481 = vmatprep.subr.bf16.mxu0 0
  %5482 = vmatpush1.bf16.msra.mxu0 0
  %5483 = vmatprep.mubr.bf16.mxu0 0
  %5484 = vmatmul.mubr.bf16.gmra.mrb[0].mxu0 %v1633
  %v5485 = vpop.f32.mrb[0].mxu0
  %v5486 = vadd.f32 %v5438, %v5485
  %v5487 = vpop.f32.mrb[0].mxu0
  %v5488 = vpop.f32.mrb[0].mxu0
  %v5489 = vpop.f32.mrb[0].mxu0
  %5490 = vdwg.mxu0
  %s5491 = scalar_lea.vmem %s9, 16
  %v5492 = vld [vmem:[%s5491] sm:$0xf]
  %v5493 = vld [vmem:[%s5491 + $0x4] sm:$0xf]
  %v5494 = vld [vmem:[%s5491 + $0x8] sm:$0xf]
  %v5495 = vld [vmem:[%s5491 + $0xc] sm:$0xf]
  %v5496 = vpack.c.bf16 %v5486, %v5486
  %v5497 = vld [vmem:[%s10 + $0x1] sm:$0x1]
  %v5498 = vlaneseq
  %v5499 = vshrl.u32 %v5498, 7
  %v5500 = vsub.s32 0, %v5499
  %v5501 = vrot.slane %v5497, %v5500
  %v5506 = vunpack.c.l.b16 %v5492
  %v5507 = vunpack.c.l.b16 %v5493
  %v5508 = vunpack.c.l.b16 %v5494
  %v5509 = vunpack.c.l.b16 %v5495
  %v5510 = vpack.c.b16 %v5507, %v5506
  %v5511 = vpack.c.b16 %v5509, %v5508
  %v5515 = vsel %vm89, %v5496, 0
  %5517 = vmatprep.subr.bf16.mxu0 0
  %5518 = vmatpush1.bf16.msra.mxu0 %v5510
  %5519 = vmatprep.subr.bf16.mxu0 0
  %5520 = vmatpush1.bf16.msra.mxu0 %v5511
  %5521 = vmatprep.subr.bf16.mxu0 0
  %5522 = vmatpush1.bf16.msra.mxu0 0
  %5523 = vmatprep.subr.bf16.mxu0 0
  %5524 = vmatpush1.bf16.msra.mxu0 0
  %5525 = vmatprep.subr.bf16.mxu0 0
  %5526 = vmatpush1.bf16.msra.mxu0 0
  %5527 = vmatprep.subr.bf16.mxu0 0
  %5528 = vmatpush1.bf16.msra.mxu0 0
  %5529 = vmatprep.subr.bf16.mxu0 0
  %5530 = vmatpush1.bf16.msra.mxu0 0
  %5531 = vmatprep.subr.bf16.mxu0 0
  %5532 = vmatpush1.bf16.msra.mxu0 0
  %5533 = vmatprep.subr.bf16.mxu0 0
  %5534 = vmatpush1.bf16.msra.mxu0 0
  %5535 = vmatprep.subr.bf16.mxu0 0
  %5536 = vmatpush1.bf16.msra.mxu0 0
  %5537 = vmatprep.subr.bf16.mxu0 0
  %5538 = vmatpush1.bf16.msra.mxu0 0
  %5539 = vmatprep.subr.bf16.mxu0 0
  %5540 = vmatpush1.bf16.msra.mxu0 0
  %5541 = vmatprep.subr.bf16.mxu0 0
  %5542 = vmatpush1.bf16.msra.mxu0 0
  %5543 = vmatprep.subr.bf16.mxu0 0
  %5544 = vmatpush1.bf16.msra.mxu0 0
  %5545 = vmatprep.subr.bf16.mxu0 0
  %5546 = vmatpush1.bf16.msra.mxu0 0
  %5547 = vmatprep.subr.bf16.mxu0 0
  %5548 = vmatpush1.bf16.msra.mxu0 0
  %5549 = vmatprep.mubr.bf16.mxu0 0
  %5550 = vmatmul.mubr.bf16.gmra.mrb[0].mxu0 %v5515
  %v5551 = vpop.f32.mrb[0].mxu0
  %v5552 = vadd.f32 %v5501, %v5551
  %v5553 = vpop.f32.mrb[0].mxu0
  %v5554 = vpop.f32.mrb[0].mxu0
  %v5555 = vpop.f32.mrb[0].mxu0
  %5556 = vdwg.mxu0
  %v5559 = vunpack.c.l.s4 1966171168
  %v5560 = vunpack.c.0.s8 %v5559
  %v5561 = vlaneseq
  %v5562 = vshrl.u32 %v5561, 7
  %v5563 = vsub.s32 %v5560, %v5562
  %v5564 = vrot.slane %v5552, %v5563
  %v5565 = vcombine.high %v5564, %v5564
  %v5567 = vunpack.c.l.s4 1966171168
  %v5568 = vunpack.c.0.s8 %v5567
  %v5569 = vlaneseq
  %v5570 = vshrl.u32 %v5569, 7
  %v5571 = vsub.s32 %v5568, %v5570
  %v5572 = vrot.slane %v5564, %v5571
  %v5574 = vunpack.c.l.s4 1966171168
  %v5575 = vunpack.c.0.s8 %v5574
  %v5576 = vlaneseq
  %v5577 = vshrl.u32 %v5576, 7
  %v5578 = vsub.s32 %v5575, %v5577
  %v5579 = vrot.slane %v5565, %v5578
  %v5580 = vlaneseq
  %v5581 = vshrl.u32 %v5580, 7
  %v5582 = vsub.s32 0, %v5581
  %v5583 = vrot.slane %v5572, %v5582
  %v5584 = vlaneseq
  %v5585 = vshrl.u32 %v5584, 7
  %v5586 = vsub.s32 0, %v5585
  %v5587 = vrot.slane %v5579, %v5586
  %v5590 = vadd.f32 %v5427, %v5583
  %v5591 = vadd.f32 %v5428, %v5587
  %v5592 = vld [vmem:[%s5387 + $0x1] sm:$0x1]
  %v5593 = vld [vmem:[%s5389 + $0x1] sm:$0x1]
  %v5594 = vsel %vm89, %v5590, 0.0
  %5595 = vadd.xlane.f32.xlu0 %v5594
  %v5596 = vpop.xlane.xlu0 %5595
  %v5597 = vsel %vm89, %v5591, 0.0
  %5598 = vadd.xlane.f32.xlu0 %v5597
  %v5599 = vpop.xlane.xlu0 %5598
  %v5600 = vmul.f32 %v5596, %v1577
  %v5601 = vmul.f32 %v5599, %v1577
  %v5602 = vsub.f32 %v5590, %v5600
  %v5603 = vsub.f32 %v5591, %v5601
  %v5604 = vmul.f32 %v5602, %v5602
  %v5605 = vmul.f32 %v5603, %v5603
  %v5606 = vsel %vm89, %v5604, 0.0
  %5607 = vadd.xlane.f32.xlu0 %v5606
  %v5608 = vpop.xlane.xlu0 %5607
  %v5609 = vsel %vm89, %v5605, 0.0
  %5610 = vadd.xlane.f32.xlu0 %v5609
  %v5611 = vpop.xlane.xlu0 %5610
  %v5612 = vmul.f32 %v5608, %v1577
  %v5613 = vmul.f32 %v5611, %v1577
  %v5614 = vadd.f32 %v5612, 1e-05
  %v5615 = vadd.f32 %v5613, 1e-05
  %v5616 = vrsqrt.pop %v5614
  %v5617 = vrsqrt.pop %v5615
  %v5618 = vmul.f32 %v5602, %v5616
  %v5619 = vmul.f32 %v5603, %v5617
  %v5620 = vlaneseq
  %v5621 = vshrl.u32 %v5620, 7
  %v5622 = vsub.s32 0, %v5621
  %v5623 = vrot.slane %v5592, %v5622
  %v5624 = vmul.f32 %v5618, %v5623
  %v5625 = vmul.f32 %v5619, %v5623
  %v5626 = vlaneseq
  %v5627 = vshrl.u32 %v5626, 7
  %v5628 = vsub.s32 0, %v5627
  %v5629 = vrot.slane %v5593, %v5628
  %v5630 = vadd.f32 %v5624, %v5629
  %v5631 = vadd.f32 %v5625, %v5629
  %s5632 = scalar_lea.vmem %s11, 256
  %v5633 = vld [vmem:[%s5632] sm:$0xff]
  %v5634 = vld [vmem:[%s5632 + $0x8] sm:$0xff]
  %v5635 = vld [vmem:[%s5632 + $0x10] sm:$0xff]
  %v5636 = vld [vmem:[%s5632 + $0x18] sm:$0xff]
  %v5637 = vld [vmem:[%s5632 + $0x20] sm:$0xff]
  %v5638 = vld [vmem:[%s5632 + $0x28] sm:$0xff]
  %v5639 = vld [vmem:[%s5632 + $0x30] sm:$0xff]
  %v5640 = vld [vmem:[%s5632 + $0x38] sm:$0xff]
  %v5641 = vld [vmem:[%s5632 + $0x40] sm:$0xff]
  %v5642 = vld [vmem:[%s5632 + $0x48] sm:$0xff]
  %v5643 = vld [vmem:[%s5632 + $0x50] sm:$0xff]
  %v5644 = vld [vmem:[%s5632 + $0x58] sm:$0xff]
  %v5645 = vld [vmem:[%s5632 + $0x60] sm:$0xff]
  %v5646 = vld [vmem:[%s5632 + $0x68] sm:$0xff]
  %v5647 = vld [vmem:[%s5632 + $0x70] sm:$0xff]
  %v5648 = vld [vmem:[%s5632 + $0x78] sm:$0xff]
  %v5649 = vld [vmem:[%s5632 + $0x80] sm:$0xff]
  %v5650 = vld [vmem:[%s5632 + $0x88] sm:$0xff]
  %v5651 = vld [vmem:[%s5632 + $0x90] sm:$0xff]
  %v5652 = vld [vmem:[%s5632 + $0x98] sm:$0xff]
  %v5653 = vld [vmem:[%s5632 + $0xa0] sm:$0xff]
  %v5654 = vld [vmem:[%s5632 + $0xa8] sm:$0xff]
  %v5655 = vld [vmem:[%s5632 + $0xb0] sm:$0xff]
  %v5656 = vld [vmem:[%s5632 + $0xb8] sm:$0xff]
  %v5657 = vld [vmem:[%s5632 + $0xc0] sm:$0xff]
  %v5658 = vld [vmem:[%s5632 + $0xc8] sm:$0xff]
  %v5659 = vld [vmem:[%s5632 + $0xd0] sm:$0xff]
  %v5660 = vld [vmem:[%s5632 + $0xd8] sm:$0xff]
  %v5661 = vld [vmem:[%s5632 + $0xe0] sm:$0xff]
  %v5662 = vld [vmem:[%s5632 + $0xe8] sm:$0xff]
  %v5663 = vld [vmem:[%s5632 + $0xf0] sm:$0xff]
  %v5664 = vld [vmem:[%s5632 + $0xf8] sm:$0xff]
  %v5665 = vpack.c.bf16 %v5631, %v5630
  %s5666 = scalar_lea.vmem %s12, 1
  %v5667 = vld [vmem:[%s5666] ss:$2 sm:$0xff]
  %s5668 = scalar_lea.vmem %s12, 17
  %v5669 = vld [vmem:[%s5668] ss:$2 sm:$0xff]
  %v5672 = vlaneseq
  %v5673 = vshrl.u32 %v5672, 7
  %v5674 = vsub.s32 0, %v5673
  %v5675 = vrot.slane %v5667, %v5674
  %v5676 = vlaneseq
  %v5677 = vshrl.u32 %v5676, 7
  %v5678 = vsub.s32 1, %v5677
  %v5679 = vrot.slane %v5667, %v5678
  %v5680 = vlaneseq
  %v5681 = vshrl.u32 %v5680, 7
  %v5682 = vsub.s32 2, %v5681
  %v5683 = vrot.slane %v5667, %v5682
  %v5684 = vlaneseq
  %v5685 = vshrl.u32 %v5684, 7
  %v5686 = vsub.s32 3, %v5685
  %v5687 = vrot.slane %v5667, %v5686
  %v5688 = vlaneseq
  %v5689 = vshrl.u32 %v5688, 7
  %v5690 = vsub.s32 4, %v5689
  %v5691 = vrot.slane %v5667, %v5690
  %v5692 = vlaneseq
  %v5693 = vshrl.u32 %v5692, 7
  %v5694 = vsub.s32 5, %v5693
  %v5695 = vrot.slane %v5667, %v5694
  %v5696 = vlaneseq
  %v5697 = vshrl.u32 %v5696, 7
  %v5698 = vsub.s32 6, %v5697
  %v5699 = vrot.slane %v5667, %v5698
  %v5700 = vlaneseq
  %v5701 = vshrl.u32 %v5700, 7
  %v5702 = vsub.s32 7, %v5701
  %v5703 = vrot.slane %v5667, %v5702
  %v5704 = vlaneseq
  %v5705 = vshrl.u32 %v5704, 7
  %v5706 = vsub.s32 0, %v5705
  %v5707 = vrot.slane %v5669, %v5706
  %v5708 = vlaneseq
  %v5709 = vshrl.u32 %v5708, 7
  %v5710 = vsub.s32 1, %v5709
  %v5711 = vrot.slane %v5669, %v5710
  %v5712 = vlaneseq
  %v5713 = vshrl.u32 %v5712, 7
  %v5714 = vsub.s32 2, %v5713
  %v5715 = vrot.slane %v5669, %v5714
  %v5716 = vlaneseq
  %v5717 = vshrl.u32 %v5716, 7
  %v5718 = vsub.s32 3, %v5717
  %v5719 = vrot.slane %v5669, %v5718
  %v5720 = vlaneseq
  %v5721 = vshrl.u32 %v5720, 7
  %v5722 = vsub.s32 4, %v5721
  %v5723 = vrot.slane %v5669, %v5722
  %v5724 = vlaneseq
  %v5725 = vshrl.u32 %v5724, 7
  %v5726 = vsub.s32 5, %v5725
  %v5727 = vrot.slane %v5669, %v5726
  %v5728 = vlaneseq
  %v5729 = vshrl.u32 %v5728, 7
  %v5730 = vsub.s32 6, %v5729
  %v5731 = vrot.slane %v5669, %v5730
  %v5732 = vlaneseq
  %v5733 = vshrl.u32 %v5732, 7
  %v5734 = vsub.s32 7, %v5733
  %v5735 = vrot.slane %v5669, %v5734
  %v5784 = vunpack.c.l.b16 %v5633
  %v5785 = vunpack.c.h.b16 %v5633
  %v5786 = vunpack.c.l.b16 %v5634
  %v5787 = vunpack.c.h.b16 %v5634
  %v5788 = vunpack.c.l.b16 %v5635
  %v5789 = vunpack.c.h.b16 %v5635
  %v5790 = vunpack.c.l.b16 %v5636
  %v5791 = vunpack.c.h.b16 %v5636
  %v5792 = vunpack.c.l.b16 %v5637
  %v5793 = vunpack.c.h.b16 %v5637
  %v5794 = vunpack.c.l.b16 %v5638
  %v5795 = vunpack.c.h.b16 %v5638
  %v5796 = vunpack.c.l.b16 %v5639
  %v5797 = vunpack.c.h.b16 %v5639
  %v5798 = vunpack.c.l.b16 %v5640
  %v5799 = vunpack.c.h.b16 %v5640
  %v5800 = vunpack.c.l.b16 %v5641
  %v5801 = vunpack.c.h.b16 %v5641
  %v5802 = vunpack.c.l.b16 %v5642
  %v5803 = vunpack.c.h.b16 %v5642
  %v5804 = vunpack.c.l.b16 %v5643
  %v5805 = vunpack.c.h.b16 %v5643
  %v5806 = vunpack.c.l.b16 %v5644
  %v5807 = vunpack.c.h.b16 %v5644
  %v5808 = vunpack.c.l.b16 %v5645
  %v5809 = vunpack.c.h.b16 %v5645
  %v5810 = vunpack.c.l.b16 %v5646
  %v5811 = vunpack.c.h.b16 %v5646
  %v5812 = vunpack.c.l.b16 %v5647
  %v5813 = vunpack.c.h.b16 %v5647
  %v5814 = vunpack.c.l.b16 %v5648
  %v5815 = vunpack.c.h.b16 %v5648
  %v5816 = vunpack.c.l.b16 %v5649
  %v5817 = vunpack.c.h.b16 %v5649
  %v5818 = vunpack.c.l.b16 %v5650
  %v5819 = vunpack.c.h.b16 %v5650
  %v5820 = vunpack.c.l.b16 %v5651
  %v5821 = vunpack.c.h.b16 %v5651
  %v5822 = vunpack.c.l.b16 %v5652
  %v5823 = vunpack.c.h.b16 %v5652
  %v5824 = vunpack.c.l.b16 %v5653
  %v5825 = vunpack.c.h.b16 %v5653
  %v5826 = vunpack.c.l.b16 %v5654
  %v5827 = vunpack.c.h.b16 %v5654
  %v5828 = vunpack.c.l.b16 %v5655
  %v5829 = vunpack.c.h.b16 %v5655
  %v5830 = vunpack.c.l.b16 %v5656
  %v5831 = vunpack.c.h.b16 %v5656
  %v5832 = vunpack.c.l.b16 %v5657
  %v5833 = vunpack.c.h.b16 %v5657
  %v5834 = vunpack.c.l.b16 %v5658
  %v5835 = vunpack.c.h.b16 %v5658
  %v5836 = vunpack.c.l.b16 %v5659
  %v5837 = vunpack.c.h.b16 %v5659
  %v5838 = vunpack.c.l.b16 %v5660
  %v5839 = vunpack.c.h.b16 %v5660
  %v5840 = vunpack.c.l.b16 %v5661
  %v5841 = vunpack.c.h.b16 %v5661
  %v5842 = vunpack.c.l.b16 %v5662
  %v5843 = vunpack.c.h.b16 %v5662
  %v5844 = vunpack.c.l.b16 %v5663
  %v5845 = vunpack.c.h.b16 %v5663
  %v5846 = vunpack.c.l.b16 %v5664
  %v5847 = vunpack.c.h.b16 %v5664
  %v5848 = vpack.c.b16 %v5800, %v5784
  %v5849 = vpack.c.b16 %v5801, %v5785
  %v5850 = vpack.c.b16 %v5802, %v5786
  %v5851 = vpack.c.b16 %v5803, %v5787
  %v5852 = vpack.c.b16 %v5804, %v5788
  %v5853 = vpack.c.b16 %v5805, %v5789
  %v5854 = vpack.c.b16 %v5806, %v5790
  %v5855 = vpack.c.b16 %v5807, %v5791
  %v5856 = vpack.c.b16 %v5808, %v5792
  %v5857 = vpack.c.b16 %v5809, %v5793
  %v5858 = vpack.c.b16 %v5810, %v5794
  %v5859 = vpack.c.b16 %v5811, %v5795
  %v5860 = vpack.c.b16 %v5812, %v5796
  %v5861 = vpack.c.b16 %v5813, %v5797
  %v5862 = vpack.c.b16 %v5814, %v5798
  %v5863 = vpack.c.b16 %v5815, %v5799
  %v5864 = vpack.c.b16 %v5832, %v5816
  %v5865 = vpack.c.b16 %v5833, %v5817
  %v5866 = vpack.c.b16 %v5834, %v5818
  %v5867 = vpack.c.b16 %v5835, %v5819
  %v5868 = vpack.c.b16 %v5836, %v5820
  %v5869 = vpack.c.b16 %v5837, %v5821
  %v5870 = vpack.c.b16 %v5838, %v5822
  %v5871 = vpack.c.b16 %v5839, %v5823
  %v5872 = vpack.c.b16 %v5840, %v5824
  %v5873 = vpack.c.b16 %v5841, %v5825
  %v5874 = vpack.c.b16 %v5842, %v5826
  %v5875 = vpack.c.b16 %v5843, %v5827
  %v5876 = vpack.c.b16 %v5844, %v5828
  %v5877 = vpack.c.b16 %v5845, %v5829
  %v5878 = vpack.c.b16 %v5846, %v5830
  %v5879 = vpack.c.b16 %v5847, %v5831
  %v5913 = vsel %vm89, %v5665, 0
  %5915 = vmatprep.subr.bf16.mxu0 %v5849
  %5916 = vmatpush1.bf16.msra.mxu0 %v5848
  %5917 = vmatprep.subr.bf16.mxu0 %v5865
  %5918 = vmatpush1.bf16.msra.mxu0 %v5864
  %5919 = vmatprep.subr.bf16.mxu0 0
  %5920 = vmatpush1.bf16.msra.mxu0 0
  %5921 = vmatprep.subr.bf16.mxu0 0
  %5922 = vmatpush1.bf16.msra.mxu0 0
  %5923 = vmatprep.subr.bf16.mxu0 0
  %5924 = vmatpush1.bf16.msra.mxu0 0
  %5925 = vmatprep.subr.bf16.mxu0 0
  %5926 = vmatpush1.bf16.msra.mxu0 0
  %5927 = vmatprep.subr.bf16.mxu0 0
  %5928 = vmatpush1.bf16.msra.mxu0 0
  %5929 = vmatprep.subr.bf16.mxu0 0
  %5930 = vmatpush1.bf16.msra.mxu0 0
  %5931 = vmatprep.subr.bf16.mxu0 0
  %5932 = vmatpush1.bf16.msra.mxu0 0
  %5933 = vmatprep.subr.bf16.mxu0 0
  %5934 = vmatpush1.bf16.msra.mxu0 0
  %5935 = vmatprep.subr.bf16.mxu0 0
  %5936 = vmatpush1.bf16.msra.mxu0 0
  %5937 = vmatprep.subr.bf16.mxu0 0
  %5938 = vmatpush1.bf16.msra.mxu0 0
  %5939 = vmatprep.subr.bf16.mxu0 0
  %5940 = vmatpush1.bf16.msra.mxu0 0
  %5941 = vmatprep.subr.bf16.mxu0 0
  %5942 = vmatpush1.bf16.msra.mxu0 0
  %5943 = vmatprep.subr.bf16.mxu0 0
  %5944 = vmatpush1.bf16.msra.mxu0 0
  %5945 = vmatprep.subr.bf16.mxu0 0
  %5946 = vmatpush1.bf16.msra.mxu0 0
  %5947 = vmatprep.mubr.bf16.mxu0 0
  %5948 = vmatmul.mubr.bf16.gmra.mrb[0].mxu0 %v5913
  %v5949 = vpop.f32.mrb[0].mxu0
  %v5950 = vadd.f32 %v5675, %v5949
  %v5951 = vpop.f32.mrb[0].mxu0
  %v5952 = vadd.f32 %v5679, %v5951
  %v5953 = vpop.f32.mrb[0].mxu0
  %v5954 = vadd.f32 %v5675, %v5953
  %v5955 = vpop.f32.mrb[0].mxu0
  %v5956 = vadd.f32 %v5679, %v5955
  %5957 = vdwg.mxu0
  %5958 = vmatprep.subr.bf16.mxu0 %v5851
  %5959 = vmatpush1.bf16.msra.mxu0 %v5850
  %5960 = vmatprep.subr.bf16.mxu0 %v5867
  %5961 = vmatpush1.bf16.msra.mxu0 %v5866
  %5962 = vmatprep.subr.bf16.mxu0 0
  %5963 = vmatpush1.bf16.msra.mxu0 0
  %5964 = vmatprep.subr.bf16.mxu0 0
  %5965 = vmatpush1.bf16.msra.mxu0 0
  %5966 = vmatprep.subr.bf16.mxu0 0
  %5967 = vmatpush1.bf16.msra.mxu0 0
  %5968 = vmatprep.subr.bf16.mxu0 0
  %5969 = vmatpush1.bf16.msra.mxu0 0
  %5970 = vmatprep.subr.bf16.mxu0 0
  %5971 = vmatpush1.bf16.msra.mxu0 0
  %5972 = vmatprep.subr.bf16.mxu0 0
  %5973 = vmatpush1.bf16.msra.mxu0 0
  %5974 = vmatprep.subr.bf16.mxu0 0
  %5975 = vmatpush1.bf16.msra.mxu0 0
  %5976 = vmatprep.subr.bf16.mxu0 0
  %5977 = vmatpush1.bf16.msra.mxu0 0
  %5978 = vmatprep.subr.bf16.mxu0 0
  %5979 = vmatpush1.bf16.msra.mxu0 0
  %5980 = vmatprep.subr.bf16.mxu0 0
  %5981 = vmatpush1.bf16.msra.mxu0 0
  %5982 = vmatprep.subr.bf16.mxu0 0
  %5983 = vmatpush1.bf16.msra.mxu0 0
  %5984 = vmatprep.subr.bf16.mxu0 0
  %5985 = vmatpush1.bf16.msra.mxu0 0
  %5986 = vmatprep.subr.bf16.mxu0 0
  %5987 = vmatpush1.bf16.msra.mxu0 0
  %5988 = vmatprep.subr.bf16.mxu0 0
  %5989 = vmatpush1.bf16.msra.mxu0 0
  %5990 = vmatprep.mubr.bf16.mxu0 0
  %5991 = vmatmul.mubr.bf16.gmra.mrb[0].mxu0 %v5913
  %v5992 = vpop.f32.mrb[0].mxu0
  %v5993 = vadd.f32 %v5683, %v5992
  %v5994 = vpop.f32.mrb[0].mxu0
  %v5995 = vadd.f32 %v5687, %v5994
  %v5996 = vpop.f32.mrb[0].mxu0
  %v5997 = vadd.f32 %v5683, %v5996
  %v5998 = vpop.f32.mrb[0].mxu0
  %v5999 = vadd.f32 %v5687, %v5998
  %6000 = vdwg.mxu0
  %6001 = vmatprep.subr.bf16.mxu0 %v5853
  %6002 = vmatpush1.bf16.msra.mxu0 %v5852
  %6003 = vmatprep.subr.bf16.mxu0 %v5869
  %6004 = vmatpush1.bf16.msra.mxu0 %v5868
  %6005 = vmatprep.subr.bf16.mxu0 0
  %6006 = vmatpush1.bf16.msra.mxu0 0
  %6007 = vmatprep.subr.bf16.mxu0 0
  %6008 = vmatpush1.bf16.msra.mxu0 0
  %6009 = vmatprep.subr.bf16.mxu0 0
  %6010 = vmatpush1.bf16.msra.mxu0 0
  %6011 = vmatprep.subr.bf16.mxu0 0
  %6012 = vmatpush1.bf16.msra.mxu0 0
  %6013 = vmatprep.subr.bf16.mxu0 0
  %6014 = vmatpush1.bf16.msra.mxu0 0
  %6015 = vmatprep.subr.bf16.mxu0 0
  %6016 = vmatpush1.bf16.msra.mxu0 0
  %6017 = vmatprep.subr.bf16.mxu0 0
  %6018 = vmatpush1.bf16.msra.mxu0 0
  %6019 = vmatprep.subr.bf16.mxu0 0
  %6020 = vmatpush1.bf16.msra.mxu0 0
  %6021 = vmatprep.subr.bf16.mxu0 0
  %6022 = vmatpush1.bf16.msra.mxu0 0
  %6023 = vmatprep.subr.bf16.mxu0 0
  %6024 = vmatpush1.bf16.msra.mxu0 0
  %6025 = vmatprep.subr.bf16.mxu0 0
  %6026 = vmatpush1.bf16.msra.mxu0 0
  %6027 = vmatprep.subr.bf16.mxu0 0
  %6028 = vmatpush1.bf16.msra.mxu0 0
  %6029 = vmatprep.subr.bf16.mxu0 0
  %6030 = vmatpush1.bf16.msra.mxu0 0
  %6031 = vmatprep.subr.bf16.mxu0 0
  %6032 = vmatpush1.bf16.msra.mxu0 0
  %6033 = vmatprep.mubr.bf16.mxu0 0
  %6034 = vmatmul.mubr.bf16.gmra.mrb[0].mxu0 %v5913
  %v6035 = vpop.f32.mrb[0].mxu0
  %v6036 = vadd.f32 %v5691, %v6035
  %v6037 = vpop.f32.mrb[0].mxu0
  %v6038 = vadd.f32 %v5695, %v6037
  %v6039 = vpop.f32.mrb[0].mxu0
  %v6040 = vadd.f32 %v5691, %v6039
  %v6041 = vpop.f32.mrb[0].mxu0
  %v6042 = vadd.f32 %v5695, %v6041
  %6043 = vdwg.mxu0
  %6044 = vmatprep.subr.bf16.mxu0 %v5855
  %6045 = vmatpush1.bf16.msra.mxu0 %v5854
  %6046 = vmatprep.subr.bf16.mxu0 %v5871
  %6047 = vmatpush1.bf16.msra.mxu0 %v5870
  %6048 = vmatprep.subr.bf16.mxu0 0
  %6049 = vmatpush1.bf16.msra.mxu0 0
  %6050 = vmatprep.subr.bf16.mxu0 0
  %6051 = vmatpush1.bf16.msra.mxu0 0
  %6052 = vmatprep.subr.bf16.mxu0 0
  %6053 = vmatpush1.bf16.msra.mxu0 0
  %6054 = vmatprep.subr.bf16.mxu0 0
  %6055 = vmatpush1.bf16.msra.mxu0 0
  %6056 = vmatprep.subr.bf16.mxu0 0
  %6057 = vmatpush1.bf16.msra.mxu0 0
  %6058 = vmatprep.subr.bf16.mxu0 0
  %6059 = vmatpush1.bf16.msra.mxu0 0
  %6060 = vmatprep.subr.bf16.mxu0 0
  %6061 = vmatpush1.bf16.msra.mxu0 0
  %6062 = vmatprep.subr.bf16.mxu0 0
  %6063 = vmatpush1.bf16.msra.mxu0 0
  %6064 = vmatprep.subr.bf16.mxu0 0
  %6065 = vmatpush1.bf16.msra.mxu0 0
  %6066 = vmatprep.subr.bf16.mxu0 0
  %6067 = vmatpush1.bf16.msra.mxu0 0
  %6068 = vmatprep.subr.bf16.mxu0 0
  %6069 = vmatpush1.bf16.msra.mxu0 0
  %6070 = vmatprep.subr.bf16.mxu0 0
  %6071 = vmatpush1.bf16.msra.mxu0 0
  %6072 = vmatprep.subr.bf16.mxu0 0
  %6073 = vmatpush1.bf16.msra.mxu0 0
  %6074 = vmatprep.subr.bf16.mxu0 0
  %6075 = vmatpush1.bf16.msra.mxu0 0
  %6076 = vmatprep.mubr.bf16.mxu0 0
  %6077 = vmatmul.mubr.bf16.gmra.mrb[0].mxu0 %v5913
  %v6078 = vpop.f32.mrb[0].mxu0
  %v6079 = vadd.f32 %v5699, %v6078
  %v6080 = vpop.f32.mrb[0].mxu0
  %v6081 = vadd.f32 %v5703, %v6080
  %v6082 = vpop.f32.mrb[0].mxu0
  %v6083 = vadd.f32 %v5699, %v6082
  %v6084 = vpop.f32.mrb[0].mxu0
  %v6085 = vadd.f32 %v5703, %v6084
  %6086 = vdwg.mxu0
  %6087 = vmatprep.subr.bf16.mxu0 %v5857
  %6088 = vmatpush1.bf16.msra.mxu0 %v5856
  %6089 = vmatprep.subr.bf16.mxu0 %v5873
  %6090 = vmatpush1.bf16.msra.mxu0 %v5872
  %6091 = vmatprep.subr.bf16.mxu0 0
  %6092 = vmatpush1.bf16.msra.mxu0 0
  %6093 = vmatprep.subr.bf16.mxu0 0
  %6094 = vmatpush1.bf16.msra.mxu0 0
  %6095 = vmatprep.subr.bf16.mxu0 0
  %6096 = vmatpush1.bf16.msra.mxu0 0
  %6097 = vmatprep.subr.bf16.mxu0 0
  %6098 = vmatpush1.bf16.msra.mxu0 0
  %6099 = vmatprep.subr.bf16.mxu0 0
  %6100 = vmatpush1.bf16.msra.mxu0 0
  %6101 = vmatprep.subr.bf16.mxu0 0
  %6102 = vmatpush1.bf16.msra.mxu0 0
  %6103 = vmatprep.subr.bf16.mxu0 0
  %6104 = vmatpush1.bf16.msra.mxu0 0
  %6105 = vmatprep.subr.bf16.mxu0 0
  %6106 = vmatpush1.bf16.msra.mxu0 0
  %6107 = vmatprep.subr.bf16.mxu0 0
  %6108 = vmatpush1.bf16.msra.mxu0 0
  %6109 = vmatprep.subr.bf16.mxu0 0
  %6110 = vmatpush1.bf16.msra.mxu0 0
  %6111 = vmatprep.subr.bf16.mxu0 0
  %6112 = vmatpush1.bf16.msra.mxu0 0
  %6113 = vmatprep.subr.bf16.mxu0 0
  %6114 = vmatpush1.bf16.msra.mxu0 0
  %6115 = vmatprep.subr.bf16.mxu0 0
  %6116 = vmatpush1.bf16.msra.mxu0 0
  %6117 = vmatprep.subr.bf16.mxu0 0
  %6118 = vmatpush1.bf16.msra.mxu0 0
  %6119 = vmatprep.mubr.bf16.mxu0 0
  %6120 = vmatmul.mubr.bf16.gmra.mrb[0].mxu0 %v5913
  %v6121 = vpop.f32.mrb[0].mxu0
  %v6122 = vadd.f32 %v5707, %v6121
  %v6123 = vpop.f32.mrb[0].mxu0
  %v6124 = vadd.f32 %v5711, %v6123
  %v6125 = vpop.f32.mrb[0].mxu0
  %v6126 = vadd.f32 %v5707, %v6125
  %v6127 = vpop.f32.mrb[0].mxu0
  %v6128 = vadd.f32 %v5711, %v6127
  %6129 = vdwg.mxu0
  %6130 = vmatprep.subr.bf16.mxu0 %v5859
  %6131 = vmatpush1.bf16.msra.mxu0 %v5858
  %6132 = vmatprep.subr.bf16.mxu0 %v5875
  %6133 = vmatpush1.bf16.msra.mxu0 %v5874
  %6134 = vmatprep.subr.bf16.mxu0 0
  %6135 = vmatpush1.bf16.msra.mxu0 0
  %6136 = vmatprep.subr.bf16.mxu0 0
  %6137 = vmatpush1.bf16.msra.mxu0 0
  %6138 = vmatprep.subr.bf16.mxu0 0
  %6139 = vmatpush1.bf16.msra.mxu0 0
  %6140 = vmatprep.subr.bf16.mxu0 0
  %6141 = vmatpush1.bf16.msra.mxu0 0
  %6142 = vmatprep.subr.bf16.mxu0 0
  %6143 = vmatpush1.bf16.msra.mxu0 0
  %6144 = vmatprep.subr.bf16.mxu0 0
  %6145 = vmatpush1.bf16.msra.mxu0 0
  %6146 = vmatprep.subr.bf16.mxu0 0
  %6147 = vmatpush1.bf16.msra.mxu0 0
  %6148 = vmatprep.subr.bf16.mxu0 0
  %6149 = vmatpush1.bf16.msra.mxu0 0
  %6150 = vmatprep.subr.bf16.mxu0 0
  %6151 = vmatpush1.bf16.msra.mxu0 0
  %6152 = vmatprep.subr.bf16.mxu0 0
  %6153 = vmatpush1.bf16.msra.mxu0 0
  %6154 = vmatprep.subr.bf16.mxu0 0
  %6155 = vmatpush1.bf16.msra.mxu0 0
  %6156 = vmatprep.subr.bf16.mxu0 0
  %6157 = vmatpush1.bf16.msra.mxu0 0
  %6158 = vmatprep.subr.bf16.mxu0 0
  %6159 = vmatpush1.bf16.msra.mxu0 0
  %6160 = vmatprep.subr.bf16.mxu0 0
  %6161 = vmatpush1.bf16.msra.mxu0 0
  %6162 = vmatprep.mubr.bf16.mxu0 0
  %6163 = vmatmul.mubr.bf16.gmra.mrb[0].mxu0 %v5913
  %v6164 = vpop.f32.mrb[0].mxu0
  %v6165 = vadd.f32 %v5715, %v6164
  %v6166 = vpop.f32.mrb[0].mxu0
  %v6167 = vadd.f32 %v5719, %v6166
  %v6168 = vpop.f32.mrb[0].mxu0
  %v6169 = vadd.f32 %v5715, %v6168
  %v6170 = vpop.f32.mrb[0].mxu0
  %v6171 = vadd.f32 %v5719, %v6170
  %6172 = vdwg.mxu0
  %6173 = vmatprep.subr.bf16.mxu0 %v5861
  %6174 = vmatpush1.bf16.msra.mxu0 %v5860
  %6175 = vmatprep.subr.bf16.mxu0 %v5877
  %6176 = vmatpush1.bf16.msra.mxu0 %v5876
  %6177 = vmatprep.subr.bf16.mxu0 0
  %6178 = vmatpush1.bf16.msra.mxu0 0
  %6179 = vmatprep.subr.bf16.mxu0 0
  %6180 = vmatpush1.bf16.msra.mxu0 0
  %6181 = vmatprep.subr.bf16.mxu0 0
  %6182 = vmatpush1.bf16.msra.mxu0 0
  %6183 = vmatprep.subr.bf16.mxu0 0
  %6184 = vmatpush1.bf16.msra.mxu0 0
  %6185 = vmatprep.subr.bf16.mxu0 0
  %6186 = vmatpush1.bf16.msra.mxu0 0
  %6187 = vmatprep.subr.bf16.mxu0 0
  %6188 = vmatpush1.bf16.msra.mxu0 0
  %6189 = vmatprep.subr.bf16.mxu0 0
  %6190 = vmatpush1.bf16.msra.mxu0 0
  %6191 = vmatprep.subr.bf16.mxu0 0
  %6192 = vmatpush1.bf16.msra.mxu0 0
  %6193 = vmatprep.subr.bf16.mxu0 0
  %6194 = vmatpush1.bf16.msra.mxu0 0
  %6195 = vmatprep.subr.bf16.mxu0 0
  %6196 = vmatpush1.bf16.msra.mxu0 0
  %6197 = vmatprep.subr.bf16.mxu0 0
  %6198 = vmatpush1.bf16.msra.mxu0 0
  %6199 = vmatprep.subr.bf16.mxu0 0
  %6200 = vmatpush1.bf16.msra.mxu0 0
  %6201 = vmatprep.subr.bf16.mxu0 0
  %6202 = vmatpush1.bf16.msra.mxu0 0
  %6203 = vmatprep.subr.bf16.mxu0 0
  %6204 = vmatpush1.bf16.msra.mxu0 0
  %6205 = vmatprep.mubr.bf16.mxu0 0
  %6206 = vmatmul.mubr.bf16.gmra.mrb[0].mxu0 %v5913
  %v6207 = vpop.f32.mrb[0].mxu0
  %v6208 = vadd.f32 %v5723, %v6207
  %v6209 = vpop.f32.mrb[0].mxu0
  %v6210 = vadd.f32 %v5727, %v6209
  %v6211 = vpop.f32.mrb[0].mxu0
  %v6212 = vadd.f32 %v5723, %v6211
  %v6213 = vpop.f32.mrb[0].mxu0
  %v6214 = vadd.f32 %v5727, %v6213
  %6215 = vdwg.mxu0
  %6216 = vmatprep.subr.bf16.mxu0 %v5863
  %6217 = vmatpush1.bf16.msra.mxu0 %v5862
  %6218 = vmatprep.subr.bf16.mxu0 %v5879
  %6219 = vmatpush1.bf16.msra.mxu0 %v5878
  %6220 = vmatprep.subr.bf16.mxu0 0
  %6221 = vmatpush1.bf16.msra.mxu0 0
  %6222 = vmatprep.subr.bf16.mxu0 0
  %6223 = vmatpush1.bf16.msra.mxu0 0
  %6224 = vmatprep.subr.bf16.mxu0 0
  %6225 = vmatpush1.bf16.msra.mxu0 0
  %6226 = vmatprep.subr.bf16.mxu0 0
  %6227 = vmatpush1.bf16.msra.mxu0 0
  %6228 = vmatprep.subr.bf16.mxu0 0
  %6229 = vmatpush1.bf16.msra.mxu0 0
  %6230 = vmatprep.subr.bf16.mxu0 0
  %6231 = vmatpush1.bf16.msra.mxu0 0
  %6232 = vmatprep.subr.bf16.mxu0 0
  %6233 = vmatpush1.bf16.msra.mxu0 0
  %6234 = vmatprep.subr.bf16.mxu0 0
  %6235 = vmatpush1.bf16.msra.mxu0 0
  %6236 = vmatprep.subr.bf16.mxu0 0
  %6237 = vmatpush1.bf16.msra.mxu0 0
  %6238 = vmatprep.subr.bf16.mxu0 0
  %6239 = vmatpush1.bf16.msra.mxu0 0
  %6240 = vmatprep.subr.bf16.mxu0 0
  %6241 = vmatpush1.bf16.msra.mxu0 0
  %6242 = vmatprep.subr.bf16.mxu0 0
  %6243 = vmatpush1.bf16.msra.mxu0 0
  %6244 = vmatprep.subr.bf16.mxu0 0
  %6245 = vmatpush1.bf16.msra.mxu0 0
  %6246 = vmatprep.subr.bf16.mxu0 0
  %6247 = vmatpush1.bf16.msra.mxu0 0
  %6248 = vmatprep.mubr.bf16.mxu0 0
  %6249 = vmatmul.mubr.bf16.gmra.mrb[0].mxu0 %v5913
  %v6250 = vpop.f32.mrb[0].mxu0
  %v6251 = vadd.f32 %v5731, %v6250
  %v6252 = vpop.f32.mrb[0].mxu0
  %v6253 = vadd.f32 %v5735, %v6252
  %v6254 = vpop.f32.mrb[0].mxu0
  %v6255 = vadd.f32 %v5731, %v6254
  %v6256 = vpop.f32.mrb[0].mxu0
  %v6257 = vadd.f32 %v5735, %v6256
  %6258 = vdwg.mxu0
  %v6259 = vmax.f32 %v5950, 0.0
  %v6260 = vmax.f32 %v5952, 0.0
  %v6261 = vmax.f32 %v5993, 0.0
  %v6262 = vmax.f32 %v5995, 0.0
  %v6263 = vmax.f32 %v6036, 0.0
  %v6264 = vmax.f32 %v6038, 0.0
  %v6265 = vmax.f32 %v6079, 0.0
  %v6266 = vmax.f32 %v6081, 0.0
  %v6267 = vmax.f32 %v6122, 0.0
  %v6268 = vmax.f32 %v6124, 0.0
  %v6269 = vmax.f32 %v6165, 0.0
  %v6270 = vmax.f32 %v6167, 0.0
  %v6271 = vmax.f32 %v6208, 0.0
  %v6272 = vmax.f32 %v6210, 0.0
  %v6273 = vmax.f32 %v6251, 0.0
  %v6274 = vmax.f32 %v6253, 0.0
  %v6275 = vmax.f32 %v5954, 0.0
  %v6276 = vmax.f32 %v5956, 0.0
  %v6277 = vmax.f32 %v5997, 0.0
  %v6278 = vmax.f32 %v5999, 0.0
  %v6279 = vmax.f32 %v6040, 0.0
  %v6280 = vmax.f32 %v6042, 0.0
  %v6281 = vmax.f32 %v6083, 0.0
  %v6282 = vmax.f32 %v6085, 0.0
  %v6283 = vmax.f32 %v6126, 0.0
  %v6284 = vmax.f32 %v6128, 0.0
  %v6285 = vmax.f32 %v6169, 0.0
  %v6286 = vmax.f32 %v6171, 0.0
  %v6287 = vmax.f32 %v6212, 0.0
  %v6288 = vmax.f32 %v6214, 0.0
  %v6289 = vmax.f32 %v6255, 0.0
  %v6290 = vmax.f32 %v6257, 0.0
  %s6291 = scalar_lea.vmem %s13, 1024
  %v6292 = vld [vmem:[%s6291] sm:$0xf]
  %v6293 = vld [vmem:[%s6291 + $0x4] sm:$0xf]
  %v6294 = vld [vmem:[%s6291 + $0x8] sm:$0xf]
  %v6295 = vld [vmem:[%s6291 + $0xc] sm:$0xf]
  %v6296 = vld [vmem:[%s6291 + $0x10] sm:$0xf]
  %v6297 = vld [vmem:[%s6291 + $0x14] sm:$0xf]
  %v6298 = vld [vmem:[%s6291 + $0x18] sm:$0xf]
  %v6299 = vld [vmem:[%s6291 + $0x1c] sm:$0xf]
  %v6300 = vld [vmem:[%s6291 + $0x20] sm:$0xf]
  %v6301 = vld [vmem:[%s6291 + $0x24] sm:$0xf]
  %v6302 = vld [vmem:[%s6291 + $0x28] sm:$0xf]
  %v6303 = vld [vmem:[%s6291 + $0x2c] sm:$0xf]
  %v6304 = vld [vmem:[%s6291 + $0x30] sm:$0xf]
  %v6305 = vld [vmem:[%s6291 + $0x34] sm:$0xf]
  %v6306 = vld [vmem:[%s6291 + $0x38] sm:$0xf]
  %v6307 = vld [vmem:[%s6291 + $0x3c] sm:$0xf]
  %v6308 = vld [vmem:[%s6291 + $0x40] sm:$0xf]
  %v6309 = vld [vmem:[%s6291 + $0x44] sm:$0xf]
  %v6310 = vld [vmem:[%s6291 + $0x48] sm:$0xf]
  %v6311 = vld [vmem:[%s6291 + $0x4c] sm:$0xf]
  %v6312 = vld [vmem:[%s6291 + $0x50] sm:$0xf]
  %v6313 = vld [vmem:[%s6291 + $0x54] sm:$0xf]
  %v6314 = vld [vmem:[%s6291 + $0x58] sm:$0xf]
  %v6315 = vld [vmem:[%s6291 + $0x5c] sm:$0xf]
  %v6316 = vld [vmem:[%s6291 + $0x60] sm:$0xf]
  %v6317 = vld [vmem:[%s6291 + $0x64] sm:$0xf]
  %v6318 = vld [vmem:[%s6291 + $0x68] sm:$0xf]
  %v6319 = vld [vmem:[%s6291 + $0x6c] sm:$0xf]
  %v6320 = vld [vmem:[%s6291 + $0x70] sm:$0xf]
  %v6321 = vld [vmem:[%s6291 + $0x74] sm:$0xf]
  %v6322 = vld [vmem:[%s6291 + $0x78] sm:$0xf]
  %v6323 = vld [vmem:[%s6291 + $0x7c] sm:$0xf]
  %v6324 = vld [vmem:[%s6291 + $0x80] sm:$0xf]
  %v6325 = vld [vmem:[%s6291 + $0x84] sm:$0xf]
  %v6326 = vld [vmem:[%s6291 + $0x88] sm:$0xf]
  %v6327 = vld [vmem:[%s6291 + $0x8c] sm:$0xf]
  %v6328 = vld [vmem:[%s6291 + $0x90] sm:$0xf]
  %v6329 = vld [vmem:[%s6291 + $0x94] sm:$0xf]
  %v6330 = vld [vmem:[%s6291 + $0x98] sm:$0xf]
  %v6331 = vld [vmem:[%s6291 + $0x9c] sm:$0xf]
  %v6332 = vld [vmem:[%s6291 + $0xa0] sm:$0xf]
  %v6333 = vld [vmem:[%s6291 + $0xa4] sm:$0xf]
  %v6334 = vld [vmem:[%s6291 + $0xa8] sm:$0xf]
  %v6335 = vld [vmem:[%s6291 + $0xac] sm:$0xf]
  %v6336 = vld [vmem:[%s6291 + $0xb0] sm:$0xf]
  %v6337 = vld [vmem:[%s6291 + $0xb4] sm:$0xf]
  %v6338 = vld [vmem:[%s6291 + $0xb8] sm:$0xf]
  %v6339 = vld [vmem:[%s6291 + $0xbc] sm:$0xf]
  %v6340 = vld [vmem:[%s6291 + $0xc0] sm:$0xf]
  %v6341 = vld [vmem:[%s6291 + $0xc4] sm:$0xf]
  %v6342 = vld [vmem:[%s6291 + $0xc8] sm:$0xf]
  %v6343 = vld [vmem:[%s6291 + $0xcc] sm:$0xf]
  %v6344 = vld [vmem:[%s6291 + $0xd0] sm:$0xf]
  %v6345 = vld [vmem:[%s6291 + $0xd4] sm:$0xf]
  %v6346 = vld [vmem:[%s6291 + $0xd8] sm:$0xf]
  %v6347 = vld [vmem:[%s6291 + $0xdc] sm:$0xf]
  %v6348 = vld [vmem:[%s6291 + $0xe0] sm:$0xf]
  %v6349 = vld [vmem:[%s6291 + $0xe4] sm:$0xf]
  %v6350 = vld [vmem:[%s6291 + $0xe8] sm:$0xf]
  %v6351 = vld [vmem:[%s6291 + $0xec] sm:$0xf]
  %v6352 = vld [vmem:[%s6291 + $0xf0] sm:$0xf]
  %v6353 = vld [vmem:[%s6291 + $0xf4] sm:$0xf]
  %v6354 = vld [vmem:[%s6291 + $0xf8] sm:$0xf]
  %v6355 = vld [vmem:[%s6291 + $0xfc] sm:$0xf]
  %v6356 = vld [vmem:[%s6291 + $0x100] sm:$0xf]
  %v6357 = vld [vmem:[%s6291 + $0x104] sm:$0xf]
  %v6358 = vld [vmem:[%s6291 + $0x108] sm:$0xf]
  %v6359 = vld [vmem:[%s6291 + $0x10c] sm:$0xf]
  %v6360 = vld [vmem:[%s6291 + $0x110] sm:$0xf]
  %v6361 = vld [vmem:[%s6291 + $0x114] sm:$0xf]
  %v6362 = vld [vmem:[%s6291 + $0x118] sm:$0xf]
  %v6363 = vld [vmem:[%s6291 + $0x11c] sm:$0xf]
  %v6364 = vld [vmem:[%s6291 + $0x120] sm:$0xf]
  %v6365 = vld [vmem:[%s6291 + $0x124] sm:$0xf]
  %v6366 = vld [vmem:[%s6291 + $0x128] sm:$0xf]
  %v6367 = vld [vmem:[%s6291 + $0x12c] sm:$0xf]
  %v6368 = vld [vmem:[%s6291 + $0x130] sm:$0xf]
  %v6369 = vld [vmem:[%s6291 + $0x134] sm:$0xf]
  %v6370 = vld [vmem:[%s6291 + $0x138] sm:$0xf]
  %v6371 = vld [vmem:[%s6291 + $0x13c] sm:$0xf]
  %v6372 = vld [vmem:[%s6291 + $0x140] sm:$0xf]
  %v6373 = vld [vmem:[%s6291 + $0x144] sm:$0xf]
  %v6374 = vld [vmem:[%s6291 + $0x148] sm:$0xf]
  %v6375 = vld [vmem:[%s6291 + $0x14c] sm:$0xf]
  %v6376 = vld [vmem:[%s6291 + $0x150] sm:$0xf]
  %v6377 = vld [vmem:[%s6291 + $0x154] sm:$0xf]
  %v6378 = vld [vmem:[%s6291 + $0x158] sm:$0xf]
  %v6379 = vld [vmem:[%s6291 + $0x15c] sm:$0xf]
  %v6380 = vld [vmem:[%s6291 + $0x160] sm:$0xf]
  %v6381 = vld [vmem:[%s6291 + $0x164] sm:$0xf]
  %v6382 = vld [vmem:[%s6291 + $0x168] sm:$0xf]
  %v6383 = vld [vmem:[%s6291 + $0x16c] sm:$0xf]
  %v6384 = vld [vmem:[%s6291 + $0x170] sm:$0xf]
  %v6385 = vld [vmem:[%s6291 + $0x174] sm:$0xf]
  %v6386 = vld [vmem:[%s6291 + $0x178] sm:$0xf]
  %v6387 = vld [vmem:[%s6291 + $0x17c] sm:$0xf]
  %v6388 = vld [vmem:[%s6291 + $0x180] sm:$0xf]
  %v6389 = vld [vmem:[%s6291 + $0x184] sm:$0xf]
  %v6390 = vld [vmem:[%s6291 + $0x188] sm:$0xf]
  %v6391 = vld [vmem:[%s6291 + $0x18c] sm:$0xf]
  %v6392 = vld [vmem:[%s6291 + $0x190] sm:$0xf]
  %v6393 = vld [vmem:[%s6291 + $0x194] sm:$0xf]
  %v6394 = vld [vmem:[%s6291 + $0x198] sm:$0xf]
  %v6395 = vld [vmem:[%s6291 + $0x19c] sm:$0xf]
  %v6396 = vld [vmem:[%s6291 + $0x1a0] sm:$0xf]
  %v6397 = vld [vmem:[%s6291 + $0x1a4] sm:$0xf]
  %v6398 = vld [vmem:[%s6291 + $0x1a8] sm:$0xf]
  %v6399 = vld [vmem:[%s6291 + $0x1ac] sm:$0xf]
  %v6400 = vld [vmem:[%s6291 + $0x1b0] sm:$0xf]
  %v6401 = vld [vmem:[%s6291 + $0x1b4] sm:$0xf]
  %v6402 = vld [vmem:[%s6291 + $0x1b8] sm:$0xf]
  %v6403 = vld [vmem:[%s6291 + $0x1bc] sm:$0xf]
  %v6404 = vld [vmem:[%s6291 + $0x1c0] sm:$0xf]
  %v6405 = vld [vmem:[%s6291 + $0x1c4] sm:$0xf]
  %v6406 = vld [vmem:[%s6291 + $0x1c8] sm:$0xf]
  %v6407 = vld [vmem:[%s6291 + $0x1cc] sm:$0xf]
  %v6408 = vld [vmem:[%s6291 + $0x1d0] sm:$0xf]
  %v6409 = vld [vmem:[%s6291 + $0x1d4] sm:$0xf]
  %v6410 = vld [vmem:[%s6291 + $0x1d8] sm:$0xf]
  %v6411 = vld [vmem:[%s6291 + $0x1dc] sm:$0xf]
  %v6412 = vld [vmem:[%s6291 + $0x1e0] sm:$0xf]
  %v6413 = vld [vmem:[%s6291 + $0x1e4] sm:$0xf]
  %v6414 = vld [vmem:[%s6291 + $0x1e8] sm:$0xf]
  %v6415 = vld [vmem:[%s6291 + $0x1ec] sm:$0xf]
  %v6416 = vld [vmem:[%s6291 + $0x1f0] sm:$0xf]
  %v6417 = vld [vmem:[%s6291 + $0x1f4] sm:$0xf]
  %v6418 = vld [vmem:[%s6291 + $0x1f8] sm:$0xf]
  %v6419 = vld [vmem:[%s6291 + $0x1fc] sm:$0xf]
  %v6420 = vld [vmem:[%s6291 + $0x200] sm:$0xf]
  %v6421 = vld [vmem:[%s6291 + $0x204] sm:$0xf]
  %v6422 = vld [vmem:[%s6291 + $0x208] sm:$0xf]
  %v6423 = vld [vmem:[%s6291 + $0x20c] sm:$0xf]
  %v6424 = vld [vmem:[%s6291 + $0x210] sm:$0xf]
  %v6425 = vld [vmem:[%s6291 + $0x214] sm:$0xf]
  %v6426 = vld [vmem:[%s6291 + $0x218] sm:$0xf]
  %v6427 = vld [vmem:[%s6291 + $0x21c] sm:$0xf]
  %v6428 = vld [vmem:[%s6291 + $0x220] sm:$0xf]
  %v6429 = vld [vmem:[%s6291 + $0x224] sm:$0xf]
  %v6430 = vld [vmem:[%s6291 + $0x228] sm:$0xf]
  %v6431 = vld [vmem:[%s6291 + $0x22c] sm:$0xf]
  %v6432 = vld [vmem:[%s6291 + $0x230] sm:$0xf]
  %v6433 = vld [vmem:[%s6291 + $0x234] sm:$0xf]
  %v6434 = vld [vmem:[%s6291 + $0x238] sm:$0xf]
  %v6435 = vld [vmem:[%s6291 + $0x23c] sm:$0xf]
  %v6436 = vld [vmem:[%s6291 + $0x240] sm:$0xf]
  %v6437 = vld [vmem:[%s6291 + $0x244] sm:$0xf]
  %v6438 = vld [vmem:[%s6291 + $0x248] sm:$0xf]
  %v6439 = vld [vmem:[%s6291 + $0x24c] sm:$0xf]
  %v6440 = vld [vmem:[%s6291 + $0x250] sm:$0xf]
  %v6441 = vld [vmem:[%s6291 + $0x254] sm:$0xf]
  %v6442 = vld [vmem:[%s6291 + $0x258] sm:$0xf]
  %v6443 = vld [vmem:[%s6291 + $0x25c] sm:$0xf]
  %v6444 = vld [vmem:[%s6291 + $0x260] sm:$0xf]
  %v6445 = vld [vmem:[%s6291 + $0x264] sm:$0xf]
  %v6446 = vld [vmem:[%s6291 + $0x268] sm:$0xf]
  %v6447 = vld [vmem:[%s6291 + $0x26c] sm:$0xf]
  %v6448 = vld [vmem:[%s6291 + $0x270] sm:$0xf]
  %v6449 = vld [vmem:[%s6291 + $0x274] sm:$0xf]
  %v6450 = vld [vmem:[%s6291 + $0x278] sm:$0xf]
  %v6451 = vld [vmem:[%s6291 + $0x27c] sm:$0xf]
  %v6452 = vld [vmem:[%s6291 + $0x280] sm:$0xf]
  %v6453 = vld [vmem:[%s6291 + $0x284] sm:$0xf]
  %v6454 = vld [vmem:[%s6291 + $0x288] sm:$0xf]
  %v6455 = vld [vmem:[%s6291 + $0x28c] sm:$0xf]
  %v6456 = vld [vmem:[%s6291 + $0x290] sm:$0xf]
  %v6457 = vld [vmem:[%s6291 + $0x294] sm:$0xf]
  %v6458 = vld [vmem:[%s6291 + $0x298] sm:$0xf]
  %v6459 = vld [vmem:[%s6291 + $0x29c] sm:$0xf]
  %v6460 = vld [vmem:[%s6291 + $0x2a0] sm:$0xf]
  %v6461 = vld [vmem:[%s6291 + $0x2a4] sm:$0xf]
  %v6462 = vld [vmem:[%s6291 + $0x2a8] sm:$0xf]
  %v6463 = vld [vmem:[%s6291 + $0x2ac] sm:$0xf]
  %v6464 = vld [vmem:[%s6291 + $0x2b0] sm:$0xf]
  %v6465 = vld [vmem:[%s6291 + $0x2b4] sm:$0xf]
  %v6466 = vld [vmem:[%s6291 + $0x2b8] sm:$0xf]
  %v6467 = vld [vmem:[%s6291 + $0x2bc] sm:$0xf]
  %v6468 = vld [vmem:[%s6291 + $0x2c0] sm:$0xf]
  %v6469 = vld [vmem:[%s6291 + $0x2c4] sm:$0xf]
  %v6470 = vld [vmem:[%s6291 + $0x2c8] sm:$0xf]
  %v6471 = vld [vmem:[%s6291 + $0x2cc] sm:$0xf]
  %v6472 = vld [vmem:[%s6291 + $0x2d0] sm:$0xf]
  %v6473 = vld [vmem:[%s6291 + $0x2d4] sm:$0xf]
  %v6474 = vld [vmem:[%s6291 + $0x2d8] sm:$0xf]
  %v6475 = vld [vmem:[%s6291 + $0x2dc] sm:$0xf]
  %v6476 = vld [vmem:[%s6291 + $0x2e0] sm:$0xf]
  %v6477 = vld [vmem:[%s6291 + $0x2e4] sm:$0xf]
  %v6478 = vld [vmem:[%s6291 + $0x2e8] sm:$0xf]
  %v6479 = vld [vmem:[%s6291 + $0x2ec] sm:$0xf]
  %v6480 = vld [vmem:[%s6291 + $0x2f0] sm:$0xf]
  %v6481 = vld [vmem:[%s6291 + $0x2f4] sm:$0xf]
  %v6482 = vld [vmem:[%s6291 + $0x2f8] sm:$0xf]
  %v6483 = vld [vmem:[%s6291 + $0x2fc] sm:$0xf]
  %v6484 = vld [vmem:[%s6291 + $0x300] sm:$0xf]
  %v6485 = vld [vmem:[%s6291 + $0x304] sm:$0xf]
  %v6486 = vld [vmem:[%s6291 + $0x308] sm:$0xf]
  %v6487 = vld [vmem:[%s6291 + $0x30c] sm:$0xf]
  %v6488 = vld [vmem:[%s6291 + $0x310] sm:$0xf]
  %v6489 = vld [vmem:[%s6291 + $0x314] sm:$0xf]
  %v6490 = vld [vmem:[%s6291 + $0x318] sm:$0xf]
  %v6491 = vld [vmem:[%s6291 + $0x31c] sm:$0xf]
  %v6492 = vld [vmem:[%s6291 + $0x320] sm:$0xf]
  %v6493 = vld [vmem:[%s6291 + $0x324] sm:$0xf]
  %v6494 = vld [vmem:[%s6291 + $0x328] sm:$0xf]
  %v6495 = vld [vmem:[%s6291 + $0x32c] sm:$0xf]
  %v6496 = vld [vmem:[%s6291 + $0x330] sm:$0xf]
  %v6497 = vld [vmem:[%s6291 + $0x334] sm:$0xf]
  %v6498 = vld [vmem:[%s6291 + $0x338] sm:$0xf]
  %v6499 = vld [vmem:[%s6291 + $0x33c] sm:$0xf]
  %v6500 = vld [vmem:[%s6291 + $0x340] sm:$0xf]
  %v6501 = vld [vmem:[%s6291 + $0x344] sm:$0xf]
  %v6502 = vld [vmem:[%s6291 + $0x348] sm:$0xf]
  %v6503 = vld [vmem:[%s6291 + $0x34c] sm:$0xf]
  %v6504 = vld [vmem:[%s6291 + $0x350] sm:$0xf]
  %v6505 = vld [vmem:[%s6291 + $0x354] sm:$0xf]
  %v6506 = vld [vmem:[%s6291 + $0x358] sm:$0xf]
  %v6507 = vld [vmem:[%s6291 + $0x35c] sm:$0xf]
  %v6508 = vld [vmem:[%s6291 + $0x360] sm:$0xf]
  %v6509 = vld [vmem:[%s6291 + $0x364] sm:$0xf]
  %v6510 = vld [vmem:[%s6291 + $0x368] sm:$0xf]
  %v6511 = vld [vmem:[%s6291 + $0x36c] sm:$0xf]
  %v6512 = vld [vmem:[%s6291 + $0x370] sm:$0xf]
  %v6513 = vld [vmem:[%s6291 + $0x374] sm:$0xf]
  %v6514 = vld [vmem:[%s6291 + $0x378] sm:$0xf]
  %v6515 = vld [vmem:[%s6291 + $0x37c] sm:$0xf]
  %v6516 = vld [vmem:[%s6291 + $0x380] sm:$0xf]
  %v6517 = vld [vmem:[%s6291 + $0x384] sm:$0xf]
  %v6518 = vld [vmem:[%s6291 + $0x388] sm:$0xf]
  %v6519 = vld [vmem:[%s6291 + $0x38c] sm:$0xf]
  %v6520 = vld [vmem:[%s6291 + $0x390] sm:$0xf]
  %v6521 = vld [vmem:[%s6291 + $0x394] sm:$0xf]
  %v6522 = vld [vmem:[%s6291 + $0x398] sm:$0xf]
  %v6523 = vld [vmem:[%s6291 + $0x39c] sm:$0xf]
  %v6524 = vld [vmem:[%s6291 + $0x3a0] sm:$0xf]
  %v6525 = vld [vmem:[%s6291 + $0x3a4] sm:$0xf]
  %v6526 = vld [vmem:[%s6291 + $0x3a8] sm:$0xf]
  %v6527 = vld [vmem:[%s6291 + $0x3ac] sm:$0xf]
  %v6528 = vld [vmem:[%s6291 + $0x3b0] sm:$0xf]
  %v6529 = vld [vmem:[%s6291 + $0x3b4] sm:$0xf]
  %v6530 = vld [vmem:[%s6291 + $0x3b8] sm:$0xf]
  %v6531 = vld [vmem:[%s6291 + $0x3bc] sm:$0xf]
  %v6532 = vld [vmem:[%s6291 + $0x3c0] sm:$0xf]
  %v6533 = vld [vmem:[%s6291 + $0x3c4] sm:$0xf]
  %v6534 = vld [vmem:[%s6291 + $0x3c8] sm:$0xf]
  %v6535 = vld [vmem:[%s6291 + $0x3cc] sm:$0xf]
  %v6536 = vld [vmem:[%s6291 + $0x3d0] sm:$0xf]
  %v6537 = vld [vmem:[%s6291 + $0x3d4] sm:$0xf]
  %v6538 = vld [vmem:[%s6291 + $0x3d8] sm:$0xf]
  %v6539 = vld [vmem:[%s6291 + $0x3dc] sm:$0xf]
  %v6540 = vld [vmem:[%s6291 + $0x3e0] sm:$0xf]
  %v6541 = vld [vmem:[%s6291 + $0x3e4] sm:$0xf]
  %v6542 = vld [vmem:[%s6291 + $0x3e8] sm:$0xf]
  %v6543 = vld [vmem:[%s6291 + $0x3ec] sm:$0xf]
  %v6544 = vld [vmem:[%s6291 + $0x3f0] sm:$0xf]
  %v6545 = vld [vmem:[%s6291 + $0x3f4] sm:$0xf]
  %v6546 = vld [vmem:[%s6291 + $0x3f8] sm:$0xf]
  %v6547 = vld [vmem:[%s6291 + $0x3fc] sm:$0xf]
  %v6548 = vpack.c.bf16 %v6275, %v6259
  %v6549 = vpack.c.bf16 %v6276, %v6260
  %v6550 = vpack.c.bf16 %v6277, %v6261
  %v6551 = vpack.c.bf16 %v6278, %v6262
  %v6552 = vpack.c.bf16 %v6279, %v6263
  %v6553 = vpack.c.bf16 %v6280, %v6264
  %v6554 = vpack.c.bf16 %v6281, %v6265
  %v6555 = vpack.c.bf16 %v6282, %v6266
  %v6556 = vpack.c.bf16 %v6283, %v6267
  %v6557 = vpack.c.bf16 %v6284, %v6268
  %v6558 = vpack.c.bf16 %v6285, %v6269
  %v6559 = vpack.c.bf16 %v6286, %v6270
  %v6560 = vpack.c.bf16 %v6287, %v6271
  %v6561 = vpack.c.bf16 %v6288, %v6272
  %v6562 = vpack.c.bf16 %v6289, %v6273
  %v6563 = vpack.c.bf16 %v6290, %v6274
  %v6564 = vld [vmem:[%s14 + $0x1] sm:$0x1]
  %v6565 = vlaneseq
  %v6566 = vshrl.u32 %v6565, 7
  %v6567 = vsub.s32 0, %v6566
  %v6568 = vrot.slane %v6564, %v6567
  %v6825 = vunpack.c.l.b16 %v6292
  %v6826 = vunpack.c.l.b16 %v6293
  %v6827 = vunpack.c.l.b16 %v6294
  %v6828 = vunpack.c.l.b16 %v6295
  %v6829 = vunpack.c.l.b16 %v6296
  %v6830 = vunpack.c.l.b16 %v6297
  %v6831 = vunpack.c.l.b16 %v6298
  %v6832 = vunpack.c.l.b16 %v6299
  %v6833 = vunpack.c.l.b16 %v6300
  %v6834 = vunpack.c.l.b16 %v6301
  %v6835 = vunpack.c.l.b16 %v6302
  %v6836 = vunpack.c.l.b16 %v6303
  %v6837 = vunpack.c.l.b16 %v6304
  %v6838 = vunpack.c.l.b16 %v6305
  %v6839 = vunpack.c.l.b16 %v6306
  %v6840 = vunpack.c.l.b16 %v6307
  %v6841 = vunpack.c.l.b16 %v6308
  %v6842 = vunpack.c.l.b16 %v6309
  %v6843 = vunpack.c.l.b16 %v6310
  %v6844 = vunpack.c.l.b16 %v6311
  %v6845 = vunpack.c.l.b16 %v6312
  %v6846 = vunpack.c.l.b16 %v6313
  %v6847 = vunpack.c.l.b16 %v6314
  %v6848 = vunpack.c.l.b16 %v6315
  %v6849 = vunpack.c.l.b16 %v6316
  %v6850 = vunpack.c.l.b16 %v6317
  %v6851 = vunpack.c.l.b16 %v6318
  %v6852 = vunpack.c.l.b16 %v6319
  %v6853 = vunpack.c.l.b16 %v6320
  %v6854 = vunpack.c.l.b16 %v6321
  %v6855 = vunpack.c.l.b16 %v6322
  %v6856 = vunpack.c.l.b16 %v6323
  %v6857 = vunpack.c.l.b16 %v6324
  %v6858 = vunpack.c.l.b16 %v6325
  %v6859 = vunpack.c.l.b16 %v6326
  %v6860 = vunpack.c.l.b16 %v6327
  %v6861 = vunpack.c.l.b16 %v6328
  %v6862 = vunpack.c.l.b16 %v6329
  %v6863 = vunpack.c.l.b16 %v6330
  %v6864 = vunpack.c.l.b16 %v6331
  %v6865 = vunpack.c.l.b16 %v6332
  %v6866 = vunpack.c.l.b16 %v6333
  %v6867 = vunpack.c.l.b16 %v6334
  %v6868 = vunpack.c.l.b16 %v6335
  %v6869 = vunpack.c.l.b16 %v6336
  %v6870 = vunpack.c.l.b16 %v6337
  %v6871 = vunpack.c.l.b16 %v6338
  %v6872 = vunpack.c.l.b16 %v6339
  %v6873 = vunpack.c.l.b16 %v6340
  %v6874 = vunpack.c.l.b16 %v6341
  %v6875 = vunpack.c.l.b16 %v6342
  %v6876 = vunpack.c.l.b16 %v6343
  %v6877 = vunpack.c.l.b16 %v6344
  %v6878 = vunpack.c.l.b16 %v6345
  %v6879 = vunpack.c.l.b16 %v6346
  %v6880 = vunpack.c.l.b16 %v6347
  %v6881 = vunpack.c.l.b16 %v6348
  %v6882 = vunpack.c.l.b16 %v6349
  %v6883 = vunpack.c.l.b16 %v6350
  %v6884 = vunpack.c.l.b16 %v6351
  %v6885 = vunpack.c.l.b16 %v6352
  %v6886 = vunpack.c.l.b16 %v6353
  %v6887 = vunpack.c.l.b16 %v6354
  %v6888 = vunpack.c.l.b16 %v6355
  %v6889 = vunpack.c.l.b16 %v6356
  %v6890 = vunpack.c.l.b16 %v6357
  %v6891 = vunpack.c.l.b16 %v6358
  %v6892 = vunpack.c.l.b16 %v6359
  %v6893 = vunpack.c.l.b16 %v6360
  %v6894 = vunpack.c.l.b16 %v6361
  %v6895 = vunpack.c.l.b16 %v6362
  %v6896 = vunpack.c.l.b16 %v6363
  %v6897 = vunpack.c.l.b16 %v6364
  %v6898 = vunpack.c.l.b16 %v6365
  %v6899 = vunpack.c.l.b16 %v6366
  %v6900 = vunpack.c.l.b16 %v6367
  %v6901 = vunpack.c.l.b16 %v6368
  %v6902 = vunpack.c.l.b16 %v6369
  %v6903 = vunpack.c.l.b16 %v6370
  %v6904 = vunpack.c.l.b16 %v6371
  %v6905 = vunpack.c.l.b16 %v6372
  %v6906 = vunpack.c.l.b16 %v6373
  %v6907 = vunpack.c.l.b16 %v6374
  %v6908 = vunpack.c.l.b16 %v6375
  %v6909 = vunpack.c.l.b16 %v6376
  %v6910 = vunpack.c.l.b16 %v6377
  %v6911 = vunpack.c.l.b16 %v6378
  %v6912 = vunpack.c.l.b16 %v6379
  %v6913 = vunpack.c.l.b16 %v6380
  %v6914 = vunpack.c.l.b16 %v6381
  %v6915 = vunpack.c.l.b16 %v6382
  %v6916 = vunpack.c.l.b16 %v6383
  %v6917 = vunpack.c.l.b16 %v6384
  %v6918 = vunpack.c.l.b16 %v6385
  %v6919 = vunpack.c.l.b16 %v6386
  %v6920 = vunpack.c.l.b16 %v6387
  %v6921 = vunpack.c.l.b16 %v6388
  %v6922 = vunpack.c.l.b16 %v6389
  %v6923 = vunpack.c.l.b16 %v6390
  %v6924 = vunpack.c.l.b16 %v6391
  %v6925 = vunpack.c.l.b16 %v6392
  %v6926 = vunpack.c.l.b16 %v6393
  %v6927 = vunpack.c.l.b16 %v6394
  %v6928 = vunpack.c.l.b16 %v6395
  %v6929 = vunpack.c.l.b16 %v6396
  %v6930 = vunpack.c.l.b16 %v6397
  %v6931 = vunpack.c.l.b16 %v6398
  %v6932 = vunpack.c.l.b16 %v6399
  %v6933 = vunpack.c.l.b16 %v6400
  %v6934 = vunpack.c.l.b16 %v6401
  %v6935 = vunpack.c.l.b16 %v6402
  %v6936 = vunpack.c.l.b16 %v6403
  %v6937 = vunpack.c.l.b16 %v6404
  %v6938 = vunpack.c.l.b16 %v6405
  %v6939 = vunpack.c.l.b16 %v6406
  %v6940 = vunpack.c.l.b16 %v6407
  %v6941 = vunpack.c.l.b16 %v6408
  %v6942 = vunpack.c.l.b16 %v6409
  %v6943 = vunpack.c.l.b16 %v6410
  %v6944 = vunpack.c.l.b16 %v6411
  %v6945 = vunpack.c.l.b16 %v6412
  %v6946 = vunpack.c.l.b16 %v6413
  %v6947 = vunpack.c.l.b16 %v6414
  %v6948 = vunpack.c.l.b16 %v6415
  %v6949 = vunpack.c.l.b16 %v6416
  %v6950 = vunpack.c.l.b16 %v6417
  %v6951 = vunpack.c.l.b16 %v6418
  %v6952 = vunpack.c.l.b16 %v6419
  %v6953 = vunpack.c.l.b16 %v6420
  %v6954 = vunpack.c.l.b16 %v6421
  %v6955 = vunpack.c.l.b16 %v6422
  %v6956 = vunpack.c.l.b16 %v6423
  %v6957 = vunpack.c.l.b16 %v6424
  %v6958 = vunpack.c.l.b16 %v6425
  %v6959 = vunpack.c.l.b16 %v6426
  %v6960 = vunpack.c.l.b16 %v6427
  %v6961 = vunpack.c.l.b16 %v6428
  %v6962 = vunpack.c.l.b16 %v6429
  %v6963 = vunpack.c.l.b16 %v6430
  %v6964 = vunpack.c.l.b16 %v6431
  %v6965 = vunpack.c.l.b16 %v6432
  %v6966 = vunpack.c.l.b16 %v6433
  %v6967 = vunpack.c.l.b16 %v6434
  %v6968 = vunpack.c.l.b16 %v6435
  %v6969 = vunpack.c.l.b16 %v6436
  %v6970 = vunpack.c.l.b16 %v6437
  %v6971 = vunpack.c.l.b16 %v6438
  %v6972 = vunpack.c.l.b16 %v6439
  %v6973 = vunpack.c.l.b16 %v6440
  %v6974 = vunpack.c.l.b16 %v6441
  %v6975 = vunpack.c.l.b16 %v6442
  %v6976 = vunpack.c.l.b16 %v6443
  %v6977 = vunpack.c.l.b16 %v6444
  %v6978 = vunpack.c.l.b16 %v6445
  %v6979 = vunpack.c.l.b16 %v6446
  %v6980 = vunpack.c.l.b16 %v6447
  %v6981 = vunpack.c.l.b16 %v6448
  %v6982 = vunpack.c.l.b16 %v6449
  %v6983 = vunpack.c.l.b16 %v6450
  %v6984 = vunpack.c.l.b16 %v6451
  %v6985 = vunpack.c.l.b16 %v6452
  %v6986 = vunpack.c.l.b16 %v6453
  %v6987 = vunpack.c.l.b16 %v6454
  %v6988 = vunpack.c.l.b16 %v6455
  %v6989 = vunpack.c.l.b16 %v6456
  %v6990 = vunpack.c.l.b16 %v6457
  %v6991 = vunpack.c.l.b16 %v6458
  %v6992 = vunpack.c.l.b16 %v6459
  %v6993 = vunpack.c.l.b16 %v6460
  %v6994 = vunpack.c.l.b16 %v6461
  %v6995 = vunpack.c.l.b16 %v6462
  %v6996 = vunpack.c.l.b16 %v6463
  %v6997 = vunpack.c.l.b16 %v6464
  %v6998 = vunpack.c.l.b16 %v6465
  %v6999 = vunpack.c.l.b16 %v6466
  %v7000 = vunpack.c.l.b16 %v6467
  %v7001 = vunpack.c.l.b16 %v6468
  %v7002 = vunpack.c.l.b16 %v6469
  %v7003 = vunpack.c.l.b16 %v6470
  %v7004 = vunpack.c.l.b16 %v6471
  %v7005 = vunpack.c.l.b16 %v6472
  %v7006 = vunpack.c.l.b16 %v6473
  %v7007 = vunpack.c.l.b16 %v6474
  %v7008 = vunpack.c.l.b16 %v6475
  %v7009 = vunpack.c.l.b16 %v6476
  %v7010 = vunpack.c.l.b16 %v6477
  %v7011 = vunpack.c.l.b16 %v6478
  %v7012 = vunpack.c.l.b16 %v6479
  %v7013 = vunpack.c.l.b16 %v6480
  %v7014 = vunpack.c.l.b16 %v6481
  %v7015 = vunpack.c.l.b16 %v6482
  %v7016 = vunpack.c.l.b16 %v6483
  %v7017 = vunpack.c.l.b16 %v6484
  %v7018 = vunpack.c.l.b16 %v6485
  %v7019 = vunpack.c.l.b16 %v6486
  %v7020 = vunpack.c.l.b16 %v6487
  %v7021 = vunpack.c.l.b16 %v6488
  %v7022 = vunpack.c.l.b16 %v6489
  %v7023 = vunpack.c.l.b16 %v6490
  %v7024 = vunpack.c.l.b16 %v6491
  %v7025 = vunpack.c.l.b16 %v6492
  %v7026 = vunpack.c.l.b16 %v6493
  %v7027 = vunpack.c.l.b16 %v6494
  %v7028 = vunpack.c.l.b16 %v6495
  %v7029 = vunpack.c.l.b16 %v6496
  %v7030 = vunpack.c.l.b16 %v6497
  %v7031 = vunpack.c.l.b16 %v6498
  %v7032 = vunpack.c.l.b16 %v6499
  %v7033 = vunpack.c.l.b16 %v6500
  %v7034 = vunpack.c.l.b16 %v6501
  %v7035 = vunpack.c.l.b16 %v6502
  %v7036 = vunpack.c.l.b16 %v6503
  %v7037 = vunpack.c.l.b16 %v6504
  %v7038 = vunpack.c.l.b16 %v6505
  %v7039 = vunpack.c.l.b16 %v6506
  %v7040 = vunpack.c.l.b16 %v6507
  %v7041 = vunpack.c.l.b16 %v6508
  %v7042 = vunpack.c.l.b16 %v6509
  %v7043 = vunpack.c.l.b16 %v6510
  %v7044 = vunpack.c.l.b16 %v6511
  %v7045 = vunpack.c.l.b16 %v6512
  %v7046 = vunpack.c.l.b16 %v6513
  %v7047 = vunpack.c.l.b16 %v6514
  %v7048 = vunpack.c.l.b16 %v6515
  %v7049 = vunpack.c.l.b16 %v6516
  %v7050 = vunpack.c.l.b16 %v6517
  %v7051 = vunpack.c.l.b16 %v6518
  %v7052 = vunpack.c.l.b16 %v6519
  %v7053 = vunpack.c.l.b16 %v6520
  %v7054 = vunpack.c.l.b16 %v6521
  %v7055 = vunpack.c.l.b16 %v6522
  %v7056 = vunpack.c.l.b16 %v6523
  %v7057 = vunpack.c.l.b16 %v6524
  %v7058 = vunpack.c.l.b16 %v6525
  %v7059 = vunpack.c.l.b16 %v6526
  %v7060 = vunpack.c.l.b16 %v6527
  %v7061 = vunpack.c.l.b16 %v6528
  %v7062 = vunpack.c.l.b16 %v6529
  %v7063 = vunpack.c.l.b16 %v6530
  %v7064 = vunpack.c.l.b16 %v6531
  %v7065 = vunpack.c.l.b16 %v6532
  %v7066 = vunpack.c.l.b16 %v6533
  %v7067 = vunpack.c.l.b16 %v6534
  %v7068 = vunpack.c.l.b16 %v6535
  %v7069 = vunpack.c.l.b16 %v6536
  %v7070 = vunpack.c.l.b16 %v6537
  %v7071 = vunpack.c.l.b16 %v6538
  %v7072 = vunpack.c.l.b16 %v6539
  %v7073 = vunpack.c.l.b16 %v6540
  %v7074 = vunpack.c.l.b16 %v6541
  %v7075 = vunpack.c.l.b16 %v6542
  %v7076 = vunpack.c.l.b16 %v6543
  %v7077 = vunpack.c.l.b16 %v6544
  %v7078 = vunpack.c.l.b16 %v6545
  %v7079 = vunpack.c.l.b16 %v6546
  %v7080 = vunpack.c.l.b16 %v6547
  %v7081 = vpack.c.b16 %v6826, %v6825
  %v7082 = vpack.c.b16 %v6828, %v6827
  %v7083 = vpack.c.b16 %v6830, %v6829
  %v7084 = vpack.c.b16 %v6832, %v6831
  %v7085 = vpack.c.b16 %v6834, %v6833
  %v7086 = vpack.c.b16 %v6836, %v6835
  %v7087 = vpack.c.b16 %v6838, %v6837
  %v7088 = vpack.c.b16 %v6840, %v6839
  %v7089 = vpack.c.b16 %v6842, %v6841
  %v7090 = vpack.c.b16 %v6844, %v6843
  %v7091 = vpack.c.b16 %v6846, %v6845
  %v7092 = vpack.c.b16 %v6848, %v6847
  %v7093 = vpack.c.b16 %v6850, %v6849
  %v7094 = vpack.c.b16 %v6852, %v6851
  %v7095 = vpack.c.b16 %v6854, %v6853
  %v7096 = vpack.c.b16 %v6856, %v6855
  %v7097 = vpack.c.b16 %v6858, %v6857
  %v7098 = vpack.c.b16 %v6860, %v6859
  %v7099 = vpack.c.b16 %v6862, %v6861
  %v7100 = vpack.c.b16 %v6864, %v6863
  %v7101 = vpack.c.b16 %v6866, %v6865
  %v7102 = vpack.c.b16 %v6868, %v6867
  %v7103 = vpack.c.b16 %v6870, %v6869
  %v7104 = vpack.c.b16 %v6872, %v6871
  %v7105 = vpack.c.b16 %v6874, %v6873
  %v7106 = vpack.c.b16 %v6876, %v6875
  %v7107 = vpack.c.b16 %v6878, %v6877
  %v7108 = vpack.c.b16 %v6880, %v6879
  %v7109 = vpack.c.b16 %v6882, %v6881
  %v7110 = vpack.c.b16 %v6884, %v6883
  %v7111 = vpack.c.b16 %v6886, %v6885
  %v7112 = vpack.c.b16 %v6888, %v6887
  %v7113 = vpack.c.b16 %v6890, %v6889
  %v7114 = vpack.c.b16 %v6892, %v6891
  %v7115 = vpack.c.b16 %v6894, %v6893
  %v7116 = vpack.c.b16 %v6896, %v6895
  %v7117 = vpack.c.b16 %v6898, %v6897
  %v7118 = vpack.c.b16 %v6900, %v6899
  %v7119 = vpack.c.b16 %v6902, %v6901
  %v7120 = vpack.c.b16 %v6904, %v6903
  %v7121 = vpack.c.b16 %v6906, %v6905
  %v7122 = vpack.c.b16 %v6908, %v6907
  %v7123 = vpack.c.b16 %v6910, %v6909
  %v7124 = vpack.c.b16 %v6912, %v6911
  %v7125 = vpack.c.b16 %v6914, %v6913
  %v7126 = vpack.c.b16 %v6916, %v6915
  %v7127 = vpack.c.b16 %v6918, %v6917
  %v7128 = vpack.c.b16 %v6920, %v6919
  %v7129 = vpack.c.b16 %v6922, %v6921
  %v7130 = vpack.c.b16 %v6924, %v6923
  %v7131 = vpack.c.b16 %v6926, %v6925
  %v7132 = vpack.c.b16 %v6928, %v6927
  %v7133 = vpack.c.b16 %v6930, %v6929
  %v7134 = vpack.c.b16 %v6932, %v6931
  %v7135 = vpack.c.b16 %v6934, %v6933
  %v7136 = vpack.c.b16 %v6936, %v6935
  %v7137 = vpack.c.b16 %v6938, %v6937
  %v7138 = vpack.c.b16 %v6940, %v6939
  %v7139 = vpack.c.b16 %v6942, %v6941
  %v7140 = vpack.c.b16 %v6944, %v6943
  %v7141 = vpack.c.b16 %v6946, %v6945
  %v7142 = vpack.c.b16 %v6948, %v6947
  %v7143 = vpack.c.b16 %v6950, %v6949
  %v7144 = vpack.c.b16 %v6952, %v6951
  %v7145 = vpack.c.b16 %v6954, %v6953
  %v7146 = vpack.c.b16 %v6956, %v6955
  %v7147 = vpack.c.b16 %v6958, %v6957
  %v7148 = vpack.c.b16 %v6960, %v6959
  %v7149 = vpack.c.b16 %v6962, %v6961
  %v7150 = vpack.c.b16 %v6964, %v6963
  %v7151 = vpack.c.b16 %v6966, %v6965
  %v7152 = vpack.c.b16 %v6968, %v6967
  %v7153 = vpack.c.b16 %v6970, %v6969
  %v7154 = vpack.c.b16 %v6972, %v6971
  %v7155 = vpack.c.b16 %v6974, %v6973
  %v7156 = vpack.c.b16 %v6976, %v6975
  %v7157 = vpack.c.b16 %v6978, %v6977
  %v7158 = vpack.c.b16 %v6980, %v6979
  %v7159 = vpack.c.b16 %v6982, %v6981
  %v7160 = vpack.c.b16 %v6984, %v6983
  %v7161 = vpack.c.b16 %v6986, %v6985
  %v7162 = vpack.c.b16 %v6988, %v6987
  %v7163 = vpack.c.b16 %v6990, %v6989
  %v7164 = vpack.c.b16 %v6992, %v6991
  %v7165 = vpack.c.b16 %v6994, %v6993
  %v7166 = vpack.c.b16 %v6996, %v6995
  %v7167 = vpack.c.b16 %v6998, %v6997
  %v7168 = vpack.c.b16 %v7000, %v6999
  %v7169 = vpack.c.b16 %v7002, %v7001
  %v7170 = vpack.c.b16 %v7004, %v7003
  %v7171 = vpack.c.b16 %v7006, %v7005
  %v7172 = vpack.c.b16 %v7008, %v7007
  %v7173 = vpack.c.b16 %v7010, %v7009
  %v7174 = vpack.c.b16 %v7012, %v7011
  %v7175 = vpack.c.b16 %v7014, %v7013
  %v7176 = vpack.c.b16 %v7016, %v7015
  %v7177 = vpack.c.b16 %v7018, %v7017
  %v7178 = vpack.c.b16 %v7020, %v7019
  %v7179 = vpack.c.b16 %v7022, %v7021
  %v7180 = vpack.c.b16 %v7024, %v7023
  %v7181 = vpack.c.b16 %v7026, %v7025
  %v7182 = vpack.c.b16 %v7028, %v7027
  %v7183 = vpack.c.b16 %v7030, %v7029
  %v7184 = vpack.c.b16 %v7032, %v7031
  %v7185 = vpack.c.b16 %v7034, %v7033
  %v7186 = vpack.c.b16 %v7036, %v7035
  %v7187 = vpack.c.b16 %v7038, %v7037
  %v7188 = vpack.c.b16 %v7040, %v7039
  %v7189 = vpack.c.b16 %v7042, %v7041
  %v7190 = vpack.c.b16 %v7044, %v7043
  %v7191 = vpack.c.b16 %v7046, %v7045
  %v7192 = vpack.c.b16 %v7048, %v7047
  %v7193 = vpack.c.b16 %v7050, %v7049
  %v7194 = vpack.c.b16 %v7052, %v7051
  %v7195 = vpack.c.b16 %v7054, %v7053
  %v7196 = vpack.c.b16 %v7056, %v7055
  %v7197 = vpack.c.b16 %v7058, %v7057
  %v7198 = vpack.c.b16 %v7060, %v7059
  %v7199 = vpack.c.b16 %v7062, %v7061
  %v7200 = vpack.c.b16 %v7064, %v7063
  %v7201 = vpack.c.b16 %v7066, %v7065
  %v7202 = vpack.c.b16 %v7068, %v7067
  %v7203 = vpack.c.b16 %v7070, %v7069
  %v7204 = vpack.c.b16 %v7072, %v7071
  %v7205 = vpack.c.b16 %v7074, %v7073
  %v7206 = vpack.c.b16 %v7076, %v7075
  %v7207 = vpack.c.b16 %v7078, %v7077
  %v7208 = vpack.c.b16 %v7080, %v7079
  %7337 = vmatprep.subr.bf16.mxu0 0
  %7338 = vmatpush1.bf16.msra.mxu0 %v7081
  %7339 = vmatprep.subr.bf16.mxu0 0
  %7340 = vmatpush1.bf16.msra.mxu0 %v7082
  %7341 = vmatprep.subr.bf16.mxu0 0
  %7342 = vmatpush1.bf16.msra.mxu0 %v7083
  %7343 = vmatprep.subr.bf16.mxu0 0
  %7344 = vmatpush1.bf16.msra.mxu0 %v7084
  %7345 = vmatprep.subr.bf16.mxu0 0
  %7346 = vmatpush1.bf16.msra.mxu0 %v7085
  %7347 = vmatprep.subr.bf16.mxu0 0
  %7348 = vmatpush1.bf16.msra.mxu0 %v7086
  %7349 = vmatprep.subr.bf16.mxu0 0
  %7350 = vmatpush1.bf16.msra.mxu0 %v7087
  %7351 = vmatprep.subr.bf16.mxu0 0
  %7352 = vmatpush1.bf16.msra.mxu0 %v7088
  %7353 = vmatprep.subr.bf16.mxu0 0
  %7354 = vmatpush1.bf16.msra.mxu0 %v7089
  %7355 = vmatprep.subr.bf16.mxu0 0
  %7356 = vmatpush1.bf16.msra.mxu0 %v7090
  %7357 = vmatprep.subr.bf16.mxu0 0
  %7358 = vmatpush1.bf16.msra.mxu0 %v7091
  %7359 = vmatprep.subr.bf16.mxu0 0
  %7360 = vmatpush1.bf16.msra.mxu0 %v7092
  %7361 = vmatprep.subr.bf16.mxu0 0
  %7362 = vmatpush1.bf16.msra.mxu0 %v7093
  %7363 = vmatprep.subr.bf16.mxu0 0
  %7364 = vmatpush1.bf16.msra.mxu0 %v7094
  %7365 = vmatprep.subr.bf16.mxu0 0
  %7366 = vmatpush1.bf16.msra.mxu0 %v7095
  %7367 = vmatprep.subr.bf16.mxu0 0
  %7368 = vmatpush1.bf16.msra.mxu0 %v7096
  %7369 = vmatprep.mubr.bf16.mxu0 %v6549
  %7370 = vmatmul.mubr.bf16.gmra.mrb[0].mxu0 %v6548
  %v7371 = vpop.f32.mrb[0].mxu0
  %v7372 = vadd.f32 %v6568, %v7371
  %v7373 = vpop.f32.mrb[0].mxu0
  %v7374 = vpop.f32.mrb[0].mxu0
  %v7375 = vadd.f32 %v6568, %v7374
  %v7376 = vpop.f32.mrb[0].mxu0
  %7377 = vdwg.mxu0
  %7378 = vmatprep.subr.bf16.mxu0 0
  %7379 = vmatpush1.bf16.msra.mxu0 %v7097
  %7380 = vmatprep.subr.bf16.mxu0 0
  %7381 = vmatpush1.bf16.msra.mxu0 %v7098
  %7382 = vmatprep.subr.bf16.mxu0 0
  %7383 = vmatpush1.bf16.msra.mxu0 %v7099
  %7384 = vmatprep.subr.bf16.mxu0 0
  %7385 = vmatpush1.bf16.msra.mxu0 %v7100
  %7386 = vmatprep.subr.bf16.mxu0 0
  %7387 = vmatpush1.bf16.msra.mxu0 %v7101
  %7388 = vmatprep.subr.bf16.mxu0 0
  %7389 = vmatpush1.bf16.msra.mxu0 %v7102
  %7390 = vmatprep.subr.bf16.mxu0 0
  %7391 = vmatpush1.bf16.msra.mxu0 %v7103
  %7392 = vmatprep.subr.bf16.mxu0 0
  %7393 = vmatpush1.bf16.msra.mxu0 %v7104
  %7394 = vmatprep.subr.bf16.mxu0 0
  %7395 = vmatpush1.bf16.msra.mxu0 %v7105
  %7396 = vmatprep.subr.bf16.mxu0 0
  %7397 = vmatpush1.bf16.msra.mxu0 %v7106
  %7398 = vmatprep.subr.bf16.mxu0 0
  %7399 = vmatpush1.bf16.msra.mxu0 %v7107
  %7400 = vmatprep.subr.bf16.mxu0 0
  %7401 = vmatpush1.bf16.msra.mxu0 %v7108
  %7402 = vmatprep.subr.bf16.mxu0 0
  %7403 = vmatpush1.bf16.msra.mxu0 %v7109
  %7404 = vmatprep.subr.bf16.mxu0 0
  %7405 = vmatpush1.bf16.msra.mxu0 %v7110
  %7406 = vmatprep.subr.bf16.mxu0 0
  %7407 = vmatpush1.bf16.msra.mxu0 %v7111
  %7408 = vmatprep.subr.bf16.mxu0 0
  %7409 = vmatpush1.bf16.msra.mxu0 %v7112
  %7410 = vmatprep.mubr.bf16.mxu0 %v6551
  %7411 = vmatmul.mubr.bf16.gmra.mrb[0].mxu0 %v6550
  %v7412 = vpop.f32.mrb[0].mxu0
  %v7413 = vadd.f32 %v7372, %v7412
  %v7414 = vpop.f32.mrb[0].mxu0
  %v7415 = vpop.f32.mrb[0].mxu0
  %v7416 = vadd.f32 %v7375, %v7415
  %v7417 = vpop.f32.mrb[0].mxu0
  %7418 = vdwg.mxu0
  %7419 = vmatprep.subr.bf16.mxu0 0
  %7420 = vmatpush1.bf16.msra.mxu0 %v7113
  %7421 = vmatprep.subr.bf16.mxu0 0
  %7422 = vmatpush1.bf16.msra.mxu0 %v7114
  %7423 = vmatprep.subr.bf16.mxu0 0
  %7424 = vmatpush1.bf16.msra.mxu0 %v7115
  %7425 = vmatprep.subr.bf16.mxu0 0
  %7426 = vmatpush1.bf16.msra.mxu0 %v7116
  %7427 = vmatprep.subr.bf16.mxu0 0
  %7428 = vmatpush1.bf16.msra.mxu0 %v7117
  %7429 = vmatprep.subr.bf16.mxu0 0
  %7430 = vmatpush1.bf16.msra.mxu0 %v7118
  %7431 = vmatprep.subr.bf16.mxu0 0
  %7432 = vmatpush1.bf16.msra.mxu0 %v7119
  %7433 = vmatprep.subr.bf16.mxu0 0
  %7434 = vmatpush1.bf16.msra.mxu0 %v7120
  %7435 = vmatprep.subr.bf16.mxu0 0
  %7436 = vmatpush1.bf16.msra.mxu0 %v7121
  %7437 = vmatprep.subr.bf16.mxu0 0
  %7438 = vmatpush1.bf16.msra.mxu0 %v7122
  %7439 = vmatprep.subr.bf16.mxu0 0
  %7440 = vmatpush1.bf16.msra.mxu0 %v7123
  %7441 = vmatprep.subr.bf16.mxu0 0
  %7442 = vmatpush1.bf16.msra.mxu0 %v7124
  %7443 = vmatprep.subr.bf16.mxu0 0
  %7444 = vmatpush1.bf16.msra.mxu0 %v7125
  %7445 = vmatprep.subr.bf16.mxu0 0
  %7446 = vmatpush1.bf16.msra.mxu0 %v7126
  %7447 = vmatprep.subr.bf16.mxu0 0
  %7448 = vmatpush1.bf16.msra.mxu0 %v7127
  %7449 = vmatprep.subr.bf16.mxu0 0
  %7450 = vmatpush1.bf16.msra.mxu0 %v7128
  %7451 = vmatprep.mubr.bf16.mxu0 %v6553
  %7452 = vmatmul.mubr.bf16.gmra.mrb[0].mxu0 %v6552
  %v7453 = vpop.f32.mrb[0].mxu0
  %v7454 = vadd.f32 %v7413, %v7453
  %v7455 = vpop.f32.mrb[0].mxu0
  %v7456 = vpop.f32.mrb[0].mxu0
  %v7457 = vadd.f32 %v7416, %v7456
  %v7458 = vpop.f32.mrb[0].mxu0
  %7459 = vdwg.mxu0
  %7460 = vmatprep.subr.bf16.mxu0 0
  %7461 = vmatpush1.bf16.msra.mxu0 %v7129
  %7462 = vmatprep.subr.bf16.mxu0 0
  %7463 = vmatpush1.bf16.msra.mxu0 %v7130
  %7464 = vmatprep.subr.bf16.mxu0 0
  %7465 = vmatpush1.bf16.msra.mxu0 %v7131
  %7466 = vmatprep.subr.bf16.mxu0 0
  %7467 = vmatpush1.bf16.msra.mxu0 %v7132
  %7468 = vmatprep.subr.bf16.mxu0 0
  %7469 = vmatpush1.bf16.msra.mxu0 %v7133
  %7470 = vmatprep.subr.bf16.mxu0 0
  %7471 = vmatpush1.bf16.msra.mxu0 %v7134
  %7472 = vmatprep.subr.bf16.mxu0 0
  %7473 = vmatpush1.bf16.msra.mxu0 %v7135
  %7474 = vmatprep.subr.bf16.mxu0 0
  %7475 = vmatpush1.bf16.msra.mxu0 %v7136
  %7476 = vmatprep.subr.bf16.mxu0 0
  %7477 = vmatpush1.bf16.msra.mxu0 %v7137
  %7478 = vmatprep.subr.bf16.mxu0 0
  %7479 = vmatpush1.bf16.msra.mxu0 %v7138
  %7480 = vmatprep.subr.bf16.mxu0 0
  %7481 = vmatpush1.bf16.msra.mxu0 %v7139
  %7482 = vmatprep.subr.bf16.mxu0 0
  %7483 = vmatpush1.bf16.msra.mxu0 %v7140
  %7484 = vmatprep.subr.bf16.mxu0 0
  %7485 = vmatpush1.bf16.msra.mxu0 %v7141
  %7486 = vmatprep.subr.bf16.mxu0 0
  %7487 = vmatpush1.bf16.msra.mxu0 %v7142
  %7488 = vmatprep.subr.bf16.mxu0 0
  %7489 = vmatpush1.bf16.msra.mxu0 %v7143
  %7490 = vmatprep.subr.bf16.mxu0 0
  %7491 = vmatpush1.bf16.msra.mxu0 %v7144
  %7492 = vmatprep.mubr.bf16.mxu0 %v6555
  %7493 = vmatmul.mubr.bf16.gmra.mrb[0].mxu0 %v6554
  %v7494 = vpop.f32.mrb[0].mxu0
  %v7495 = vadd.f32 %v7454, %v7494
  %v7496 = vpop.f32.mrb[0].mxu0
  %v7497 = vpop.f32.mrb[0].mxu0
  %v7498 = vadd.f32 %v7457, %v7497
  %v7499 = vpop.f32.mrb[0].mxu0
  %7500 = vdwg.mxu0
  %7501 = vmatprep.subr.bf16.mxu0 0
  %7502 = vmatpush1.bf16.msra.mxu0 %v7145
  %7503 = vmatprep.subr.bf16.mxu0 0
  %7504 = vmatpush1.bf16.msra.mxu0 %v7146
  %7505 = vmatprep.subr.bf16.mxu0 0
  %7506 = vmatpush1.bf16.msra.mxu0 %v7147
  %7507 = vmatprep.subr.bf16.mxu0 0
  %7508 = vmatpush1.bf16.msra.mxu0 %v7148
  %7509 = vmatprep.subr.bf16.mxu0 0
  %7510 = vmatpush1.bf16.msra.mxu0 %v7149
  %7511 = vmatprep.subr.bf16.mxu0 0
  %7512 = vmatpush1.bf16.msra.mxu0 %v7150
  %7513 = vmatprep.subr.bf16.mxu0 0
  %7514 = vmatpush1.bf16.msra.mxu0 %v7151
  %7515 = vmatprep.subr.bf16.mxu0 0
  %7516 = vmatpush1.bf16.msra.mxu0 %v7152
  %7517 = vmatprep.subr.bf16.mxu0 0
  %7518 = vmatpush1.bf16.msra.mxu0 %v7153
  %7519 = vmatprep.subr.bf16.mxu0 0
  %7520 = vmatpush1.bf16.msra.mxu0 %v7154
  %7521 = vmatprep.subr.bf16.mxu0 0
  %7522 = vmatpush1.bf16.msra.mxu0 %v7155
  %7523 = vmatprep.subr.bf16.mxu0 0
  %7524 = vmatpush1.bf16.msra.mxu0 %v7156
  %7525 = vmatprep.subr.bf16.mxu0 0
  %7526 = vmatpush1.bf16.msra.mxu0 %v7157
  %7527 = vmatprep.subr.bf16.mxu0 0
  %7528 = vmatpush1.bf16.msra.mxu0 %v7158
  %7529 = vmatprep.subr.bf16.mxu0 0
  %7530 = vmatpush1.bf16.msra.mxu0 %v7159
  %7531 = vmatprep.subr.bf16.mxu0 0
  %7532 = vmatpush1.bf16.msra.mxu0 %v7160
  %7533 = vmatprep.mubr.bf16.mxu0 %v6557
  %7534 = vmatmul.mubr.bf16.gmra.mrb[0].mxu0 %v6556
  %v7535 = vpop.f32.mrb[0].mxu0
  %v7536 = vadd.f32 %v7495, %v7535
  %v7537 = vpop.f32.mrb[0].mxu0
  %v7538 = vpop.f32.mrb[0].mxu0
  %v7539 = vadd.f32 %v7498, %v7538
  %v7540 = vpop.f32.mrb[0].mxu0
  %7541 = vdwg.mxu0
  %7542 = vmatprep.subr.bf16.mxu0 0
  %7543 = vmatpush1.bf16.msra.mxu0 %v7161
  %7544 = vmatprep.subr.bf16.mxu0 0
  %7545 = vmatpush1.bf16.msra.mxu0 %v7162
  %7546 = vmatprep.subr.bf16.mxu0 0
  %7547 = vmatpush1.bf16.msra.mxu0 %v7163
  %7548 = vmatprep.subr.bf16.mxu0 0
  %7549 = vmatpush1.bf16.msra.mxu0 %v7164
  %7550 = vmatprep.subr.bf16.mxu0 0
  %7551 = vmatpush1.bf16.msra.mxu0 %v7165
  %7552 = vmatprep.subr.bf16.mxu0 0
  %7553 = vmatpush1.bf16.msra.mxu0 %v7166
  %7554 = vmatprep.subr.bf16.mxu0 0
  %7555 = vmatpush1.bf16.msra.mxu0 %v7167
  %7556 = vmatprep.subr.bf16.mxu0 0
  %7557 = vmatpush1.bf16.msra.mxu0 %v7168
  %7558 = vmatprep.subr.bf16.mxu0 0
  %7559 = vmatpush1.bf16.msra.mxu0 %v7169
  %7560 = vmatprep.subr.bf16.mxu0 0
  %7561 = vmatpush1.bf16.msra.mxu0 %v7170
  %7562 = vmatprep.subr.bf16.mxu0 0
  %7563 = vmatpush1.bf16.msra.mxu0 %v7171
  %7564 = vmatprep.subr.bf16.mxu0 0
  %7565 = vmatpush1.bf16.msra.mxu0 %v7172
  %7566 = vmatprep.subr.bf16.mxu0 0
  %7567 = vmatpush1.bf16.msra.mxu0 %v7173
  %7568 = vmatprep.subr.bf16.mxu0 0
  %7569 = vmatpush1.bf16.msra.mxu0 %v7174
  %7570 = vmatprep.subr.bf16.mxu0 0
  %7571 = vmatpush1.bf16.msra.mxu0 %v7175
  %7572 = vmatprep.subr.bf16.mxu0 0
  %7573 = vmatpush1.bf16.msra.mxu0 %v7176
  %7574 = vmatprep.mubr.bf16.mxu0 %v6559
  %7575 = vmatmul.mubr.bf16.gmra.mrb[0].mxu0 %v6558
  %v7576 = vpop.f32.mrb[0].mxu0
  %v7577 = vadd.f32 %v7536, %v7576
  %v7578 = vpop.f32.mrb[0].mxu0
  %v7579 = vpop.f32.mrb[0].mxu0
  %v7580 = vadd.f32 %v7539, %v7579
  %v7581 = vpop.f32.mrb[0].mxu0
  %7582 = vdwg.mxu0
  %7583 = vmatprep.subr.bf16.mxu0 0
  %7584 = vmatpush1.bf16.msra.mxu0 %v7177
  %7585 = vmatprep.subr.bf16.mxu0 0
  %7586 = vmatpush1.bf16.msra.mxu0 %v7178
  %7587 = vmatprep.subr.bf16.mxu0 0
  %7588 = vmatpush1.bf16.msra.mxu0 %v7179
  %7589 = vmatprep.subr.bf16.mxu0 0
  %7590 = vmatpush1.bf16.msra.mxu0 %v7180
  %7591 = vmatprep.subr.bf16.mxu0 0
  %7592 = vmatpush1.bf16.msra.mxu0 %v7181
  %7593 = vmatprep.subr.bf16.mxu0 0
  %7594 = vmatpush1.bf16.msra.mxu0 %v7182
  %7595 = vmatprep.subr.bf16.mxu0 0
  %7596 = vmatpush1.bf16.msra.mxu0 %v7183
  %7597 = vmatprep.subr.bf16.mxu0 0
  %7598 = vmatpush1.bf16.msra.mxu0 %v7184
  %7599 = vmatprep.subr.bf16.mxu0 0
  %7600 = vmatpush1.bf16.msra.mxu0 %v7185
  %7601 = vmatprep.subr.bf16.mxu0 0
  %7602 = vmatpush1.bf16.msra.mxu0 %v7186
  %7603 = vmatprep.subr.bf16.mxu0 0
  %7604 = vmatpush1.bf16.msra.mxu0 %v7187
  %7605 = vmatprep.subr.bf16.mxu0 0
  %7606 = vmatpush1.bf16.msra.mxu0 %v7188
  %7607 = vmatprep.subr.bf16.mxu0 0
  %7608 = vmatpush1.bf16.msra.mxu0 %v7189
  %7609 = vmatprep.subr.bf16.mxu0 0
  %7610 = vmatpush1.bf16.msra.mxu0 %v7190
  %7611 = vmatprep.subr.bf16.mxu0 0
  %7612 = vmatpush1.bf16.msra.mxu0 %v7191
  %7613 = vmatprep.subr.bf16.mxu0 0
  %7614 = vmatpush1.bf16.msra.mxu0 %v7192
  %7615 = vmatprep.mubr.bf16.mxu0 %v6561
  %7616 = vmatmul.mubr.bf16.gmra.mrb[0].mxu0 %v6560
  %v7617 = vpop.f32.mrb[0].mxu0
  %v7618 = vadd.f32 %v7577, %v7617
  %v7619 = vpop.f32.mrb[0].mxu0
  %v7620 = vpop.f32.mrb[0].mxu0
  %v7621 = vadd.f32 %v7580, %v7620
  %v7622 = vpop.f32.mrb[0].mxu0
  %7623 = vdwg.mxu0
  %7624 = vmatprep.subr.bf16.mxu0 0
  %7625 = vmatpush1.bf16.msra.mxu0 %v7193
  %7626 = vmatprep.subr.bf16.mxu0 0
  %7627 = vmatpush1.bf16.msra.mxu0 %v7194
  %7628 = vmatprep.subr.bf16.mxu0 0
  %7629 = vmatpush1.bf16.msra.mxu0 %v7195
  %7630 = vmatprep.subr.bf16.mxu0 0
  %7631 = vmatpush1.bf16.msra.mxu0 %v7196
  %7632 = vmatprep.subr.bf16.mxu0 0
  %7633 = vmatpush1.bf16.msra.mxu0 %v7197
  %7634 = vmatprep.subr.bf16.mxu0 0
  %7635 = vmatpush1.bf16.msra.mxu0 %v7198
  %7636 = vmatprep.subr.bf16.mxu0 0
  %7637 = vmatpush1.bf16.msra.mxu0 %v7199
  %7638 = vmatprep.subr.bf16.mxu0 0
  %7639 = vmatpush1.bf16.msra.mxu0 %v7200
  %7640 = vmatprep.subr.bf16.mxu0 0
  %7641 = vmatpush1.bf16.msra.mxu0 %v7201
  %7642 = vmatprep.subr.bf16.mxu0 0
  %7643 = vmatpush1.bf16.msra.mxu0 %v7202
  %7644 = vmatprep.subr.bf16.mxu0 0
  %7645 = vmatpush1.bf16.msra.mxu0 %v7203
  %7646 = vmatprep.subr.bf16.mxu0 0
  %7647 = vmatpush1.bf16.msra.mxu0 %v7204
  %7648 = vmatprep.subr.bf16.mxu0 0
  %7649 = vmatpush1.bf16.msra.mxu0 %v7205
  %7650 = vmatprep.subr.bf16.mxu0 0
  %7651 = vmatpush1.bf16.msra.mxu0 %v7206
  %7652 = vmatprep.subr.bf16.mxu0 0
  %7653 = vmatpush1.bf16.msra.mxu0 %v7207
  %7654 = vmatprep.subr.bf16.mxu0 0
  %7655 = vmatpush1.bf16.msra.mxu0 %v7208
  %7656 = vmatprep.mubr.bf16.mxu0 %v6563
  %7657 = vmatmul.mubr.bf16.gmra.mrb[0].mxu0 %v6562
  %v7658 = vpop.f32.mrb[0].mxu0
  %v7659 = vadd.f32 %v7618, %v7658
  %v7660 = vpop.f32.mrb[0].mxu0
  %v7661 = vpop.f32.mrb[0].mxu0
  %v7662 = vadd.f32 %v7621, %v7661
  %v7663 = vpop.f32.mrb[0].mxu0
  %7664 = vdwg.mxu0
  %v7665 = vadd.f32 %v5630, %v7659
  %v7666 = vadd.f32 %v5631, %v7662
  %v7667 = vld [vmem:[%s5387 + $0x2] sm:$0x1]
  %v7668 = vld [vmem:[%s5389 + $0x2] sm:$0x1]
  %v7669 = vsel %vm89, %v7665, 0.0
  %7670 = vadd.xlane.f32.xlu0 %v7669
  %v7671 = vpop.xlane.xlu0 %7670
  %v7672 = vsel %vm89, %v7666, 0.0
  %7673 = vadd.xlane.f32.xlu0 %v7672
  %v7674 = vpop.xlane.xlu0 %7673
  %v7675 = vmul.f32 %v7671, %v1577
  %v7676 = vmul.f32 %v7674, %v1577
  %v7677 = vsub.f32 %v7665, %v7675
  %v7678 = vsub.f32 %v7666, %v7676
  %v7679 = vmul.f32 %v7677, %v7677
  %v7680 = vmul.f32 %v7678, %v7678
  %v7681 = vsel %vm89, %v7679, 0.0
  %7682 = vadd.xlane.f32.xlu0 %v7681
  %v7683 = vpop.xlane.xlu0 %7682
  %v7684 = vsel %vm89, %v7680, 0.0
  %7685 = vadd.xlane.f32.xlu0 %v7684
  %v7686 = vpop.xlane.xlu0 %7685
  %v7687 = vmul.f32 %v7683, %v1577
  %v7688 = vmul.f32 %v7686, %v1577
  %v7689 = vadd.f32 %v7687, 1e-05
  %v7690 = vadd.f32 %v7688, 1e-05
  %v7691 = vrsqrt.pop %v7689
  %v7692 = vrsqrt.pop %v7690
  %v7693 = vmul.f32 %v7677, %v7691
  %v7694 = vmul.f32 %v7678, %v7692
  %v7695 = vlaneseq
  %v7696 = vshrl.u32 %v7695, 7
  %v7697 = vsub.s32 0, %v7696
  %v7698 = vrot.slane %v7667, %v7697
  %v7699 = vmul.f32 %v7693, %v7698
  %v7700 = vmul.f32 %v7694, %v7698
  %v7701 = vlaneseq
  %v7702 = vshrl.u32 %v7701, 7
  %v7703 = vsub.s32 0, %v7702
  %v7704 = vrot.slane %v7668, %v7703
  %v7705 = vadd.f32 %v7699, %v7704
  %v7706 = vadd.f32 %v7700, %v7704
  %v7707 = vld [vmem:[%s17] sm:$0xf]
  %v7708 = vld [vmem:[%s17 + $0x4] sm:$0xf]
  %v7709 = vld [vmem:[%s17 + $0x8] sm:$0xf]
  %v7710 = vld [vmem:[%s17 + $0xc] sm:$0xf]
  %v7711 = vpack.c.bf16 %v7706, %v7705
  %v7712 = vld [vmem:[%s18] sm:$0x1]
  %v7714 = vlaneseq
  %v7715 = vshrl.u32 %v7714, 7
  %v7716 = vsub.s32 0, %v7715
  %v7717 = vrot.slane %v7712, %v7716
  %v7723 = vunpack.c.l.b16 %v7707
  %v7724 = vunpack.c.l.b16 %v7708
  %v7725 = vunpack.c.l.b16 %v7709
  %v7726 = vunpack.c.l.b16 %v7710
  %v7727 = vpack.c.b16 %v7724, %v7723
  %v7728 = vpack.c.b16 %v7726, %v7725
  %v7732 = vsel %vm89, %v7711, 0
  %7734 = vmatprep.subr.bf16.mxu0 0
  %7735 = vmatpush1.bf16.msra.mxu0 %v7727
  %7736 = vmatprep.subr.bf16.mxu0 0
  %7737 = vmatpush1.bf16.msra.mxu0 %v7728
  %7738 = vmatprep.subr.bf16.mxu0 0
  %7739 = vmatpush1.bf16.msra.mxu0 0
  %7740 = vmatprep.subr.bf16.mxu0 0
  %7741 = vmatpush1.bf16.msra.mxu0 0
  %7742 = vmatprep.subr.bf16.mxu0 0
  %7743 = vmatpush1.bf16.msra.mxu0 0
  %7744 = vmatprep.subr.bf16.mxu0 0
  %7745 = vmatpush1.bf16.msra.mxu0 0
  %7746 = vmatprep.subr.bf16.mxu0 0
  %7747 = vmatpush1.bf16.msra.mxu0 0
  %7748 = vmatprep.subr.bf16.mxu0 0
  %7749 = vmatpush1.bf16.msra.mxu0 0
  %7750 = vmatprep.subr.bf16.mxu0 0
  %7751 = vmatpush1.bf16.msra.mxu0 0
  %7752 = vmatprep.subr.bf16.mxu0 0
  %7753 = vmatpush1.bf16.msra.mxu0 0
  %7754 = vmatprep.subr.bf16.mxu0 0
  %7755 = vmatpush1.bf16.msra.mxu0 0
  %7756 = vmatprep.subr.bf16.mxu0 0
  %7757 = vmatpush1.bf16.msra.mxu0 0
  %7758 = vmatprep.subr.bf16.mxu0 0
  %7759 = vmatpush1.bf16.msra.mxu0 0
  %7760 = vmatprep.subr.bf16.mxu0 0
  %7761 = vmatpush1.bf16.msra.mxu0 0
  %7762 = vmatprep.subr.bf16.mxu0 0
  %7763 = vmatpush1.bf16.msra.mxu0 0
  %7764 = vmatprep.subr.bf16.mxu0 0
  %7765 = vmatpush1.bf16.msra.mxu0 0
  %7766 = vmatprep.mubr.bf16.mxu0 0
  %7767 = vmatmul.mubr.bf16.gmra.mrb[0].mxu0 %v7732
  %v7768 = vpop.f32.mrb[0].mxu0
  %v7769 = vadd.f32 %v7717, %v7768
  %v7770 = vpop.f32.mrb[0].mxu0
  %v7771 = vpop.f32.mrb[0].mxu0
  %v7772 = vadd.f32 %v7717, %v7771
  %v7773 = vpop.f32.mrb[0].mxu0
  %7774 = vdwg.mxu0
  %7775 = vst [vmem:[%s19] sm:$0xff] %v7769
  %7776 = vst [vmem:[%s19 + $0x8] sm:$0xff] %v7772
  // Predicated region
  $region78: #{transformers_decoder_forward.1} parent=0 // pred_check
    _
  $region79: #{transformers_decoder_forward.1} parent=0 // pred_check_branch
    %7778 = sbr.rel (0) target = $region81
  $region80: #{transformers_decoder_forward.1} parent=0 // pred_region
    _
  $region81: #{transformers_decoder_forward.1} parent=0 // pred_fallthru
    _
  // Predicated region
  $region82: #{transformers_decoder_forward.1} parent=0 // pred_check
    _
  $region83: #{transformers_decoder_forward.1} parent=0 // pred_check_branch
    %7780 = sbr.rel (0) target = $region85
  $region84: #{transformers_decoder_forward.1} parent=0 // pred_region
    _
  $region85: #{transformers_decoder_forward.1} parent=0 // pred_fallthru
    _

</llo_original>
